<compile_context>
chip_gen: v5e
topology: v5e:2x2
jax: 0.10.0
libtpu: 0.0.40
codegen_flags: <defaults>
</compile_context>

<pallas_src>
import functools

import jax
import jax.numpy as jnp
from jax.experimental import pallas as pl
from jax.experimental.pallas import tpu as pltpu

# whole-array, VMEM-resident operand (weights / small constants)
_WSPEC = pl.BlockSpec(memory_space=pltpu.MemorySpace.VMEM)


# ----------------------------- fused forward kernel -----------------------------

def _fused_forward_kernel(
    x_ref,                                   # (hs, hs, 12) bf16  space-to-depth input (1 sample)
    w0_ref, b0_ref,                          # stem0  (48, 8) bf16 / (1, 8) f32
    w1_ref, b1_ref,                          # stem1  (72, 8)
    w2_ref, b2_ref,                          # stem2  (72, 16)
    sel_ref,                                 # (hp*hp, hm*hm) f32  one-hot stride-2 subsample
    wf_ref, bf_ref,                          # fused 1x1 convs (16, 24)
    wbd_ref, bbd_ref,                        # block-diag 3x3 (144, 20)
    w22_ref, b22_ref,                        # branch2 second 3x3 (108, 12)
    inv_ref,                                 # (hp*hp, 1) f32  avg-pool divisor (no pad count)
    w3_ref, b3_ref,                          # branch3 1x1 (16, 8)
    wh0_ref, wh1_ref, wh2_ref, wh3_ref,      # last_linear per-branch chunks (Ci, out) bf16
    bh_ref,                                  # (1, out) f32
    o_ref,                                   # (1, out) f32
    s0, s1c, s2, pc, fcv, b2c,               # VMEM scratch activations (f32)
    *, h0, h1, hm, hp,
):
    f32 = jnp.float32

    def conv(src, kh, kw, ho, wo, w_ref, b_ref, relu=True):
        # In-kernel im2col: concatenate the kh*kw shifted windows along the channel axis once
        # and run ONE MXU matmul (K = kh*kw*cin); f32 accumulate, bias + ReLU on the VPU.
        cols = [src[di:di + ho, dj:dj + wo, :]
                for di in range(kh) for dj in range(kw)]
        patch = jnp.concatenate(cols, axis=-1).reshape(ho * wo, -1)
        y = jnp.dot(patch.astype(jnp.bfloat16), w_ref[...],
                    preferred_element_type=f32) + b_ref[...]
        return jnp.maximum(y, 0.0) if relu else y

    # ---------------- inception_v4 stem (reduced width, BN folded) ----------------
    # stem0: 3x3/stride-2 conv expressed exactly as a 2x2/stride-1 conv over the
    # space-to-depth input (layout transform done once on the raw input in the wrapper).
    s0[...] = conv(x_ref, 2, 2, h0, h0, w0_ref, b0_ref).reshape(h0, h0, 8)

    # stem1: 3x3 valid conv; result lands in the interior of a zero-bordered canvas so
    # stem2's pad=1 conv needs no jnp.pad / extra HBM pass.
    s1c[...] = jnp.zeros_like(s1c)
    s1c[1:1 + h1, 1:1 + h1, :] = conv(s0, 3, 3, h1, h1, w1_ref, b1_ref).reshape(h1, h1, 8)

    # stem2: 3x3 pad=1 conv.
    s2[...] = conv(s1c, 3, 3, h1, h1, w2_ref, b2_ref).reshape(h1, h1, 16)

    # 3x3/stride-2 max pool: stride-1 shifted-window maxes (VPU) + one-hot stride-2 row/col
    # subsample as a single tiny MXU matmul (avoids strided loads and XLA glue).
    m = s2[0:hm, 0:hm, :]
    for di in range(3):
        for dj in range(3):
            if di == 0 and dj == 0:
                continue
            m = jnp.maximum(m, s2[di:di + hm, dj:dj + hm, :])
    p = jnp.dot(sel_ref[...], m.reshape(hm * hm, 16), preferred_element_type=f32)  # (hp*hp,16)
    pc[...] = jnp.zeros_like(pc)
    pc[1:1 + hp, 1:1 + hp, :] = p.reshape(hp, hp, 16)

    # ---------------- Inception-A block ----------------
    # The three 1x1 branch convs reading the same input are one fused matmul (cout = 8+8+8).
    fo = jnp.dot(p.astype(jnp.bfloat16), wf_ref[...], preferred_element_type=f32)
    fo = jnp.maximum(fo + bf_ref[...], 0.0)                    # (hp*hp, 24)
    b0_feat = fo[:, 0:8]                                       # branch0 output (1x1)

    # branch1 3x3 and branch2 first 3x3 fused as one block-diagonal conv (cout = 8 + 12).
    fcv[...] = jnp.zeros_like(fcv)
    fcv[1:1 + hp, 1:1 + hp, :] = fo[:, 8:24].reshape(hp, hp, 16)
    bd = conv(fcv, 3, 3, hp, hp, wbd_ref, bbd_ref)             # (hp*hp, 20)
    b1_feat = bd[:, 0:8]                                       # branch1 output

    # branch2 second 3x3.
    b2c[...] = jnp.zeros_like(b2c)
    b2c[1:1 + hp, 1:1 + hp, :] = bd[:, 8:20].reshape(hp, hp, 12)
    b2_feat = conv(b2c, 3, 3, hp, hp, w22_ref, b22_ref)        # (hp*hp, 12)

    # branch3: 3x3/s1 'same' avg pool (count_include_pad=False, static divisor) + 1x1 conv.
    acc = pc[0:hp, 0:hp, :]
    for di in range(3):
        for dj in range(3):
            if di == 0 and dj == 0:
                continue
            acc = acc + pc[di:di + hp, dj:dj + hp, :]
    avg = acc.reshape(hp * hp, 16) * inv_ref[...]
    b3_feat = jnp.dot(avg.astype(jnp.bfloat16), w3_ref[...], preferred_element_type=f32)
    b3_feat = jnp.maximum(b3_feat + b3_ref[...], 0.0)          # (hp*hp, 8)

    # ---------------- head: global average pool + last_linear ----------------
    # Per-branch spatial sums -> four tiny (1,Ci)x(Ci,out) matmuls; no concat tensor and no
    # re-read of feature maps from HBM.
    inv_hw = 1.0 / float(hp * hp)
    out = bh_ref[...]
    for feat, wh_ref in ((b0_feat, wh0_ref), (b1_feat, wh1_ref),
                         (b2_feat, wh2_ref), (b3_feat, wh3_ref)):
        gap = jnp.sum(feat, axis=0, keepdims=True) * inv_hw
        out = out + jnp.dot(gap.astype(jnp.bfloat16), wh_ref[...],
                            preferred_element_type=f32)
    o_ref[...] = out


# ----------------------------- parameters ---------------------------------------

def init_params(key, output_size):
    def conv_p(k, kh, kw, cin, cout):
        k1, k2 = jax.random.split(k)
        return {"w": jax.random.normal(k1, (kh, kw, cin, cout), jnp.float32) * 0.1,
                "b": jax.random.normal(k2, (cout,), jnp.float32) * 0.01}

    keys = jax.random.split(key, 12)
    p = {
        "stem0": conv_p(keys[0], 3, 3, 3, 8),     # conv 3x3 s2
        "stem1": conv_p(keys[1], 3, 3, 8, 8),     # conv 3x3 s1
        "stem2": conv_p(keys[2], 3, 3, 8, 16),    # conv 3x3 s1 pad1
        "a_b0":   conv_p(keys[3], 1, 1, 16, 8),
        "a_b1_0": conv_p(keys[4], 1, 1, 16, 8),
        "a_b1_1": conv_p(keys[5], 3, 3, 8, 8),
        "a_b2_0": conv_p(keys[6], 1, 1, 16, 8),
        "a_b2_1": conv_p(keys[7], 3, 3, 8, 12),
        "a_b2_2": conv_p(keys[8], 3, 3, 12, 12),
        "a_b3":   conv_p(keys[9], 1, 1, 16, 8),
    }
    n_features = 8 + 8 + 12 + 8  # Inception-A branch concat (1536 in the real inception_v4)
    k1, _ = jax.random.split(keys[10])
    p["last_linear"] = {  # the re-initialized, trainable nn.Linear(n_features, output_size)
        "w": jax.random.normal(k1, (output_size, n_features), jnp.float32) * 0.1,
        "b": jnp.zeros((output_size,), jnp.float32),
    }
    return p


# ----------------------------- forward wrapper -----------------------------------

def modified_inception_forward(params, x_nchw):
    n, c, h, w = x_nchw.shape
    assert (c, h, w) == (3, 32, 32), "demo geometry is fixed to 3x32x32 inputs"
    out_dim = params["last_linear"]["b"].shape[0]
    f32, bf16 = jnp.float32, jnp.bfloat16

    # geometry (stem / pool output sizes)
    hs = h // 2              # space-to-depth spatial          (16)
    h0 = hs - 1              # stem0 (3x3/s2 valid) output     (15)
    h1 = h0 - 2              # stem1 / stem2 output            (13)
    hm = h1 - 2              # stride-1 3x3 max-pool output    (11)
    hp = (h1 - 3) // 2 + 1   # stride-2 3x3 max-pool output    (6)

    # One input-boundary layout transform in XLA: NCHW -> space-to-depth NHWC + bf16 cast.
    xs2d = (x_nchw.astype(f32)
            .reshape(n, c, hs, 2, hs, 2)
            .transpose(0, 2, 4, 3, 5, 1)
            .reshape(n, hs, hs, 4 * c)
            .astype(bf16))

    # ----- trace-time constant weight prep (params are closed over -> constant-folded) -----
    def cb(b):
        return b.reshape(1, -1).astype(f32)

    # stem0 weight: zero-pad the 3x3 taps to 4x4 and regroup into the s2d 2x2 layout (exact).
    w0 = (jnp.pad(params["stem0"]["w"], ((0, 1), (0, 1), (0, 0), (0, 0)))
          .reshape(2, 2, 2, 2, c, 8).transpose(0, 2, 1, 3, 4, 5)
          .reshape(2 * 2 * 4 * c, 8).astype(bf16))                       # (48, 8)
    w1 = params["stem1"]["w"].reshape(9 * 8, 8).astype(bf16)             # (72, 8)
    w2 = params["stem2"]["w"].reshape(9 * 8, 16).astype(bf16)            # (72, 16)

    # fused 1x1 convs (branch0 | branch1-in | branch2-in)
    wf = jnp.concatenate([params["a_b0"]["w"], params["a_b1_0"]["w"],
                          params["a_b2_0"]["w"]], axis=-1).reshape(16, 24).astype(bf16)
    bfu = jnp.concatenate([params["a_b0"]["b"], params["a_b1_0"]["b"],
                           params["a_b2_0"]["b"]])

    # block-diagonal fusion of branch1 3x3 (8->8) and branch2 first 3x3 (8->12) (exact)
    wbd = jnp.concatenate(
        [jnp.concatenate([params["a_b1_1"]["w"], jnp.zeros((3, 3, 8, 12), f32)], axis=-1),
         jnp.concatenate([jnp.zeros((3, 3, 8, 8), f32), params["a_b2_1"]["w"]], axis=-1)],
        axis=2).reshape(9 * 16, 20).astype(bf16)                         # (144, 20)
    bbd = jnp.concatenate([params["a_b1_1"]["b"], params["a_b2_1"]["b"]])

    w22 = params["a_b2_2"]["w"].reshape(9 * 12, 12).astype(bf16)         # (108, 12)
    w3 = params["a_b3"]["w"].reshape(16, 8).astype(bf16)                 # (16, 8)

    # one-hot stride-2 subsample of the stride-1 max-pool result (hm x hm -> hp x hp)
    keep = (jnp.arange(hm)[None, :] == (2 * jnp.arange(hp))[:, None]).astype(f32)   # (hp, hm)
    sel = jnp.einsum("ai,bj->abij", keep, keep).reshape(hp * hp, hm * hm)

    # 3x3/s1/pad1 avg-pool divisor, count_include_pad=False (geometry-only constant)
    cnt = jnp.minimum(jnp.arange(hp) + 1, hp - 1) - jnp.maximum(jnp.arange(hp) - 1, 0) + 1
    inv = (1.0 / (cnt[:, None] * cnt[None, :]).astype(f32)).reshape(hp * hp, 1)

    # last_linear split per branch (concat order: b0 | b1 | b2 | b3)
    wl = params["last_linear"]["w"]                                      # (out, 36)
    wh0 = jnp.transpose(wl[:, 0:8]).astype(bf16)
    wh1 = jnp.transpose(wl[:, 8:16]).astype(bf16)
    wh2 = jnp.transpose(wl[:, 16:28]).astype(bf16)
    wh3 = jnp.transpose(wl[:, 28:36]).astype(bf16)
    bh = params["last_linear"]["b"].reshape(1, out_dim).astype(f32)

    out = pl.pallas_call(
        functools.partial(_fused_forward_kernel, h0=h0, h1=h1, hm=hm, hp=hp),
        grid=(n,),
        in_specs=[pl.BlockSpec((pl.Squeezed(), hs, hs, 4 * c),
                               lambda i: (i, 0, 0, 0))] + [_WSPEC] * 21,
        out_specs=pl.BlockSpec((pl.Squeezed(), 1, out_dim), lambda i: (i, 0, 0)),
        out_shape=jax.ShapeDtypeStruct((n, 1, out_dim), f32),
        scratch_shapes=[
            pltpu.VMEM((h0, h0, 8), f32),            # stem0 out
            pltpu.VMEM((h0, h0, 8), f32),            # stem1 out (zero-bordered canvas)
            pltpu.VMEM((h1, h1, 16), f32),           # stem2 out
            pltpu.VMEM((hp + 2, hp + 2, 16), f32),   # max-pool out (canvas)
            pltpu.VMEM((hp + 2, hp + 2, 16), f32),   # fused 1x1 branch1/2 inputs (canvas)
            pltpu.VMEM((hp + 2, hp + 2, 12), f32),   # branch2 mid (canvas)
        ],
        compiler_params=pltpu.CompilerParams(
            dimension_semantics=("parallel",)),      # v7x: shard the batch across both TCs
    )(xs2d, w0, cb(params["stem0"]["b"]), w1, cb(params["stem1"]["b"]),
      w2, cb(params["stem2"]["b"]), sel, wf, cb(bfu), wbd, cb(bbd),
      w22, cb(params["a_b2_2"]["b"]), inv, w3, cb(params["a_b3"]["b"]),
      wh0, wh1, wh2, wh3, bh)
    return out.reshape(n, out_dim)


if __name__ == "__main__":
    key = jax.random.PRNGKey(0)
    pkey, xkey = jax.random.split(key)
    output_size = 8
    params = init_params(pkey, output_size)
    x = jax.random.normal(xkey, (2, 3, 32, 32), jnp.float32)    # NCHW like the PyTorch module
    fwd = jax.jit(functools.partial(modified_inception_forward, params))
    out = fwd(x)
    jax.block_until_ready(out)
    assert out.shape == (2, output_size) and out.dtype == jnp.float32
    print("KERNEL_OK")
</pallas_src>

<mosaic_0001>
module attributes {stable_mosaic.version = 11 : i64} {
  func.func @_fused_forward_kernel(%arg0: i32, %arg1: memref<1x16x16x12xbf16, #tpu.memory_space<vmem>>, %arg2: memref<48x8xbf16, #tpu.memory_space<vmem>>, %arg3: memref<1x8xf32, #tpu.memory_space<vmem>>, %arg4: memref<72x8xbf16, #tpu.memory_space<vmem>>, %arg5: memref<1x8xf32, #tpu.memory_space<vmem>>, %arg6: memref<72x16xbf16, #tpu.memory_space<vmem>>, %arg7: memref<1x16xf32, #tpu.memory_space<vmem>>, %arg8: memref<36x121xf32, #tpu.memory_space<vmem>>, %arg9: memref<16x24xbf16, #tpu.memory_space<vmem>>, %arg10: memref<1x24xf32, #tpu.memory_space<vmem>>, %arg11: memref<144x20xbf16, #tpu.memory_space<vmem>>, %arg12: memref<1x20xf32, #tpu.memory_space<vmem>>, %arg13: memref<108x12xbf16, #tpu.memory_space<vmem>>, %arg14: memref<1x12xf32, #tpu.memory_space<vmem>>, %arg15: memref<36x1xf32, #tpu.memory_space<vmem>>, %arg16: memref<16x8xbf16, #tpu.memory_space<vmem>>, %arg17: memref<1x8xf32, #tpu.memory_space<vmem>>, %arg18: memref<8x8xbf16, #tpu.memory_space<vmem>>, %arg19: memref<8x8xbf16, #tpu.memory_space<vmem>>, %arg20: memref<12x8xbf16, #tpu.memory_space<vmem>>, %arg21: memref<8x8xbf16, #tpu.memory_space<vmem>>, %arg22: memref<1x8xf32, #tpu.memory_space<vmem>>, %arg23: memref<1x1x8xf32, #tpu.memory_space<vmem>>, %arg24: memref<15x15x8xf32, #tpu.memory_space<vmem>>, %arg25: memref<15x15x8xf32, #tpu.memory_space<vmem>>, %arg26: memref<13x13x16xf32, #tpu.memory_space<vmem>>, %arg27: memref<8x8x16xf32, #tpu.memory_space<vmem>>, %arg28: memref<8x8x16xf32, #tpu.memory_space<vmem>>, %arg29: memref<8x8x12xf32, #tpu.memory_space<vmem>>) attributes {dimension_semantics = [#tpu.dimension_semantics<parallel>], iteration_bounds = array<i64: 2>, scalar_prefetch = 0 : i64, scratch_operands = 6 : i64, tpu.core_type = #tpu.core_type<tc>, window_params = [{transform_indices = @transform_0, window_bounds = array<i64: 1, 16, 16, 12>}, {pipeline_mode = #tpu.pipeline_mode<synchronous>, transform_indices = @transform_1, window_bounds = array<i64: 48, 8>}, {pipeline_mode = #tpu.pipeline_mode<synchronous>, transform_indices = @transform_2, window_bounds = array<i64: 1, 8>}, {pipeline_mode = #tpu.pipeline_mode<synchronous>, transform_indices = @transform_3, window_bounds = array<i64: 72, 8>}, {pipeline_mode = #tpu.pipeline_mode<synchronous>, transform_indices = @transform_4, window_bounds = array<i64: 1, 8>}, {pipeline_mode = #tpu.pipeline_mode<synchronous>, transform_indices = @transform_5, window_bounds = array<i64: 72, 16>}, {pipeline_mode = #tpu.pipeline_mode<synchronous>, transform_indices = @transform_6, window_bounds = array<i64: 1, 16>}, {pipeline_mode = #tpu.pipeline_mode<synchronous>, transform_indices = @transform_7, window_bounds = array<i64: 36, 121>}, {pipeline_mode = #tpu.pipeline_mode<synchronous>, transform_indices = @transform_8, window_bounds = array<i64: 16, 24>}, {pipeline_mode = #tpu.pipeline_mode<synchronous>, transform_indices = @transform_9, window_bounds = array<i64: 1, 24>}, {pipeline_mode = #tpu.pipeline_mode<synchronous>, transform_indices = @transform_10, window_bounds = array<i64: 144, 20>}, {pipeline_mode = #tpu.pipeline_mode<synchronous>, transform_indices = @transform_11, window_bounds = array<i64: 1, 20>}, {pipeline_mode = #tpu.pipeline_mode<synchronous>, transform_indices = @transform_12, window_bounds = array<i64: 108, 12>}, {pipeline_mode = #tpu.pipeline_mode<synchronous>, transform_indices = @transform_13, window_bounds = array<i64: 1, 12>}, {pipeline_mode = #tpu.pipeline_mode<synchronous>, transform_indices = @transform_14, window_bounds = array<i64: 36, 1>}, {pipeline_mode = #tpu.pipeline_mode<synchronous>, transform_indices = @transform_15, window_bounds = array<i64: 16, 8>}, {pipeline_mode = #tpu.pipeline_mode<synchronous>, transform_indices = @transform_16, window_bounds = array<i64: 1, 8>}, {pipeline_mode = #tpu.pipeline_mode<synchronous>, transform_indices = @transform_17, window_bounds = array<i64: 8, 8>}, {pipeline_mode = #tpu.pipeline_mode<synchronous>, transform_indices = @transform_18, window_bounds = array<i64: 8, 8>}, {pipeline_mode = #tpu.pipeline_mode<synchronous>, transform_indices = @transform_19, window_bounds = array<i64: 12, 8>}, {pipeline_mode = #tpu.pipeline_mode<synchronous>, transform_indices = @transform_20, window_bounds = array<i64: 8, 8>}, {pipeline_mode = #tpu.pipeline_mode<synchronous>, transform_indices = @transform_21, window_bounds = array<i64: 1, 8>}, {transform_indices = @transform_22, window_bounds = array<i64: 1, 1, 8>}]} {
    %c0 = arith.constant 0 : index
    %c0_0 = arith.constant 0 : index
    %c0_1 = arith.constant 0 : index
    %c0_2 = arith.constant 0 : index
    %0 = vector.load %arg1[%c0, %c0_0, %c0_1, %c0_2] : memref<1x16x16x12xbf16, #tpu.memory_space<vmem>>, vector<1x15x15x12xbf16>
    %1 = vector.shape_cast %0 : vector<1x15x15x12xbf16> to vector<15x15x12xbf16>
    %c0_3 = arith.constant 0 : index
    %c0_4 = arith.constant 0 : index
    %c1 = arith.constant 1 : index
    %c0_5 = arith.constant 0 : index
    %2 = vector.load %arg1[%c0_3, %c0_4, %c1, %c0_5] : memref<1x16x16x12xbf16, #tpu.memory_space<vmem>>, vector<1x15x15x12xbf16>
    %3 = vector.shape_cast %2 : vector<1x15x15x12xbf16> to vector<15x15x12xbf16>
    %c0_6 = arith.constant 0 : index
    %c1_7 = arith.constant 1 : index
    %c0_8 = arith.constant 0 : index
    %c0_9 = arith.constant 0 : index
    %4 = vector.load %arg1[%c0_6, %c1_7, %c0_8, %c0_9] : memref<1x16x16x12xbf16, #tpu.memory_space<vmem>>, vector<1x15x15x12xbf16>
    %5 = vector.shape_cast %4 : vector<1x15x15x12xbf16> to vector<15x15x12xbf16>
    %c0_10 = arith.constant 0 : index
    %c1_11 = arith.constant 1 : index
    %c1_12 = arith.constant 1 : index
    %c0_13 = arith.constant 0 : index
    %6 = vector.load %arg1[%c0_10, %c1_11, %c1_12, %c0_13] : memref<1x16x16x12xbf16, #tpu.memory_space<vmem>>, vector<1x15x15x12xbf16>
    %7 = vector.shape_cast %6 : vector<1x15x15x12xbf16> to vector<15x15x12xbf16>
    %8 = tpu.concatenate %1, %3, %5, %7 in 2 : vector<15x15x12xbf16>, vector<15x15x12xbf16>, vector<15x15x12xbf16>, vector<15x15x12xbf16> -> vector<15x15x48xbf16>
    %9 = vector.shape_cast %8 : vector<15x15x48xbf16> to vector<225x48xbf16>
    %c0_14 = arith.constant 0 : index
    %c0_15 = arith.constant 0 : index
    %10 = vector.load %arg2[%c0_14, %c0_15] : memref<48x8xbf16, #tpu.memory_space<vmem>>, vector<48x8xbf16>
    %cst = arith.constant dense<0.000000e+00> : vector<225x8xf32>
    %11 = tpu.matmul %9, %10, %cst {dimension_numbers = #tpu.dot_dimension_numbers<[1], [0], [0], [1], [0, 0, 1, 1], [], []>} : vector<225x48xbf16>, vector<48x8xbf16>, vector<225x8xf32> -> vector<225x8xf32>
    %c0_16 = arith.constant 0 : index
    %c0_17 = arith.constant 0 : index
    %12 = vector.load %arg3[%c0_16, %c0_17] : memref<1x8xf32, #tpu.memory_space<vmem>>, vector<1x8xf32>
    %13 = vector.broadcast %12 : vector<1x8xf32> to vector<225x8xf32>
    %14 = arith.addf %11, %13 : vector<225x8xf32>
    %cst_18 = arith.constant 0.000000e+00 : f32
    %15 = vector.broadcast %cst_18 : f32 to vector<225x8xf32>
    %16 = arith.maximumf %14, %15 : vector<225x8xf32>
    %17 = vector.shape_cast %16 : vector<225x8xf32> to vector<15x15x8xf32>
    %c0_19 = arith.constant 0 : index
    %c0_20 = arith.constant 0 : index
    %c0_21 = arith.constant 0 : index
    %18 = vector.load %arg24[%c0_19, %c0_20, %c0_21] : memref<15x15x8xf32, #tpu.memory_space<vmem>>, vector<15x15x8xf32>
    tpu.vector_store %arg24[%c0_19, %c0_20, %c0_21], %17 {strides = array<i32>} : memref<15x15x8xf32, #tpu.memory_space<vmem>>, vector<15x15x8xf32>,
    %cst_22 = arith.constant 0.000000e+00 : f32
    %19 = vector.broadcast %cst_22 : f32 to vector<15x15x8xf32>
    %c0_23 = arith.constant 0 : index
    %c0_24 = arith.constant 0 : index
    %c0_25 = arith.constant 0 : index
    %20 = vector.load %arg25[%c0_23, %c0_24, %c0_25] : memref<15x15x8xf32, #tpu.memory_space<vmem>>, vector<15x15x8xf32>
    tpu.vector_store %arg25[%c0_23, %c0_24, %c0_25], %19 {strides = array<i32>} : memref<15x15x8xf32, #tpu.memory_space<vmem>>, vector<15x15x8xf32>,
    %c0_26 = arith.constant 0 : index
    %c0_27 = arith.constant 0 : index
    %c0_28 = arith.constant 0 : index
    %21 = vector.load %arg24[%c0_26, %c0_27, %c0_28] : memref<15x15x8xf32, #tpu.memory_space<vmem>>, vector<13x13x8xf32>
    %c0_29 = arith.constant 0 : index
    %c1_30 = arith.constant 1 : index
    %c0_31 = arith.constant 0 : index
    %22 = vector.load %arg24[%c0_29, %c1_30, %c0_31] : memref<15x15x8xf32, #tpu.memory_space<vmem>>, vector<13x13x8xf32>
    %c0_32 = arith.constant 0 : index
    %c2 = arith.constant 2 : index
    %c0_33 = arith.constant 0 : index
    %23 = vector.load %arg24[%c0_32, %c2, %c0_33] : memref<15x15x8xf32, #tpu.memory_space<vmem>>, vector<13x13x8xf32>
    %c1_34 = arith.constant 1 : index
    %c0_35 = arith.constant 0 : index
    %c0_36 = arith.constant 0 : index
    %24 = vector.load %arg24[%c1_34, %c0_35, %c0_36] : memref<15x15x8xf32, #tpu.memory_space<vmem>>, vector<13x13x8xf32>
    %c1_37 = arith.constant 1 : index
    %c1_38 = arith.constant 1 : index
    %c0_39 = arith.constant 0 : index
    %25 = vector.load %arg24[%c1_37, %c1_38, %c0_39] : memref<15x15x8xf32, #tpu.memory_space<vmem>>, vector<13x13x8xf32>
    %c1_40 = arith.constant 1 : index
    %c2_41 = arith.constant 2 : index
    %c0_42 = arith.constant 0 : index
    %26 = vector.load %arg24[%c1_40, %c2_41, %c0_42] : memref<15x15x8xf32, #tpu.memory_space<vmem>>, vector<13x13x8xf32>
    %c2_43 = arith.constant 2 : index
    %c0_44 = arith.constant 0 : index
    %c0_45 = arith.constant 0 : index
    %27 = vector.load %arg24[%c2_43, %c0_44, %c0_45] : memref<15x15x8xf32, #tpu.memory_space<vmem>>, vector<13x13x8xf32>
    %c2_46 = arith.constant 2 : index
    %c1_47 = arith.constant 1 : index
    %c0_48 = arith.constant 0 : index
    %28 = vector.load %arg24[%c2_46, %c1_47, %c0_48] : memref<15x15x8xf32, #tpu.memory_space<vmem>>, vector<13x13x8xf32>
    %c2_49 = arith.constant 2 : index
    %c2_50 = arith.constant 2 : index
    %c0_51 = arith.constant 0 : index
    %29 = vector.load %arg24[%c2_49, %c2_50, %c0_51] : memref<15x15x8xf32, #tpu.memory_space<vmem>>, vector<13x13x8xf32>
    %30 = tpu.concatenate %21, %22, %23, %24, %25, %26, %27, %28, %29 in 2 : vector<13x13x8xf32>, vector<13x13x8xf32>, vector<13x13x8xf32>, vector<13x13x8xf32>, vector<13x13x8xf32>, vector<13x13x8xf32>, vector<13x13x8xf32>, vector<13x13x8xf32>, vector<13x13x8xf32> -> vector<13x13x72xf32>
    %31 = vector.shape_cast %30 : vector<13x13x72xf32> to vector<169x72xf32>
    %32 = arith.truncf %31 : vector<169x72xf32> to vector<169x72xbf16>
    %c0_52 = arith.constant 0 : index
    %c0_53 = arith.constant 0 : index
    %33 = vector.load %arg4[%c0_52, %c0_53] : memref<72x8xbf16, #tpu.memory_space<vmem>>, vector<72x8xbf16>
    %cst_54 = arith.constant dense<0.000000e+00> : vector<169x8xf32>
    %34 = tpu.matmul %32, %33, %cst_54 {dimension_numbers = #tpu.dot_dimension_numbers<[1], [0], [0], [1], [0, 0, 1, 1], [], []>} : vector<169x72xbf16>, vector<72x8xbf16>, vector<169x8xf32> -> vector<169x8xf32>
    %c0_55 = arith.constant 0 : index
    %c0_56 = arith.constant 0 : index
    %35 = vector.load %arg5[%c0_55, %c0_56] : memref<1x8xf32, #tpu.memory_space<vmem>>, vector<1x8xf32>
    %36 = vector.broadcast %35 : vector<1x8xf32> to vector<169x8xf32>
    %37 = arith.addf %34, %36 : vector<169x8xf32>
    %cst_57 = arith.constant 0.000000e+00 : f32
    %38 = vector.broadcast %cst_57 : f32 to vector<169x8xf32>
    %39 = arith.maximumf %37, %38 : vector<169x8xf32>
    %40 = vector.shape_cast %39 : vector<169x8xf32> to vector<13x13x8xf32>
    %c1_58 = arith.constant 1 : index
    %c1_59 = arith.constant 1 : index
    %c0_60 = arith.constant 0 : index
    %41 = vector.load %arg25[%c1_58, %c1_59, %c0_60] : memref<15x15x8xf32, #tpu.memory_space<vmem>>, vector<13x13x8xf32>
    tpu.vector_store %arg25[%c1_58, %c1_59, %c0_60], %40 {strides = array<i32>} : memref<15x15x8xf32, #tpu.memory_space<vmem>>, vector<13x13x8xf32>,
    %c0_61 = arith.constant 0 : index
    %c0_62 = arith.constant 0 : index
    %c0_63 = arith.constant 0 : index
    %42 = vector.load %arg25[%c0_61, %c0_62, %c0_63] : memref<15x15x8xf32, #tpu.memory_space<vmem>>, vector<13x13x8xf32>
    %c0_64 = arith.constant 0 : index
    %c1_65 = arith.constant 1 : index
    %c0_66 = arith.constant 0 : index
    %43 = vector.load %arg25[%c0_64, %c1_65, %c0_66] : memref<15x15x8xf32, #tpu.memory_space<vmem>>, vector<13x13x8xf32>
    %c0_67 = arith.constant 0 : index
    %c2_68 = arith.constant 2 : index
    %c0_69 = arith.constant 0 : index
    %44 = vector.load %arg25[%c0_67, %c2_68, %c0_69] : memref<15x15x8xf32, #tpu.memory_space<vmem>>, vector<13x13x8xf32>
    %c1_70 = arith.constant 1 : index
    %c0_71 = arith.constant 0 : index
    %c0_72 = arith.constant 0 : index
    %45 = vector.load %arg25[%c1_70, %c0_71, %c0_72] : memref<15x15x8xf32, #tpu.memory_space<vmem>>, vector<13x13x8xf32>
    %c1_73 = arith.constant 1 : index
    %c1_74 = arith.constant 1 : index
    %c0_75 = arith.constant 0 : index
    %46 = vector.load %arg25[%c1_73, %c1_74, %c0_75] : memref<15x15x8xf32, #tpu.memory_space<vmem>>, vector<13x13x8xf32>
    %c1_76 = arith.constant 1 : index
    %c2_77 = arith.constant 2 : index
    %c0_78 = arith.constant 0 : index
    %47 = vector.load %arg25[%c1_76, %c2_77, %c0_78] : memref<15x15x8xf32, #tpu.memory_space<vmem>>, vector<13x13x8xf32>
    %c2_79 = arith.constant 2 : index
    %c0_80 = arith.constant 0 : index
    %c0_81 = arith.constant 0 : index
    %48 = vector.load %arg25[%c2_79, %c0_80, %c0_81] : memref<15x15x8xf32, #tpu.memory_space<vmem>>, vector<13x13x8xf32>
    %c2_82 = arith.constant 2 : index
    %c1_83 = arith.constant 1 : index
    %c0_84 = arith.constant 0 : index
    %49 = vector.load %arg25[%c2_82, %c1_83, %c0_84] : memref<15x15x8xf32, #tpu.memory_space<vmem>>, vector<13x13x8xf32>
    %c2_85 = arith.constant 2 : index
    %c2_86 = arith.constant 2 : index
    %c0_87 = arith.constant 0 : index
    %50 = vector.load %arg25[%c2_85, %c2_86, %c0_87] : memref<15x15x8xf32, #tpu.memory_space<vmem>>, vector<13x13x8xf32>
    %51 = tpu.concatenate %42, %43, %44, %45, %46, %47, %48, %49, %50 in 2 : vector<13x13x8xf32>, vector<13x13x8xf32>, vector<13x13x8xf32>, vector<13x13x8xf32>, vector<13x13x8xf32>, vector<13x13x8xf32>, vector<13x13x8xf32>, vector<13x13x8xf32>, vector<13x13x8xf32> -> vector<13x13x72xf32>
    %52 = vector.shape_cast %51 : vector<13x13x72xf32> to vector<169x72xf32>
    %53 = arith.truncf %52 : vector<169x72xf32> to vector<169x72xbf16>
    %c0_88 = arith.constant 0 : index
    %c0_89 = arith.constant 0 : index
    %54 = vector.load %arg6[%c0_88, %c0_89] : memref<72x16xbf16, #tpu.memory_space<vmem>>, vector<72x16xbf16>
    %cst_90 = arith.constant dense<0.000000e+00> : vector<169x16xf32>
    %55 = tpu.matmul %53, %54, %cst_90 {dimension_numbers = #tpu.dot_dimension_numbers<[1], [0], [0], [1], [0, 0, 1, 1], [], []>} : vector<169x72xbf16>, vector<72x16xbf16>, vector<169x16xf32> -> vector<169x16xf32>
    %c0_91 = arith.constant 0 : index
    %c0_92 = arith.constant 0 : index
    %56 = vector.load %arg7[%c0_91, %c0_92] : memref<1x16xf32, #tpu.memory_space<vmem>>, vector<1x16xf32>
    %57 = vector.broadcast %56 : vector<1x16xf32> to vector<169x16xf32>
    %58 = arith.addf %55, %57 : vector<169x16xf32>
    %cst_93 = arith.constant 0.000000e+00 : f32
    %59 = vector.broadcast %cst_93 : f32 to vector<169x16xf32>
    %60 = arith.maximumf %58, %59 : vector<169x16xf32>
    %61 = vector.shape_cast %60 : vector<169x16xf32> to vector<13x13x16xf32>
    %c0_94 = arith.constant 0 : index
    %c0_95 = arith.constant 0 : index
    %c0_96 = arith.constant 0 : index
    %62 = vector.load %arg26[%c0_94, %c0_95, %c0_96] : memref<13x13x16xf32, #tpu.memory_space<vmem>>, vector<13x13x16xf32>
    tpu.vector_store %arg26[%c0_94, %c0_95, %c0_96], %61 {strides = array<i32>} : memref<13x13x16xf32, #tpu.memory_space<vmem>>, vector<13x13x16xf32>,
    %c0_97 = arith.constant 0 : index
    %c0_98 = arith.constant 0 : index
    %c0_99 = arith.constant 0 : index
    %63 = vector.load %arg26[%c0_97, %c0_98, %c0_99] : memref<13x13x16xf32, #tpu.memory_space<vmem>>, vector<11x11x16xf32>
    %c0_100 = arith.constant 0 : index
    %c1_101 = arith.constant 1 : index
    %c0_102 = arith.constant 0 : index
    %64 = vector.load %arg26[%c0_100, %c1_101, %c0_102] : memref<13x13x16xf32, #tpu.memory_space<vmem>>, vector<11x11x16xf32>
    %65 = arith.maximumf %63, %64 : vector<11x11x16xf32>
    %c0_103 = arith.constant 0 : index
    %c2_104 = arith.constant 2 : index
    %c0_105 = arith.constant 0 : index
    %66 = vector.load %arg26[%c0_103, %c2_104, %c0_105] : memref<13x13x16xf32, #tpu.memory_space<vmem>>, vector<11x11x16xf32>
    %67 = arith.maximumf %65, %66 : vector<11x11x16xf32>
    %c1_106 = arith.constant 1 : index
    %c0_107 = arith.constant 0 : index
    %c0_108 = arith.constant 0 : index
    %68 = vector.load %arg26[%c1_106, %c0_107, %c0_108] : memref<13x13x16xf32, #tpu.memory_space<vmem>>, vector<11x11x16xf32>
    %69 = arith.maximumf %67, %68 : vector<11x11x16xf32>
    %c1_109 = arith.constant 1 : index
    %c1_110 = arith.constant 1 : index
    %c0_111 = arith.constant 0 : index
    %70 = vector.load %arg26[%c1_109, %c1_110, %c0_111] : memref<13x13x16xf32, #tpu.memory_space<vmem>>, vector<11x11x16xf32>
    %71 = arith.maximumf %69, %70 : vector<11x11x16xf32>
    %c1_112 = arith.constant 1 : index
    %c2_113 = arith.constant 2 : index
    %c0_114 = arith.constant 0 : index
    %72 = vector.load %arg26[%c1_112, %c2_113, %c0_114] : memref<13x13x16xf32, #tpu.memory_space<vmem>>, vector<11x11x16xf32>
    %73 = arith.maximumf %71, %72 : vector<11x11x16xf32>
    %c2_115 = arith.constant 2 : index
    %c0_116 = arith.constant 0 : index
    %c0_117 = arith.constant 0 : index
    %74 = vector.load %arg26[%c2_115, %c0_116, %c0_117] : memref<13x13x16xf32, #tpu.memory_space<vmem>>, vector<11x11x16xf32>
    %75 = arith.maximumf %73, %74 : vector<11x11x16xf32>
    %c2_118 = arith.constant 2 : index
    %c1_119 = arith.constant 1 : index
    %c0_120 = arith.constant 0 : index
    %76 = vector.load %arg26[%c2_118, %c1_119, %c0_120] : memref<13x13x16xf32, #tpu.memory_space<vmem>>, vector<11x11x16xf32>
    %77 = arith.maximumf %75, %76 : vector<11x11x16xf32>
    %c2_121 = arith.constant 2 : index
    %c2_122 = arith.constant 2 : index
    %c0_123 = arith.constant 0 : index
    %78 = vector.load %arg26[%c2_121, %c2_122, %c0_123] : memref<13x13x16xf32, #tpu.memory_space<vmem>>, vector<11x11x16xf32>
    %79 = arith.maximumf %77, %78 : vector<11x11x16xf32>
    %c0_124 = arith.constant 0 : index
    %c0_125 = arith.constant 0 : index
    %80 = vector.load %arg8[%c0_124, %c0_125] : memref<36x121xf32, #tpu.memory_space<vmem>>, vector<36x121xf32>
    %81 = vector.shape_cast %79 : vector<11x11x16xf32> to vector<121x16xf32>
    %cst_126 = arith.constant dense<0.000000e+00> : vector<36x16xf32>
    %82 = tpu.matmul %80, %81, %cst_126 {dimension_numbers = #tpu.dot_dimension_numbers<[1], [0], [0], [1], [0, 0, 1, 1], [], []>} : vector<36x121xf32>, vector<121x16xf32>, vector<36x16xf32> -> vector<36x16xf32>
    %cst_127 = arith.constant 0.000000e+00 : f32
    %83 = vector.broadcast %cst_127 : f32 to vector<8x8x16xf32>
    %c0_128 = arith.constant 0 : index
    %c0_129 = arith.constant 0 : index
    %c0_130 = arith.constant 0 : index
    %84 = vector.load %arg27[%c0_128, %c0_129, %c0_130] : memref<8x8x16xf32, #tpu.memory_space<vmem>>, vector<8x8x16xf32>
    tpu.vector_store %arg27[%c0_128, %c0_129, %c0_130], %83 {strides = array<i32>} : memref<8x8x16xf32, #tpu.memory_space<vmem>>, vector<8x8x16xf32>,
    %85 = vector.shape_cast %82 : vector<36x16xf32> to vector<6x6x16xf32>
    %c1_131 = arith.constant 1 : index
    %c1_132 = arith.constant 1 : index
    %c0_133 = arith.constant 0 : index
    %86 = vector.load %arg27[%c1_131, %c1_132, %c0_133] : memref<8x8x16xf32, #tpu.memory_space<vmem>>, vector<6x6x16xf32>
    tpu.vector_store %arg27[%c1_131, %c1_132, %c0_133], %85 {strides = array<i32>} : memref<8x8x16xf32, #tpu.memory_space<vmem>>, vector<6x6x16xf32>,
    %87 = arith.truncf %82 : vector<36x16xf32> to vector<36x16xbf16>
    %c0_134 = arith.constant 0 : index
    %c0_135 = arith.constant 0 : index
    %88 = vector.load %arg9[%c0_134, %c0_135] : memref<16x24xbf16, #tpu.memory_space<vmem>>, vector<16x24xbf16>
    %cst_136 = arith.constant dense<0.000000e+00> : vector<36x24xf32>
    %89 = tpu.matmul %87, %88, %cst_136 {dimension_numbers = #tpu.dot_dimension_numbers<[1], [0], [0], [1], [0, 0, 1, 1], [], []>} : vector<36x16xbf16>, vector<16x24xbf16>, vector<36x24xf32> -> vector<36x24xf32>
    %c0_137 = arith.constant 0 : index
    %c0_138 = arith.constant 0 : index
    %90 = vector.load %arg10[%c0_137, %c0_138] : memref<1x24xf32, #tpu.memory_space<vmem>>, vector<1x24xf32>
    %91 = vector.broadcast %90 : vector<1x24xf32> to vector<36x24xf32>
    %92 = arith.addf %89, %91 : vector<36x24xf32>
    %cst_139 = arith.constant 0.000000e+00 : f32
    %93 = vector.broadcast %cst_139 : f32 to vector<36x24xf32>
    %94 = arith.maximumf %92, %93 : vector<36x24xf32>
    %95 = vector.extract_strided_slice %94 {offsets = [0, 0], sizes = [36, 8], strides = [1, 1]} : vector<36x24xf32> to vector<36x8xf32>
    %cst_140 = arith.constant 0.000000e+00 : f32
    %96 = vector.broadcast %cst_140 : f32 to vector<8x8x16xf32>
    %c0_141 = arith.constant 0 : index
    %c0_142 = arith.constant 0 : index
    %c0_143 = arith.constant 0 : index
    %97 = vector.load %arg28[%c0_141, %c0_142, %c0_143] : memref<8x8x16xf32, #tpu.memory_space<vmem>>, vector<8x8x16xf32>
    tpu.vector_store %arg28[%c0_141, %c0_142, %c0_143], %96 {strides = array<i32>} : memref<8x8x16xf32, #tpu.memory_space<vmem>>, vector<8x8x16xf32>,
    %98 = vector.extract_strided_slice %94 {offsets = [0, 8], sizes = [36, 16], strides = [1, 1]} : vector<36x24xf32> to vector<36x16xf32>
    %99 = vector.shape_cast %98 : vector<36x16xf32> to vector<6x6x16xf32>
    %c1_144 = arith.constant 1 : index
    %c1_145 = arith.constant 1 : index
    %c0_146 = arith.constant 0 : index
    %100 = vector.load %arg28[%c1_144, %c1_145, %c0_146] : memref<8x8x16xf32, #tpu.memory_space<vmem>>, vector<6x6x16xf32>
    tpu.vector_store %arg28[%c1_144, %c1_145, %c0_146], %99 {strides = array<i32>} : memref<8x8x16xf32, #tpu.memory_space<vmem>>, vector<6x6x16xf32>,
    %c0_147 = arith.constant 0 : index
    %c0_148 = arith.constant 0 : index
    %c0_149 = arith.constant 0 : index
    %101 = vector.load %arg28[%c0_147, %c0_148, %c0_149] : memref<8x8x16xf32, #tpu.memory_space<vmem>>, vector<6x6x16xf32>
    %c0_150 = arith.constant 0 : index
    %c1_151 = arith.constant 1 : index
    %c0_152 = arith.constant 0 : index
    %102 = vector.load %arg28[%c0_150, %c1_151, %c0_152] : memref<8x8x16xf32, #tpu.memory_space<vmem>>, vector<6x6x16xf32>
    %c0_153 = arith.constant 0 : index
    %c2_154 = arith.constant 2 : index
    %c0_155 = arith.constant 0 : index
    %103 = vector.load %arg28[%c0_153, %c2_154, %c0_155] : memref<8x8x16xf32, #tpu.memory_space<vmem>>, vector<6x6x16xf32>
    %c1_156 = arith.constant 1 : index
    %c0_157 = arith.constant 0 : index
    %c0_158 = arith.constant 0 : index
    %104 = vector.load %arg28[%c1_156, %c0_157, %c0_158] : memref<8x8x16xf32, #tpu.memory_space<vmem>>, vector<6x6x16xf32>
    %c1_159 = arith.constant 1 : index
    %c1_160 = arith.constant 1 : index
    %c0_161 = arith.constant 0 : index
    %105 = vector.load %arg28[%c1_159, %c1_160, %c0_161] : memref<8x8x16xf32, #tpu.memory_space<vmem>>, vector<6x6x16xf32>
    %c1_162 = arith.constant 1 : index
    %c2_163 = arith.constant 2 : index
    %c0_164 = arith.constant 0 : index
    %106 = vector.load %arg28[%c1_162, %c2_163, %c0_164] : memref<8x8x16xf32, #tpu.memory_space<vmem>>, vector<6x6x16xf32>
    %c2_165 = arith.constant 2 : index
    %c0_166 = arith.constant 0 : index
    %c0_167 = arith.constant 0 : index
    %107 = vector.load %arg28[%c2_165, %c0_166, %c0_167] : memref<8x8x16xf32, #tpu.memory_space<vmem>>, vector<6x6x16xf32>
    %c2_168 = arith.constant 2 : index
    %c1_169 = arith.constant 1 : index
    %c0_170 = arith.constant 0 : index
    %108 = vector.load %arg28[%c2_168, %c1_169, %c0_170] : memref<8x8x16xf32, #tpu.memory_space<vmem>>, vector<6x6x16xf32>
    %c2_171 = arith.constant 2 : index
    %c2_172 = arith.constant 2 : index
    %c0_173 = arith.constant 0 : index
    %109 = vector.load %arg28[%c2_171, %c2_172, %c0_173] : memref<8x8x16xf32, #tpu.memory_space<vmem>>, vector<6x6x16xf32>
    %110 = tpu.concatenate %101, %102, %103, %104, %105, %106, %107, %108, %109 in 2 : vector<6x6x16xf32>, vector<6x6x16xf32>, vector<6x6x16xf32>, vector<6x6x16xf32>, vector<6x6x16xf32>, vector<6x6x16xf32>, vector<6x6x16xf32>, vector<6x6x16xf32>, vector<6x6x16xf32> -> vector<6x6x144xf32>
    %111 = vector.shape_cast %110 : vector<6x6x144xf32> to vector<36x144xf32>
    %112 = arith.truncf %111 : vector<36x144xf32> to vector<36x144xbf16>
    %c0_174 = arith.constant 0 : index
    %c0_175 = arith.constant 0 : index
    %113 = vector.load %arg11[%c0_174, %c0_175] : memref<144x20xbf16, #tpu.memory_space<vmem>>, vector<144x20xbf16>
    %cst_176 = arith.constant dense<0.000000e+00> : vector<36x20xf32>
    %114 = tpu.matmul %112, %113, %cst_176 {dimension_numbers = #tpu.dot_dimension_numbers<[1], [0], [0], [1], [0, 0, 1, 1], [], []>} : vector<36x144xbf16>, vector<144x20xbf16>, vector<36x20xf32> -> vector<36x20xf32>
    %c0_177 = arith.constant 0 : index
    %c0_178 = arith.constant 0 : index
    %115 = vector.load %arg12[%c0_177, %c0_178] : memref<1x20xf32, #tpu.memory_space<vmem>>, vector<1x20xf32>
    %116 = vector.broadcast %115 : vector<1x20xf32> to vector<36x20xf32>
    %117 = arith.addf %114, %116 : vector<36x20xf32>
    %cst_179 = arith.constant 0.000000e+00 : f32
    %118 = vector.broadcast %cst_179 : f32 to vector<36x20xf32>
    %119 = arith.maximumf %117, %118 : vector<36x20xf32>
    %120 = vector.extract_strided_slice %119 {offsets = [0, 0], sizes = [36, 8], strides = [1, 1]} : vector<36x20xf32> to vector<36x8xf32>
    %cst_180 = arith.constant 0.000000e+00 : f32
    %121 = vector.broadcast %cst_180 : f32 to vector<8x8x12xf32>
    %c0_181 = arith.constant 0 : index
    %c0_182 = arith.constant 0 : index
    %c0_183 = arith.constant 0 : index
    %122 = vector.load %arg29[%c0_181, %c0_182, %c0_183] : memref<8x8x12xf32, #tpu.memory_space<vmem>>, vector<8x8x12xf32>
    tpu.vector_store %arg29[%c0_181, %c0_182, %c0_183], %121 {strides = array<i32>} : memref<8x8x12xf32, #tpu.memory_space<vmem>>, vector<8x8x12xf32>,
    %123 = vector.extract_strided_slice %119 {offsets = [0, 8], sizes = [36, 12], strides = [1, 1]} : vector<36x20xf32> to vector<36x12xf32>
    %124 = vector.shape_cast %123 : vector<36x12xf32> to vector<6x6x12xf32>
    %c1_184 = arith.constant 1 : index
    %c1_185 = arith.constant 1 : index
    %c0_186 = arith.constant 0 : index
    %125 = vector.load %arg29[%c1_184, %c1_185, %c0_186] : memref<8x8x12xf32, #tpu.memory_space<vmem>>, vector<6x6x12xf32>
    tpu.vector_store %arg29[%c1_184, %c1_185, %c0_186], %124 {strides = array<i32>} : memref<8x8x12xf32, #tpu.memory_space<vmem>>, vector<6x6x12xf32>,
    %c0_187 = arith.constant 0 : index
    %c0_188 = arith.constant 0 : index
    %c0_189 = arith.constant 0 : index
    %126 = vector.load %arg29[%c0_187, %c0_188, %c0_189] : memref<8x8x12xf32, #tpu.memory_space<vmem>>, vector<6x6x12xf32>
    %c0_190 = arith.constant 0 : index
    %c1_191 = arith.constant 1 : index
    %c0_192 = arith.constant 0 : index
    %127 = vector.load %arg29[%c0_190, %c1_191, %c0_192] : memref<8x8x12xf32, #tpu.memory_space<vmem>>, vector<6x6x12xf32>
    %c0_193 = arith.constant 0 : index
    %c2_194 = arith.constant 2 : index
    %c0_195 = arith.constant 0 : index
    %128 = vector.load %arg29[%c0_193, %c2_194, %c0_195] : memref<8x8x12xf32, #tpu.memory_space<vmem>>, vector<6x6x12xf32>
    %c1_196 = arith.constant 1 : index
    %c0_197 = arith.constant 0 : index
    %c0_198 = arith.constant 0 : index
    %129 = vector.load %arg29[%c1_196, %c0_197, %c0_198] : memref<8x8x12xf32, #tpu.memory_space<vmem>>, vector<6x6x12xf32>
    %c1_199 = arith.constant 1 : index
    %c1_200 = arith.constant 1 : index
    %c0_201 = arith.constant 0 : index
    %130 = vector.load %arg29[%c1_199, %c1_200, %c0_201] : memref<8x8x12xf32, #tpu.memory_space<vmem>>, vector<6x6x12xf32>
    %c1_202 = arith.constant 1 : index
    %c2_203 = arith.constant 2 : index
    %c0_204 = arith.constant 0 : index
    %131 = vector.load %arg29[%c1_202, %c2_203, %c0_204] : memref<8x8x12xf32, #tpu.memory_space<vmem>>, vector<6x6x12xf32>
    %c2_205 = arith.constant 2 : index
    %c0_206 = arith.constant 0 : index
    %c0_207 = arith.constant 0 : index
    %132 = vector.load %arg29[%c2_205, %c0_206, %c0_207] : memref<8x8x12xf32, #tpu.memory_space<vmem>>, vector<6x6x12xf32>
    %c2_208 = arith.constant 2 : index
    %c1_209 = arith.constant 1 : index
    %c0_210 = arith.constant 0 : index
    %133 = vector.load %arg29[%c2_208, %c1_209, %c0_210] : memref<8x8x12xf32, #tpu.memory_space<vmem>>, vector<6x6x12xf32>
    %c2_211 = arith.constant 2 : index
    %c2_212 = arith.constant 2 : index
    %c0_213 = arith.constant 0 : index
    %134 = vector.load %arg29[%c2_211, %c2_212, %c0_213] : memref<8x8x12xf32, #tpu.memory_space<vmem>>, vector<6x6x12xf32>
    %135 = tpu.concatenate %126, %127, %128, %129, %130, %131, %132, %133, %134 in 2 : vector<6x6x12xf32>, vector<6x6x12xf32>, vector<6x6x12xf32>, vector<6x6x12xf32>, vector<6x6x12xf32>, vector<6x6x12xf32>, vector<6x6x12xf32>, vector<6x6x12xf32>, vector<6x6x12xf32> -> vector<6x6x108xf32>
    %136 = vector.shape_cast %135 : vector<6x6x108xf32> to vector<36x108xf32>
    %137 = arith.truncf %136 : vector<36x108xf32> to vector<36x108xbf16>
    %c0_214 = arith.constant 0 : index
    %c0_215 = arith.constant 0 : index
    %138 = vector.load %arg13[%c0_214, %c0_215] : memref<108x12xbf16, #tpu.memory_space<vmem>>, vector<108x12xbf16>
    %cst_216 = arith.constant dense<0.000000e+00> : vector<36x12xf32>
    %139 = tpu.matmul %137, %138, %cst_216 {dimension_numbers = #tpu.dot_dimension_numbers<[1], [0], [0], [1], [0, 0, 1, 1], [], []>} : vector<36x108xbf16>, vector<108x12xbf16>, vector<36x12xf32> -> vector<36x12xf32>
    %c0_217 = arith.constant 0 : index
    %c0_218 = arith.constant 0 : index
    %140 = vector.load %arg14[%c0_217, %c0_218] : memref<1x12xf32, #tpu.memory_space<vmem>>, vector<1x12xf32>
    %141 = vector.broadcast %140 : vector<1x12xf32> to vector<36x12xf32>
    %142 = arith.addf %139, %141 : vector<36x12xf32>
    %cst_219 = arith.constant 0.000000e+00 : f32
    %143 = vector.broadcast %cst_219 : f32 to vector<36x12xf32>
    %144 = arith.maximumf %142, %143 : vector<36x12xf32>
    %c0_220 = arith.constant 0 : index
    %c0_221 = arith.constant 0 : index
    %c0_222 = arith.constant 0 : index
    %145 = vector.load %arg27[%c0_220, %c0_221, %c0_222] : memref<8x8x16xf32, #tpu.memory_space<vmem>>, vector<6x6x16xf32>
    %c0_223 = arith.constant 0 : index
    %c1_224 = arith.constant 1 : index
    %c0_225 = arith.constant 0 : index
    %146 = vector.load %arg27[%c0_223, %c1_224, %c0_225] : memref<8x8x16xf32, #tpu.memory_space<vmem>>, vector<6x6x16xf32>
    %147 = arith.addf %145, %146 : vector<6x6x16xf32>
    %c0_226 = arith.constant 0 : index
    %c2_227 = arith.constant 2 : index
    %c0_228 = arith.constant 0 : index
    %148 = vector.load %arg27[%c0_226, %c2_227, %c0_228] : memref<8x8x16xf32, #tpu.memory_space<vmem>>, vector<6x6x16xf32>
    %149 = arith.addf %147, %148 : vector<6x6x16xf32>
    %c1_229 = arith.constant 1 : index
    %c0_230 = arith.constant 0 : index
    %c0_231 = arith.constant 0 : index
    %150 = vector.load %arg27[%c1_229, %c0_230, %c0_231] : memref<8x8x16xf32, #tpu.memory_space<vmem>>, vector<6x6x16xf32>
    %151 = arith.addf %149, %150 : vector<6x6x16xf32>
    %c1_232 = arith.constant 1 : index
    %c1_233 = arith.constant 1 : index
    %c0_234 = arith.constant 0 : index
    %152 = vector.load %arg27[%c1_232, %c1_233, %c0_234] : memref<8x8x16xf32, #tpu.memory_space<vmem>>, vector<6x6x16xf32>
    %153 = arith.addf %151, %152 : vector<6x6x16xf32>
    %c1_235 = arith.constant 1 : index
    %c2_236 = arith.constant 2 : index
    %c0_237 = arith.constant 0 : index
    %154 = vector.load %arg27[%c1_235, %c2_236, %c0_237] : memref<8x8x16xf32, #tpu.memory_space<vmem>>, vector<6x6x16xf32>
    %155 = arith.addf %153, %154 : vector<6x6x16xf32>
    %c2_238 = arith.constant 2 : index
    %c0_239 = arith.constant 0 : index
    %c0_240 = arith.constant 0 : index
    %156 = vector.load %arg27[%c2_238, %c0_239, %c0_240] : memref<8x8x16xf32, #tpu.memory_space<vmem>>, vector<6x6x16xf32>
    %157 = arith.addf %155, %156 : vector<6x6x16xf32>
    %c2_241 = arith.constant 2 : index
    %c1_242 = arith.constant 1 : index
    %c0_243 = arith.constant 0 : index
    %158 = vector.load %arg27[%c2_241, %c1_242, %c0_243] : memref<8x8x16xf32, #tpu.memory_space<vmem>>, vector<6x6x16xf32>
    %159 = arith.addf %157, %158 : vector<6x6x16xf32>
    %c2_244 = arith.constant 2 : index
    %c2_245 = arith.constant 2 : index
    %c0_246 = arith.constant 0 : index
    %160 = vector.load %arg27[%c2_244, %c2_245, %c0_246] : memref<8x8x16xf32, #tpu.memory_space<vmem>>, vector<6x6x16xf32>
    %161 = arith.addf %159, %160 : vector<6x6x16xf32>
    %162 = vector.shape_cast %161 : vector<6x6x16xf32> to vector<36x16xf32>
    %c0_247 = arith.constant 0 : index
    %c0_248 = arith.constant 0 : index
    %163 = vector.load %arg15[%c0_247, %c0_248] : memref<36x1xf32, #tpu.memory_space<vmem>>, vector<36x1xf32>
    %164 = vector.broadcast %163 : vector<36x1xf32> to vector<36x16xf32>
    %165 = arith.mulf %162, %164 : vector<36x16xf32>
    %166 = arith.truncf %165 : vector<36x16xf32> to vector<36x16xbf16>
    %c0_249 = arith.constant 0 : index
    %c0_250 = arith.constant 0 : index
    %167 = vector.load %arg16[%c0_249, %c0_250] : memref<16x8xbf16, #tpu.memory_space<vmem>>, vector<16x8xbf16>
    %cst_251 = arith.constant dense<0.000000e+00> : vector<36x8xf32>
    %168 = tpu.matmul %166, %167, %cst_251 {dimension_numbers = #tpu.dot_dimension_numbers<[1], [0], [0], [1], [0, 0, 1, 1], [], []>} : vector<36x16xbf16>, vector<16x8xbf16>, vector<36x8xf32> -> vector<36x8xf32>
    %c0_252 = arith.constant 0 : index
    %c0_253 = arith.constant 0 : index
    %169 = vector.load %arg17[%c0_252, %c0_253] : memref<1x8xf32, #tpu.memory_space<vmem>>, vector<1x8xf32>
    %170 = vector.broadcast %169 : vector<1x8xf32> to vector<36x8xf32>
    %171 = arith.addf %168, %170 : vector<36x8xf32>
    %cst_254 = arith.constant 0.000000e+00 : f32
    %172 = vector.broadcast %cst_254 : f32 to vector<36x8xf32>
    %173 = arith.maximumf %171, %172 : vector<36x8xf32>
    %c0_255 = arith.constant 0 : index
    %c0_256 = arith.constant 0 : index
    %174 = vector.load %arg22[%c0_255, %c0_256] : memref<1x8xf32, #tpu.memory_space<vmem>>, vector<1x8xf32>
    %cst_257 = arith.constant dense<0.000000e+00> : vector<8xf32>
    %175 = vector.multi_reduction <add>, %95, %cst_257 [0] : vector<36x8xf32> to vector<8xf32>
    %176 = vector.shape_cast %175 : vector<8xf32> to vector<1x8xf32>
    %cst_258 = arith.constant 0.027777778 : f32
    %177 = vector.broadcast %cst_258 : f32 to vector<1x8xf32>
    %178 = arith.mulf %176, %177 : vector<1x8xf32>
    %179 = arith.truncf %178 : vector<1x8xf32> to vector<1x8xbf16>
    %c0_259 = arith.constant 0 : index
    %c0_260 = arith.constant 0 : index
    %180 = vector.load %arg18[%c0_259, %c0_260] : memref<8x8xbf16, #tpu.memory_space<vmem>>, vector<8x8xbf16>
    %cst_261 = arith.constant dense<0.000000e+00> : vector<1x8xf32>
    %181 = tpu.matmul %179, %180, %cst_261 {dimension_numbers = #tpu.dot_dimension_numbers<[1], [0], [0], [1], [0, 0, 1, 1], [], []>} : vector<1x8xbf16>, vector<8x8xbf16>, vector<1x8xf32> -> vector<1x8xf32>
    %182 = arith.addf %174, %181 : vector<1x8xf32>
    %cst_262 = arith.constant dense<0.000000e+00> : vector<8xf32>
    %183 = vector.multi_reduction <add>, %120, %cst_262 [0] : vector<36x8xf32> to vector<8xf32>
    %184 = vector.shape_cast %183 : vector<8xf32> to vector<1x8xf32>
    %cst_263 = arith.constant 0.027777778 : f32
    %185 = vector.broadcast %cst_263 : f32 to vector<1x8xf32>
    %186 = arith.mulf %184, %185 : vector<1x8xf32>
    %187 = arith.truncf %186 : vector<1x8xf32> to vector<1x8xbf16>
    %c0_264 = arith.constant 0 : index
    %c0_265 = arith.constant 0 : index
    %188 = vector.load %arg19[%c0_264, %c0_265] : memref<8x8xbf16, #tpu.memory_space<vmem>>, vector<8x8xbf16>
    %cst_266 = arith.constant dense<0.000000e+00> : vector<1x8xf32>
    %189 = tpu.matmul %187, %188, %cst_266 {dimension_numbers = #tpu.dot_dimension_numbers<[1], [0], [0], [1], [0, 0, 1, 1], [], []>} : vector<1x8xbf16>, vector<8x8xbf16>, vector<1x8xf32> -> vector<1x8xf32>
    %190 = arith.addf %182, %189 : vector<1x8xf32>
    %cst_267 = arith.constant dense<0.000000e+00> : vector<12xf32>
    %191 = vector.multi_reduction <add>, %144, %cst_267 [0] : vector<36x12xf32> to vector<12xf32>
    %192 = vector.shape_cast %191 : vector<12xf32> to vector<1x12xf32>
    %cst_268 = arith.constant 0.027777778 : f32
    %193 = vector.broadcast %cst_268 : f32 to vector<1x12xf32>
    %194 = arith.mulf %192, %193 : vector<1x12xf32>
    %195 = arith.truncf %194 : vector<1x12xf32> to vector<1x12xbf16>
    %c0_269 = arith.constant 0 : index
    %c0_270 = arith.constant 0 : index
    %196 = vector.load %arg20[%c0_269, %c0_270] : memref<12x8xbf16, #tpu.memory_space<vmem>>, vector<12x8xbf16>
    %cst_271 = arith.constant dense<0.000000e+00> : vector<1x8xf32>
    %197 = tpu.matmul %195, %196, %cst_271 {dimension_numbers = #tpu.dot_dimension_numbers<[1], [0], [0], [1], [0, 0, 1, 1], [], []>} : vector<1x12xbf16>, vector<12x8xbf16>, vector<1x8xf32> -> vector<1x8xf32>
    %198 = arith.addf %190, %197 : vector<1x8xf32>
    %cst_272 = arith.constant dense<0.000000e+00> : vector<8xf32>
    %199 = vector.multi_reduction <add>, %173, %cst_272 [0] : vector<36x8xf32> to vector<8xf32>
    %200 = vector.shape_cast %199 : vector<8xf32> to vector<1x8xf32>
    %cst_273 = arith.constant 0.027777778 : f32
    %201 = vector.broadcast %cst_273 : f32 to vector<1x8xf32>
    %202 = arith.mulf %200, %201 : vector<1x8xf32>
    %203 = arith.truncf %202 : vector<1x8xf32> to vector<1x8xbf16>
    %c0_274 = arith.constant 0 : index
    %c0_275 = arith.constant 0 : index
    %204 = vector.load %arg21[%c0_274, %c0_275] : memref<8x8xbf16, #tpu.memory_space<vmem>>, vector<8x8xbf16>
    %cst_276 = arith.constant dense<0.000000e+00> : vector<1x8xf32>
    %205 = tpu.matmul %203, %204, %cst_276 {dimension_numbers = #tpu.dot_dimension_numbers<[1], [0], [0], [1], [0, 0, 1, 1], [], []>} : vector<1x8xbf16>, vector<8x8xbf16>, vector<1x8xf32> -> vector<1x8xf32>
    %206 = arith.addf %198, %205 : vector<1x8xf32>
    %c0_277 = arith.constant 0 : index
    %c0_278 = arith.constant 0 : index
    %c0_279 = arith.constant 0 : index
    %207 = vector.load %arg23[%c0_277, %c0_278, %c0_279] : memref<1x1x8xf32, #tpu.memory_space<vmem>>, vector<1x1x8xf32>
    %208 = vector.shape_cast %207 : vector<1x1x8xf32> to vector<1x8xf32>
    %209 = vector.shape_cast %206 : vector<1x8xf32> to vector<1x1x8xf32>
    tpu.vector_store %arg23[%c0_277, %c0_278, %c0_279], %209 {strides = array<i32>} : memref<1x1x8xf32, #tpu.memory_space<vmem>>, vector<1x1x8xf32>,
    return
  }
  func.func @transform_0(%arg0: i32) -> (i32, i32, i32, i32) {
    %c0_i32 = arith.constant 0 : i32
    %c0_i32_0 = arith.constant 0 : i32
    %c0_i32_1 = arith.constant 0 : i32
    %c0_i32_2 = arith.constant 0 : i32
    return %arg0, %c0_i32, %c0_i32_0, %c0_i32_1 : i32, i32, i32, i32
  }
  func.func @transform_1(%arg0: i32) -> (i32, i32) {
    %c0_i32 = arith.constant 0 : i32
    %c0_i32_0 = arith.constant 0 : i32
    %c0_i32_1 = arith.constant 0 : i32
    return %c0_i32, %c0_i32_0 : i32, i32
  }
  func.func @transform_2(%arg0: i32) -> (i32, i32) {
    %c0_i32 = arith.constant 0 : i32
    %c0_i32_0 = arith.constant 0 : i32
    %c0_i32_1 = arith.constant 0 : i32
    return %c0_i32, %c0_i32_0 : i32, i32
  }
  func.func @transform_3(%arg0: i32) -> (i32, i32) {
    %c0_i32 = arith.constant 0 : i32
    %c0_i32_0 = arith.constant 0 : i32
    %c0_i32_1 = arith.constant 0 : i32
    return %c0_i32, %c0_i32_0 : i32, i32
  }
  func.func @transform_4(%arg0: i32) -> (i32, i32) {
    %c0_i32 = arith.constant 0 : i32
    %c0_i32_0 = arith.constant 0 : i32
    %c0_i32_1 = arith.constant 0 : i32
    return %c0_i32, %c0_i32_0 : i32, i32
  }
  func.func @transform_5(%arg0: i32) -> (i32, i32) {
    %c0_i32 = arith.constant 0 : i32
    %c0_i32_0 = arith.constant 0 : i32
    %c0_i32_1 = arith.constant 0 : i32
    return %c0_i32, %c0_i32_0 : i32, i32
  }
  func.func @transform_6(%arg0: i32) -> (i32, i32) {
    %c0_i32 = arith.constant 0 : i32
    %c0_i32_0 = arith.constant 0 : i32
    %c0_i32_1 = arith.constant 0 : i32
    return %c0_i32, %c0_i32_0 : i32, i32
  }
  func.func @transform_7(%arg0: i32) -> (i32, i32) {
    %c0_i32 = arith.constant 0 : i32
    %c0_i32_0 = arith.constant 0 : i32
    %c0_i32_1 = arith.constant 0 : i32
    return %c0_i32, %c0_i32_0 : i32, i32
  }
  func.func @transform_8(%arg0: i32) -> (i32, i32) {
    %c0_i32 = arith.constant 0 : i32
    %c0_i32_0 = arith.constant 0 : i32
    %c0_i32_1 = arith.constant 0 : i32
    return %c0_i32, %c0_i32_0 : i32, i32
  }
  func.func @transform_9(%arg0: i32) -> (i32, i32) {
    %c0_i32 = arith.constant 0 : i32
    %c0_i32_0 = arith.constant 0 : i32
    %c0_i32_1 = arith.constant 0 : i32
    return %c0_i32, %c0_i32_0 : i32, i32
  }
  func.func @transform_10(%arg0: i32) -> (i32, i32) {
    %c0_i32 = arith.constant 0 : i32
    %c0_i32_0 = arith.constant 0 : i32
    %c0_i32_1 = arith.constant 0 : i32
    return %c0_i32, %c0_i32_0 : i32, i32
  }
  func.func @transform_11(%arg0: i32) -> (i32, i32) {
    %c0_i32 = arith.constant 0 : i32
    %c0_i32_0 = arith.constant 0 : i32
    %c0_i32_1 = arith.constant 0 : i32
    return %c0_i32, %c0_i32_0 : i32, i32
  }
  func.func @transform_12(%arg0: i32) -> (i32, i32) {
    %c0_i32 = arith.constant 0 : i32
    %c0_i32_0 = arith.constant 0 : i32
    %c0_i32_1 = arith.constant 0 : i32
    return %c0_i32, %c0_i32_0 : i32, i32
  }
  func.func @transform_13(%arg0: i32) -> (i32, i32) {
    %c0_i32 = arith.constant 0 : i32
    %c0_i32_0 = arith.constant 0 : i32
    %c0_i32_1 = arith.constant 0 : i32
    return %c0_i32, %c0_i32_0 : i32, i32
  }
  func.func @transform_14(%arg0: i32) -> (i32, i32) {
    %c0_i32 = arith.constant 0 : i32
    %c0_i32_0 = arith.constant 0 : i32
    %c0_i32_1 = arith.constant 0 : i32
    return %c0_i32, %c0_i32_0 : i32, i32
  }
  func.func @transform_15(%arg0: i32) -> (i32, i32) {
    %c0_i32 = arith.constant 0 : i32
    %c0_i32_0 = arith.constant 0 : i32
    %c0_i32_1 = arith.constant 0 : i32
    return %c0_i32, %c0_i32_0 : i32, i32
  }
  func.func @transform_16(%arg0: i32) -> (i32, i32) {
    %c0_i32 = arith.constant 0 : i32
    %c0_i32_0 = arith.constant 0 : i32
    %c0_i32_1 = arith.constant 0 : i32
    return %c0_i32, %c0_i32_0 : i32, i32
  }
  func.func @transform_17(%arg0: i32) -> (i32, i32) {
    %c0_i32 = arith.constant 0 : i32
    %c0_i32_0 = arith.constant 0 : i32
    %c0_i32_1 = arith.constant 0 : i32
    return %c0_i32, %c0_i32_0 : i32, i32
  }
  func.func @transform_18(%arg0: i32) -> (i32, i32) {
    %c0_i32 = arith.constant 0 : i32
    %c0_i32_0 = arith.constant 0 : i32
    %c0_i32_1 = arith.constant 0 : i32
    return %c0_i32, %c0_i32_0 : i32, i32
  }
  func.func @transform_19(%arg0: i32) -> (i32, i32) {
    %c0_i32 = arith.constant 0 : i32
    %c0_i32_0 = arith.constant 0 : i32
    %c0_i32_1 = arith.constant 0 : i32
    return %c0_i32, %c0_i32_0 : i32, i32
  }
  func.func @transform_20(%arg0: i32) -> (i32, i32) {
    %c0_i32 = arith.constant 0 : i32
    %c0_i32_0 = arith.constant 0 : i32
    %c0_i32_1 = arith.constant 0 : i32
    return %c0_i32, %c0_i32_0 : i32, i32
  }
  func.func @transform_21(%arg0: i32) -> (i32, i32) {
    %c0_i32 = arith.constant 0 : i32
    %c0_i32_0 = arith.constant 0 : i32
    %c0_i32_1 = arith.constant 0 : i32
    return %c0_i32, %c0_i32_0 : i32, i32
  }
  func.func @transform_22(%arg0: i32) -> (i32, i32, i32) {
    %c0_i32 = arith.constant 0 : i32
    %c0_i32_0 = arith.constant 0 : i32
    %c0_i32_1 = arith.constant 0 : i32
    return %arg0, %c0_i32, %c0_i32_0 : i32, i32, i32
  }
}

</mosaic_0001>

<llo_original>
// kernel: modified_inception_forward.1
$region0: #{modified_inception_forward.1}
  #allocation0 [shape = 'u32[]', space=smem, size = 0x4, offset = 0x4, fixed_abs, tag = 'smem constant byte address 0x4 - core index']
  #allocation1 [shape = 'u32[72,128]{1,0:T(1,128)}', space=vmem, size = 0x9000, scoped, tag = 'internal scratch']
  #allocation2 [shape = 'f32[15,15,8]{2,1,0:T(8,128)}', space=vmem, size = 0x1e000, scoped, tag = 'scratch operand']
  #allocation3 [shape = 'f32[15,15,8]{2,1,0:T(8,128)}', space=vmem, size = 0x1e000, scoped, tag = 'scratch operand']
  #allocation4 [shape = 'f32[13,13,16]{2,1,0:T(8,128)}', space=vmem, size = 0x1a000, scoped, tag = 'scratch operand']
  #allocation5 [shape = 'f32[8,8,16]{2,1,0:T(8,128)}', space=vmem, size = 0x8000, scoped, tag = 'scratch operand']
  #allocation6 [shape = 'f32[8,8,16]{2,1,0:T(8,128)}', space=vmem, size = 0x8000, scoped, tag = 'scratch operand']
  #allocation7 [shape = 'f32[8,8,12]{2,1,0:T(8,128)}', space=vmem, size = 0x8000, scoped, tag = 'scratch operand']
  %s0 = inlined_call_operand.vmem [shape: bf16[2,16,16,12], index: 0, kind: input, shape index: {}]
  %s1 = inlined_call_operand.vmem [shape: bf16[48,8], index: 1, kind: input, shape index: {}]
  %s2 = inlined_call_operand.vmem [shape: f32[1,8], index: 2, kind: input, shape index: {}]
  %s3 = inlined_call_operand.vmem [shape: bf16[72,8], index: 3, kind: input, shape index: {}]
  %s4 = inlined_call_operand.vmem [shape: f32[1,8], index: 4, kind: input, shape index: {}]
  %s5 = inlined_call_operand.vmem [shape: bf16[72,16], index: 5, kind: input, shape index: {}]
  %s6 = inlined_call_operand.vmem [shape: f32[1,16], index: 6, kind: input, shape index: {}]
  %s7 = inlined_call_operand.vmem [shape: f32[36,121], index: 7, kind: input, shape index: {}]
  %s8 = inlined_call_operand.vmem [shape: bf16[16,24], index: 8, kind: input, shape index: {}]
  %s9 = inlined_call_operand.vmem [shape: f32[1,24], index: 9, kind: input, shape index: {}]
  %s10 = inlined_call_operand.vmem [shape: bf16[144,20], index: 10, kind: input, shape index: {}]
  %s11 = inlined_call_operand.vmem [shape: f32[1,20], index: 11, kind: input, shape index: {}]
  %s12 = inlined_call_operand.vmem [shape: bf16[108,12], index: 12, kind: input, shape index: {}]
  %s13 = inlined_call_operand.vmem [shape: f32[1,12], index: 13, kind: input, shape index: {}]
  %s14 = inlined_call_operand.vmem [shape: f32[36,1], index: 14, kind: input, shape index: {}]
  %s15 = inlined_call_operand.vmem [shape: bf16[16,8], index: 15, kind: input, shape index: {}]
  %s16 = inlined_call_operand.vmem [shape: f32[1,8], index: 16, kind: input, shape index: {}]
  %s17 = inlined_call_operand.vmem [shape: bf16[8,8], index: 17, kind: input, shape index: {}]
  %s18 = inlined_call_operand.vmem [shape: bf16[8,8], index: 18, kind: input, shape index: {}]
  %s19 = inlined_call_operand.vmem [shape: bf16[12,8], index: 19, kind: input, shape index: {}]
  %s20 = inlined_call_operand.vmem [shape: bf16[8,8], index: 20, kind: input, shape index: {}]
  %s21 = inlined_call_operand.vmem [shape: f32[1,8], index: 21, kind: input, shape index: {}]
  %s22 = inlined_call_operand.hbm [shape: f32[2,1,8], index: 22, kind: output, shape index: {}]
  %s23 = sld [smem:[#allocation0]]
  $region121: #{modified_inception_forward.1} parent=0
    _
  %s25 = ssub.s32 1, %s23
  %s26 = scalar_select 0, %s25, %s23
  $region1: #{modified_inception_forward.1} parent=0
    #allocation8 [shape = 'u8[1024]{0}', space=vmem, size = 0x400, scoped, tag = 'output window, operand 0']
    #allocation9 [shape = 's32[2]{0}', space=sflag, size = 0x8, scoped, tag = 'scoped memory for modified_inception_forward.1']
    %27 = vsyncpa [#allocation9], 0
    %s28 = scalar_lea.sflag [#allocation9], 1
    %29 = vsyncpa %s28, 0
    loop: start=0, step=1, limit=4
    $region2: #{modified_inception_forward.1} parent=1 // loop_pre_header
      _
    $region3: #{modified_inception_forward.1} parent=1 // loop_header
      %s31 = sphi 0, %s35
      %p32 = scmp.ge.s32.totalorder %s31, 4
      %s41 = sphi 0, %s43
      %s44 = sphi 0, %s41
      %s45 = sphi 0, %s44
      %s61 = sphi 0, %s45
      %s65 = sphi 0, %s65
      %s67 = sphi 0, %s65
      %s68 = sphi 0, %s67
      %s82 = sphi 0, %s68
      %s86 = sphi 0, %s86
      %s88 = sphi 0, %s86
      %s89 = sphi 0, %s88
      %s103 = sphi 0, %s89
      %s107 = sphi 0, %s107
      %s109 = sphi 0, %s107
      %s110 = sphi 0, %s109
      %s124 = sphi 0, %s110
      %s128 = sphi 0, %s128
      %s130 = sphi 0, %s128
      %s131 = sphi 0, %s130
      %s145 = sphi 0, %s131
      %s149 = sphi 0, %s149
      %s151 = sphi 0, %s149
      %s152 = sphi 0, %s151
      %s166 = sphi 0, %s152
      %s170 = sphi 0, %s170
      %s172 = sphi 0, %s170
      %s173 = sphi 0, %s172
      %s187 = sphi 0, %s173
      %s191 = sphi 0, %s191
      %s193 = sphi 0, %s191
      %s194 = sphi 0, %s193
      %s208 = sphi 0, %s194
      %s212 = sphi 0, %s212
      %s214 = sphi 0, %s212
      %s215 = sphi 0, %s214
      %s229 = sphi 0, %s215
      %s233 = sphi 0, %s233
      %s235 = sphi 0, %s233
      %s236 = sphi 0, %s235
      %s250 = sphi 0, %s236
      %s254 = sphi 0, %s254
      %s256 = sphi 0, %s254
      %s257 = sphi 0, %s256
      %s271 = sphi 0, %s257
      %s275 = sphi 0, %s275
      %s277 = sphi 0, %s275
      %s278 = sphi 0, %s277
      %s292 = sphi 0, %s278
      %s296 = sphi 0, %s296
      %s298 = sphi 0, %s296
      %s299 = sphi 0, %s298
      %s313 = sphi 0, %s299
      %s317 = sphi 0, %s317
      %s319 = sphi 0, %s317
      %s320 = sphi 0, %s319
      %s334 = sphi 0, %s320
      %s338 = sphi 0, %s338
      %s340 = sphi 0, %s338
      %s341 = sphi 0, %s340
      %s355 = sphi 0, %s341
      %s359 = sphi 0, %s359
      %s361 = sphi 0, %s359
      %s362 = sphi 0, %s361
      %s376 = sphi 0, %s362
      %s380 = sphi 0, %s380
      %s382 = sphi 0, %s380
      %s383 = sphi 0, %s382
      %s397 = sphi 0, %s383
      %s401 = sphi 0, %s401
      %s403 = sphi 0, %s401
      %s404 = sphi 0, %s403
      %s418 = sphi 0, %s404
      %s422 = sphi 0, %s422
      %s424 = sphi 0, %s422
      %s425 = sphi 0, %s424
      %s439 = sphi 0, %s425
      %s443 = sphi 0, %s443
      %s445 = sphi 0, %s443
      %s446 = sphi 0, %s445
      %s460 = sphi 0, %s446
      %s464 = sphi 0, %s464
      %s466 = sphi 0, %s464
      %s467 = sphi 0, %s466
      %s481 = sphi 0, %s467
      %s485 = sphi 0, %s485
      %s487 = sphi 0, %s485
      %s488 = sphi 0, %s487
      %s502 = sphi 0, %s488
      %s508 = sphi 0, %s510
      %s511 = sphi 0, %s508
      %s512 = sphi 0, %s511
      %s528 = sphi 0, %s512
    $region4: #{modified_inception_forward.1} parent=1 // loop_header_branch
      %34 = sbr.rel (%p32) target = $region8
    $region5: #{modified_inception_forward.1} parent=1 // loop_body
      %s36 = ssub.s32 %s31, 1
      %s37 = ssub.s32 %s31, 2
      %s38 = sadd.s32 %s31, 1
      %s39 = ssub.s32 %s31, %s38
      %p40 = scmp.eq.s32.totalorder %s39, 0
      %s42 = sadd.s32 %s41, 1
      %s43 = scalar_select %p40, %s41, %s42
      %p46 = pneg %p40
      %p47 = scmp.eq.s32.totalorder %s31, 1
      %p48 = por %p46, %p47
      %p49 = scmp.ne.s32.totalorder %s41, %s44
      %p50 = scmp.eq.s32.totalorder %s31, 0
      %p51 = por %p49, %p50
      %p52 = scmp.ne.s32.totalorder %s41, %s44
      %p53 = scmp.eq.s32.totalorder %s36, 1
      %p54 = por %p52, %p53
      %p55 = scmp.ne.s32.totalorder %s44, %s45
      %p56 = scmp.eq.s32.totalorder %s36, 0
      %p57 = por %p55, %p56
      %p58 = scmp.ne.s32.totalorder %s44, %s45
      %p59 = scmp.eq.s32.totalorder %s37, 1
      %p60 = por %p58, %p59
      %p62 = scmp.ne.s32.totalorder %s45, %s61
      %p63 = scmp.eq.s32.totalorder %s37, 0
      %p64 = por %p62, %p63
      %s66 = sadd.s32 %s65, 1
      %p69 = scmp.eq.s32.totalorder %s31, 1
      %p70 = scmp.ne.s32.totalorder %s65, %s67
      %p71 = scmp.eq.s32.totalorder %s31, 0
      %p72 = por %p70, %p71
      %p73 = scmp.ne.s32.totalorder %s65, %s67
      %p74 = scmp.eq.s32.totalorder %s36, 1
      %p75 = por %p73, %p74
      %p76 = scmp.ne.s32.totalorder %s67, %s68
      %p77 = scmp.eq.s32.totalorder %s36, 0
      %p78 = por %p76, %p77
      %p79 = scmp.ne.s32.totalorder %s67, %s68
      %p80 = scmp.eq.s32.totalorder %s37, 1
      %p81 = por %p79, %p80
      %p83 = scmp.ne.s32.totalorder %s68, %s82
      %p84 = scmp.eq.s32.totalorder %s37, 0
      %p85 = por %p83, %p84
      %s87 = sadd.s32 %s86, 1
      %p90 = scmp.eq.s32.totalorder %s31, 1
      %p91 = scmp.ne.s32.totalorder %s86, %s88
      %p92 = scmp.eq.s32.totalorder %s31, 0
      %p93 = por %p91, %p92
      %p94 = scmp.ne.s32.totalorder %s86, %s88
      %p95 = scmp.eq.s32.totalorder %s36, 1
      %p96 = por %p94, %p95
      %p97 = scmp.ne.s32.totalorder %s88, %s89
      %p98 = scmp.eq.s32.totalorder %s36, 0
      %p99 = por %p97, %p98
      %p100 = scmp.ne.s32.totalorder %s88, %s89
      %p101 = scmp.eq.s32.totalorder %s37, 1
      %p102 = por %p100, %p101
      %p104 = scmp.ne.s32.totalorder %s89, %s103
      %p105 = scmp.eq.s32.totalorder %s37, 0
      %p106 = por %p104, %p105
      %s108 = sadd.s32 %s107, 1
      %p111 = scmp.eq.s32.totalorder %s31, 1
      %p112 = scmp.ne.s32.totalorder %s107, %s109
      %p113 = scmp.eq.s32.totalorder %s31, 0
      %p114 = por %p112, %p113
      %p115 = scmp.ne.s32.totalorder %s107, %s109
      %p116 = scmp.eq.s32.totalorder %s36, 1
      %p117 = por %p115, %p116
      %p118 = scmp.ne.s32.totalorder %s109, %s110
      %p119 = scmp.eq.s32.totalorder %s36, 0
      %p120 = por %p118, %p119
      %p121 = scmp.ne.s32.totalorder %s109, %s110
      %p122 = scmp.eq.s32.totalorder %s37, 1
      %p123 = por %p121, %p122
      %p125 = scmp.ne.s32.totalorder %s110, %s124
      %p126 = scmp.eq.s32.totalorder %s37, 0
      %p127 = por %p125, %p126
      %s129 = sadd.s32 %s128, 1
      %p132 = scmp.eq.s32.totalorder %s31, 1
      %p133 = scmp.ne.s32.totalorder %s128, %s130
      %p134 = scmp.eq.s32.totalorder %s31, 0
      %p135 = por %p133, %p134
      %p136 = scmp.ne.s32.totalorder %s128, %s130
      %p137 = scmp.eq.s32.totalorder %s36, 1
      %p138 = por %p136, %p137
      %p139 = scmp.ne.s32.totalorder %s130, %s131
      %p140 = scmp.eq.s32.totalorder %s36, 0
      %p141 = por %p139, %p140
      %p142 = scmp.ne.s32.totalorder %s130, %s131
      %p143 = scmp.eq.s32.totalorder %s37, 1
      %p144 = por %p142, %p143
      %p146 = scmp.ne.s32.totalorder %s131, %s145
      %p147 = scmp.eq.s32.totalorder %s37, 0
      %p148 = por %p146, %p147
      %s150 = sadd.s32 %s149, 1
      %p153 = scmp.eq.s32.totalorder %s31, 1
      %p154 = scmp.ne.s32.totalorder %s149, %s151
      %p155 = scmp.eq.s32.totalorder %s31, 0
      %p156 = por %p154, %p155
      %p157 = scmp.ne.s32.totalorder %s149, %s151
      %p158 = scmp.eq.s32.totalorder %s36, 1
      %p159 = por %p157, %p158
      %p160 = scmp.ne.s32.totalorder %s151, %s152
      %p161 = scmp.eq.s32.totalorder %s36, 0
      %p162 = por %p160, %p161
      %p163 = scmp.ne.s32.totalorder %s151, %s152
      %p164 = scmp.eq.s32.totalorder %s37, 1
      %p165 = por %p163, %p164
      %p167 = scmp.ne.s32.totalorder %s152, %s166
      %p168 = scmp.eq.s32.totalorder %s37, 0
      %p169 = por %p167, %p168
      %s171 = sadd.s32 %s170, 1
      %p174 = scmp.eq.s32.totalorder %s31, 1
      %p175 = scmp.ne.s32.totalorder %s170, %s172
      %p176 = scmp.eq.s32.totalorder %s31, 0
      %p177 = por %p175, %p176
      %p178 = scmp.ne.s32.totalorder %s170, %s172
      %p179 = scmp.eq.s32.totalorder %s36, 1
      %p180 = por %p178, %p179
      %p181 = scmp.ne.s32.totalorder %s172, %s173
      %p182 = scmp.eq.s32.totalorder %s36, 0
      %p183 = por %p181, %p182
      %p184 = scmp.ne.s32.totalorder %s172, %s173
      %p185 = scmp.eq.s32.totalorder %s37, 1
      %p186 = por %p184, %p185
      %p188 = scmp.ne.s32.totalorder %s173, %s187
      %p189 = scmp.eq.s32.totalorder %s37, 0
      %p190 = por %p188, %p189
      %s192 = sadd.s32 %s191, 1
      %p195 = scmp.eq.s32.totalorder %s31, 1
      %p196 = scmp.ne.s32.totalorder %s191, %s193
      %p197 = scmp.eq.s32.totalorder %s31, 0
      %p198 = por %p196, %p197
      %p199 = scmp.ne.s32.totalorder %s191, %s193
      %p200 = scmp.eq.s32.totalorder %s36, 1
      %p201 = por %p199, %p200
      %p202 = scmp.ne.s32.totalorder %s193, %s194
      %p203 = scmp.eq.s32.totalorder %s36, 0
      %p204 = por %p202, %p203
      %p205 = scmp.ne.s32.totalorder %s193, %s194
      %p206 = scmp.eq.s32.totalorder %s37, 1
      %p207 = por %p205, %p206
      %p209 = scmp.ne.s32.totalorder %s194, %s208
      %p210 = scmp.eq.s32.totalorder %s37, 0
      %p211 = por %p209, %p210
      %s213 = sadd.s32 %s212, 1
      %p216 = scmp.eq.s32.totalorder %s31, 1
      %p217 = scmp.ne.s32.totalorder %s212, %s214
      %p218 = scmp.eq.s32.totalorder %s31, 0
      %p219 = por %p217, %p218
      %p220 = scmp.ne.s32.totalorder %s212, %s214
      %p221 = scmp.eq.s32.totalorder %s36, 1
      %p222 = por %p220, %p221
      %p223 = scmp.ne.s32.totalorder %s214, %s215
      %p224 = scmp.eq.s32.totalorder %s36, 0
      %p225 = por %p223, %p224
      %p226 = scmp.ne.s32.totalorder %s214, %s215
      %p227 = scmp.eq.s32.totalorder %s37, 1
      %p228 = por %p226, %p227
      %p230 = scmp.ne.s32.totalorder %s215, %s229
      %p231 = scmp.eq.s32.totalorder %s37, 0
      %p232 = por %p230, %p231
      %s234 = sadd.s32 %s233, 1
      %p237 = scmp.eq.s32.totalorder %s31, 1
      %p238 = scmp.ne.s32.totalorder %s233, %s235
      %p239 = scmp.eq.s32.totalorder %s31, 0
      %p240 = por %p238, %p239
      %p241 = scmp.ne.s32.totalorder %s233, %s235
      %p242 = scmp.eq.s32.totalorder %s36, 1
      %p243 = por %p241, %p242
      %p244 = scmp.ne.s32.totalorder %s235, %s236
      %p245 = scmp.eq.s32.totalorder %s36, 0
      %p246 = por %p244, %p245
      %p247 = scmp.ne.s32.totalorder %s235, %s236
      %p248 = scmp.eq.s32.totalorder %s37, 1
      %p249 = por %p247, %p248
      %p251 = scmp.ne.s32.totalorder %s236, %s250
      %p252 = scmp.eq.s32.totalorder %s37, 0
      %p253 = por %p251, %p252
      %s255 = sadd.s32 %s254, 1
      %p258 = scmp.eq.s32.totalorder %s31, 1
      %p259 = scmp.ne.s32.totalorder %s254, %s256
      %p260 = scmp.eq.s32.totalorder %s31, 0
      %p261 = por %p259, %p260
      %p262 = scmp.ne.s32.totalorder %s254, %s256
      %p263 = scmp.eq.s32.totalorder %s36, 1
      %p264 = por %p262, %p263
      %p265 = scmp.ne.s32.totalorder %s256, %s257
      %p266 = scmp.eq.s32.totalorder %s36, 0
      %p267 = por %p265, %p266
      %p268 = scmp.ne.s32.totalorder %s256, %s257
      %p269 = scmp.eq.s32.totalorder %s37, 1
      %p270 = por %p268, %p269
      %p272 = scmp.ne.s32.totalorder %s257, %s271
      %p273 = scmp.eq.s32.totalorder %s37, 0
      %p274 = por %p272, %p273
      %s276 = sadd.s32 %s275, 1
      %p279 = scmp.eq.s32.totalorder %s31, 1
      %p280 = scmp.ne.s32.totalorder %s275, %s277
      %p281 = scmp.eq.s32.totalorder %s31, 0
      %p282 = por %p280, %p281
      %p283 = scmp.ne.s32.totalorder %s275, %s277
      %p284 = scmp.eq.s32.totalorder %s36, 1
      %p285 = por %p283, %p284
      %p286 = scmp.ne.s32.totalorder %s277, %s278
      %p287 = scmp.eq.s32.totalorder %s36, 0
      %p288 = por %p286, %p287
      %p289 = scmp.ne.s32.totalorder %s277, %s278
      %p290 = scmp.eq.s32.totalorder %s37, 1
      %p291 = por %p289, %p290
      %p293 = scmp.ne.s32.totalorder %s278, %s292
      %p294 = scmp.eq.s32.totalorder %s37, 0
      %p295 = por %p293, %p294
      %s297 = sadd.s32 %s296, 1
      %p300 = scmp.eq.s32.totalorder %s31, 1
      %p301 = scmp.ne.s32.totalorder %s296, %s298
      %p302 = scmp.eq.s32.totalorder %s31, 0
      %p303 = por %p301, %p302
      %p304 = scmp.ne.s32.totalorder %s296, %s298
      %p305 = scmp.eq.s32.totalorder %s36, 1
      %p306 = por %p304, %p305
      %p307 = scmp.ne.s32.totalorder %s298, %s299
      %p308 = scmp.eq.s32.totalorder %s36, 0
      %p309 = por %p307, %p308
      %p310 = scmp.ne.s32.totalorder %s298, %s299
      %p311 = scmp.eq.s32.totalorder %s37, 1
      %p312 = por %p310, %p311
      %p314 = scmp.ne.s32.totalorder %s299, %s313
      %p315 = scmp.eq.s32.totalorder %s37, 0
      %p316 = por %p314, %p315
      %s318 = sadd.s32 %s317, 1
      %p321 = scmp.eq.s32.totalorder %s31, 1
      %p322 = scmp.ne.s32.totalorder %s317, %s319
      %p323 = scmp.eq.s32.totalorder %s31, 0
      %p324 = por %p322, %p323
      %p325 = scmp.ne.s32.totalorder %s317, %s319
      %p326 = scmp.eq.s32.totalorder %s36, 1
      %p327 = por %p325, %p326
      %p328 = scmp.ne.s32.totalorder %s319, %s320
      %p329 = scmp.eq.s32.totalorder %s36, 0
      %p330 = por %p328, %p329
      %p331 = scmp.ne.s32.totalorder %s319, %s320
      %p332 = scmp.eq.s32.totalorder %s37, 1
      %p333 = por %p331, %p332
      %p335 = scmp.ne.s32.totalorder %s320, %s334
      %p336 = scmp.eq.s32.totalorder %s37, 0
      %p337 = por %p335, %p336
      %s339 = sadd.s32 %s338, 1
      %p342 = scmp.eq.s32.totalorder %s31, 1
      %p343 = scmp.ne.s32.totalorder %s338, %s340
      %p344 = scmp.eq.s32.totalorder %s31, 0
      %p345 = por %p343, %p344
      %p346 = scmp.ne.s32.totalorder %s338, %s340
      %p347 = scmp.eq.s32.totalorder %s36, 1
      %p348 = por %p346, %p347
      %p349 = scmp.ne.s32.totalorder %s340, %s341
      %p350 = scmp.eq.s32.totalorder %s36, 0
      %p351 = por %p349, %p350
      %p352 = scmp.ne.s32.totalorder %s340, %s341
      %p353 = scmp.eq.s32.totalorder %s37, 1
      %p354 = por %p352, %p353
      %p356 = scmp.ne.s32.totalorder %s341, %s355
      %p357 = scmp.eq.s32.totalorder %s37, 0
      %p358 = por %p356, %p357
      %s360 = sadd.s32 %s359, 1
      %p363 = scmp.eq.s32.totalorder %s31, 1
      %p364 = scmp.ne.s32.totalorder %s359, %s361
      %p365 = scmp.eq.s32.totalorder %s31, 0
      %p366 = por %p364, %p365
      %p367 = scmp.ne.s32.totalorder %s359, %s361
      %p368 = scmp.eq.s32.totalorder %s36, 1
      %p369 = por %p367, %p368
      %p370 = scmp.ne.s32.totalorder %s361, %s362
      %p371 = scmp.eq.s32.totalorder %s36, 0
      %p372 = por %p370, %p371
      %p373 = scmp.ne.s32.totalorder %s361, %s362
      %p374 = scmp.eq.s32.totalorder %s37, 1
      %p375 = por %p373, %p374
      %p377 = scmp.ne.s32.totalorder %s362, %s376
      %p378 = scmp.eq.s32.totalorder %s37, 0
      %p379 = por %p377, %p378
      %s381 = sadd.s32 %s380, 1
      %p384 = scmp.eq.s32.totalorder %s31, 1
      %p385 = scmp.ne.s32.totalorder %s380, %s382
      %p386 = scmp.eq.s32.totalorder %s31, 0
      %p387 = por %p385, %p386
      %p388 = scmp.ne.s32.totalorder %s380, %s382
      %p389 = scmp.eq.s32.totalorder %s36, 1
      %p390 = por %p388, %p389
      %p391 = scmp.ne.s32.totalorder %s382, %s383
      %p392 = scmp.eq.s32.totalorder %s36, 0
      %p393 = por %p391, %p392
      %p394 = scmp.ne.s32.totalorder %s382, %s383
      %p395 = scmp.eq.s32.totalorder %s37, 1
      %p396 = por %p394, %p395
      %p398 = scmp.ne.s32.totalorder %s383, %s397
      %p399 = scmp.eq.s32.totalorder %s37, 0
      %p400 = por %p398, %p399
      %s402 = sadd.s32 %s401, 1
      %p405 = scmp.eq.s32.totalorder %s31, 1
      %p406 = scmp.ne.s32.totalorder %s401, %s403
      %p407 = scmp.eq.s32.totalorder %s31, 0
      %p408 = por %p406, %p407
      %p409 = scmp.ne.s32.totalorder %s401, %s403
      %p410 = scmp.eq.s32.totalorder %s36, 1
      %p411 = por %p409, %p410
      %p412 = scmp.ne.s32.totalorder %s403, %s404
      %p413 = scmp.eq.s32.totalorder %s36, 0
      %p414 = por %p412, %p413
      %p415 = scmp.ne.s32.totalorder %s403, %s404
      %p416 = scmp.eq.s32.totalorder %s37, 1
      %p417 = por %p415, %p416
      %p419 = scmp.ne.s32.totalorder %s404, %s418
      %p420 = scmp.eq.s32.totalorder %s37, 0
      %p421 = por %p419, %p420
      %s423 = sadd.s32 %s422, 1
      %p426 = scmp.eq.s32.totalorder %s31, 1
      %p427 = scmp.ne.s32.totalorder %s422, %s424
      %p428 = scmp.eq.s32.totalorder %s31, 0
      %p429 = por %p427, %p428
      %p430 = scmp.ne.s32.totalorder %s422, %s424
      %p431 = scmp.eq.s32.totalorder %s36, 1
      %p432 = por %p430, %p431
      %p433 = scmp.ne.s32.totalorder %s424, %s425
      %p434 = scmp.eq.s32.totalorder %s36, 0
      %p435 = por %p433, %p434
      %p436 = scmp.ne.s32.totalorder %s424, %s425
      %p437 = scmp.eq.s32.totalorder %s37, 1
      %p438 = por %p436, %p437
      %p440 = scmp.ne.s32.totalorder %s425, %s439
      %p441 = scmp.eq.s32.totalorder %s37, 0
      %p442 = por %p440, %p441
      %s444 = sadd.s32 %s443, 1
      %p447 = scmp.eq.s32.totalorder %s31, 1
      %p448 = scmp.ne.s32.totalorder %s443, %s445
      %p449 = scmp.eq.s32.totalorder %s31, 0
      %p450 = por %p448, %p449
      %p451 = scmp.ne.s32.totalorder %s443, %s445
      %p452 = scmp.eq.s32.totalorder %s36, 1
      %p453 = por %p451, %p452
      %p454 = scmp.ne.s32.totalorder %s445, %s446
      %p455 = scmp.eq.s32.totalorder %s36, 0
      %p456 = por %p454, %p455
      %p457 = scmp.ne.s32.totalorder %s445, %s446
      %p458 = scmp.eq.s32.totalorder %s37, 1
      %p459 = por %p457, %p458
      %p461 = scmp.ne.s32.totalorder %s446, %s460
      %p462 = scmp.eq.s32.totalorder %s37, 0
      %p463 = por %p461, %p462
      %s465 = sadd.s32 %s464, 1
      %p468 = scmp.eq.s32.totalorder %s31, 1
      %p469 = scmp.ne.s32.totalorder %s464, %s466
      %p470 = scmp.eq.s32.totalorder %s31, 0
      %p471 = por %p469, %p470
      %p472 = scmp.ne.s32.totalorder %s464, %s466
      %p473 = scmp.eq.s32.totalorder %s36, 1
      %p474 = por %p472, %p473
      %p475 = scmp.ne.s32.totalorder %s466, %s467
      %p476 = scmp.eq.s32.totalorder %s36, 0
      %p477 = por %p475, %p476
      %p478 = scmp.ne.s32.totalorder %s466, %s467
      %p479 = scmp.eq.s32.totalorder %s37, 1
      %p480 = por %p478, %p479
      %p482 = scmp.ne.s32.totalorder %s467, %s481
      %p483 = scmp.eq.s32.totalorder %s37, 0
      %p484 = por %p482, %p483
      %s486 = sadd.s32 %s485, 1
      %p489 = scmp.eq.s32.totalorder %s31, 1
      %p490 = scmp.ne.s32.totalorder %s485, %s487
      %p491 = scmp.eq.s32.totalorder %s31, 0
      %p492 = por %p490, %p491
      %p493 = scmp.ne.s32.totalorder %s485, %s487
      %p494 = scmp.eq.s32.totalorder %s36, 1
      %p495 = por %p493, %p494
      %p496 = scmp.ne.s32.totalorder %s487, %s488
      %p497 = scmp.eq.s32.totalorder %s36, 0
      %p498 = por %p496, %p497
      %p499 = scmp.ne.s32.totalorder %s487, %s488
      %p500 = scmp.eq.s32.totalorder %s37, 1
      %p501 = por %p499, %p500
      %p503 = scmp.ne.s32.totalorder %s488, %s502
      %p504 = scmp.eq.s32.totalorder %s37, 0
      %p505 = por %p503, %p504
      %s506 = ssub.s32 %s31, %s38
      %p507 = scmp.eq.s32.totalorder %s506, 0
      %s509 = sadd.s32 %s508, 1
      %s510 = scalar_select %p507, %s508, %s509
      %p513 = pneg %p507
      %p514 = scmp.eq.s32.totalorder %s31, 1
      %p515 = por %p513, %p514
      %p516 = scmp.ne.s32.totalorder %s508, %s511
      %p517 = scmp.eq.s32.totalorder %s31, 0
      %p518 = por %p516, %p517
      %p519 = scmp.ne.s32.totalorder %s508, %s511
      %p520 = scmp.eq.s32.totalorder %s36, 1
      %p521 = por %p519, %p520
      %p522 = scmp.ne.s32.totalorder %s511, %s512
      %p523 = scmp.eq.s32.totalorder %s36, 0
      %p524 = por %p522, %p523
      %p525 = scmp.ne.s32.totalorder %s511, %s512
      %p526 = scmp.eq.s32.totalorder %s37, 1
      %p527 = por %p525, %p526
      %p529 = scmp.ne.s32.totalorder %s512, %s528
      %p530 = scmp.eq.s32.totalorder %s37, 0
      %p531 = por %p529, %p530
      %p532 = scmp.le.s32.totalorder 1, %s31
      %p533 = scmp.lt.s32.totalorder %s31, 3
      %p534 = pnand %p532, %p533
      %p535 = pneg %p534
      // Predicated region
      $region9: #{modified_inception_forward.1} parent=5 // pred_check
        _
      $region10: #{modified_inception_forward.1} parent=5 // pred_check_branch
        %537 = sbr.rel (%p534) target = $region12
      $region11: #{modified_inception_forward.1} parent=5 // pred_region
        %s538 = ssub.s32 %s31, 1
        // Predicated region
        $region13: #{modified_inception_forward.1} parent=11 // pred_check
          %p539 = pneg %p78
        $region14: #{modified_inception_forward.1} parent=11 // pred_check_branch
          %541 = sbr.rel (%p539) target = $region16
        $region15: #{modified_inception_forward.1} parent=11 // pred_region
          _
        $region16: #{modified_inception_forward.1} parent=11 // pred_fallthru
          _
        // Predicated region
        $region17: #{modified_inception_forward.1} parent=11 // pred_check
          %p542 = pneg %p99
        $region18: #{modified_inception_forward.1} parent=11 // pred_check_branch
          %544 = sbr.rel (%p542) target = $region20
        $region19: #{modified_inception_forward.1} parent=11 // pred_region
          _
        $region20: #{modified_inception_forward.1} parent=11 // pred_fallthru
          _
        // Predicated region
        $region21: #{modified_inception_forward.1} parent=11 // pred_check
          %p545 = pneg %p120
        $region22: #{modified_inception_forward.1} parent=11 // pred_check_branch
          %547 = sbr.rel (%p545) target = $region24
        $region23: #{modified_inception_forward.1} parent=11 // pred_region
          _
        $region24: #{modified_inception_forward.1} parent=11 // pred_fallthru
          _
        // Predicated region
        $region25: #{modified_inception_forward.1} parent=11 // pred_check
          %p548 = pneg %p141
        $region26: #{modified_inception_forward.1} parent=11 // pred_check_branch
          %550 = sbr.rel (%p548) target = $region28
        $region27: #{modified_inception_forward.1} parent=11 // pred_region
          _
        $region28: #{modified_inception_forward.1} parent=11 // pred_fallthru
          _
        // Predicated region
        $region29: #{modified_inception_forward.1} parent=11 // pred_check
          %p551 = pneg %p162
        $region30: #{modified_inception_forward.1} parent=11 // pred_check_branch
          %553 = sbr.rel (%p551) target = $region32
        $region31: #{modified_inception_forward.1} parent=11 // pred_region
          _
        $region32: #{modified_inception_forward.1} parent=11 // pred_fallthru
          _
        // Predicated region
        $region33: #{modified_inception_forward.1} parent=11 // pred_check
          %p554 = pneg %p183
        $region34: #{modified_inception_forward.1} parent=11 // pred_check_branch
          %556 = sbr.rel (%p554) target = $region36
        $region35: #{modified_inception_forward.1} parent=11 // pred_region
          _
        $region36: #{modified_inception_forward.1} parent=11 // pred_fallthru
          _
        // Predicated region
        $region37: #{modified_inception_forward.1} parent=11 // pred_check
          %p557 = pneg %p204
        $region38: #{modified_inception_forward.1} parent=11 // pred_check_branch
          %559 = sbr.rel (%p557) target = $region40
        $region39: #{modified_inception_forward.1} parent=11 // pred_region
          _
        $region40: #{modified_inception_forward.1} parent=11 // pred_fallthru
          _
        // Predicated region
        $region41: #{modified_inception_forward.1} parent=11 // pred_check
          %p560 = pneg %p225
        $region42: #{modified_inception_forward.1} parent=11 // pred_check_branch
          %562 = sbr.rel (%p560) target = $region44
        $region43: #{modified_inception_forward.1} parent=11 // pred_region
          _
        $region44: #{modified_inception_forward.1} parent=11 // pred_fallthru
          _
        // Predicated region
        $region45: #{modified_inception_forward.1} parent=11 // pred_check
          %p563 = pneg %p246
        $region46: #{modified_inception_forward.1} parent=11 // pred_check_branch
          %565 = sbr.rel (%p563) target = $region48
        $region47: #{modified_inception_forward.1} parent=11 // pred_region
          _
        $region48: #{modified_inception_forward.1} parent=11 // pred_fallthru
          _
        // Predicated region
        $region49: #{modified_inception_forward.1} parent=11 // pred_check
          %p566 = pneg %p267
        $region50: #{modified_inception_forward.1} parent=11 // pred_check_branch
          %568 = sbr.rel (%p566) target = $region52
        $region51: #{modified_inception_forward.1} parent=11 // pred_region
          _
        $region52: #{modified_inception_forward.1} parent=11 // pred_fallthru
          _
        // Predicated region
        $region53: #{modified_inception_forward.1} parent=11 // pred_check
          %p569 = pneg %p288
        $region54: #{modified_inception_forward.1} parent=11 // pred_check_branch
          %571 = sbr.rel (%p569) target = $region56
        $region55: #{modified_inception_forward.1} parent=11 // pred_region
          _
        $region56: #{modified_inception_forward.1} parent=11 // pred_fallthru
          _
        // Predicated region
        $region57: #{modified_inception_forward.1} parent=11 // pred_check
          %p572 = pneg %p309
        $region58: #{modified_inception_forward.1} parent=11 // pred_check_branch
          %574 = sbr.rel (%p572) target = $region60
        $region59: #{modified_inception_forward.1} parent=11 // pred_region
          _
        $region60: #{modified_inception_forward.1} parent=11 // pred_fallthru
          _
        // Predicated region
        $region61: #{modified_inception_forward.1} parent=11 // pred_check
          %p575 = pneg %p330
        $region62: #{modified_inception_forward.1} parent=11 // pred_check_branch
          %577 = sbr.rel (%p575) target = $region64
        $region63: #{modified_inception_forward.1} parent=11 // pred_region
          _
        $region64: #{modified_inception_forward.1} parent=11 // pred_fallthru
          _
        // Predicated region
        $region65: #{modified_inception_forward.1} parent=11 // pred_check
          %p578 = pneg %p351
        $region66: #{modified_inception_forward.1} parent=11 // pred_check_branch
          %580 = sbr.rel (%p578) target = $region68
        $region67: #{modified_inception_forward.1} parent=11 // pred_region
          _
        $region68: #{modified_inception_forward.1} parent=11 // pred_fallthru
          _
        // Predicated region
        $region69: #{modified_inception_forward.1} parent=11 // pred_check
          %p581 = pneg %p372
        $region70: #{modified_inception_forward.1} parent=11 // pred_check_branch
          %583 = sbr.rel (%p581) target = $region72
        $region71: #{modified_inception_forward.1} parent=11 // pred_region
          _
        $region72: #{modified_inception_forward.1} parent=11 // pred_fallthru
          _
        // Predicated region
        $region73: #{modified_inception_forward.1} parent=11 // pred_check
          %p584 = pneg %p393
        $region74: #{modified_inception_forward.1} parent=11 // pred_check_branch
          %586 = sbr.rel (%p584) target = $region76
        $region75: #{modified_inception_forward.1} parent=11 // pred_region
          _
        $region76: #{modified_inception_forward.1} parent=11 // pred_fallthru
          _
        // Predicated region
        $region77: #{modified_inception_forward.1} parent=11 // pred_check
          %p587 = pneg %p414
        $region78: #{modified_inception_forward.1} parent=11 // pred_check_branch
          %589 = sbr.rel (%p587) target = $region80
        $region79: #{modified_inception_forward.1} parent=11 // pred_region
          _
        $region80: #{modified_inception_forward.1} parent=11 // pred_fallthru
          _
        // Predicated region
        $region81: #{modified_inception_forward.1} parent=11 // pred_check
          %p590 = pneg %p435
        $region82: #{modified_inception_forward.1} parent=11 // pred_check_branch
          %592 = sbr.rel (%p590) target = $region84
        $region83: #{modified_inception_forward.1} parent=11 // pred_region
          _
        $region84: #{modified_inception_forward.1} parent=11 // pred_fallthru
          _
        // Predicated region
        $region85: #{modified_inception_forward.1} parent=11 // pred_check
          %p593 = pneg %p456
        $region86: #{modified_inception_forward.1} parent=11 // pred_check_branch
          %595 = sbr.rel (%p593) target = $region88
        $region87: #{modified_inception_forward.1} parent=11 // pred_region
          _
        $region88: #{modified_inception_forward.1} parent=11 // pred_fallthru
          _
        // Predicated region
        $region89: #{modified_inception_forward.1} parent=11 // pred_check
          %p596 = pneg %p477
        $region90: #{modified_inception_forward.1} parent=11 // pred_check_branch
          %598 = sbr.rel (%p596) target = $region92
        $region91: #{modified_inception_forward.1} parent=11 // pred_region
          _
        $region92: #{modified_inception_forward.1} parent=11 // pred_fallthru
          _
        // Predicated region
        $region93: #{modified_inception_forward.1} parent=11 // pred_check
          %p599 = pneg %p498
        $region94: #{modified_inception_forward.1} parent=11 // pred_check_branch
          %601 = sbr.rel (%p599) target = $region96
        $region95: #{modified_inception_forward.1} parent=11 // pred_region
          _
        $region96: #{modified_inception_forward.1} parent=11 // pred_fallthru
          _
      $region12: #{modified_inception_forward.1} parent=5 // pred_fallthru
        _
      %p602 = scmp.lt.s32.totalorder %s31, 2
      // Predicated region
      $region97: #{modified_inception_forward.1} parent=5 // pred_check
        %p603 = pneg %p602
      $region98: #{modified_inception_forward.1} parent=5 // pred_check_branch
        %605 = sbr.rel (%p603) target = $region100
      $region99: #{modified_inception_forward.1} parent=5 // pred_region
        // Predicated region
        $region101: #{modified_inception_forward.1} parent=99 // pred_check
          %p606 = pneg %p51
        $region102: #{modified_inception_forward.1} parent=99 // pred_check_branch
          %608 = sbr.rel (%p606) target = $region104
        $region103: #{modified_inception_forward.1} parent=99 // pred_region
          %p609 = scmp.lt.s32.totalorder %s31, 1
          %s610 = scalar_select %p609, %s31, 1
          %s611 = smul.addr %s610, 32
          %s612 = smul.addr %s611, 4
          %s613 = scalar_lea.vmem %s0, %s612
        $region104: #{modified_inception_forward.1} parent=99 // pred_fallthru
          _
      $region100: #{modified_inception_forward.1} parent=5 // pred_fallthru
        _
      %p614 = scmp.le.s32.totalorder 1, %s31
      %p615 = scmp.lt.s32.totalorder %s31, 3
      %p616 = pnand %p614, %p615
      %p617 = pneg %p616
      // Predicated region
      $region105: #{modified_inception_forward.1} parent=5 // pred_check
        _
      $region106: #{modified_inception_forward.1} parent=5 // pred_check_branch
        %619 = sbr.rel (%p616) target = $region108
      $region107: #{modified_inception_forward.1} parent=5 // pred_region
        %s620 = ssub.s32 %s31, 1
        %p621 = scmp.lt.s32.totalorder %s36, 1
        %s622 = scalar_select %p621, %s36, 1
        %s623 = smul.addr %s622, 32
        %s624 = smul.addr %s623, 4
        %s625 = scalar_lea.vmem %s0, %s624
        %p626 = pneg %p57
        %p627 = pneg %p54
        %p628 = pneg %p78
        %p629 = pneg %p75
        %p630 = pneg %p99
        %p631 = pneg %p96
        %p632 = pneg %p120
        %p633 = pneg %p117
        %p634 = pneg %p141
        %p635 = pneg %p138
        %p636 = pneg %p162
        %p637 = pneg %p159
        %p638 = pneg %p183
        %p639 = pneg %p180
        %p640 = pneg %p204
        %p641 = pneg %p201
        %p642 = pneg %p225
        %p643 = pneg %p222
        %p644 = pneg %p246
        %p645 = pneg %p243
        %p646 = pneg %p267
        %p647 = pneg %p264
        %p648 = pneg %p288
        %p649 = pneg %p285
        %p650 = pneg %p309
        %p651 = pneg %p306
        %p652 = pneg %p330
        %p653 = pneg %p327
        %p654 = pneg %p351
        %p655 = pneg %p348
        %p656 = pneg %p372
        %p657 = pneg %p369
        %p658 = pneg %p393
        %p659 = pneg %p390
        %p660 = pneg %p414
        %p661 = pneg %p411
        %p662 = pneg %p435
        %p663 = pneg %p432
        %p664 = pneg %p456
        %p665 = pneg %p453
        %p666 = pneg %p477
        %p667 = pneg %p474
        %p668 = pneg %p498
        %p669 = pneg %p495
        %p670 = pneg %p524
        %p671 = pneg %p521
        %s672 = sand.u32 %s511, 1
        %s673 = scalar_lea.sflag [#allocation9], %s672
        %s674 = sand.u32 %s511, 1
        %s675 = scalar_lea.vmem [#allocation8], %s674
        %p676 = scmp.lt.s32.totalorder %s36, 1
        %s677 = scalar_select %p676, %s36, 1
        %s678 = smul.addr %s677, 32
        %s679 = smul.addr %s678, 4
        %s680 = scalar_lea.vmem %s0, %s679
        %v682 = vld [vmem:[%s680] sm:$0xf]
        %v683 = vld [vmem:[%s680 + $0x4] sm:$0xf]
        %v684 = vld [vmem:[%s680 + $0x8] sm:$0xf]
        %v685 = vld [vmem:[%s680 + $0xc] sm:$0xf]
        %v686 = vld [vmem:[%s680 + $0x10] sm:$0xf]
        %v687 = vld [vmem:[%s680 + $0x14] sm:$0xf]
        %v688 = vld [vmem:[%s680 + $0x18] sm:$0xf]
        %v689 = vld [vmem:[%s680 + $0x1c] sm:$0xf]
        %v690 = vld [vmem:[%s680 + $0x20] sm:$0xf]
        %v691 = vld [vmem:[%s680 + $0x24] sm:$0xf]
        %v692 = vld [vmem:[%s680 + $0x28] sm:$0xf]
        %v693 = vld [vmem:[%s680 + $0x2c] sm:$0xf]
        %v694 = vld [vmem:[%s680 + $0x30] sm:$0xf]
        %v695 = vld [vmem:[%s680 + $0x34] sm:$0xf]
        %v696 = vld [vmem:[%s680 + $0x38] sm:$0xf]
        %v697 = vld [vmem:[%s680 + $0x3c] sm:$0xf]
        %v698 = vld [vmem:[%s680 + $0x40] sm:$0xf]
        %v699 = vld [vmem:[%s680 + $0x44] sm:$0xf]
        %v700 = vld [vmem:[%s680 + $0x48] sm:$0xf]
        %v701 = vld [vmem:[%s680 + $0x4c] sm:$0xf]
        %v702 = vld [vmem:[%s680 + $0x50] sm:$0xf]
        %v703 = vld [vmem:[%s680 + $0x54] sm:$0xf]
        %v704 = vld [vmem:[%s680 + $0x58] sm:$0xf]
        %v705 = vld [vmem:[%s680 + $0x5c] sm:$0xf]
        %v706 = vld [vmem:[%s680 + $0x60] sm:$0xf]
        %v707 = vld [vmem:[%s680 + $0x64] sm:$0xf]
        %v708 = vld [vmem:[%s680 + $0x68] sm:$0xf]
        %v709 = vld [vmem:[%s680 + $0x6c] sm:$0xf]
        %v710 = vld [vmem:[%s680 + $0x70] sm:$0xf]
        %v711 = vld [vmem:[%s680 + $0x74] sm:$0xf]
        %s712 = scalar_lea.vmem %s680, 8
        %v713 = vld [vmem:[%s712] sm:$0xf]
        %v714 = vld [vmem:[%s712 + $0x4] sm:$0xf]
        %v715 = vld [vmem:[%s712 + $0x8] sm:$0xf]
        %v716 = vld [vmem:[%s712 + $0xc] sm:$0xf]
        %v717 = vld [vmem:[%s712 + $0x10] sm:$0xf]
        %v718 = vld [vmem:[%s712 + $0x14] sm:$0xf]
        %v719 = vld [vmem:[%s712 + $0x18] sm:$0xf]
        %v720 = vld [vmem:[%s712 + $0x1c] sm:$0xf]
        %v721 = vld [vmem:[%s712 + $0x20] sm:$0xf]
        %v722 = vld [vmem:[%s712 + $0x24] sm:$0xf]
        %v723 = vld [vmem:[%s712 + $0x28] sm:$0xf]
        %v724 = vld [vmem:[%s712 + $0x2c] sm:$0xf]
        %v725 = vld [vmem:[%s712 + $0x30] sm:$0xf]
        %v726 = vld [vmem:[%s712 + $0x34] sm:$0xf]
        %v727 = vld [vmem:[%s712 + $0x38] sm:$0xf]
        %v728 = vld [vmem:[%s712 + $0x3c] sm:$0xf]
        %v729 = vld [vmem:[%s712 + $0x40] sm:$0xf]
        %v730 = vld [vmem:[%s712 + $0x44] sm:$0xf]
        %v731 = vld [vmem:[%s712 + $0x48] sm:$0xf]
        %v732 = vld [vmem:[%s712 + $0x4c] sm:$0xf]
        %v733 = vld [vmem:[%s712 + $0x50] sm:$0xf]
        %v734 = vld [vmem:[%s712 + $0x54] sm:$0xf]
        %v735 = vld [vmem:[%s712 + $0x58] sm:$0xf]
        %v736 = vld [vmem:[%s712 + $0x5c] sm:$0xf]
        %v737 = vld [vmem:[%s712 + $0x60] sm:$0xf]
        %v738 = vld [vmem:[%s712 + $0x64] sm:$0xf]
        %v739 = vld [vmem:[%s712 + $0x68] sm:$0xf]
        %v740 = vld [vmem:[%s712 + $0x6c] sm:$0xf]
        %v741 = vld [vmem:[%s712 + $0x70] sm:$0xf]
        %v742 = vld [vmem:[%s712 + $0x74] sm:$0xf]
        %v773 = vunpack.c.l.b16 %v682
        %v774 = vunpack.c.l.b16 %v683
        %v775 = vunpack.c.l.b16 %v684
        %v776 = vunpack.c.l.b16 %v685
        %v777 = vunpack.c.l.b16 %v686
        %v778 = vunpack.c.l.b16 %v687
        %v779 = vunpack.c.l.b16 %v688
        %v780 = vunpack.c.l.b16 %v689
        %v781 = vunpack.c.l.b16 %v690
        %v782 = vunpack.c.l.b16 %v691
        %v783 = vunpack.c.l.b16 %v692
        %v784 = vunpack.c.l.b16 %v693
        %v785 = vunpack.c.l.b16 %v694
        %v786 = vunpack.c.l.b16 %v695
        %v787 = vunpack.c.l.b16 %v696
        %v788 = vunpack.c.l.b16 %v697
        %v789 = vunpack.c.l.b16 %v698
        %v790 = vunpack.c.l.b16 %v699
        %v791 = vunpack.c.l.b16 %v700
        %v792 = vunpack.c.l.b16 %v701
        %v793 = vunpack.c.l.b16 %v702
        %v794 = vunpack.c.l.b16 %v703
        %v795 = vunpack.c.l.b16 %v704
        %v796 = vunpack.c.l.b16 %v705
        %v797 = vunpack.c.l.b16 %v706
        %v798 = vunpack.c.l.b16 %v707
        %v799 = vunpack.c.l.b16 %v708
        %v800 = vunpack.c.l.b16 %v709
        %v801 = vunpack.c.l.b16 %v710
        %v802 = vunpack.c.l.b16 %v711
        %v803 = vpack.c.b16 %v774, %v773
        %v804 = vpack.c.b16 %v776, %v775
        %v805 = vpack.c.b16 %v778, %v777
        %v806 = vpack.c.b16 %v780, %v779
        %v807 = vpack.c.b16 %v782, %v781
        %v808 = vpack.c.b16 %v784, %v783
        %v809 = vpack.c.b16 %v786, %v785
        %v810 = vpack.c.b16 %v788, %v787
        %v811 = vpack.c.b16 %v790, %v789
        %v812 = vpack.c.b16 %v792, %v791
        %v813 = vpack.c.b16 %v794, %v793
        %v814 = vpack.c.b16 %v796, %v795
        %v815 = vpack.c.b16 %v798, %v797
        %v816 = vpack.c.b16 %v800, %v799
        %v817 = vpack.c.b16 %v802, %v801
        %v819 = vshrl.u32 %v803, 16
        %v821 = vshll.u32 %v803, 16
        %v823 = vrot.slane %v821, 1
        %v824 = vor.u32 %v819, %v823
        %v826 = vshrl.u32 %v804, 16
        %v828 = vshll.u32 %v804, 16
        %v830 = vrot.slane %v828, 1
        %v831 = vor.u32 %v826, %v830
        %v833 = vshrl.u32 %v805, 16
        %v835 = vshll.u32 %v805, 16
        %v837 = vrot.slane %v835, 1
        %v838 = vor.u32 %v833, %v837
        %v840 = vshrl.u32 %v806, 16
        %v842 = vshll.u32 %v806, 16
        %v844 = vrot.slane %v842, 1
        %v845 = vor.u32 %v840, %v844
        %v847 = vshrl.u32 %v807, 16
        %v849 = vshll.u32 %v807, 16
        %v851 = vrot.slane %v849, 1
        %v852 = vor.u32 %v847, %v851
        %v854 = vshrl.u32 %v808, 16
        %v856 = vshll.u32 %v808, 16
        %v858 = vrot.slane %v856, 1
        %v859 = vor.u32 %v854, %v858
        %v861 = vshrl.u32 %v809, 16
        %v863 = vshll.u32 %v809, 16
        %v865 = vrot.slane %v863, 1
        %v866 = vor.u32 %v861, %v865
        %v868 = vshrl.u32 %v810, 16
        %v870 = vshll.u32 %v810, 16
        %v872 = vrot.slane %v870, 1
        %v873 = vor.u32 %v868, %v872
        %v875 = vshrl.u32 %v811, 16
        %v877 = vshll.u32 %v811, 16
        %v879 = vrot.slane %v877, 1
        %v880 = vor.u32 %v875, %v879
        %v882 = vshrl.u32 %v812, 16
        %v884 = vshll.u32 %v812, 16
        %v886 = vrot.slane %v884, 1
        %v887 = vor.u32 %v882, %v886
        %v889 = vshrl.u32 %v813, 16
        %v891 = vshll.u32 %v813, 16
        %v893 = vrot.slane %v891, 1
        %v894 = vor.u32 %v889, %v893
        %v896 = vshrl.u32 %v814, 16
        %v898 = vshll.u32 %v814, 16
        %v900 = vrot.slane %v898, 1
        %v901 = vor.u32 %v896, %v900
        %v903 = vshrl.u32 %v815, 16
        %v905 = vshll.u32 %v815, 16
        %v907 = vrot.slane %v905, 1
        %v908 = vor.u32 %v903, %v907
        %v910 = vshrl.u32 %v816, 16
        %v912 = vshll.u32 %v816, 16
        %v914 = vrot.slane %v912, 1
        %v915 = vor.u32 %v910, %v914
        %v917 = vshrl.u32 %v817, 16
        %v919 = vshll.u32 %v817, 16
        %v921 = vrot.slane %v919, 1
        %v922 = vor.u32 %v917, %v921
        %923 = vrot.lane.b32.xlu0 %v824, 12
        %v924 = vpop.permute.xlu0 %923
        %925 = vrot.lane.b32.xlu0 %v831, 12
        %v926 = vpop.permute.xlu0 %925
        %927 = vrot.lane.b32.xlu0 %v838, 12
        %v928 = vpop.permute.xlu0 %927
        %929 = vrot.lane.b32.xlu0 %v845, 12
        %v930 = vpop.permute.xlu0 %929
        %931 = vrot.lane.b32.xlu0 %v852, 12
        %v932 = vpop.permute.xlu0 %931
        %933 = vrot.lane.b32.xlu0 %v859, 12
        %v934 = vpop.permute.xlu0 %933
        %935 = vrot.lane.b32.xlu0 %v866, 12
        %v936 = vpop.permute.xlu0 %935
        %937 = vrot.lane.b32.xlu0 %v873, 12
        %v938 = vpop.permute.xlu0 %937
        %939 = vrot.lane.b32.xlu0 %v880, 12
        %v940 = vpop.permute.xlu0 %939
        %941 = vrot.lane.b32.xlu0 %v887, 12
        %v942 = vpop.permute.xlu0 %941
        %943 = vrot.lane.b32.xlu0 %v894, 12
        %v944 = vpop.permute.xlu0 %943
        %945 = vrot.lane.b32.xlu0 %v901, 12
        %v946 = vpop.permute.xlu0 %945
        %947 = vrot.lane.b32.xlu0 %v908, 12
        %v948 = vpop.permute.xlu0 %947
        %949 = vrot.lane.b32.xlu0 %v915, 12
        %v950 = vpop.permute.xlu0 %949
        %951 = vrot.lane.b32.xlu0 %v922, 12
        %v952 = vpop.permute.xlu0 %951
        %v983 = vunpack.c.l.b16 %v713
        %v984 = vunpack.c.l.b16 %v714
        %v985 = vunpack.c.l.b16 %v715
        %v986 = vunpack.c.l.b16 %v716
        %v987 = vunpack.c.l.b16 %v717
        %v988 = vunpack.c.l.b16 %v718
        %v989 = vunpack.c.l.b16 %v719
        %v990 = vunpack.c.l.b16 %v720
        %v991 = vunpack.c.l.b16 %v721
        %v992 = vunpack.c.l.b16 %v722
        %v993 = vunpack.c.l.b16 %v723
        %v994 = vunpack.c.l.b16 %v724
        %v995 = vunpack.c.l.b16 %v725
        %v996 = vunpack.c.l.b16 %v726
        %v997 = vunpack.c.l.b16 %v727
        %v998 = vunpack.c.l.b16 %v728
        %v999 = vunpack.c.l.b16 %v729
        %v1000 = vunpack.c.l.b16 %v730
        %v1001 = vunpack.c.l.b16 %v731
        %v1002 = vunpack.c.l.b16 %v732
        %v1003 = vunpack.c.l.b16 %v733
        %v1004 = vunpack.c.l.b16 %v734
        %v1005 = vunpack.c.l.b16 %v735
        %v1006 = vunpack.c.l.b16 %v736
        %v1007 = vunpack.c.l.b16 %v737
        %v1008 = vunpack.c.l.b16 %v738
        %v1009 = vunpack.c.l.b16 %v739
        %v1010 = vunpack.c.l.b16 %v740
        %v1011 = vunpack.c.l.b16 %v741
        %v1012 = vunpack.c.l.b16 %v742
        %v1013 = vpack.c.b16 %v984, %v983
        %v1014 = vpack.c.b16 %v986, %v985
        %v1015 = vpack.c.b16 %v988, %v987
        %v1016 = vpack.c.b16 %v990, %v989
        %v1017 = vpack.c.b16 %v992, %v991
        %v1018 = vpack.c.b16 %v994, %v993
        %v1019 = vpack.c.b16 %v996, %v995
        %v1020 = vpack.c.b16 %v998, %v997
        %v1021 = vpack.c.b16 %v1000, %v999
        %v1022 = vpack.c.b16 %v1002, %v1001
        %v1023 = vpack.c.b16 %v1004, %v1003
        %v1024 = vpack.c.b16 %v1006, %v1005
        %v1025 = vpack.c.b16 %v1008, %v1007
        %v1026 = vpack.c.b16 %v1010, %v1009
        %v1027 = vpack.c.b16 %v1012, %v1011
        %1028 = vrot.lane.b32.xlu0 %v1013, 24
        %v1029 = vpop.permute.xlu0 %1028
        %1030 = vrot.lane.b32.xlu0 %v1014, 24
        %v1031 = vpop.permute.xlu0 %1030
        %1032 = vrot.lane.b32.xlu0 %v1015, 24
        %v1033 = vpop.permute.xlu0 %1032
        %1034 = vrot.lane.b32.xlu0 %v1016, 24
        %v1035 = vpop.permute.xlu0 %1034
        %1036 = vrot.lane.b32.xlu0 %v1017, 24
        %v1037 = vpop.permute.xlu0 %1036
        %1038 = vrot.lane.b32.xlu0 %v1018, 24
        %v1039 = vpop.permute.xlu0 %1038
        %1040 = vrot.lane.b32.xlu0 %v1019, 24
        %v1041 = vpop.permute.xlu0 %1040
        %1042 = vrot.lane.b32.xlu0 %v1020, 24
        %v1043 = vpop.permute.xlu0 %1042
        %1044 = vrot.lane.b32.xlu0 %v1021, 24
        %v1045 = vpop.permute.xlu0 %1044
        %1046 = vrot.lane.b32.xlu0 %v1022, 24
        %v1047 = vpop.permute.xlu0 %1046
        %1048 = vrot.lane.b32.xlu0 %v1023, 24
        %v1049 = vpop.permute.xlu0 %1048
        %1050 = vrot.lane.b32.xlu0 %v1024, 24
        %v1051 = vpop.permute.xlu0 %1050
        %1052 = vrot.lane.b32.xlu0 %v1025, 24
        %v1053 = vpop.permute.xlu0 %1052
        %1054 = vrot.lane.b32.xlu0 %v1026, 24
        %v1055 = vpop.permute.xlu0 %1054
        %1056 = vrot.lane.b32.xlu0 %v1027, 24
        %v1057 = vpop.permute.xlu0 %1056
        %v1059 = vshrl.u32 %v1013, 16
        %v1061 = vshll.u32 %v1013, 16
        %v1063 = vrot.slane %v1061, 1
        %v1064 = vor.u32 %v1059, %v1063
        %v1066 = vshrl.u32 %v1014, 16
        %v1068 = vshll.u32 %v1014, 16
        %v1070 = vrot.slane %v1068, 1
        %v1071 = vor.u32 %v1066, %v1070
        %v1073 = vshrl.u32 %v1015, 16
        %v1075 = vshll.u32 %v1015, 16
        %v1077 = vrot.slane %v1075, 1
        %v1078 = vor.u32 %v1073, %v1077
        %v1080 = vshrl.u32 %v1016, 16
        %v1082 = vshll.u32 %v1016, 16
        %v1084 = vrot.slane %v1082, 1
        %v1085 = vor.u32 %v1080, %v1084
        %v1087 = vshrl.u32 %v1017, 16
        %v1089 = vshll.u32 %v1017, 16
        %v1091 = vrot.slane %v1089, 1
        %v1092 = vor.u32 %v1087, %v1091
        %v1094 = vshrl.u32 %v1018, 16
        %v1096 = vshll.u32 %v1018, 16
        %v1098 = vrot.slane %v1096, 1
        %v1099 = vor.u32 %v1094, %v1098
        %v1101 = vshrl.u32 %v1019, 16
        %v1103 = vshll.u32 %v1019, 16
        %v1105 = vrot.slane %v1103, 1
        %v1106 = vor.u32 %v1101, %v1105
        %v1108 = vshrl.u32 %v1020, 16
        %v1110 = vshll.u32 %v1020, 16
        %v1112 = vrot.slane %v1110, 1
        %v1113 = vor.u32 %v1108, %v1112
        %v1115 = vshrl.u32 %v1021, 16
        %v1117 = vshll.u32 %v1021, 16
        %v1119 = vrot.slane %v1117, 1
        %v1120 = vor.u32 %v1115, %v1119
        %v1122 = vshrl.u32 %v1022, 16
        %v1124 = vshll.u32 %v1022, 16
        %v1126 = vrot.slane %v1124, 1
        %v1127 = vor.u32 %v1122, %v1126
        %v1129 = vshrl.u32 %v1023, 16
        %v1131 = vshll.u32 %v1023, 16
        %v1133 = vrot.slane %v1131, 1
        %v1134 = vor.u32 %v1129, %v1133
        %v1136 = vshrl.u32 %v1024, 16
        %v1138 = vshll.u32 %v1024, 16
        %v1140 = vrot.slane %v1138, 1
        %v1141 = vor.u32 %v1136, %v1140
        %v1143 = vshrl.u32 %v1025, 16
        %v1145 = vshll.u32 %v1025, 16
        %v1147 = vrot.slane %v1145, 1
        %v1148 = vor.u32 %v1143, %v1147
        %v1150 = vshrl.u32 %v1026, 16
        %v1152 = vshll.u32 %v1026, 16
        %v1154 = vrot.slane %v1152, 1
        %v1155 = vor.u32 %v1150, %v1154
        %v1157 = vshrl.u32 %v1027, 16
        %v1159 = vshll.u32 %v1027, 16
        %v1161 = vrot.slane %v1159, 1
        %v1162 = vor.u32 %v1157, %v1161
        %1163 = vrot.lane.b32.xlu0 %v1064, 36
        %v1164 = vpop.permute.xlu0 %1163
        %1165 = vrot.lane.b32.xlu0 %v1071, 36
        %v1166 = vpop.permute.xlu0 %1165
        %1167 = vrot.lane.b32.xlu0 %v1078, 36
        %v1168 = vpop.permute.xlu0 %1167
        %1169 = vrot.lane.b32.xlu0 %v1085, 36
        %v1170 = vpop.permute.xlu0 %1169
        %1171 = vrot.lane.b32.xlu0 %v1092, 36
        %v1172 = vpop.permute.xlu0 %1171
        %1173 = vrot.lane.b32.xlu0 %v1099, 36
        %v1174 = vpop.permute.xlu0 %1173
        %1175 = vrot.lane.b32.xlu0 %v1106, 36
        %v1176 = vpop.permute.xlu0 %1175
        %1177 = vrot.lane.b32.xlu0 %v1113, 36
        %v1178 = vpop.permute.xlu0 %1177
        %1179 = vrot.lane.b32.xlu0 %v1120, 36
        %v1180 = vpop.permute.xlu0 %1179
        %1181 = vrot.lane.b32.xlu0 %v1127, 36
        %v1182 = vpop.permute.xlu0 %1181
        %1183 = vrot.lane.b32.xlu0 %v1134, 36
        %v1184 = vpop.permute.xlu0 %1183
        %1185 = vrot.lane.b32.xlu0 %v1141, 36
        %v1186 = vpop.permute.xlu0 %1185
        %1187 = vrot.lane.b32.xlu0 %v1148, 36
        %v1188 = vpop.permute.xlu0 %1187
        %1189 = vrot.lane.b32.xlu0 %v1155, 36
        %v1190 = vpop.permute.xlu0 %1189
        %1191 = vrot.lane.b32.xlu0 %v1162, 36
        %v1192 = vpop.permute.xlu0 %1191
        %vm1193 = vcmask 97280
        %v1195 = vsel %vm1193, %v803, %v924
        %v1197 = vsel %vm1193, %v804, %v926
        %v1199 = vsel %vm1193, %v805, %v928
        %v1201 = vsel %vm1193, %v806, %v930
        %v1203 = vsel %vm1193, %v807, %v932
        %v1205 = vsel %vm1193, %v808, %v934
        %v1207 = vsel %vm1193, %v809, %v936
        %v1209 = vsel %vm1193, %v810, %v938
        %v1211 = vsel %vm1193, %v811, %v940
        %v1213 = vsel %vm1193, %v812, %v942
        %v1215 = vsel %vm1193, %v813, %v944
        %v1217 = vsel %vm1193, %v814, %v946
        %v1219 = vsel %vm1193, %v815, %v948
        %v1221 = vsel %vm1193, %v816, %v950
        %v1223 = vsel %vm1193, %v817, %v952
        %vm1224 = vcmask 195584
        %v1226 = vsel %vm1224, %v1195, %v1029
        %v1228 = vsel %vm1224, %v1197, %v1031
        %v1230 = vsel %vm1224, %v1199, %v1033
        %v1232 = vsel %vm1224, %v1201, %v1035
        %v1234 = vsel %vm1224, %v1203, %v1037
        %v1236 = vsel %vm1224, %v1205, %v1039
        %v1238 = vsel %vm1224, %v1207, %v1041
        %v1240 = vsel %vm1224, %v1209, %v1043
        %v1242 = vsel %vm1224, %v1211, %v1045
        %v1244 = vsel %vm1224, %v1213, %v1047
        %v1246 = vsel %vm1224, %v1215, %v1049
        %v1248 = vsel %vm1224, %v1217, %v1051
        %v1250 = vsel %vm1224, %v1219, %v1053
        %v1252 = vsel %vm1224, %v1221, %v1055
        %v1254 = vsel %vm1224, %v1223, %v1057
        %vm1255 = vcmask 293888
        %v1257 = vsel %vm1255, %v1226, %v1164
        %v1259 = vsel %vm1255, %v1228, %v1166
        %v1261 = vsel %vm1255, %v1230, %v1168
        %v1263 = vsel %vm1255, %v1232, %v1170
        %v1265 = vsel %vm1255, %v1234, %v1172
        %v1267 = vsel %vm1255, %v1236, %v1174
        %v1269 = vsel %vm1255, %v1238, %v1176
        %v1271 = vsel %vm1255, %v1240, %v1178
        %v1273 = vsel %vm1255, %v1242, %v1180
        %v1275 = vsel %vm1255, %v1244, %v1182
        %v1277 = vsel %vm1255, %v1246, %v1184
        %v1279 = vsel %vm1255, %v1248, %v1186
        %v1281 = vsel %vm1255, %v1250, %v1188
        %v1283 = vsel %vm1255, %v1252, %v1190
        %v1285 = vsel %vm1255, %v1254, %v1192
        %v1301 = vrot.slane %v1257, 1
        %v1302 = vrot.slane %v1257, 2
        %v1303 = vrot.slane %v1257, 3
        %v1304 = vrot.slane %v1257, 4
        %v1305 = vrot.slane %v1257, 5
        %v1306 = vrot.slane %v1257, 6
        %v1307 = vrot.slane %v1257, 7
        %v1308 = vrot.slane %v1259, 1
        %v1309 = vrot.slane %v1259, 2
        %v1310 = vrot.slane %v1259, 3
        %v1311 = vrot.slane %v1259, 4
        %v1312 = vrot.slane %v1259, 5
        %v1313 = vrot.slane %v1259, 6
        %v1314 = vrot.slane %v1259, 7
        %v1315 = vrot.slane %v1261, 1
        %v1316 = vrot.slane %v1261, 2
        %v1317 = vrot.slane %v1261, 3
        %v1318 = vrot.slane %v1261, 4
        %v1319 = vrot.slane %v1261, 5
        %v1320 = vrot.slane %v1261, 6
        %v1321 = vrot.slane %v1261, 7
        %v1322 = vrot.slane %v1263, 1
        %v1323 = vrot.slane %v1263, 2
        %v1324 = vrot.slane %v1263, 3
        %v1325 = vrot.slane %v1263, 4
        %v1326 = vrot.slane %v1263, 5
        %v1327 = vrot.slane %v1263, 6
        %v1328 = vrot.slane %v1263, 7
        %v1329 = vrot.slane %v1265, 1
        %v1330 = vrot.slane %v1265, 2
        %v1331 = vrot.slane %v1265, 3
        %v1332 = vrot.slane %v1265, 4
        %v1333 = vrot.slane %v1265, 5
        %v1334 = vrot.slane %v1265, 6
        %v1335 = vrot.slane %v1265, 7
        %v1336 = vrot.slane %v1267, 1
        %v1337 = vrot.slane %v1267, 2
        %v1338 = vrot.slane %v1267, 3
        %v1339 = vrot.slane %v1267, 4
        %v1340 = vrot.slane %v1267, 5
        %v1341 = vrot.slane %v1267, 6
        %v1342 = vrot.slane %v1267, 7
        %v1343 = vrot.slane %v1269, 1
        %v1344 = vrot.slane %v1269, 2
        %v1345 = vrot.slane %v1269, 3
        %v1346 = vrot.slane %v1269, 4
        %v1347 = vrot.slane %v1269, 5
        %v1348 = vrot.slane %v1269, 6
        %v1349 = vrot.slane %v1269, 7
        %v1350 = vrot.slane %v1271, 1
        %v1351 = vrot.slane %v1271, 2
        %v1352 = vrot.slane %v1271, 3
        %v1353 = vrot.slane %v1271, 4
        %v1354 = vrot.slane %v1271, 5
        %v1355 = vrot.slane %v1271, 6
        %v1356 = vrot.slane %v1271, 7
        %v1357 = vrot.slane %v1273, 1
        %v1358 = vrot.slane %v1273, 2
        %v1359 = vrot.slane %v1273, 3
        %v1360 = vrot.slane %v1273, 4
        %v1361 = vrot.slane %v1273, 5
        %v1362 = vrot.slane %v1273, 6
        %v1363 = vrot.slane %v1273, 7
        %v1364 = vrot.slane %v1275, 1
        %v1365 = vrot.slane %v1275, 2
        %v1366 = vrot.slane %v1275, 3
        %v1367 = vrot.slane %v1275, 4
        %v1368 = vrot.slane %v1275, 5
        %v1369 = vrot.slane %v1275, 6
        %v1370 = vrot.slane %v1275, 7
        %v1371 = vrot.slane %v1277, 1
        %v1372 = vrot.slane %v1277, 2
        %v1373 = vrot.slane %v1277, 3
        %v1374 = vrot.slane %v1277, 4
        %v1375 = vrot.slane %v1277, 5
        %v1376 = vrot.slane %v1277, 6
        %v1377 = vrot.slane %v1277, 7
        %v1378 = vrot.slane %v1279, 1
        %v1379 = vrot.slane %v1279, 2
        %v1380 = vrot.slane %v1279, 3
        %v1381 = vrot.slane %v1279, 4
        %v1382 = vrot.slane %v1279, 5
        %v1383 = vrot.slane %v1279, 6
        %v1384 = vrot.slane %v1279, 7
        %v1385 = vrot.slane %v1281, 1
        %v1386 = vrot.slane %v1281, 2
        %v1387 = vrot.slane %v1281, 3
        %v1388 = vrot.slane %v1281, 4
        %v1389 = vrot.slane %v1281, 5
        %v1390 = vrot.slane %v1281, 6
        %v1391 = vrot.slane %v1281, 7
        %v1392 = vrot.slane %v1283, 1
        %v1393 = vrot.slane %v1283, 2
        %v1394 = vrot.slane %v1283, 3
        %v1395 = vrot.slane %v1283, 4
        %v1396 = vrot.slane %v1283, 5
        %v1397 = vrot.slane %v1283, 6
        %v1398 = vrot.slane %v1283, 7
        %v1399 = vrot.slane %v1285, 1
        %v1400 = vrot.slane %v1285, 2
        %v1401 = vrot.slane %v1285, 3
        %v1402 = vrot.slane %v1285, 4
        %v1403 = vrot.slane %v1285, 5
        %v1404 = vrot.slane %v1285, 6
        %v1405 = vrot.slane %v1285, 7
        %v1406 = vunpack.i.l.s16 %v1257
        %v1407 = vunpack.i.h.s16 %v1257
        %v1408 = vunpack.i.l.s16 %v1301
        %v1409 = vunpack.i.h.s16 %v1301
        %v1410 = vunpack.i.l.s16 %v1302
        %v1411 = vunpack.i.h.s16 %v1302
        %v1412 = vunpack.i.l.s16 %v1303
        %v1413 = vunpack.i.h.s16 %v1303
        %v1414 = vunpack.i.l.s16 %v1304
        %v1415 = vunpack.i.h.s16 %v1304
        %v1416 = vunpack.i.l.s16 %v1305
        %v1417 = vunpack.i.h.s16 %v1305
        %v1418 = vunpack.i.l.s16 %v1306
        %v1419 = vunpack.i.h.s16 %v1306
        %v1420 = vunpack.i.l.s16 %v1307
        %v1421 = vunpack.i.l.s16 %v1259
        %v1422 = vunpack.i.h.s16 %v1259
        %v1423 = vunpack.i.l.s16 %v1308
        %v1424 = vunpack.i.h.s16 %v1308
        %v1425 = vunpack.i.l.s16 %v1309
        %v1426 = vunpack.i.h.s16 %v1309
        %v1427 = vunpack.i.l.s16 %v1310
        %v1428 = vunpack.i.h.s16 %v1310
        %v1429 = vunpack.i.l.s16 %v1311
        %v1430 = vunpack.i.h.s16 %v1311
        %v1431 = vunpack.i.l.s16 %v1312
        %v1432 = vunpack.i.h.s16 %v1312
        %v1433 = vunpack.i.l.s16 %v1313
        %v1434 = vunpack.i.h.s16 %v1313
        %v1435 = vunpack.i.l.s16 %v1314
        %v1436 = vunpack.i.l.s16 %v1261
        %v1437 = vunpack.i.h.s16 %v1261
        %v1438 = vunpack.i.l.s16 %v1315
        %v1439 = vunpack.i.h.s16 %v1315
        %v1440 = vunpack.i.l.s16 %v1316
        %v1441 = vunpack.i.h.s16 %v1316
        %v1442 = vunpack.i.l.s16 %v1317
        %v1443 = vunpack.i.h.s16 %v1317
        %v1444 = vunpack.i.l.s16 %v1318
        %v1445 = vunpack.i.h.s16 %v1318
        %v1446 = vunpack.i.l.s16 %v1319
        %v1447 = vunpack.i.h.s16 %v1319
        %v1448 = vunpack.i.l.s16 %v1320
        %v1449 = vunpack.i.h.s16 %v1320
        %v1450 = vunpack.i.l.s16 %v1321
        %v1451 = vunpack.i.l.s16 %v1263
        %v1452 = vunpack.i.h.s16 %v1263
        %v1453 = vunpack.i.l.s16 %v1322
        %v1454 = vunpack.i.h.s16 %v1322
        %v1455 = vunpack.i.l.s16 %v1323
        %v1456 = vunpack.i.h.s16 %v1323
        %v1457 = vunpack.i.l.s16 %v1324
        %v1458 = vunpack.i.h.s16 %v1324
        %v1459 = vunpack.i.l.s16 %v1325
        %v1460 = vunpack.i.h.s16 %v1325
        %v1461 = vunpack.i.l.s16 %v1326
        %v1462 = vunpack.i.h.s16 %v1326
        %v1463 = vunpack.i.l.s16 %v1327
        %v1464 = vunpack.i.h.s16 %v1327
        %v1465 = vunpack.i.l.s16 %v1328
        %v1466 = vunpack.i.l.s16 %v1265
        %v1467 = vunpack.i.h.s16 %v1265
        %v1468 = vunpack.i.l.s16 %v1329
        %v1469 = vunpack.i.h.s16 %v1329
        %v1470 = vunpack.i.l.s16 %v1330
        %v1471 = vunpack.i.h.s16 %v1330
        %v1472 = vunpack.i.l.s16 %v1331
        %v1473 = vunpack.i.h.s16 %v1331
        %v1474 = vunpack.i.l.s16 %v1332
        %v1475 = vunpack.i.h.s16 %v1332
        %v1476 = vunpack.i.l.s16 %v1333
        %v1477 = vunpack.i.h.s16 %v1333
        %v1478 = vunpack.i.l.s16 %v1334
        %v1479 = vunpack.i.h.s16 %v1334
        %v1480 = vunpack.i.l.s16 %v1335
        %v1481 = vunpack.i.l.s16 %v1267
        %v1482 = vunpack.i.h.s16 %v1267
        %v1483 = vunpack.i.l.s16 %v1336
        %v1484 = vunpack.i.h.s16 %v1336
        %v1485 = vunpack.i.l.s16 %v1337
        %v1486 = vunpack.i.h.s16 %v1337
        %v1487 = vunpack.i.l.s16 %v1338
        %v1488 = vunpack.i.h.s16 %v1338
        %v1489 = vunpack.i.l.s16 %v1339
        %v1490 = vunpack.i.h.s16 %v1339
        %v1491 = vunpack.i.l.s16 %v1340
        %v1492 = vunpack.i.h.s16 %v1340
        %v1493 = vunpack.i.l.s16 %v1341
        %v1494 = vunpack.i.h.s16 %v1341
        %v1495 = vunpack.i.l.s16 %v1342
        %v1496 = vunpack.i.l.s16 %v1269
        %v1497 = vunpack.i.h.s16 %v1269
        %v1498 = vunpack.i.l.s16 %v1343
        %v1499 = vunpack.i.h.s16 %v1343
        %v1500 = vunpack.i.l.s16 %v1344
        %v1501 = vunpack.i.h.s16 %v1344
        %v1502 = vunpack.i.l.s16 %v1345
        %v1503 = vunpack.i.h.s16 %v1345
        %v1504 = vunpack.i.l.s16 %v1346
        %v1505 = vunpack.i.h.s16 %v1346
        %v1506 = vunpack.i.l.s16 %v1347
        %v1507 = vunpack.i.h.s16 %v1347
        %v1508 = vunpack.i.l.s16 %v1348
        %v1509 = vunpack.i.h.s16 %v1348
        %v1510 = vunpack.i.l.s16 %v1349
        %v1511 = vunpack.i.l.s16 %v1271
        %v1512 = vunpack.i.h.s16 %v1271
        %v1513 = vunpack.i.l.s16 %v1350
        %v1514 = vunpack.i.h.s16 %v1350
        %v1515 = vunpack.i.l.s16 %v1351
        %v1516 = vunpack.i.h.s16 %v1351
        %v1517 = vunpack.i.l.s16 %v1352
        %v1518 = vunpack.i.h.s16 %v1352
        %v1519 = vunpack.i.l.s16 %v1353
        %v1520 = vunpack.i.h.s16 %v1353
        %v1521 = vunpack.i.l.s16 %v1354
        %v1522 = vunpack.i.h.s16 %v1354
        %v1523 = vunpack.i.l.s16 %v1355
        %v1524 = vunpack.i.h.s16 %v1355
        %v1525 = vunpack.i.l.s16 %v1356
        %v1526 = vunpack.i.l.s16 %v1273
        %v1527 = vunpack.i.h.s16 %v1273
        %v1528 = vunpack.i.l.s16 %v1357
        %v1529 = vunpack.i.h.s16 %v1357
        %v1530 = vunpack.i.l.s16 %v1358
        %v1531 = vunpack.i.h.s16 %v1358
        %v1532 = vunpack.i.l.s16 %v1359
        %v1533 = vunpack.i.h.s16 %v1359
        %v1534 = vunpack.i.l.s16 %v1360
        %v1535 = vunpack.i.h.s16 %v1360
        %v1536 = vunpack.i.l.s16 %v1361
        %v1537 = vunpack.i.h.s16 %v1361
        %v1538 = vunpack.i.l.s16 %v1362
        %v1539 = vunpack.i.h.s16 %v1362
        %v1540 = vunpack.i.l.s16 %v1363
        %v1541 = vunpack.i.l.s16 %v1275
        %v1542 = vunpack.i.h.s16 %v1275
        %v1543 = vunpack.i.l.s16 %v1364
        %v1544 = vunpack.i.h.s16 %v1364
        %v1545 = vunpack.i.l.s16 %v1365
        %v1546 = vunpack.i.h.s16 %v1365
        %v1547 = vunpack.i.l.s16 %v1366
        %v1548 = vunpack.i.h.s16 %v1366
        %v1549 = vunpack.i.l.s16 %v1367
        %v1550 = vunpack.i.h.s16 %v1367
        %v1551 = vunpack.i.l.s16 %v1368
        %v1552 = vunpack.i.h.s16 %v1368
        %v1553 = vunpack.i.l.s16 %v1369
        %v1554 = vunpack.i.h.s16 %v1369
        %v1555 = vunpack.i.l.s16 %v1370
        %v1556 = vunpack.i.l.s16 %v1277
        %v1557 = vunpack.i.h.s16 %v1277
        %v1558 = vunpack.i.l.s16 %v1371
        %v1559 = vunpack.i.h.s16 %v1371
        %v1560 = vunpack.i.l.s16 %v1372
        %v1561 = vunpack.i.h.s16 %v1372
        %v1562 = vunpack.i.l.s16 %v1373
        %v1563 = vunpack.i.h.s16 %v1373
        %v1564 = vunpack.i.l.s16 %v1374
        %v1565 = vunpack.i.h.s16 %v1374
        %v1566 = vunpack.i.l.s16 %v1375
        %v1567 = vunpack.i.h.s16 %v1375
        %v1568 = vunpack.i.l.s16 %v1376
        %v1569 = vunpack.i.h.s16 %v1376
        %v1570 = vunpack.i.l.s16 %v1377
        %v1571 = vunpack.i.l.s16 %v1279
        %v1572 = vunpack.i.h.s16 %v1279
        %v1573 = vunpack.i.l.s16 %v1378
        %v1574 = vunpack.i.h.s16 %v1378
        %v1575 = vunpack.i.l.s16 %v1379
        %v1576 = vunpack.i.h.s16 %v1379
        %v1577 = vunpack.i.l.s16 %v1380
        %v1578 = vunpack.i.h.s16 %v1380
        %v1579 = vunpack.i.l.s16 %v1381
        %v1580 = vunpack.i.h.s16 %v1381
        %v1581 = vunpack.i.l.s16 %v1382
        %v1582 = vunpack.i.h.s16 %v1382
        %v1583 = vunpack.i.l.s16 %v1383
        %v1584 = vunpack.i.h.s16 %v1383
        %v1585 = vunpack.i.l.s16 %v1384
        %v1586 = vunpack.i.l.s16 %v1281
        %v1587 = vunpack.i.h.s16 %v1281
        %v1588 = vunpack.i.l.s16 %v1385
        %v1589 = vunpack.i.h.s16 %v1385
        %v1590 = vunpack.i.l.s16 %v1386
        %v1591 = vunpack.i.h.s16 %v1386
        %v1592 = vunpack.i.l.s16 %v1387
        %v1593 = vunpack.i.h.s16 %v1387
        %v1594 = vunpack.i.l.s16 %v1388
        %v1595 = vunpack.i.h.s16 %v1388
        %v1596 = vunpack.i.l.s16 %v1389
        %v1597 = vunpack.i.h.s16 %v1389
        %v1598 = vunpack.i.l.s16 %v1390
        %v1599 = vunpack.i.h.s16 %v1390
        %v1600 = vunpack.i.l.s16 %v1391
        %v1601 = vunpack.i.l.s16 %v1283
        %v1602 = vunpack.i.h.s16 %v1283
        %v1603 = vunpack.i.l.s16 %v1392
        %v1604 = vunpack.i.h.s16 %v1392
        %v1605 = vunpack.i.l.s16 %v1393
        %v1606 = vunpack.i.h.s16 %v1393
        %v1607 = vunpack.i.l.s16 %v1394
        %v1608 = vunpack.i.h.s16 %v1394
        %v1609 = vunpack.i.l.s16 %v1395
        %v1610 = vunpack.i.h.s16 %v1395
        %v1611 = vunpack.i.l.s16 %v1396
        %v1612 = vunpack.i.h.s16 %v1396
        %v1613 = vunpack.i.l.s16 %v1397
        %v1614 = vunpack.i.h.s16 %v1397
        %v1615 = vunpack.i.l.s16 %v1398
        %v1616 = vunpack.i.l.s16 %v1285
        %v1617 = vunpack.i.h.s16 %v1285
        %v1618 = vunpack.i.l.s16 %v1399
        %v1619 = vunpack.i.h.s16 %v1399
        %v1620 = vunpack.i.l.s16 %v1400
        %v1621 = vunpack.i.h.s16 %v1400
        %v1622 = vunpack.i.l.s16 %v1401
        %v1623 = vunpack.i.h.s16 %v1401
        %v1624 = vunpack.i.l.s16 %v1402
        %v1625 = vunpack.i.h.s16 %v1402
        %v1626 = vunpack.i.l.s16 %v1403
        %v1627 = vunpack.i.h.s16 %v1403
        %v1628 = vunpack.i.l.s16 %v1404
        %v1629 = vunpack.i.h.s16 %v1404
        %v1630 = vunpack.i.l.s16 %v1405
        %v1631 = vld [vmem:[%s1] sm:$0xf]
        %v1632 = vld [vmem:[%s1 + $0x4] sm:$0xf]
        %v1633 = vld [vmem:[%s1 + $0x8] sm:$0xf]
        %v1634 = vld [vmem:[%s1 + $0xc] sm:$0xf]
        %v1635 = vld [vmem:[%s1 + $0x10] sm:$0xf]
        %v1636 = vld [vmem:[%s1 + $0x14] sm:$0xf]
        %v1637 = vld [vmem:[%s2] sm:$0x1]
        %v1639 = vperm.slane %v1637, 0
        %v1641 = vpack.i.b16 %v1407, %v1406
        %v1642 = vpack.i.b16 %v1409, %v1408
        %v1643 = vpack.i.b16 %v1411, %v1410
        %v1644 = vpack.i.b16 %v1413, %v1412
        %v1645 = vpack.i.b16 %v1415, %v1414
        %v1646 = vpack.i.b16 %v1417, %v1416
        %v1647 = vpack.i.b16 %v1419, %v1418
        %v1648 = vpack.i.b16 %v1421, %v1420
        %v1649 = vpack.i.b16 %v1423, %v1422
        %v1650 = vpack.i.b16 %v1425, %v1424
        %v1651 = vpack.i.b16 %v1427, %v1426
        %v1652 = vpack.i.b16 %v1429, %v1428
        %v1653 = vpack.i.b16 %v1431, %v1430
        %v1654 = vpack.i.b16 %v1433, %v1432
        %v1655 = vpack.i.b16 %v1435, %v1434
        %v1656 = vpack.i.b16 %v1437, %v1436
        %v1657 = vpack.i.b16 %v1439, %v1438
        %v1658 = vpack.i.b16 %v1441, %v1440
        %v1659 = vpack.i.b16 %v1443, %v1442
        %v1660 = vpack.i.b16 %v1445, %v1444
        %v1661 = vpack.i.b16 %v1447, %v1446
        %v1662 = vpack.i.b16 %v1449, %v1448
        %v1663 = vpack.i.b16 %v1451, %v1450
        %v1664 = vpack.i.b16 %v1453, %v1452
        %v1665 = vpack.i.b16 %v1455, %v1454
        %v1666 = vpack.i.b16 %v1457, %v1456
        %v1667 = vpack.i.b16 %v1459, %v1458
        %v1668 = vpack.i.b16 %v1461, %v1460
        %v1669 = vpack.i.b16 %v1463, %v1462
        %v1670 = vpack.i.b16 %v1465, %v1464
        %v1671 = vpack.i.b16 %v1467, %v1466
        %v1672 = vpack.i.b16 %v1469, %v1468
        %v1673 = vpack.i.b16 %v1471, %v1470
        %v1674 = vpack.i.b16 %v1473, %v1472
        %v1675 = vpack.i.b16 %v1475, %v1474
        %v1676 = vpack.i.b16 %v1477, %v1476
        %v1677 = vpack.i.b16 %v1479, %v1478
        %v1678 = vpack.i.b16 %v1481, %v1480
        %v1679 = vpack.i.b16 %v1483, %v1482
        %v1680 = vpack.i.b16 %v1485, %v1484
        %v1681 = vpack.i.b16 %v1487, %v1486
        %v1682 = vpack.i.b16 %v1489, %v1488
        %v1683 = vpack.i.b16 %v1491, %v1490
        %v1684 = vpack.i.b16 %v1493, %v1492
        %v1685 = vpack.i.b16 %v1495, %v1494
        %v1686 = vpack.i.b16 %v1497, %v1496
        %v1687 = vpack.i.b16 %v1499, %v1498
        %v1688 = vpack.i.b16 %v1501, %v1500
        %v1689 = vpack.i.b16 %v1503, %v1502
        %v1690 = vpack.i.b16 %v1505, %v1504
        %v1691 = vpack.i.b16 %v1507, %v1506
        %v1692 = vpack.i.b16 %v1509, %v1508
        %v1693 = vpack.i.b16 %v1511, %v1510
        %v1694 = vpack.i.b16 %v1513, %v1512
        %v1695 = vpack.i.b16 %v1515, %v1514
        %v1696 = vpack.i.b16 %v1517, %v1516
        %v1697 = vpack.i.b16 %v1519, %v1518
        %v1698 = vpack.i.b16 %v1521, %v1520
        %v1699 = vpack.i.b16 %v1523, %v1522
        %v1700 = vpack.i.b16 %v1525, %v1524
        %v1701 = vpack.i.b16 %v1527, %v1526
        %v1702 = vpack.i.b16 %v1529, %v1528
        %v1703 = vpack.i.b16 %v1531, %v1530
        %v1704 = vpack.i.b16 %v1533, %v1532
        %v1705 = vpack.i.b16 %v1535, %v1534
        %v1706 = vpack.i.b16 %v1537, %v1536
        %v1707 = vpack.i.b16 %v1539, %v1538
        %v1708 = vpack.i.b16 %v1541, %v1540
        %v1709 = vpack.i.b16 %v1543, %v1542
        %v1710 = vpack.i.b16 %v1545, %v1544
        %v1711 = vpack.i.b16 %v1547, %v1546
        %v1712 = vpack.i.b16 %v1549, %v1548
        %v1713 = vpack.i.b16 %v1551, %v1550
        %v1714 = vpack.i.b16 %v1553, %v1552
        %v1715 = vpack.i.b16 %v1555, %v1554
        %v1716 = vpack.i.b16 %v1557, %v1556
        %v1717 = vpack.i.b16 %v1559, %v1558
        %v1718 = vpack.i.b16 %v1561, %v1560
        %v1719 = vpack.i.b16 %v1563, %v1562
        %v1720 = vpack.i.b16 %v1565, %v1564
        %v1721 = vpack.i.b16 %v1567, %v1566
        %v1722 = vpack.i.b16 %v1569, %v1568
        %v1723 = vpack.i.b16 %v1571, %v1570
        %v1724 = vpack.i.b16 %v1573, %v1572
        %v1725 = vpack.i.b16 %v1575, %v1574
        %v1726 = vpack.i.b16 %v1577, %v1576
        %v1727 = vpack.i.b16 %v1579, %v1578
        %v1728 = vpack.i.b16 %v1581, %v1580
        %v1729 = vpack.i.b16 %v1583, %v1582
        %v1730 = vpack.i.b16 %v1585, %v1584
        %v1731 = vpack.i.b16 %v1587, %v1586
        %v1732 = vpack.i.b16 %v1589, %v1588
        %v1733 = vpack.i.b16 %v1591, %v1590
        %v1734 = vpack.i.b16 %v1593, %v1592
        %v1735 = vpack.i.b16 %v1595, %v1594
        %v1736 = vpack.i.b16 %v1597, %v1596
        %v1737 = vpack.i.b16 %v1599, %v1598
        %v1738 = vpack.i.b16 %v1601, %v1600
        %v1739 = vpack.i.b16 %v1603, %v1602
        %v1740 = vpack.i.b16 %v1605, %v1604
        %v1741 = vpack.i.b16 %v1607, %v1606
        %v1742 = vpack.i.b16 %v1609, %v1608
        %v1743 = vpack.i.b16 %v1611, %v1610
        %v1744 = vpack.i.b16 %v1613, %v1612
        %v1745 = vpack.i.b16 %v1615, %v1614
        %v1746 = vpack.i.b16 %v1617, %v1616
        %v1747 = vpack.i.b16 %v1619, %v1618
        %v1748 = vpack.i.b16 %v1621, %v1620
        %v1749 = vpack.i.b16 %v1623, %v1622
        %v1750 = vpack.i.b16 %v1625, %v1624
        %v1751 = vpack.i.b16 %v1627, %v1626
        %v1752 = vpack.i.b16 %v1629, %v1628
        %1755 = vst [vmem:[#allocation1] ss:$9 sm:$0xff] %v1641
        %s1757 = scalar_lea.vmem [#allocation1], 1
        %1758 = vst [vmem:[%s1757] ss:$9 sm:$0xff] %v1642
        %s1760 = scalar_lea.vmem [#allocation1], 2
        %1761 = vst [vmem:[%s1760] ss:$9 sm:$0xff] %v1643
        %s1763 = scalar_lea.vmem [#allocation1], 3
        %1764 = vst [vmem:[%s1763] ss:$9 sm:$0xff] %v1644
        %s1766 = scalar_lea.vmem [#allocation1], 4
        %1767 = vst [vmem:[%s1766] ss:$9 sm:$0xff] %v1645
        %s1769 = scalar_lea.vmem [#allocation1], 5
        %1770 = vst [vmem:[%s1769] ss:$9 sm:$0xff] %v1646
        %s1772 = scalar_lea.vmem [#allocation1], 6
        %1773 = vst [vmem:[%s1772] ss:$9 sm:$0xff] %v1647
        %s1775 = scalar_lea.vmem [#allocation1], 7
        %1776 = vst [vmem:[%s1775] ss:$9 sm:$0xff] %v1648
        %v1777 = vld [vmem:[#allocation1] sm:$0xff]
        %1779 = vst [vmem:[#allocation1] ss:$9 sm:$0xff] %v1649
        %1781 = vst [vmem:[%s1757] ss:$9 sm:$0xff] %v1650
        %1783 = vst [vmem:[%s1760] ss:$9 sm:$0xff] %v1651
        %1785 = vst [vmem:[%s1763] ss:$9 sm:$0xff] %v1652
        %1787 = vst [vmem:[%s1766] ss:$9 sm:$0xff] %v1653
        %1789 = vst [vmem:[%s1769] ss:$9 sm:$0xff] %v1654
        %1791 = vst [vmem:[%s1772] ss:$9 sm:$0xff] %v1655
        %1793 = vst [vmem:[%s1775] ss:$9 sm:$0xff] %v1656
        %v1794 = vld [vmem:[#allocation1] sm:$0xff]
        %1796 = vst [vmem:[#allocation1] ss:$9 sm:$0xff] %v1657
        %1798 = vst [vmem:[%s1757] ss:$9 sm:$0xff] %v1658
        %1800 = vst [vmem:[%s1760] ss:$9 sm:$0xff] %v1659
        %1802 = vst [vmem:[%s1763] ss:$9 sm:$0xff] %v1660
        %1804 = vst [vmem:[%s1766] ss:$9 sm:$0xff] %v1661
        %1806 = vst [vmem:[%s1769] ss:$9 sm:$0xff] %v1662
        %1808 = vst [vmem:[%s1772] ss:$9 sm:$0xff] %v1663
        %1810 = vst [vmem:[%s1775] ss:$9 sm:$0xff] %v1664
        %v1811 = vld [vmem:[#allocation1] sm:$0xff]
        %1813 = vst [vmem:[#allocation1] ss:$9 sm:$0xff] %v1665
        %1815 = vst [vmem:[%s1757] ss:$9 sm:$0xff] %v1666
        %1817 = vst [vmem:[%s1760] ss:$9 sm:$0xff] %v1667
        %1819 = vst [vmem:[%s1763] ss:$9 sm:$0xff] %v1668
        %1821 = vst [vmem:[%s1766] ss:$9 sm:$0xff] %v1669
        %1823 = vst [vmem:[%s1769] ss:$9 sm:$0xff] %v1670
        %1825 = vst [vmem:[%s1772] ss:$9 sm:$0xff] %v1671
        %1827 = vst [vmem:[%s1775] ss:$9 sm:$0xff] %v1672
        %v1828 = vld [vmem:[#allocation1] sm:$0xff]
        %1830 = vst [vmem:[#allocation1] ss:$9 sm:$0xff] %v1673
        %1832 = vst [vmem:[%s1757] ss:$9 sm:$0xff] %v1674
        %1834 = vst [vmem:[%s1760] ss:$9 sm:$0xff] %v1675
        %1836 = vst [vmem:[%s1763] ss:$9 sm:$0xff] %v1676
        %1838 = vst [vmem:[%s1766] ss:$9 sm:$0xff] %v1677
        %1840 = vst [vmem:[%s1769] ss:$9 sm:$0xff] %v1678
        %1842 = vst [vmem:[%s1772] ss:$9 sm:$0xff] %v1679
        %1844 = vst [vmem:[%s1775] ss:$9 sm:$0xff] %v1680
        %v1845 = vld [vmem:[#allocation1] sm:$0xff]
        %1847 = vst [vmem:[#allocation1] ss:$9 sm:$0xff] %v1681
        %1849 = vst [vmem:[%s1757] ss:$9 sm:$0xff] %v1682
        %1851 = vst [vmem:[%s1760] ss:$9 sm:$0xff] %v1683
        %1853 = vst [vmem:[%s1763] ss:$9 sm:$0xff] %v1684
        %1855 = vst [vmem:[%s1766] ss:$9 sm:$0xff] %v1685
        %1857 = vst [vmem:[%s1769] ss:$9 sm:$0xff] %v1686
        %1859 = vst [vmem:[%s1772] ss:$9 sm:$0xff] %v1687
        %1861 = vst [vmem:[%s1775] ss:$9 sm:$0xff] %v1688
        %v1862 = vld [vmem:[#allocation1] sm:$0xff]
        %1864 = vst [vmem:[#allocation1] ss:$9 sm:$0xff] %v1689
        %1866 = vst [vmem:[%s1757] ss:$9 sm:$0xff] %v1690
        %1868 = vst [vmem:[%s1760] ss:$9 sm:$0xff] %v1691
        %1870 = vst [vmem:[%s1763] ss:$9 sm:$0xff] %v1692
        %1872 = vst [vmem:[%s1766] ss:$9 sm:$0xff] %v1693
        %1874 = vst [vmem:[%s1769] ss:$9 sm:$0xff] %v1694
        %1876 = vst [vmem:[%s1772] ss:$9 sm:$0xff] %v1695
        %1878 = vst [vmem:[%s1775] ss:$9 sm:$0xff] %v1696
        %v1879 = vld [vmem:[#allocation1] sm:$0xff]
        %1881 = vst [vmem:[#allocation1] ss:$9 sm:$0xff] %v1697
        %1883 = vst [vmem:[%s1757] ss:$9 sm:$0xff] %v1698
        %1885 = vst [vmem:[%s1760] ss:$9 sm:$0xff] %v1699
        %1887 = vst [vmem:[%s1763] ss:$9 sm:$0xff] %v1700
        %1889 = vst [vmem:[%s1766] ss:$9 sm:$0xff] %v1701
        %1891 = vst [vmem:[%s1769] ss:$9 sm:$0xff] %v1702
        %1893 = vst [vmem:[%s1772] ss:$9 sm:$0xff] %v1703
        %1895 = vst [vmem:[%s1775] ss:$9 sm:$0xff] %v1704
        %v1896 = vld [vmem:[#allocation1] sm:$0xff]
        %1898 = vst [vmem:[#allocation1] ss:$9 sm:$0xff] %v1705
        %1900 = vst [vmem:[%s1757] ss:$9 sm:$0xff] %v1706
        %1902 = vst [vmem:[%s1760] ss:$9 sm:$0xff] %v1707
        %1904 = vst [vmem:[%s1763] ss:$9 sm:$0xff] %v1708
        %1906 = vst [vmem:[%s1766] ss:$9 sm:$0xff] %v1709
        %1908 = vst [vmem:[%s1769] ss:$9 sm:$0xff] %v1710
        %1910 = vst [vmem:[%s1772] ss:$9 sm:$0xff] %v1711
        %1912 = vst [vmem:[%s1775] ss:$9 sm:$0xff] %v1712
        %v1913 = vld [vmem:[#allocation1] sm:$0xff]
        %1915 = vst [vmem:[#allocation1] ss:$9 sm:$0xff] %v1713
        %1917 = vst [vmem:[%s1757] ss:$9 sm:$0xff] %v1714
        %1919 = vst [vmem:[%s1760] ss:$9 sm:$0xff] %v1715
        %1921 = vst [vmem:[%s1763] ss:$9 sm:$0xff] %v1716
        %1923 = vst [vmem:[%s1766] ss:$9 sm:$0xff] %v1717
        %1925 = vst [vmem:[%s1769] ss:$9 sm:$0xff] %v1718
        %1927 = vst [vmem:[%s1772] ss:$9 sm:$0xff] %v1719
        %1929 = vst [vmem:[%s1775] ss:$9 sm:$0xff] %v1720
        %v1930 = vld [vmem:[#allocation1] sm:$0xff]
        %1932 = vst [vmem:[#allocation1] ss:$9 sm:$0xff] %v1721
        %1934 = vst [vmem:[%s1757] ss:$9 sm:$0xff] %v1722
        %1936 = vst [vmem:[%s1760] ss:$9 sm:$0xff] %v1723
        %1938 = vst [vmem:[%s1763] ss:$9 sm:$0xff] %v1724
        %1940 = vst [vmem:[%s1766] ss:$9 sm:$0xff] %v1725
        %1942 = vst [vmem:[%s1769] ss:$9 sm:$0xff] %v1726
        %1944 = vst [vmem:[%s1772] ss:$9 sm:$0xff] %v1727
        %1946 = vst [vmem:[%s1775] ss:$9 sm:$0xff] %v1728
        %v1947 = vld [vmem:[#allocation1] sm:$0xff]
        %1949 = vst [vmem:[#allocation1] ss:$9 sm:$0xff] %v1729
        %1951 = vst [vmem:[%s1757] ss:$9 sm:$0xff] %v1730
        %1953 = vst [vmem:[%s1760] ss:$9 sm:$0xff] %v1731
        %1955 = vst [vmem:[%s1763] ss:$9 sm:$0xff] %v1732
        %1957 = vst [vmem:[%s1766] ss:$9 sm:$0xff] %v1733
        %1959 = vst [vmem:[%s1769] ss:$9 sm:$0xff] %v1734
        %1961 = vst [vmem:[%s1772] ss:$9 sm:$0xff] %v1735
        %1963 = vst [vmem:[%s1775] ss:$9 sm:$0xff] %v1736
        %v1964 = vld [vmem:[#allocation1] sm:$0xff]
        %1966 = vst [vmem:[#allocation1] ss:$9 sm:$0xff] %v1737
        %1968 = vst [vmem:[%s1757] ss:$9 sm:$0xff] %v1738
        %1970 = vst [vmem:[%s1760] ss:$9 sm:$0xff] %v1739
        %1972 = vst [vmem:[%s1763] ss:$9 sm:$0xff] %v1740
        %1974 = vst [vmem:[%s1766] ss:$9 sm:$0xff] %v1741
        %1976 = vst [vmem:[%s1769] ss:$9 sm:$0xff] %v1742
        %1978 = vst [vmem:[%s1772] ss:$9 sm:$0xff] %v1743
        %1980 = vst [vmem:[%s1775] ss:$9 sm:$0xff] %v1744
        %v1981 = vld [vmem:[#allocation1] sm:$0xff]
        %1983 = vst [vmem:[#allocation1] ss:$9 sm:$0xff] %v1745
        %1985 = vst [vmem:[%s1757] ss:$9 sm:$0xff] %v1746
        %1987 = vst [vmem:[%s1760] ss:$9 sm:$0xff] %v1747
        %1989 = vst [vmem:[%s1763] ss:$9 sm:$0xff] %v1748
        %1991 = vst [vmem:[%s1766] ss:$9 sm:$0xff] %v1749
        %1993 = vst [vmem:[%s1769] ss:$9 sm:$0xff] %v1750
        %1995 = vst [vmem:[%s1772] ss:$9 sm:$0xff] %v1751
        %1997 = vst [vmem:[%s1775] ss:$9 sm:$0xff] %v1752
        %v1998 = vld [vmem:[#allocation1] sm:$0xff]
        %2000 = vst [vmem:[#allocation1] ss:$9 sm:$0xff] %v1630
        %v2001 = vld [vmem:[#allocation1] sm:$0xff]
        %v2008 = vunpack.c.l.b16 %v1631
        %v2009 = vunpack.c.l.b16 %v1632
        %v2010 = vunpack.c.l.b16 %v1633
        %v2011 = vunpack.c.l.b16 %v1634
        %v2012 = vunpack.c.l.b16 %v1635
        %v2013 = vunpack.c.l.b16 %v1636
        %v2014 = vpack.c.b16 %v2009, %v2008
        %v2015 = vpack.c.b16 %v2011, %v2010
        %v2016 = vpack.c.b16 %v2013, %v2012
        %vm2020 = vcmask 392192
        %v2021 = vsel %vm2020, %v1777, 0
        %v2023 = vsel %vm2020, %v1794, 0
        %v2025 = vsel %vm2020, %v1811, 0
        %v2027 = vsel %vm2020, %v1828, 0
        %v2029 = vsel %vm2020, %v1845, 0
        %v2031 = vsel %vm2020, %v1862, 0
        %v2033 = vsel %vm2020, %v1879, 0
        %v2035 = vsel %vm2020, %v1896, 0
        %v2037 = vsel %vm2020, %v1913, 0
        %v2039 = vsel %vm2020, %v1930, 0
        %v2041 = vsel %vm2020, %v1947, 0
        %v2043 = vsel %vm2020, %v1964, 0
        %v2045 = vsel %vm2020, %v1981, 0
        %v2047 = vsel %vm2020, %v1998, 0
        %v2049 = vsel %vm2020, %v2001, 0
        %2051 = vmatpush.bf16.msra.mxu0 0
        %2052 = vmatpush.bf16.msra.mxu0 0
        %2053 = vmatpush.bf16.msra.mxu0 0
        %2054 = vmatpush.bf16.msra.mxu0 0
        %2055 = vmatpush.bf16.msra.mxu0 0
        %2056 = vmatpush.bf16.msra.mxu0 %v2016
        %2057 = vmatpush.bf16.msra.mxu0 %v2015
        %2058 = vmatpush.bf16.msra.mxu0 %v2014
        %2059 = vmatmul.bf16.gmra.mxu0 %v2021
        %v2060 = vpop.f32.mrf.mxu0
        %v2061 = vadd.f32 %v1639, %v2060
        %v2062 = vpop.f32.mrf.mxu0
        %v2063 = vadd.f32 %v1639, %v2062
        %2064 = vmatmul.bf16.gmra.mxu0 %v2023
        %v2065 = vpop.f32.mrf.mxu0
        %v2066 = vadd.f32 %v1639, %v2065
        %v2067 = vpop.f32.mrf.mxu0
        %v2068 = vadd.f32 %v1639, %v2067
        %2069 = vmatmul.bf16.gmra.mxu0 %v2025
        %v2070 = vpop.f32.mrf.mxu0
        %v2071 = vadd.f32 %v1639, %v2070
        %v2072 = vpop.f32.mrf.mxu0
        %v2073 = vadd.f32 %v1639, %v2072
        %2074 = vmatmul.bf16.gmra.mxu0 %v2027
        %v2075 = vpop.f32.mrf.mxu0
        %v2076 = vadd.f32 %v1639, %v2075
        %v2077 = vpop.f32.mrf.mxu0
        %v2078 = vadd.f32 %v1639, %v2077
        %2079 = vmatmul.bf16.gmra.mxu0 %v2029
        %v2080 = vpop.f32.mrf.mxu0
        %v2081 = vadd.f32 %v1639, %v2080
        %v2082 = vpop.f32.mrf.mxu0
        %v2083 = vadd.f32 %v1639, %v2082
        %2084 = vmatmul.bf16.gmra.mxu0 %v2031
        %v2085 = vpop.f32.mrf.mxu0
        %v2086 = vadd.f32 %v1639, %v2085
        %v2087 = vpop.f32.mrf.mxu0
        %v2088 = vadd.f32 %v1639, %v2087
        %2089 = vmatmul.bf16.gmra.mxu0 %v2033
        %v2090 = vpop.f32.mrf.mxu0
        %v2091 = vadd.f32 %v1639, %v2090
        %v2092 = vpop.f32.mrf.mxu0
        %v2093 = vadd.f32 %v1639, %v2092
        %2094 = vmatmul.bf16.gmra.mxu0 %v2035
        %v2095 = vpop.f32.mrf.mxu0
        %v2096 = vadd.f32 %v1639, %v2095
        %v2097 = vpop.f32.mrf.mxu0
        %v2098 = vadd.f32 %v1639, %v2097
        %2099 = vmatmul.bf16.gmra.mxu0 %v2037
        %v2100 = vpop.f32.mrf.mxu0
        %v2101 = vadd.f32 %v1639, %v2100
        %v2102 = vpop.f32.mrf.mxu0
        %v2103 = vadd.f32 %v1639, %v2102
        %2104 = vmatmul.bf16.gmra.mxu0 %v2039
        %v2105 = vpop.f32.mrf.mxu0
        %v2106 = vadd.f32 %v1639, %v2105
        %v2107 = vpop.f32.mrf.mxu0
        %v2108 = vadd.f32 %v1639, %v2107
        %2109 = vmatmul.bf16.gmra.mxu0 %v2041
        %v2110 = vpop.f32.mrf.mxu0
        %v2111 = vadd.f32 %v1639, %v2110
        %v2112 = vpop.f32.mrf.mxu0
        %v2113 = vadd.f32 %v1639, %v2112
        %2114 = vmatmul.bf16.gmra.mxu0 %v2043
        %v2115 = vpop.f32.mrf.mxu0
        %v2116 = vadd.f32 %v1639, %v2115
        %v2117 = vpop.f32.mrf.mxu0
        %v2118 = vadd.f32 %v1639, %v2117
        %2119 = vmatmul.bf16.gmra.mxu0 %v2045
        %v2120 = vpop.f32.mrf.mxu0
        %v2121 = vadd.f32 %v1639, %v2120
        %v2122 = vpop.f32.mrf.mxu0
        %v2123 = vadd.f32 %v1639, %v2122
        %2124 = vmatmul.bf16.gmra.mxu0 %v2047
        %v2125 = vpop.f32.mrf.mxu0
        %v2126 = vadd.f32 %v1639, %v2125
        %v2127 = vpop.f32.mrf.mxu0
        %v2128 = vadd.f32 %v1639, %v2127
        %2129 = vmatmul.bf16.gmra.mxu0 %v2049
        %v2130 = vpop.f32.mrf.mxu0
        %v2131 = vadd.f32 %v1639, %v2130
        %v2132 = vpop.f32.mrf.mxu0
        %2133 = vdwg.mxu0
        %v2134 = vmax.f32 %v2061, 0.0
        %v2135 = vmax.f32 %v2063, 0.0
        %v2136 = vmax.f32 %v2066, 0.0
        %v2137 = vmax.f32 %v2068, 0.0
        %v2138 = vmax.f32 %v2071, 0.0
        %v2139 = vmax.f32 %v2073, 0.0
        %v2140 = vmax.f32 %v2076, 0.0
        %v2141 = vmax.f32 %v2078, 0.0
        %v2142 = vmax.f32 %v2081, 0.0
        %v2143 = vmax.f32 %v2083, 0.0
        %v2144 = vmax.f32 %v2086, 0.0
        %v2145 = vmax.f32 %v2088, 0.0
        %v2146 = vmax.f32 %v2091, 0.0
        %v2147 = vmax.f32 %v2093, 0.0
        %v2148 = vmax.f32 %v2096, 0.0
        %v2149 = vmax.f32 %v2098, 0.0
        %v2150 = vmax.f32 %v2101, 0.0
        %v2151 = vmax.f32 %v2103, 0.0
        %v2152 = vmax.f32 %v2106, 0.0
        %v2153 = vmax.f32 %v2108, 0.0
        %v2154 = vmax.f32 %v2111, 0.0
        %v2155 = vmax.f32 %v2113, 0.0
        %v2156 = vmax.f32 %v2116, 0.0
        %v2157 = vmax.f32 %v2118, 0.0
        %v2158 = vmax.f32 %v2121, 0.0
        %v2159 = vmax.f32 %v2123, 0.0
        %v2160 = vmax.f32 %v2126, 0.0
        %v2161 = vmax.f32 %v2128, 0.0
        %v2162 = vmax.f32 %v2131, 0.0
        %v2192 = vrot.slane %v2134, 1
        %v2193 = vrot.slane %v2134, 2
        %v2194 = vrot.slane %v2134, 3
        %v2195 = vrot.slane %v2134, 4
        %v2196 = vrot.slane %v2134, 5
        %v2197 = vrot.slane %v2134, 6
        %v2198 = vrot.slane %v2134, 7
        %v2199 = vrot.slane %v2135, 1
        %v2200 = vrot.slane %v2135, 2
        %v2201 = vrot.slane %v2135, 3
        %v2202 = vrot.slane %v2135, 4
        %v2203 = vrot.slane %v2135, 5
        %v2204 = vrot.slane %v2135, 6
        %v2205 = vrot.slane %v2135, 7
        %v2206 = vrot.slane %v2136, 1
        %v2207 = vrot.slane %v2136, 2
        %v2208 = vrot.slane %v2136, 3
        %v2209 = vrot.slane %v2136, 4
        %v2210 = vrot.slane %v2136, 5
        %v2211 = vrot.slane %v2136, 6
        %v2212 = vrot.slane %v2136, 7
        %v2213 = vrot.slane %v2137, 1
        %v2214 = vrot.slane %v2137, 2
        %v2215 = vrot.slane %v2137, 3
        %v2216 = vrot.slane %v2137, 4
        %v2217 = vrot.slane %v2137, 5
        %v2218 = vrot.slane %v2137, 6
        %v2219 = vrot.slane %v2137, 7
        %v2220 = vrot.slane %v2138, 1
        %v2221 = vrot.slane %v2138, 2
        %v2222 = vrot.slane %v2138, 3
        %v2223 = vrot.slane %v2138, 4
        %v2224 = vrot.slane %v2138, 5
        %v2225 = vrot.slane %v2138, 6
        %v2226 = vrot.slane %v2138, 7
        %v2227 = vrot.slane %v2139, 1
        %v2228 = vrot.slane %v2139, 2
        %v2229 = vrot.slane %v2139, 3
        %v2230 = vrot.slane %v2139, 4
        %v2231 = vrot.slane %v2139, 5
        %v2232 = vrot.slane %v2139, 6
        %v2233 = vrot.slane %v2139, 7
        %v2234 = vrot.slane %v2140, 1
        %v2235 = vrot.slane %v2140, 2
        %v2236 = vrot.slane %v2140, 3
        %v2237 = vrot.slane %v2140, 4
        %v2238 = vrot.slane %v2140, 5
        %v2239 = vrot.slane %v2140, 6
        %v2240 = vrot.slane %v2140, 7
        %v2241 = vrot.slane %v2141, 1
        %v2242 = vrot.slane %v2141, 2
        %v2243 = vrot.slane %v2141, 3
        %v2244 = vrot.slane %v2141, 4
        %v2245 = vrot.slane %v2141, 5
        %v2246 = vrot.slane %v2141, 6
        %v2247 = vrot.slane %v2141, 7
        %v2248 = vrot.slane %v2142, 1
        %v2249 = vrot.slane %v2142, 2
        %v2250 = vrot.slane %v2142, 3
        %v2251 = vrot.slane %v2142, 4
        %v2252 = vrot.slane %v2142, 5
        %v2253 = vrot.slane %v2142, 6
        %v2254 = vrot.slane %v2142, 7
        %v2255 = vrot.slane %v2143, 1
        %v2256 = vrot.slane %v2143, 2
        %v2257 = vrot.slane %v2143, 3
        %v2258 = vrot.slane %v2143, 4
        %v2259 = vrot.slane %v2143, 5
        %v2260 = vrot.slane %v2143, 6
        %v2261 = vrot.slane %v2143, 7
        %v2262 = vrot.slane %v2144, 1
        %v2263 = vrot.slane %v2144, 2
        %v2264 = vrot.slane %v2144, 3
        %v2265 = vrot.slane %v2144, 4
        %v2266 = vrot.slane %v2144, 5
        %v2267 = vrot.slane %v2144, 6
        %v2268 = vrot.slane %v2144, 7
        %v2269 = vrot.slane %v2145, 1
        %v2270 = vrot.slane %v2145, 2
        %v2271 = vrot.slane %v2145, 3
        %v2272 = vrot.slane %v2145, 4
        %v2273 = vrot.slane %v2145, 5
        %v2274 = vrot.slane %v2145, 6
        %v2275 = vrot.slane %v2145, 7
        %v2276 = vrot.slane %v2146, 1
        %v2277 = vrot.slane %v2146, 2
        %v2278 = vrot.slane %v2146, 3
        %v2279 = vrot.slane %v2146, 4
        %v2280 = vrot.slane %v2146, 5
        %v2281 = vrot.slane %v2146, 6
        %v2282 = vrot.slane %v2146, 7
        %v2283 = vrot.slane %v2147, 1
        %v2284 = vrot.slane %v2147, 2
        %v2285 = vrot.slane %v2147, 3
        %v2286 = vrot.slane %v2147, 4
        %v2287 = vrot.slane %v2147, 5
        %v2288 = vrot.slane %v2147, 6
        %v2289 = vrot.slane %v2147, 7
        %v2290 = vrot.slane %v2148, 1
        %v2291 = vrot.slane %v2148, 2
        %v2292 = vrot.slane %v2148, 3
        %v2293 = vrot.slane %v2148, 4
        %v2294 = vrot.slane %v2148, 5
        %v2295 = vrot.slane %v2148, 6
        %v2296 = vrot.slane %v2148, 7
        %v2297 = vrot.slane %v2149, 1
        %v2298 = vrot.slane %v2149, 2
        %v2299 = vrot.slane %v2149, 3
        %v2300 = vrot.slane %v2149, 4
        %v2301 = vrot.slane %v2149, 5
        %v2302 = vrot.slane %v2149, 6
        %v2303 = vrot.slane %v2149, 7
        %v2304 = vrot.slane %v2150, 1
        %v2305 = vrot.slane %v2150, 2
        %v2306 = vrot.slane %v2150, 3
        %v2307 = vrot.slane %v2150, 4
        %v2308 = vrot.slane %v2150, 5
        %v2309 = vrot.slane %v2150, 6
        %v2310 = vrot.slane %v2150, 7
        %v2311 = vrot.slane %v2151, 1
        %v2312 = vrot.slane %v2151, 2
        %v2313 = vrot.slane %v2151, 3
        %v2314 = vrot.slane %v2151, 4
        %v2315 = vrot.slane %v2151, 5
        %v2316 = vrot.slane %v2151, 6
        %v2317 = vrot.slane %v2151, 7
        %v2318 = vrot.slane %v2152, 1
        %v2319 = vrot.slane %v2152, 2
        %v2320 = vrot.slane %v2152, 3
        %v2321 = vrot.slane %v2152, 4
        %v2322 = vrot.slane %v2152, 5
        %v2323 = vrot.slane %v2152, 6
        %v2324 = vrot.slane %v2152, 7
        %v2325 = vrot.slane %v2153, 1
        %v2326 = vrot.slane %v2153, 2
        %v2327 = vrot.slane %v2153, 3
        %v2328 = vrot.slane %v2153, 4
        %v2329 = vrot.slane %v2153, 5
        %v2330 = vrot.slane %v2153, 6
        %v2331 = vrot.slane %v2153, 7
        %v2332 = vrot.slane %v2154, 1
        %v2333 = vrot.slane %v2154, 2
        %v2334 = vrot.slane %v2154, 3
        %v2335 = vrot.slane %v2154, 4
        %v2336 = vrot.slane %v2154, 5
        %v2337 = vrot.slane %v2154, 6
        %v2338 = vrot.slane %v2154, 7
        %v2339 = vrot.slane %v2155, 1
        %v2340 = vrot.slane %v2155, 2
        %v2341 = vrot.slane %v2155, 3
        %v2342 = vrot.slane %v2155, 4
        %v2343 = vrot.slane %v2155, 5
        %v2344 = vrot.slane %v2155, 6
        %v2345 = vrot.slane %v2155, 7
        %v2346 = vrot.slane %v2156, 1
        %v2347 = vrot.slane %v2156, 2
        %v2348 = vrot.slane %v2156, 3
        %v2349 = vrot.slane %v2156, 4
        %v2350 = vrot.slane %v2156, 5
        %v2351 = vrot.slane %v2156, 6
        %v2352 = vrot.slane %v2156, 7
        %v2353 = vrot.slane %v2157, 1
        %v2354 = vrot.slane %v2157, 2
        %v2355 = vrot.slane %v2157, 3
        %v2356 = vrot.slane %v2157, 4
        %v2357 = vrot.slane %v2157, 5
        %v2358 = vrot.slane %v2157, 6
        %v2359 = vrot.slane %v2157, 7
        %v2360 = vrot.slane %v2158, 1
        %v2361 = vrot.slane %v2158, 2
        %v2362 = vrot.slane %v2158, 3
        %v2363 = vrot.slane %v2158, 4
        %v2364 = vrot.slane %v2158, 5
        %v2365 = vrot.slane %v2158, 6
        %v2366 = vrot.slane %v2158, 7
        %v2367 = vrot.slane %v2159, 1
        %v2368 = vrot.slane %v2159, 2
        %v2369 = vrot.slane %v2159, 3
        %v2370 = vrot.slane %v2159, 4
        %v2371 = vrot.slane %v2159, 5
        %v2372 = vrot.slane %v2159, 6
        %v2373 = vrot.slane %v2159, 7
        %v2374 = vrot.slane %v2160, 1
        %v2375 = vrot.slane %v2160, 2
        %v2376 = vrot.slane %v2160, 3
        %v2377 = vrot.slane %v2160, 4
        %v2378 = vrot.slane %v2160, 5
        %v2379 = vrot.slane %v2160, 6
        %v2380 = vrot.slane %v2160, 7
        %v2381 = vrot.slane %v2161, 1
        %v2382 = vrot.slane %v2161, 2
        %v2383 = vrot.slane %v2161, 3
        %v2384 = vrot.slane %v2161, 4
        %v2385 = vrot.slane %v2161, 5
        %v2386 = vrot.slane %v2161, 6
        %v2387 = vrot.slane %v2161, 7
        %2388 = vst [vmem:[#allocation1] ss:$9 sm:$0xff] %v2134
        %s2389 = scalar_lea.vmem [#allocation1], 1
        %2390 = vst [vmem:[%s2389] ss:$9 sm:$0xff] %v2192
        %s2391 = scalar_lea.vmem [#allocation1], 2
        %2392 = vst [vmem:[%s2391] ss:$9 sm:$0xff] %v2193
        %s2393 = scalar_lea.vmem [#allocation1], 3
        %2394 = vst [vmem:[%s2393] ss:$9 sm:$0xff] %v2194
        %s2395 = scalar_lea.vmem [#allocation1], 4
        %2396 = vst [vmem:[%s2395] ss:$9 sm:$0xff] %v2195
        %s2397 = scalar_lea.vmem [#allocation1], 5
        %2398 = vst [vmem:[%s2397] ss:$9 sm:$0xff] %v2196
        %s2399 = scalar_lea.vmem [#allocation1], 6
        %2400 = vst [vmem:[%s2399] ss:$9 sm:$0xff] %v2197
        %s2401 = scalar_lea.vmem [#allocation1], 7
        %2402 = vst [vmem:[%s2401] ss:$9 sm:$0xff] %v2198
        %v2403 = vld [vmem:[#allocation1] sm:$0xff]
        %2404 = vst [vmem:[#allocation1] ss:$9 sm:$0xff] %v2135
        %2405 = vst [vmem:[%s2389] ss:$9 sm:$0xff] %v2199
        %2406 = vst [vmem:[%s2391] ss:$9 sm:$0xff] %v2200
        %2407 = vst [vmem:[%s2393] ss:$9 sm:$0xff] %v2201
        %2408 = vst [vmem:[%s2395] ss:$9 sm:$0xff] %v2202
        %2409 = vst [vmem:[%s2397] ss:$9 sm:$0xff] %v2203
        %2410 = vst [vmem:[%s2399] ss:$9 sm:$0xff] %v2204
        %v2411 = vld [vmem:[#allocation1] sm:$0xff]
        %2412 = vst [vmem:[#allocation1] ss:$9 sm:$0xff] %v2205
        %2413 = vst [vmem:[%s2389] ss:$9 sm:$0xff] %v2136
        %2414 = vst [vmem:[%s2391] ss:$9 sm:$0xff] %v2206
        %2415 = vst [vmem:[%s2393] ss:$9 sm:$0xff] %v2207
        %2416 = vst [vmem:[%s2395] ss:$9 sm:$0xff] %v2208
        %2417 = vst [vmem:[%s2397] ss:$9 sm:$0xff] %v2209
        %2418 = vst [vmem:[%s2399] ss:$9 sm:$0xff] %v2210
        %2419 = vst [vmem:[%s2401] ss:$9 sm:$0xff] %v2211
        %v2420 = vld [vmem:[#allocation1] sm:$0xff]
        %2421 = vst [vmem:[#allocation1] ss:$9 sm:$0xff] %v2212
        %2422 = vst [vmem:[%s2389] ss:$9 sm:$0xff] %v2137
        %2423 = vst [vmem:[%s2391] ss:$9 sm:$0xff] %v2213
        %2424 = vst [vmem:[%s2393] ss:$9 sm:$0xff] %v2214
        %2425 = vst [vmem:[%s2395] ss:$9 sm:$0xff] %v2215
        %2426 = vst [vmem:[%s2397] ss:$9 sm:$0xff] %v2216
        %2427 = vst [vmem:[%s2399] ss:$9 sm:$0xff] %v2217
        %v2428 = vld [vmem:[#allocation1] sm:$0xff]
        %2429 = vst [vmem:[#allocation1] ss:$9 sm:$0xff] %v2218
        %2430 = vst [vmem:[%s2389] ss:$9 sm:$0xff] %v2219
        %2431 = vst [vmem:[%s2391] ss:$9 sm:$0xff] %v2138
        %2432 = vst [vmem:[%s2393] ss:$9 sm:$0xff] %v2220
        %2433 = vst [vmem:[%s2395] ss:$9 sm:$0xff] %v2221
        %2434 = vst [vmem:[%s2397] ss:$9 sm:$0xff] %v2222
        %2435 = vst [vmem:[%s2399] ss:$9 sm:$0xff] %v2223
        %2436 = vst [vmem:[%s2401] ss:$9 sm:$0xff] %v2224
        %v2437 = vld [vmem:[#allocation1] sm:$0xff]
        %2438 = vst [vmem:[#allocation1] ss:$9 sm:$0xff] %v2225
        %2439 = vst [vmem:[%s2389] ss:$9 sm:$0xff] %v2226
        %2440 = vst [vmem:[%s2391] ss:$9 sm:$0xff] %v2139
        %2441 = vst [vmem:[%s2393] ss:$9 sm:$0xff] %v2227
        %2442 = vst [vmem:[%s2395] ss:$9 sm:$0xff] %v2228
        %2443 = vst [vmem:[%s2397] ss:$9 sm:$0xff] %v2229
        %2444 = vst [vmem:[%s2399] ss:$9 sm:$0xff] %v2230
        %v2445 = vld [vmem:[#allocation1] sm:$0xff]
        %2446 = vst [vmem:[#allocation1] ss:$9 sm:$0xff] %v2231
        %2447 = vst [vmem:[%s2389] ss:$9 sm:$0xff] %v2232
        %2448 = vst [vmem:[%s2391] ss:$9 sm:$0xff] %v2233
        %2449 = vst [vmem:[%s2393] ss:$9 sm:$0xff] %v2140
        %2450 = vst [vmem:[%s2395] ss:$9 sm:$0xff] %v2234
        %2451 = vst [vmem:[%s2397] ss:$9 sm:$0xff] %v2235
        %2452 = vst [vmem:[%s2399] ss:$9 sm:$0xff] %v2236
        %2453 = vst [vmem:[%s2401] ss:$9 sm:$0xff] %v2237
        %v2454 = vld [vmem:[#allocation1] sm:$0xff]
        %2455 = vst [vmem:[#allocation1] ss:$9 sm:$0xff] %v2238
        %2456 = vst [vmem:[%s2389] ss:$9 sm:$0xff] %v2239
        %2457 = vst [vmem:[%s2391] ss:$9 sm:$0xff] %v2240
        %2458 = vst [vmem:[%s2393] ss:$9 sm:$0xff] %v2141
        %2459 = vst [vmem:[%s2395] ss:$9 sm:$0xff] %v2241
        %2460 = vst [vmem:[%s2397] ss:$9 sm:$0xff] %v2242
        %2461 = vst [vmem:[%s2399] ss:$9 sm:$0xff] %v2243
        %v2462 = vld [vmem:[#allocation1] sm:$0xff]
        %2463 = vst [vmem:[#allocation1] ss:$9 sm:$0xff] %v2244
        %2464 = vst [vmem:[%s2389] ss:$9 sm:$0xff] %v2245
        %2465 = vst [vmem:[%s2391] ss:$9 sm:$0xff] %v2246
        %2466 = vst [vmem:[%s2393] ss:$9 sm:$0xff] %v2247
        %2467 = vst [vmem:[%s2395] ss:$9 sm:$0xff] %v2142
        %2468 = vst [vmem:[%s2397] ss:$9 sm:$0xff] %v2248
        %2469 = vst [vmem:[%s2399] ss:$9 sm:$0xff] %v2249
        %2470 = vst [vmem:[%s2401] ss:$9 sm:$0xff] %v2250
        %v2471 = vld [vmem:[#allocation1] sm:$0xff]
        %2472 = vst [vmem:[#allocation1] ss:$9 sm:$0xff] %v2251
        %2473 = vst [vmem:[%s2389] ss:$9 sm:$0xff] %v2252
        %2474 = vst [vmem:[%s2391] ss:$9 sm:$0xff] %v2253
        %2475 = vst [vmem:[%s2393] ss:$9 sm:$0xff] %v2254
        %2476 = vst [vmem:[%s2395] ss:$9 sm:$0xff] %v2143
        %2477 = vst [vmem:[%s2397] ss:$9 sm:$0xff] %v2255
        %2478 = vst [vmem:[%s2399] ss:$9 sm:$0xff] %v2256
        %v2479 = vld [vmem:[#allocation1] sm:$0xff]
        %2480 = vst [vmem:[#allocation1] ss:$9 sm:$0xff] %v2257
        %2481 = vst [vmem:[%s2389] ss:$9 sm:$0xff] %v2258
        %2482 = vst [vmem:[%s2391] ss:$9 sm:$0xff] %v2259
        %2483 = vst [vmem:[%s2393] ss:$9 sm:$0xff] %v2260
        %2484 = vst [vmem:[%s2395] ss:$9 sm:$0xff] %v2261
        %2485 = vst [vmem:[%s2397] ss:$9 sm:$0xff] %v2144
        %2486 = vst [vmem:[%s2399] ss:$9 sm:$0xff] %v2262
        %2487 = vst [vmem:[%s2401] ss:$9 sm:$0xff] %v2263
        %v2488 = vld [vmem:[#allocation1] sm:$0xff]
        %2489 = vst [vmem:[#allocation1] ss:$9 sm:$0xff] %v2264
        %2490 = vst [vmem:[%s2389] ss:$9 sm:$0xff] %v2265
        %2491 = vst [vmem:[%s2391] ss:$9 sm:$0xff] %v2266
        %2492 = vst [vmem:[%s2393] ss:$9 sm:$0xff] %v2267
        %2493 = vst [vmem:[%s2395] ss:$9 sm:$0xff] %v2268
        %2494 = vst [vmem:[%s2397] ss:$9 sm:$0xff] %v2145
        %2495 = vst [vmem:[%s2399] ss:$9 sm:$0xff] %v2269
        %v2496 = vld [vmem:[#allocation1] sm:$0xff]
        %2497 = vst [vmem:[#allocation1] ss:$9 sm:$0xff] %v2270
        %2498 = vst [vmem:[%s2389] ss:$9 sm:$0xff] %v2271
        %2499 = vst [vmem:[%s2391] ss:$9 sm:$0xff] %v2272
        %2500 = vst [vmem:[%s2393] ss:$9 sm:$0xff] %v2273
        %2501 = vst [vmem:[%s2395] ss:$9 sm:$0xff] %v2274
        %2502 = vst [vmem:[%s2397] ss:$9 sm:$0xff] %v2275
        %2503 = vst [vmem:[%s2399] ss:$9 sm:$0xff] %v2146
        %2504 = vst [vmem:[%s2401] ss:$9 sm:$0xff] %v2276
        %v2505 = vld [vmem:[#allocation1] sm:$0xff]
        %2506 = vst [vmem:[#allocation1] ss:$9 sm:$0xff] %v2277
        %2507 = vst [vmem:[%s2389] ss:$9 sm:$0xff] %v2278
        %2508 = vst [vmem:[%s2391] ss:$9 sm:$0xff] %v2279
        %2509 = vst [vmem:[%s2393] ss:$9 sm:$0xff] %v2280
        %2510 = vst [vmem:[%s2395] ss:$9 sm:$0xff] %v2281
        %2511 = vst [vmem:[%s2397] ss:$9 sm:$0xff] %v2282
        %2512 = vst [vmem:[%s2399] ss:$9 sm:$0xff] %v2147
        %v2513 = vld [vmem:[#allocation1] sm:$0xff]
        %2514 = vst [vmem:[#allocation1] ss:$9 sm:$0xff] %v2283
        %2515 = vst [vmem:[%s2389] ss:$9 sm:$0xff] %v2284
        %2516 = vst [vmem:[%s2391] ss:$9 sm:$0xff] %v2285
        %2517 = vst [vmem:[%s2393] ss:$9 sm:$0xff] %v2286
        %2518 = vst [vmem:[%s2395] ss:$9 sm:$0xff] %v2287
        %2519 = vst [vmem:[%s2397] ss:$9 sm:$0xff] %v2288
        %2520 = vst [vmem:[%s2399] ss:$9 sm:$0xff] %v2289
        %2521 = vst [vmem:[%s2401] ss:$9 sm:$0xff] %v2148
        %v2522 = vld [vmem:[#allocation1] sm:$0xff]
        %2523 = vst [vmem:[#allocation1] ss:$9 sm:$0xff] %v2290
        %2524 = vst [vmem:[%s2389] ss:$9 sm:$0xff] %v2291
        %2525 = vst [vmem:[%s2391] ss:$9 sm:$0xff] %v2292
        %2526 = vst [vmem:[%s2393] ss:$9 sm:$0xff] %v2293
        %2527 = vst [vmem:[%s2395] ss:$9 sm:$0xff] %v2294
        %2528 = vst [vmem:[%s2397] ss:$9 sm:$0xff] %v2295
        %2529 = vst [vmem:[%s2399] ss:$9 sm:$0xff] %v2296
        %v2530 = vld [vmem:[#allocation1] sm:$0xff]
        %2531 = vst [vmem:[#allocation1] ss:$9 sm:$0xff] %v2149
        %2532 = vst [vmem:[%s2389] ss:$9 sm:$0xff] %v2297
        %2533 = vst [vmem:[%s2391] ss:$9 sm:$0xff] %v2298
        %2534 = vst [vmem:[%s2393] ss:$9 sm:$0xff] %v2299
        %2535 = vst [vmem:[%s2395] ss:$9 sm:$0xff] %v2300
        %2536 = vst [vmem:[%s2397] ss:$9 sm:$0xff] %v2301
        %2537 = vst [vmem:[%s2399] ss:$9 sm:$0xff] %v2302
        %2538 = vst [vmem:[%s2401] ss:$9 sm:$0xff] %v2303
        %v2539 = vld [vmem:[#allocation1] sm:$0xff]
        %2540 = vst [vmem:[#allocation1] ss:$9 sm:$0xff] %v2150
        %2541 = vst [vmem:[%s2389] ss:$9 sm:$0xff] %v2304
        %2542 = vst [vmem:[%s2391] ss:$9 sm:$0xff] %v2305
        %2543 = vst [vmem:[%s2393] ss:$9 sm:$0xff] %v2306
        %2544 = vst [vmem:[%s2395] ss:$9 sm:$0xff] %v2307
        %2545 = vst [vmem:[%s2397] ss:$9 sm:$0xff] %v2308
        %2546 = vst [vmem:[%s2399] ss:$9 sm:$0xff] %v2309
        %v2547 = vld [vmem:[#allocation1] sm:$0xff]
        %2548 = vst [vmem:[#allocation1] ss:$9 sm:$0xff] %v2310
        %2549 = vst [vmem:[%s2389] ss:$9 sm:$0xff] %v2151
        %2550 = vst [vmem:[%s2391] ss:$9 sm:$0xff] %v2311
        %2551 = vst [vmem:[%s2393] ss:$9 sm:$0xff] %v2312
        %2552 = vst [vmem:[%s2395] ss:$9 sm:$0xff] %v2313
        %2553 = vst [vmem:[%s2397] ss:$9 sm:$0xff] %v2314
        %2554 = vst [vmem:[%s2399] ss:$9 sm:$0xff] %v2315
        %2555 = vst [vmem:[%s2401] ss:$9 sm:$0xff] %v2316
        %v2556 = vld [vmem:[#allocation1] sm:$0xff]
        %2557 = vst [vmem:[#allocation1] ss:$9 sm:$0xff] %v2317
        %2558 = vst [vmem:[%s2389] ss:$9 sm:$0xff] %v2152
        %2559 = vst [vmem:[%s2391] ss:$9 sm:$0xff] %v2318
        %2560 = vst [vmem:[%s2393] ss:$9 sm:$0xff] %v2319
        %2561 = vst [vmem:[%s2395] ss:$9 sm:$0xff] %v2320
        %2562 = vst [vmem:[%s2397] ss:$9 sm:$0xff] %v2321
        %2563 = vst [vmem:[%s2399] ss:$9 sm:$0xff] %v2322
        %v2564 = vld [vmem:[#allocation1] sm:$0xff]
        %2565 = vst [vmem:[#allocation1] ss:$9 sm:$0xff] %v2323
        %2566 = vst [vmem:[%s2389] ss:$9 sm:$0xff] %v2324
        %2567 = vst [vmem:[%s2391] ss:$9 sm:$0xff] %v2153
        %2568 = vst [vmem:[%s2393] ss:$9 sm:$0xff] %v2325
        %2569 = vst [vmem:[%s2395] ss:$9 sm:$0xff] %v2326
        %2570 = vst [vmem:[%s2397] ss:$9 sm:$0xff] %v2327
        %2571 = vst [vmem:[%s2399] ss:$9 sm:$0xff] %v2328
        %2572 = vst [vmem:[%s2401] ss:$9 sm:$0xff] %v2329
        %v2573 = vld [vmem:[#allocation1] sm:$0xff]
        %2574 = vst [vmem:[#allocation1] ss:$9 sm:$0xff] %v2330
        %2575 = vst [vmem:[%s2389] ss:$9 sm:$0xff] %v2331
        %2576 = vst [vmem:[%s2391] ss:$9 sm:$0xff] %v2154
        %2577 = vst [vmem:[%s2393] ss:$9 sm:$0xff] %v2332
        %2578 = vst [vmem:[%s2395] ss:$9 sm:$0xff] %v2333
        %2579 = vst [vmem:[%s2397] ss:$9 sm:$0xff] %v2334
        %2580 = vst [vmem:[%s2399] ss:$9 sm:$0xff] %v2335
        %v2581 = vld [vmem:[#allocation1] sm:$0xff]
        %2582 = vst [vmem:[#allocation1] ss:$9 sm:$0xff] %v2336
        %2583 = vst [vmem:[%s2389] ss:$9 sm:$0xff] %v2337
        %2584 = vst [vmem:[%s2391] ss:$9 sm:$0xff] %v2338
        %2585 = vst [vmem:[%s2393] ss:$9 sm:$0xff] %v2155
        %2586 = vst [vmem:[%s2395] ss:$9 sm:$0xff] %v2339
        %2587 = vst [vmem:[%s2397] ss:$9 sm:$0xff] %v2340
        %2588 = vst [vmem:[%s2399] ss:$9 sm:$0xff] %v2341
        %2589 = vst [vmem:[%s2401] ss:$9 sm:$0xff] %v2342
        %v2590 = vld [vmem:[#allocation1] sm:$0xff]
        %2591 = vst [vmem:[#allocation1] ss:$9 sm:$0xff] %v2343
        %2592 = vst [vmem:[%s2389] ss:$9 sm:$0xff] %v2344
        %2593 = vst [vmem:[%s2391] ss:$9 sm:$0xff] %v2345
        %2594 = vst [vmem:[%s2393] ss:$9 sm:$0xff] %v2156
        %2595 = vst [vmem:[%s2395] ss:$9 sm:$0xff] %v2346
        %2596 = vst [vmem:[%s2397] ss:$9 sm:$0xff] %v2347
        %2597 = vst [vmem:[%s2399] ss:$9 sm:$0xff] %v2348
        %v2598 = vld [vmem:[#allocation1] sm:$0xff]
        %2599 = vst [vmem:[#allocation1] ss:$9 sm:$0xff] %v2349
        %2600 = vst [vmem:[%s2389] ss:$9 sm:$0xff] %v2350
        %2601 = vst [vmem:[%s2391] ss:$9 sm:$0xff] %v2351
        %2602 = vst [vmem:[%s2393] ss:$9 sm:$0xff] %v2352
        %2603 = vst [vmem:[%s2395] ss:$9 sm:$0xff] %v2157
        %2604 = vst [vmem:[%s2397] ss:$9 sm:$0xff] %v2353
        %2605 = vst [vmem:[%s2399] ss:$9 sm:$0xff] %v2354
        %2606 = vst [vmem:[%s2401] ss:$9 sm:$0xff] %v2355
        %v2607 = vld [vmem:[#allocation1] sm:$0xff]
        %2608 = vst [vmem:[#allocation1] ss:$9 sm:$0xff] %v2356
        %2609 = vst [vmem:[%s2389] ss:$9 sm:$0xff] %v2357
        %2610 = vst [vmem:[%s2391] ss:$9 sm:$0xff] %v2358
        %2611 = vst [vmem:[%s2393] ss:$9 sm:$0xff] %v2359
        %2612 = vst [vmem:[%s2395] ss:$9 sm:$0xff] %v2158
        %2613 = vst [vmem:[%s2397] ss:$9 sm:$0xff] %v2360
        %2614 = vst [vmem:[%s2399] ss:$9 sm:$0xff] %v2361
        %v2615 = vld [vmem:[#allocation1] sm:$0xff]
        %2616 = vst [vmem:[#allocation1] ss:$9 sm:$0xff] %v2362
        %2617 = vst [vmem:[%s2389] ss:$9 sm:$0xff] %v2363
        %2618 = vst [vmem:[%s2391] ss:$9 sm:$0xff] %v2364
        %2619 = vst [vmem:[%s2393] ss:$9 sm:$0xff] %v2365
        %2620 = vst [vmem:[%s2395] ss:$9 sm:$0xff] %v2366
        %2621 = vst [vmem:[%s2397] ss:$9 sm:$0xff] %v2159
        %2622 = vst [vmem:[%s2399] ss:$9 sm:$0xff] %v2367
        %2623 = vst [vmem:[%s2401] ss:$9 sm:$0xff] %v2368
        %v2624 = vld [vmem:[#allocation1] sm:$0xff]
        %2625 = vst [vmem:[#allocation1] ss:$9 sm:$0xff] %v2369
        %2626 = vst [vmem:[%s2389] ss:$9 sm:$0xff] %v2370
        %2627 = vst [vmem:[%s2391] ss:$9 sm:$0xff] %v2371
        %2628 = vst [vmem:[%s2393] ss:$9 sm:$0xff] %v2372
        %2629 = vst [vmem:[%s2395] ss:$9 sm:$0xff] %v2373
        %2630 = vst [vmem:[%s2397] ss:$9 sm:$0xff] %v2160
        %2631 = vst [vmem:[%s2399] ss:$9 sm:$0xff] %v2374
        %v2632 = vld [vmem:[#allocation1] sm:$0xff]
        %2633 = vst [vmem:[#allocation1] ss:$9 sm:$0xff] %v2375
        %2634 = vst [vmem:[%s2389] ss:$9 sm:$0xff] %v2376
        %2635 = vst [vmem:[%s2391] ss:$9 sm:$0xff] %v2377
        %2636 = vst [vmem:[%s2393] ss:$9 sm:$0xff] %v2378
        %2637 = vst [vmem:[%s2395] ss:$9 sm:$0xff] %v2379
        %2638 = vst [vmem:[%s2397] ss:$9 sm:$0xff] %v2380
        %2639 = vst [vmem:[%s2399] ss:$9 sm:$0xff] %v2161
        %2640 = vst [vmem:[%s2401] ss:$9 sm:$0xff] %v2381
        %v2641 = vld [vmem:[#allocation1] sm:$0xff]
        %2642 = vst [vmem:[#allocation1] ss:$9 sm:$0xff] %v2382
        %2643 = vst [vmem:[%s2389] ss:$9 sm:$0xff] %v2383
        %2644 = vst [vmem:[%s2391] ss:$9 sm:$0xff] %v2384
        %2645 = vst [vmem:[%s2393] ss:$9 sm:$0xff] %v2385
        %2646 = vst [vmem:[%s2395] ss:$9 sm:$0xff] %v2386
        %2647 = vst [vmem:[%s2397] ss:$9 sm:$0xff] %v2387
        %2648 = vst [vmem:[%s2399] ss:$9 sm:$0xff] %v2162
        %v2649 = vld [vmem:[#allocation1] sm:$0xff]
        %vm2680 = vcmask 64512
        %2681 = vst.msk [vmem:[#allocation2] sm:$0xff] %vm2680, %v2403
        %vm2682 = vcmask 63488
        %2683 = vst.msk [vmem:[#allocation2 + $0x8] sm:$0x7f] %vm2682, %v2411
        %2684 = vst.msk [vmem:[#allocation2 + $0x10] sm:$0xff] %vm2680, %v2420
        %2685 = vst.msk [vmem:[#allocation2 + $0x18] sm:$0x7f] %vm2682, %v2428
        %2686 = vst.msk [vmem:[#allocation2 + $0x20] sm:$0xff] %vm2680, %v2437
        %2687 = vst.msk [vmem:[#allocation2 + $0x28] sm:$0x7f] %vm2682, %v2445
        %2688 = vst.msk [vmem:[#allocation2 + $0x30] sm:$0xff] %vm2680, %v2454
        %2689 = vst.msk [vmem:[#allocation2 + $0x38] sm:$0x7f] %vm2682, %v2462
        %2690 = vst.msk [vmem:[#allocation2 + $0x40] sm:$0xff] %vm2680, %v2471
        %2691 = vst.msk [vmem:[#allocation2 + $0x48] sm:$0x7f] %vm2682, %v2479
        %2692 = vst.msk [vmem:[#allocation2 + $0x50] sm:$0xff] %vm2680, %v2488
        %2693 = vst.msk [vmem:[#allocation2 + $0x58] sm:$0x7f] %vm2682, %v2496
        %2694 = vst.msk [vmem:[#allocation2 + $0x60] sm:$0xff] %vm2680, %v2505
        %2695 = vst.msk [vmem:[#allocation2 + $0x68] sm:$0x7f] %vm2682, %v2513
        %2696 = vst.msk [vmem:[#allocation2 + $0x70] sm:$0xff] %vm2680, %v2522
        %2697 = vst.msk [vmem:[#allocation2 + $0x78] sm:$0x7f] %vm2682, %v2530
        %2698 = vst.msk [vmem:[#allocation2 + $0x80] sm:$0xff] %vm2680, %v2539
        %2699 = vst.msk [vmem:[#allocation2 + $0x88] sm:$0x7f] %vm2682, %v2547
        %2700 = vst.msk [vmem:[#allocation2 + $0x90] sm:$0xff] %vm2680, %v2556
        %2701 = vst.msk [vmem:[#allocation2 + $0x98] sm:$0x7f] %vm2682, %v2564
        %2702 = vst.msk [vmem:[#allocation2 + $0xa0] sm:$0xff] %vm2680, %v2573
        %2703 = vst.msk [vmem:[#allocation2 + $0xa8] sm:$0x7f] %vm2682, %v2581
        %2704 = vst.msk [vmem:[#allocation2 + $0xb0] sm:$0xff] %vm2680, %v2590
        %2705 = vst.msk [vmem:[#allocation2 + $0xb8] sm:$0x7f] %vm2682, %v2598
        %2706 = vst.msk [vmem:[#allocation2 + $0xc0] sm:$0xff] %vm2680, %v2607
        %2707 = vst.msk [vmem:[#allocation2 + $0xc8] sm:$0x7f] %vm2682, %v2615
        %2708 = vst.msk [vmem:[#allocation2 + $0xd0] sm:$0xff] %vm2680, %v2624
        %2709 = vst.msk [vmem:[#allocation2 + $0xd8] sm:$0x7f] %vm2682, %v2632
        %2710 = vst.msk [vmem:[#allocation2 + $0xe0] sm:$0xff] %vm2680, %v2641
        %2711 = vst.msk [vmem:[#allocation2 + $0xe8] sm:$0x7f] %vm2682, %v2649
        %2712 = vst.msk [vmem:[#allocation3] sm:$0xff] %vm2680, 0.0
        %2713 = vst.msk [vmem:[#allocation3 + $0x8] sm:$0x7f] %vm2682, 0.0
        %2714 = vst.msk [vmem:[#allocation3 + $0x10] sm:$0xff] %vm2680, 0.0
        %2715 = vst.msk [vmem:[#allocation3 + $0x18] sm:$0x7f] %vm2682, 0.0
        %2716 = vst.msk [vmem:[#allocation3 + $0x20] sm:$0xff] %vm2680, 0.0
        %2717 = vst.msk [vmem:[#allocation3 + $0x28] sm:$0x7f] %vm2682, 0.0
        %2718 = vst.msk [vmem:[#allocation3 + $0x30] sm:$0xff] %vm2680, 0.0
        %2719 = vst.msk [vmem:[#allocation3 + $0x38] sm:$0x7f] %vm2682, 0.0
        %2720 = vst.msk [vmem:[#allocation3 + $0x40] sm:$0xff] %vm2680, 0.0
        %2721 = vst.msk [vmem:[#allocation3 + $0x48] sm:$0x7f] %vm2682, 0.0
        %2722 = vst.msk [vmem:[#allocation3 + $0x50] sm:$0xff] %vm2680, 0.0
        %2723 = vst.msk [vmem:[#allocation3 + $0x58] sm:$0x7f] %vm2682, 0.0
        %2724 = vst.msk [vmem:[#allocation3 + $0x60] sm:$0xff] %vm2680, 0.0
        %2725 = vst.msk [vmem:[#allocation3 + $0x68] sm:$0x7f] %vm2682, 0.0
        %2726 = vst.msk [vmem:[#allocation3 + $0x70] sm:$0xff] %vm2680, 0.0
        %2727 = vst.msk [vmem:[#allocation3 + $0x78] sm:$0x7f] %vm2682, 0.0
        %2728 = vst.msk [vmem:[#allocation3 + $0x80] sm:$0xff] %vm2680, 0.0
        %2729 = vst.msk [vmem:[#allocation3 + $0x88] sm:$0x7f] %vm2682, 0.0
        %2730 = vst.msk [vmem:[#allocation3 + $0x90] sm:$0xff] %vm2680, 0.0
        %2731 = vst.msk [vmem:[#allocation3 + $0x98] sm:$0x7f] %vm2682, 0.0
        %2732 = vst.msk [vmem:[#allocation3 + $0xa0] sm:$0xff] %vm2680, 0.0
        %2733 = vst.msk [vmem:[#allocation3 + $0xa8] sm:$0x7f] %vm2682, 0.0
        %2734 = vst.msk [vmem:[#allocation3 + $0xb0] sm:$0xff] %vm2680, 0.0
        %2735 = vst.msk [vmem:[#allocation3 + $0xb8] sm:$0x7f] %vm2682, 0.0
        %2736 = vst.msk [vmem:[#allocation3 + $0xc0] sm:$0xff] %vm2680, 0.0
        %2737 = vst.msk [vmem:[#allocation3 + $0xc8] sm:$0x7f] %vm2682, 0.0
        %2738 = vst.msk [vmem:[#allocation3 + $0xd0] sm:$0xff] %vm2680, 0.0
        %2739 = vst.msk [vmem:[#allocation3 + $0xd8] sm:$0x7f] %vm2682, 0.0
        %2740 = vst.msk [vmem:[#allocation3 + $0xe0] sm:$0xff] %vm2680, 0.0
        %2741 = vst.msk [vmem:[#allocation3 + $0xe8] sm:$0x7f] %vm2682, 0.0
        %v2742 = vld [vmem:[#allocation2] sm:$0xff]
        %v2743 = vld [vmem:[#allocation2 + $0x8] sm:$0x1f]
        %v2744 = vld [vmem:[#allocation2 + $0x10] sm:$0xff]
        %v2745 = vld [vmem:[#allocation2 + $0x18] sm:$0x1f]
        %v2746 = vld [vmem:[#allocation2 + $0x20] sm:$0xff]
        %v2747 = vld [vmem:[#allocation2 + $0x28] sm:$0x1f]
        %v2748 = vld [vmem:[#allocation2 + $0x30] sm:$0xff]
        %v2749 = vld [vmem:[#allocation2 + $0x38] sm:$0x1f]
        %v2750 = vld [vmem:[#allocation2 + $0x40] sm:$0xff]
        %v2751 = vld [vmem:[#allocation2 + $0x48] sm:$0x1f]
        %v2752 = vld [vmem:[#allocation2 + $0x50] sm:$0xff]
        %v2753 = vld [vmem:[#allocation2 + $0x58] sm:$0x1f]
        %v2754 = vld [vmem:[#allocation2 + $0x60] sm:$0xff]
        %v2755 = vld [vmem:[#allocation2 + $0x68] sm:$0x1f]
        %v2756 = vld [vmem:[#allocation2 + $0x70] sm:$0xff]
        %v2757 = vld [vmem:[#allocation2 + $0x78] sm:$0x1f]
        %v2758 = vld [vmem:[#allocation2 + $0x80] sm:$0xff]
        %v2759 = vld [vmem:[#allocation2 + $0x88] sm:$0x1f]
        %v2760 = vld [vmem:[#allocation2 + $0x90] sm:$0xff]
        %v2761 = vld [vmem:[#allocation2 + $0x98] sm:$0x1f]
        %v2762 = vld [vmem:[#allocation2 + $0xa0] sm:$0xff]
        %v2763 = vld [vmem:[#allocation2 + $0xa8] sm:$0x1f]
        %v2764 = vld [vmem:[#allocation2 + $0xb0] sm:$0xff]
        %v2765 = vld [vmem:[#allocation2 + $0xb8] sm:$0x1f]
        %v2766 = vld [vmem:[#allocation2 + $0xc0] sm:$0xff]
        %v2767 = vld [vmem:[#allocation2 + $0xc8] sm:$0x1f]
        %v2768 = vld [vmem:[#allocation2 + $0x1] sm:$0xff]
        %v2769 = vld [vmem:[#allocation2 + $0x9] sm:$0x1f]
        %v2770 = vld [vmem:[#allocation2 + $0x11] sm:$0xff]
        %v2771 = vld [vmem:[#allocation2 + $0x19] sm:$0x1f]
        %v2772 = vld [vmem:[#allocation2 + $0x21] sm:$0xff]
        %v2773 = vld [vmem:[#allocation2 + $0x29] sm:$0x1f]
        %v2774 = vld [vmem:[#allocation2 + $0x31] sm:$0xff]
        %v2775 = vld [vmem:[#allocation2 + $0x39] sm:$0x1f]
        %v2776 = vld [vmem:[#allocation2 + $0x41] sm:$0xff]
        %v2777 = vld [vmem:[#allocation2 + $0x49] sm:$0x1f]
        %v2778 = vld [vmem:[#allocation2 + $0x51] sm:$0xff]
        %v2779 = vld [vmem:[#allocation2 + $0x59] sm:$0x1f]
        %v2780 = vld [vmem:[#allocation2 + $0x61] sm:$0xff]
        %v2781 = vld [vmem:[#allocation2 + $0x69] sm:$0x1f]
        %v2782 = vld [vmem:[#allocation2 + $0x71] sm:$0xff]
        %v2783 = vld [vmem:[#allocation2 + $0x79] sm:$0x1f]
        %v2784 = vld [vmem:[#allocation2 + $0x81] sm:$0xff]
        %v2785 = vld [vmem:[#allocation2 + $0x89] sm:$0x1f]
        %v2786 = vld [vmem:[#allocation2 + $0x91] sm:$0xff]
        %v2787 = vld [vmem:[#allocation2 + $0x99] sm:$0x1f]
        %v2788 = vld [vmem:[#allocation2 + $0xa1] sm:$0xff]
        %v2789 = vld [vmem:[#allocation2 + $0xa9] sm:$0x1f]
        %v2790 = vld [vmem:[#allocation2 + $0xb1] sm:$0xff]
        %v2791 = vld [vmem:[#allocation2 + $0xb9] sm:$0x1f]
        %v2792 = vld [vmem:[#allocation2 + $0xc1] sm:$0xff]
        %v2793 = vld [vmem:[#allocation2 + $0xc9] sm:$0x1f]
        %v2794 = vld [vmem:[#allocation2 + $0x2] sm:$0xff]
        %v2795 = vld [vmem:[#allocation2 + $0xa] sm:$0x1f]
        %v2796 = vld [vmem:[#allocation2 + $0x12] sm:$0xff]
        %v2797 = vld [vmem:[#allocation2 + $0x1a] sm:$0x1f]
        %v2798 = vld [vmem:[#allocation2 + $0x22] sm:$0xff]
        %v2799 = vld [vmem:[#allocation2 + $0x2a] sm:$0x1f]
        %v2800 = vld [vmem:[#allocation2 + $0x32] sm:$0xff]
        %v2801 = vld [vmem:[#allocation2 + $0x3a] sm:$0x1f]
        %v2802 = vld [vmem:[#allocation2 + $0x42] sm:$0xff]
        %v2803 = vld [vmem:[#allocation2 + $0x4a] sm:$0x1f]
        %v2804 = vld [vmem:[#allocation2 + $0x52] sm:$0xff]
        %v2805 = vld [vmem:[#allocation2 + $0x5a] sm:$0x1f]
        %v2806 = vld [vmem:[#allocation2 + $0x62] sm:$0xff]
        %v2807 = vld [vmem:[#allocation2 + $0x6a] sm:$0x1f]
        %v2808 = vld [vmem:[#allocation2 + $0x72] sm:$0xff]
        %v2809 = vld [vmem:[#allocation2 + $0x7a] sm:$0x1f]
        %v2810 = vld [vmem:[#allocation2 + $0x82] sm:$0xff]
        %v2811 = vld [vmem:[#allocation2 + $0x8a] sm:$0x1f]
        %v2812 = vld [vmem:[#allocation2 + $0x92] sm:$0xff]
        %v2813 = vld [vmem:[#allocation2 + $0x9a] sm:$0x1f]
        %v2814 = vld [vmem:[#allocation2 + $0xa2] sm:$0xff]
        %v2815 = vld [vmem:[#allocation2 + $0xaa] sm:$0x1f]
        %v2816 = vld [vmem:[#allocation2 + $0xb2] sm:$0xff]
        %v2817 = vld [vmem:[#allocation2 + $0xba] sm:$0x1f]
        %v2818 = vld [vmem:[#allocation2 + $0xc2] sm:$0xff]
        %v2819 = vld [vmem:[#allocation2 + $0xca] sm:$0x1f]
        %s2820 = scalar_lea.vmem [#allocation2], 16
        %v2821 = vld [vmem:[%s2820] sm:$0xff]
        %v2822 = vld [vmem:[%s2820 + $0x8] sm:$0x1f]
        %v2823 = vld [vmem:[%s2820 + $0x10] sm:$0xff]
        %v2824 = vld [vmem:[%s2820 + $0x18] sm:$0x1f]
        %v2825 = vld [vmem:[%s2820 + $0x20] sm:$0xff]
        %v2826 = vld [vmem:[%s2820 + $0x28] sm:$0x1f]
        %v2827 = vld [vmem:[%s2820 + $0x30] sm:$0xff]
        %v2828 = vld [vmem:[%s2820 + $0x38] sm:$0x1f]
        %v2829 = vld [vmem:[%s2820 + $0x40] sm:$0xff]
        %v2830 = vld [vmem:[%s2820 + $0x48] sm:$0x1f]
        %v2831 = vld [vmem:[%s2820 + $0x50] sm:$0xff]
        %v2832 = vld [vmem:[%s2820 + $0x58] sm:$0x1f]
        %v2833 = vld [vmem:[%s2820 + $0x60] sm:$0xff]
        %v2834 = vld [vmem:[%s2820 + $0x68] sm:$0x1f]
        %v2835 = vld [vmem:[%s2820 + $0x70] sm:$0xff]
        %v2836 = vld [vmem:[%s2820 + $0x78] sm:$0x1f]
        %v2837 = vld [vmem:[%s2820 + $0x80] sm:$0xff]
        %v2838 = vld [vmem:[%s2820 + $0x88] sm:$0x1f]
        %v2839 = vld [vmem:[%s2820 + $0x90] sm:$0xff]
        %v2840 = vld [vmem:[%s2820 + $0x98] sm:$0x1f]
        %v2841 = vld [vmem:[%s2820 + $0xa0] sm:$0xff]
        %v2842 = vld [vmem:[%s2820 + $0xa8] sm:$0x1f]
        %v2843 = vld [vmem:[%s2820 + $0xb0] sm:$0xff]
        %v2844 = vld [vmem:[%s2820 + $0xb8] sm:$0x1f]
        %v2845 = vld [vmem:[%s2820 + $0xc0] sm:$0xff]
        %v2846 = vld [vmem:[%s2820 + $0xc8] sm:$0x1f]
        %v2847 = vld [vmem:[%s2820 + $0x1] sm:$0xff]
        %v2848 = vld [vmem:[%s2820 + $0x9] sm:$0x1f]
        %v2849 = vld [vmem:[%s2820 + $0x11] sm:$0xff]
        %v2850 = vld [vmem:[%s2820 + $0x19] sm:$0x1f]
        %v2851 = vld [vmem:[%s2820 + $0x21] sm:$0xff]
        %v2852 = vld [vmem:[%s2820 + $0x29] sm:$0x1f]
        %v2853 = vld [vmem:[%s2820 + $0x31] sm:$0xff]
        %v2854 = vld [vmem:[%s2820 + $0x39] sm:$0x1f]
        %v2855 = vld [vmem:[%s2820 + $0x41] sm:$0xff]
        %v2856 = vld [vmem:[%s2820 + $0x49] sm:$0x1f]
        %v2857 = vld [vmem:[%s2820 + $0x51] sm:$0xff]
        %v2858 = vld [vmem:[%s2820 + $0x59] sm:$0x1f]
        %v2859 = vld [vmem:[%s2820 + $0x61] sm:$0xff]
        %v2860 = vld [vmem:[%s2820 + $0x69] sm:$0x1f]
        %v2861 = vld [vmem:[%s2820 + $0x71] sm:$0xff]
        %v2862 = vld [vmem:[%s2820 + $0x79] sm:$0x1f]
        %v2863 = vld [vmem:[%s2820 + $0x81] sm:$0xff]
        %v2864 = vld [vmem:[%s2820 + $0x89] sm:$0x1f]
        %v2865 = vld [vmem:[%s2820 + $0x91] sm:$0xff]
        %v2866 = vld [vmem:[%s2820 + $0x99] sm:$0x1f]
        %v2867 = vld [vmem:[%s2820 + $0xa1] sm:$0xff]
        %v2868 = vld [vmem:[%s2820 + $0xa9] sm:$0x1f]
        %v2869 = vld [vmem:[%s2820 + $0xb1] sm:$0xff]
        %v2870 = vld [vmem:[%s2820 + $0xb9] sm:$0x1f]
        %v2871 = vld [vmem:[%s2820 + $0xc1] sm:$0xff]
        %v2872 = vld [vmem:[%s2820 + $0xc9] sm:$0x1f]
        %v2873 = vld [vmem:[%s2820 + $0x2] sm:$0xff]
        %v2874 = vld [vmem:[%s2820 + $0xa] sm:$0x1f]
        %v2875 = vld [vmem:[%s2820 + $0x12] sm:$0xff]
        %v2876 = vld [vmem:[%s2820 + $0x1a] sm:$0x1f]
        %v2877 = vld [vmem:[%s2820 + $0x22] sm:$0xff]
        %v2878 = vld [vmem:[%s2820 + $0x2a] sm:$0x1f]
        %v2879 = vld [vmem:[%s2820 + $0x32] sm:$0xff]
        %v2880 = vld [vmem:[%s2820 + $0x3a] sm:$0x1f]
        %v2881 = vld [vmem:[%s2820 + $0x42] sm:$0xff]
        %v2882 = vld [vmem:[%s2820 + $0x4a] sm:$0x1f]
        %v2883 = vld [vmem:[%s2820 + $0x52] sm:$0xff]
        %v2884 = vld [vmem:[%s2820 + $0x5a] sm:$0x1f]
        %v2885 = vld [vmem:[%s2820 + $0x62] sm:$0xff]
        %v2886 = vld [vmem:[%s2820 + $0x6a] sm:$0x1f]
        %v2887 = vld [vmem:[%s2820 + $0x72] sm:$0xff]
        %v2888 = vld [vmem:[%s2820 + $0x7a] sm:$0x1f]
        %v2889 = vld [vmem:[%s2820 + $0x82] sm:$0xff]
        %v2890 = vld [vmem:[%s2820 + $0x8a] sm:$0x1f]
        %v2891 = vld [vmem:[%s2820 + $0x92] sm:$0xff]
        %v2892 = vld [vmem:[%s2820 + $0x9a] sm:$0x1f]
        %v2893 = vld [vmem:[%s2820 + $0xa2] sm:$0xff]
        %v2894 = vld [vmem:[%s2820 + $0xaa] sm:$0x1f]
        %v2895 = vld [vmem:[%s2820 + $0xb2] sm:$0xff]
        %v2896 = vld [vmem:[%s2820 + $0xba] sm:$0x1f]
        %v2897 = vld [vmem:[%s2820 + $0xc2] sm:$0xff]
        %v2898 = vld [vmem:[%s2820 + $0xca] sm:$0x1f]
        %s2899 = scalar_lea.vmem [#allocation2], 32
        %v2900 = vld [vmem:[%s2899] sm:$0xff]
        %v2901 = vld [vmem:[%s2899 + $0x8] sm:$0x1f]
        %v2902 = vld [vmem:[%s2899 + $0x10] sm:$0xff]
        %v2903 = vld [vmem:[%s2899 + $0x18] sm:$0x1f]
        %v2904 = vld [vmem:[%s2899 + $0x20] sm:$0xff]
        %v2905 = vld [vmem:[%s2899 + $0x28] sm:$0x1f]
        %v2906 = vld [vmem:[%s2899 + $0x30] sm:$0xff]
        %v2907 = vld [vmem:[%s2899 + $0x38] sm:$0x1f]
        %v2908 = vld [vmem:[%s2899 + $0x40] sm:$0xff]
        %v2909 = vld [vmem:[%s2899 + $0x48] sm:$0x1f]
        %v2910 = vld [vmem:[%s2899 + $0x50] sm:$0xff]
        %v2911 = vld [vmem:[%s2899 + $0x58] sm:$0x1f]
        %v2912 = vld [vmem:[%s2899 + $0x60] sm:$0xff]
        %v2913 = vld [vmem:[%s2899 + $0x68] sm:$0x1f]
        %v2914 = vld [vmem:[%s2899 + $0x70] sm:$0xff]
        %v2915 = vld [vmem:[%s2899 + $0x78] sm:$0x1f]
        %v2916 = vld [vmem:[%s2899 + $0x80] sm:$0xff]
        %v2917 = vld [vmem:[%s2899 + $0x88] sm:$0x1f]
        %v2918 = vld [vmem:[%s2899 + $0x90] sm:$0xff]
        %v2919 = vld [vmem:[%s2899 + $0x98] sm:$0x1f]
        %v2920 = vld [vmem:[%s2899 + $0xa0] sm:$0xff]
        %v2921 = vld [vmem:[%s2899 + $0xa8] sm:$0x1f]
        %v2922 = vld [vmem:[%s2899 + $0xb0] sm:$0xff]
        %v2923 = vld [vmem:[%s2899 + $0xb8] sm:$0x1f]
        %v2924 = vld [vmem:[%s2899 + $0xc0] sm:$0xff]
        %v2925 = vld [vmem:[%s2899 + $0xc8] sm:$0x1f]
        %v2926 = vld [vmem:[%s2899 + $0x1] sm:$0xff]
        %v2927 = vld [vmem:[%s2899 + $0x9] sm:$0x1f]
        %v2928 = vld [vmem:[%s2899 + $0x11] sm:$0xff]
        %v2929 = vld [vmem:[%s2899 + $0x19] sm:$0x1f]
        %v2930 = vld [vmem:[%s2899 + $0x21] sm:$0xff]
        %v2931 = vld [vmem:[%s2899 + $0x29] sm:$0x1f]
        %v2932 = vld [vmem:[%s2899 + $0x31] sm:$0xff]
        %v2933 = vld [vmem:[%s2899 + $0x39] sm:$0x1f]
        %v2934 = vld [vmem:[%s2899 + $0x41] sm:$0xff]
        %v2935 = vld [vmem:[%s2899 + $0x49] sm:$0x1f]
        %v2936 = vld [vmem:[%s2899 + $0x51] sm:$0xff]
        %v2937 = vld [vmem:[%s2899 + $0x59] sm:$0x1f]
        %v2938 = vld [vmem:[%s2899 + $0x61] sm:$0xff]
        %v2939 = vld [vmem:[%s2899 + $0x69] sm:$0x1f]
        %v2940 = vld [vmem:[%s2899 + $0x71] sm:$0xff]
        %v2941 = vld [vmem:[%s2899 + $0x79] sm:$0x1f]
        %v2942 = vld [vmem:[%s2899 + $0x81] sm:$0xff]
        %v2943 = vld [vmem:[%s2899 + $0x89] sm:$0x1f]
        %v2944 = vld [vmem:[%s2899 + $0x91] sm:$0xff]
        %v2945 = vld [vmem:[%s2899 + $0x99] sm:$0x1f]
        %v2946 = vld [vmem:[%s2899 + $0xa1] sm:$0xff]
        %v2947 = vld [vmem:[%s2899 + $0xa9] sm:$0x1f]
        %v2948 = vld [vmem:[%s2899 + $0xb1] sm:$0xff]
        %v2949 = vld [vmem:[%s2899 + $0xb9] sm:$0x1f]
        %v2950 = vld [vmem:[%s2899 + $0xc1] sm:$0xff]
        %v2951 = vld [vmem:[%s2899 + $0xc9] sm:$0x1f]
        %v2952 = vld [vmem:[%s2899 + $0x2] sm:$0xff]
        %v2953 = vld [vmem:[%s2899 + $0xa] sm:$0x1f]
        %v2954 = vld [vmem:[%s2899 + $0x12] sm:$0xff]
        %v2955 = vld [vmem:[%s2899 + $0x1a] sm:$0x1f]
        %v2956 = vld [vmem:[%s2899 + $0x22] sm:$0xff]
        %v2957 = vld [vmem:[%s2899 + $0x2a] sm:$0x1f]
        %v2958 = vld [vmem:[%s2899 + $0x32] sm:$0xff]
        %v2959 = vld [vmem:[%s2899 + $0x3a] sm:$0x1f]
        %v2960 = vld [vmem:[%s2899 + $0x42] sm:$0xff]
        %v2961 = vld [vmem:[%s2899 + $0x4a] sm:$0x1f]
        %v2962 = vld [vmem:[%s2899 + $0x52] sm:$0xff]
        %v2963 = vld [vmem:[%s2899 + $0x5a] sm:$0x1f]
        %v2964 = vld [vmem:[%s2899 + $0x62] sm:$0xff]
        %v2965 = vld [vmem:[%s2899 + $0x6a] sm:$0x1f]
        %v2966 = vld [vmem:[%s2899 + $0x72] sm:$0xff]
        %v2967 = vld [vmem:[%s2899 + $0x7a] sm:$0x1f]
        %v2968 = vld [vmem:[%s2899 + $0x82] sm:$0xff]
        %v2969 = vld [vmem:[%s2899 + $0x8a] sm:$0x1f]
        %v2970 = vld [vmem:[%s2899 + $0x92] sm:$0xff]
        %v2971 = vld [vmem:[%s2899 + $0x9a] sm:$0x1f]
        %v2972 = vld [vmem:[%s2899 + $0xa2] sm:$0xff]
        %v2973 = vld [vmem:[%s2899 + $0xaa] sm:$0x1f]
        %v2974 = vld [vmem:[%s2899 + $0xb2] sm:$0xff]
        %v2975 = vld [vmem:[%s2899 + $0xba] sm:$0x1f]
        %v2976 = vld [vmem:[%s2899 + $0xc2] sm:$0xff]
        %v2977 = vld [vmem:[%s2899 + $0xca] sm:$0x1f]
        %3004 = vrot.lane.b32.xlu0 %v2768, 8
        %v3005 = vpop.permute.xlu0 %3004
        %3006 = vrot.lane.b32.xlu0 %v2769, 8
        %v3007 = vpop.permute.xlu0 %3006
        %3008 = vrot.lane.b32.xlu0 %v2770, 8
        %v3009 = vpop.permute.xlu0 %3008
        %3010 = vrot.lane.b32.xlu0 %v2771, 8
        %v3011 = vpop.permute.xlu0 %3010
        %3012 = vrot.lane.b32.xlu0 %v2772, 8
        %v3013 = vpop.permute.xlu0 %3012
        %3014 = vrot.lane.b32.xlu0 %v2773, 8
        %v3015 = vpop.permute.xlu0 %3014
        %3016 = vrot.lane.b32.xlu0 %v2774, 8
        %v3017 = vpop.permute.xlu0 %3016
        %3018 = vrot.lane.b32.xlu0 %v2775, 8
        %v3019 = vpop.permute.xlu0 %3018
        %3020 = vrot.lane.b32.xlu0 %v2776, 8
        %v3021 = vpop.permute.xlu0 %3020
        %3022 = vrot.lane.b32.xlu0 %v2777, 8
        %v3023 = vpop.permute.xlu0 %3022
        %3024 = vrot.lane.b32.xlu0 %v2778, 8
        %v3025 = vpop.permute.xlu0 %3024
        %3026 = vrot.lane.b32.xlu0 %v2779, 8
        %v3027 = vpop.permute.xlu0 %3026
        %3028 = vrot.lane.b32.xlu0 %v2780, 8
        %v3029 = vpop.permute.xlu0 %3028
        %3030 = vrot.lane.b32.xlu0 %v2781, 8
        %v3031 = vpop.permute.xlu0 %3030
        %3032 = vrot.lane.b32.xlu0 %v2782, 8
        %v3033 = vpop.permute.xlu0 %3032
        %3034 = vrot.lane.b32.xlu0 %v2783, 8
        %v3035 = vpop.permute.xlu0 %3034
        %3036 = vrot.lane.b32.xlu0 %v2784, 8
        %v3037 = vpop.permute.xlu0 %3036
        %3038 = vrot.lane.b32.xlu0 %v2785, 8
        %v3039 = vpop.permute.xlu0 %3038
        %3040 = vrot.lane.b32.xlu0 %v2786, 8
        %v3041 = vpop.permute.xlu0 %3040
        %3042 = vrot.lane.b32.xlu0 %v2787, 8
        %v3043 = vpop.permute.xlu0 %3042
        %3044 = vrot.lane.b32.xlu0 %v2788, 8
        %v3045 = vpop.permute.xlu0 %3044
        %3046 = vrot.lane.b32.xlu0 %v2789, 8
        %v3047 = vpop.permute.xlu0 %3046
        %3048 = vrot.lane.b32.xlu0 %v2790, 8
        %v3049 = vpop.permute.xlu0 %3048
        %3050 = vrot.lane.b32.xlu0 %v2791, 8
        %v3051 = vpop.permute.xlu0 %3050
        %3052 = vrot.lane.b32.xlu0 %v2792, 8
        %v3053 = vpop.permute.xlu0 %3052
        %3054 = vrot.lane.b32.xlu0 %v2793, 8
        %v3055 = vpop.permute.xlu0 %3054
        %3108 = vrot.lane.b32.xlu0 %v2794, 16
        %v3109 = vpop.permute.xlu0 %3108
        %3110 = vrot.lane.b32.xlu0 %v2795, 16
        %v3111 = vpop.permute.xlu0 %3110
        %3112 = vrot.lane.b32.xlu0 %v2796, 16
        %v3113 = vpop.permute.xlu0 %3112
        %3114 = vrot.lane.b32.xlu0 %v2797, 16
        %v3115 = vpop.permute.xlu0 %3114
        %3116 = vrot.lane.b32.xlu0 %v2798, 16
        %v3117 = vpop.permute.xlu0 %3116
        %3118 = vrot.lane.b32.xlu0 %v2799, 16
        %v3119 = vpop.permute.xlu0 %3118
        %3120 = vrot.lane.b32.xlu0 %v2800, 16
        %v3121 = vpop.permute.xlu0 %3120
        %3122 = vrot.lane.b32.xlu0 %v2801, 16
        %v3123 = vpop.permute.xlu0 %3122
        %3124 = vrot.lane.b32.xlu0 %v2802, 16
        %v3125 = vpop.permute.xlu0 %3124
        %3126 = vrot.lane.b32.xlu0 %v2803, 16
        %v3127 = vpop.permute.xlu0 %3126
        %3128 = vrot.lane.b32.xlu0 %v2804, 16
        %v3129 = vpop.permute.xlu0 %3128
        %3130 = vrot.lane.b32.xlu0 %v2805, 16
        %v3131 = vpop.permute.xlu0 %3130
        %3132 = vrot.lane.b32.xlu0 %v2806, 16
        %v3133 = vpop.permute.xlu0 %3132
        %3134 = vrot.lane.b32.xlu0 %v2807, 16
        %v3135 = vpop.permute.xlu0 %3134
        %3136 = vrot.lane.b32.xlu0 %v2808, 16
        %v3137 = vpop.permute.xlu0 %3136
        %3138 = vrot.lane.b32.xlu0 %v2809, 16
        %v3139 = vpop.permute.xlu0 %3138
        %3140 = vrot.lane.b32.xlu0 %v2810, 16
        %v3141 = vpop.permute.xlu0 %3140
        %3142 = vrot.lane.b32.xlu0 %v2811, 16
        %v3143 = vpop.permute.xlu0 %3142
        %3144 = vrot.lane.b32.xlu0 %v2812, 16
        %v3145 = vpop.permute.xlu0 %3144
        %3146 = vrot.lane.b32.xlu0 %v2813, 16
        %v3147 = vpop.permute.xlu0 %3146
        %3148 = vrot.lane.b32.xlu0 %v2814, 16
        %v3149 = vpop.permute.xlu0 %3148
        %3150 = vrot.lane.b32.xlu0 %v2815, 16
        %v3151 = vpop.permute.xlu0 %3150
        %3152 = vrot.lane.b32.xlu0 %v2816, 16
        %v3153 = vpop.permute.xlu0 %3152
        %3154 = vrot.lane.b32.xlu0 %v2817, 16
        %v3155 = vpop.permute.xlu0 %3154
        %3156 = vrot.lane.b32.xlu0 %v2818, 16
        %v3157 = vpop.permute.xlu0 %3156
        %3158 = vrot.lane.b32.xlu0 %v2819, 16
        %v3159 = vpop.permute.xlu0 %3158
        %3212 = vrot.lane.b32.xlu0 %v2821, 24
        %v3213 = vpop.permute.xlu0 %3212
        %3214 = vrot.lane.b32.xlu0 %v2822, 24
        %v3215 = vpop.permute.xlu0 %3214
        %3216 = vrot.lane.b32.xlu0 %v2823, 24
        %v3217 = vpop.permute.xlu0 %3216
        %3218 = vrot.lane.b32.xlu0 %v2824, 24
        %v3219 = vpop.permute.xlu0 %3218
        %3220 = vrot.lane.b32.xlu0 %v2825, 24
        %v3221 = vpop.permute.xlu0 %3220
        %3222 = vrot.lane.b32.xlu0 %v2826, 24
        %v3223 = vpop.permute.xlu0 %3222
        %3224 = vrot.lane.b32.xlu0 %v2827, 24
        %v3225 = vpop.permute.xlu0 %3224
        %3226 = vrot.lane.b32.xlu0 %v2828, 24
        %v3227 = vpop.permute.xlu0 %3226
        %3228 = vrot.lane.b32.xlu0 %v2829, 24
        %v3229 = vpop.permute.xlu0 %3228
        %3230 = vrot.lane.b32.xlu0 %v2830, 24
        %v3231 = vpop.permute.xlu0 %3230
        %3232 = vrot.lane.b32.xlu0 %v2831, 24
        %v3233 = vpop.permute.xlu0 %3232
        %3234 = vrot.lane.b32.xlu0 %v2832, 24
        %v3235 = vpop.permute.xlu0 %3234
        %3236 = vrot.lane.b32.xlu0 %v2833, 24
        %v3237 = vpop.permute.xlu0 %3236
        %3238 = vrot.lane.b32.xlu0 %v2834, 24
        %v3239 = vpop.permute.xlu0 %3238
        %3240 = vrot.lane.b32.xlu0 %v2835, 24
        %v3241 = vpop.permute.xlu0 %3240
        %3242 = vrot.lane.b32.xlu0 %v2836, 24
        %v3243 = vpop.permute.xlu0 %3242
        %3244 = vrot.lane.b32.xlu0 %v2837, 24
        %v3245 = vpop.permute.xlu0 %3244
        %3246 = vrot.lane.b32.xlu0 %v2838, 24
        %v3247 = vpop.permute.xlu0 %3246
        %3248 = vrot.lane.b32.xlu0 %v2839, 24
        %v3249 = vpop.permute.xlu0 %3248
        %3250 = vrot.lane.b32.xlu0 %v2840, 24
        %v3251 = vpop.permute.xlu0 %3250
        %3252 = vrot.lane.b32.xlu0 %v2841, 24
        %v3253 = vpop.permute.xlu0 %3252
        %3254 = vrot.lane.b32.xlu0 %v2842, 24
        %v3255 = vpop.permute.xlu0 %3254
        %3256 = vrot.lane.b32.xlu0 %v2843, 24
        %v3257 = vpop.permute.xlu0 %3256
        %3258 = vrot.lane.b32.xlu0 %v2844, 24
        %v3259 = vpop.permute.xlu0 %3258
        %3260 = vrot.lane.b32.xlu0 %v2845, 24
        %v3261 = vpop.permute.xlu0 %3260
        %3262 = vrot.lane.b32.xlu0 %v2846, 24
        %v3263 = vpop.permute.xlu0 %3262
        %3316 = vrot.lane.b32.xlu0 %v2847, 32
        %v3317 = vpop.permute.xlu0 %3316
        %3318 = vrot.lane.b32.xlu0 %v2848, 32
        %v3319 = vpop.permute.xlu0 %3318
        %3320 = vrot.lane.b32.xlu0 %v2849, 32
        %v3321 = vpop.permute.xlu0 %3320
        %3322 = vrot.lane.b32.xlu0 %v2850, 32
        %v3323 = vpop.permute.xlu0 %3322
        %3324 = vrot.lane.b32.xlu0 %v2851, 32
        %v3325 = vpop.permute.xlu0 %3324
        %3326 = vrot.lane.b32.xlu0 %v2852, 32
        %v3327 = vpop.permute.xlu0 %3326
        %3328 = vrot.lane.b32.xlu0 %v2853, 32
        %v3329 = vpop.permute.xlu0 %3328
        %3330 = vrot.lane.b32.xlu0 %v2854, 32
        %v3331 = vpop.permute.xlu0 %3330
        %3332 = vrot.lane.b32.xlu0 %v2855, 32
        %v3333 = vpop.permute.xlu0 %3332
        %3334 = vrot.lane.b32.xlu0 %v2856, 32
        %v3335 = vpop.permute.xlu0 %3334
        %3336 = vrot.lane.b32.xlu0 %v2857, 32
        %v3337 = vpop.permute.xlu0 %3336
        %3338 = vrot.lane.b32.xlu0 %v2858, 32
        %v3339 = vpop.permute.xlu0 %3338
        %3340 = vrot.lane.b32.xlu0 %v2859, 32
        %v3341 = vpop.permute.xlu0 %3340
        %3342 = vrot.lane.b32.xlu0 %v2860, 32
        %v3343 = vpop.permute.xlu0 %3342
        %3344 = vrot.lane.b32.xlu0 %v2861, 32
        %v3345 = vpop.permute.xlu0 %3344
        %3346 = vrot.lane.b32.xlu0 %v2862, 32
        %v3347 = vpop.permute.xlu0 %3346
        %3348 = vrot.lane.b32.xlu0 %v2863, 32
        %v3349 = vpop.permute.xlu0 %3348
        %3350 = vrot.lane.b32.xlu0 %v2864, 32
        %v3351 = vpop.permute.xlu0 %3350
        %3352 = vrot.lane.b32.xlu0 %v2865, 32
        %v3353 = vpop.permute.xlu0 %3352
        %3354 = vrot.lane.b32.xlu0 %v2866, 32
        %v3355 = vpop.permute.xlu0 %3354
        %3356 = vrot.lane.b32.xlu0 %v2867, 32
        %v3357 = vpop.permute.xlu0 %3356
        %3358 = vrot.lane.b32.xlu0 %v2868, 32
        %v3359 = vpop.permute.xlu0 %3358
        %3360 = vrot.lane.b32.xlu0 %v2869, 32
        %v3361 = vpop.permute.xlu0 %3360
        %3362 = vrot.lane.b32.xlu0 %v2870, 32
        %v3363 = vpop.permute.xlu0 %3362
        %3364 = vrot.lane.b32.xlu0 %v2871, 32
        %v3365 = vpop.permute.xlu0 %3364
        %3366 = vrot.lane.b32.xlu0 %v2872, 32
        %v3367 = vpop.permute.xlu0 %3366
        %3420 = vrot.lane.b32.xlu0 %v2873, 40
        %v3421 = vpop.permute.xlu0 %3420
        %3422 = vrot.lane.b32.xlu0 %v2874, 40
        %v3423 = vpop.permute.xlu0 %3422
        %3424 = vrot.lane.b32.xlu0 %v2875, 40
        %v3425 = vpop.permute.xlu0 %3424
        %3426 = vrot.lane.b32.xlu0 %v2876, 40
        %v3427 = vpop.permute.xlu0 %3426
        %3428 = vrot.lane.b32.xlu0 %v2877, 40
        %v3429 = vpop.permute.xlu0 %3428
        %3430 = vrot.lane.b32.xlu0 %v2878, 40
        %v3431 = vpop.permute.xlu0 %3430
        %3432 = vrot.lane.b32.xlu0 %v2879, 40
        %v3433 = vpop.permute.xlu0 %3432
        %3434 = vrot.lane.b32.xlu0 %v2880, 40
        %v3435 = vpop.permute.xlu0 %3434
        %3436 = vrot.lane.b32.xlu0 %v2881, 40
        %v3437 = vpop.permute.xlu0 %3436
        %3438 = vrot.lane.b32.xlu0 %v2882, 40
        %v3439 = vpop.permute.xlu0 %3438
        %3440 = vrot.lane.b32.xlu0 %v2883, 40
        %v3441 = vpop.permute.xlu0 %3440
        %3442 = vrot.lane.b32.xlu0 %v2884, 40
        %v3443 = vpop.permute.xlu0 %3442
        %3444 = vrot.lane.b32.xlu0 %v2885, 40
        %v3445 = vpop.permute.xlu0 %3444
        %3446 = vrot.lane.b32.xlu0 %v2886, 40
        %v3447 = vpop.permute.xlu0 %3446
        %3448 = vrot.lane.b32.xlu0 %v2887, 40
        %v3449 = vpop.permute.xlu0 %3448
        %3450 = vrot.lane.b32.xlu0 %v2888, 40
        %v3451 = vpop.permute.xlu0 %3450
        %3452 = vrot.lane.b32.xlu0 %v2889, 40
        %v3453 = vpop.permute.xlu0 %3452
        %3454 = vrot.lane.b32.xlu0 %v2890, 40
        %v3455 = vpop.permute.xlu0 %3454
        %3456 = vrot.lane.b32.xlu0 %v2891, 40
        %v3457 = vpop.permute.xlu0 %3456
        %3458 = vrot.lane.b32.xlu0 %v2892, 40
        %v3459 = vpop.permute.xlu0 %3458
        %3460 = vrot.lane.b32.xlu0 %v2893, 40
        %v3461 = vpop.permute.xlu0 %3460
        %3462 = vrot.lane.b32.xlu0 %v2894, 40
        %v3463 = vpop.permute.xlu0 %3462
        %3464 = vrot.lane.b32.xlu0 %v2895, 40
        %v3465 = vpop.permute.xlu0 %3464
        %3466 = vrot.lane.b32.xlu0 %v2896, 40
        %v3467 = vpop.permute.xlu0 %3466
        %3468 = vrot.lane.b32.xlu0 %v2897, 40
        %v3469 = vpop.permute.xlu0 %3468
        %3470 = vrot.lane.b32.xlu0 %v2898, 40
        %v3471 = vpop.permute.xlu0 %3470
        %3524 = vrot.lane.b32.xlu0 %v2900, 48
        %v3525 = vpop.permute.xlu0 %3524
        %3526 = vrot.lane.b32.xlu0 %v2901, 48
        %v3527 = vpop.permute.xlu0 %3526
        %3528 = vrot.lane.b32.xlu0 %v2902, 48
        %v3529 = vpop.permute.xlu0 %3528
        %3530 = vrot.lane.b32.xlu0 %v2903, 48
        %v3531 = vpop.permute.xlu0 %3530
        %3532 = vrot.lane.b32.xlu0 %v2904, 48
        %v3533 = vpop.permute.xlu0 %3532
        %3534 = vrot.lane.b32.xlu0 %v2905, 48
        %v3535 = vpop.permute.xlu0 %3534
        %3536 = vrot.lane.b32.xlu0 %v2906, 48
        %v3537 = vpop.permute.xlu0 %3536
        %3538 = vrot.lane.b32.xlu0 %v2907, 48
        %v3539 = vpop.permute.xlu0 %3538
        %3540 = vrot.lane.b32.xlu0 %v2908, 48
        %v3541 = vpop.permute.xlu0 %3540
        %3542 = vrot.lane.b32.xlu0 %v2909, 48
        %v3543 = vpop.permute.xlu0 %3542
        %3544 = vrot.lane.b32.xlu0 %v2910, 48
        %v3545 = vpop.permute.xlu0 %3544
        %3546 = vrot.lane.b32.xlu0 %v2911, 48
        %v3547 = vpop.permute.xlu0 %3546
        %3548 = vrot.lane.b32.xlu0 %v2912, 48
        %v3549 = vpop.permute.xlu0 %3548
        %3550 = vrot.lane.b32.xlu0 %v2913, 48
        %v3551 = vpop.permute.xlu0 %3550
        %3552 = vrot.lane.b32.xlu0 %v2914, 48
        %v3553 = vpop.permute.xlu0 %3552
        %3554 = vrot.lane.b32.xlu0 %v2915, 48
        %v3555 = vpop.permute.xlu0 %3554
        %3556 = vrot.lane.b32.xlu0 %v2916, 48
        %v3557 = vpop.permute.xlu0 %3556
        %3558 = vrot.lane.b32.xlu0 %v2917, 48
        %v3559 = vpop.permute.xlu0 %3558
        %3560 = vrot.lane.b32.xlu0 %v2918, 48
        %v3561 = vpop.permute.xlu0 %3560
        %3562 = vrot.lane.b32.xlu0 %v2919, 48
        %v3563 = vpop.permute.xlu0 %3562
        %3564 = vrot.lane.b32.xlu0 %v2920, 48
        %v3565 = vpop.permute.xlu0 %3564
        %3566 = vrot.lane.b32.xlu0 %v2921, 48
        %v3567 = vpop.permute.xlu0 %3566
        %3568 = vrot.lane.b32.xlu0 %v2922, 48
        %v3569 = vpop.permute.xlu0 %3568
        %3570 = vrot.lane.b32.xlu0 %v2923, 48
        %v3571 = vpop.permute.xlu0 %3570
        %3572 = vrot.lane.b32.xlu0 %v2924, 48
        %v3573 = vpop.permute.xlu0 %3572
        %3574 = vrot.lane.b32.xlu0 %v2925, 48
        %v3575 = vpop.permute.xlu0 %3574
        %3628 = vrot.lane.b32.xlu0 %v2926, 56
        %v3629 = vpop.permute.xlu0 %3628
        %3630 = vrot.lane.b32.xlu0 %v2927, 56
        %v3631 = vpop.permute.xlu0 %3630
        %3632 = vrot.lane.b32.xlu0 %v2928, 56
        %v3633 = vpop.permute.xlu0 %3632
        %3634 = vrot.lane.b32.xlu0 %v2929, 56
        %v3635 = vpop.permute.xlu0 %3634
        %3636 = vrot.lane.b32.xlu0 %v2930, 56
        %v3637 = vpop.permute.xlu0 %3636
        %3638 = vrot.lane.b32.xlu0 %v2931, 56
        %v3639 = vpop.permute.xlu0 %3638
        %3640 = vrot.lane.b32.xlu0 %v2932, 56
        %v3641 = vpop.permute.xlu0 %3640
        %3642 = vrot.lane.b32.xlu0 %v2933, 56
        %v3643 = vpop.permute.xlu0 %3642
        %3644 = vrot.lane.b32.xlu0 %v2934, 56
        %v3645 = vpop.permute.xlu0 %3644
        %3646 = vrot.lane.b32.xlu0 %v2935, 56
        %v3647 = vpop.permute.xlu0 %3646
        %3648 = vrot.lane.b32.xlu0 %v2936, 56
        %v3649 = vpop.permute.xlu0 %3648
        %3650 = vrot.lane.b32.xlu0 %v2937, 56
        %v3651 = vpop.permute.xlu0 %3650
        %3652 = vrot.lane.b32.xlu0 %v2938, 56
        %v3653 = vpop.permute.xlu0 %3652
        %3654 = vrot.lane.b32.xlu0 %v2939, 56
        %v3655 = vpop.permute.xlu0 %3654
        %3656 = vrot.lane.b32.xlu0 %v2940, 56
        %v3657 = vpop.permute.xlu0 %3656
        %3658 = vrot.lane.b32.xlu0 %v2941, 56
        %v3659 = vpop.permute.xlu0 %3658
        %3660 = vrot.lane.b32.xlu0 %v2942, 56
        %v3661 = vpop.permute.xlu0 %3660
        %3662 = vrot.lane.b32.xlu0 %v2943, 56
        %v3663 = vpop.permute.xlu0 %3662
        %3664 = vrot.lane.b32.xlu0 %v2944, 56
        %v3665 = vpop.permute.xlu0 %3664
        %3666 = vrot.lane.b32.xlu0 %v2945, 56
        %v3667 = vpop.permute.xlu0 %3666
        %3668 = vrot.lane.b32.xlu0 %v2946, 56
        %v3669 = vpop.permute.xlu0 %3668
        %3670 = vrot.lane.b32.xlu0 %v2947, 56
        %v3671 = vpop.permute.xlu0 %3670
        %3672 = vrot.lane.b32.xlu0 %v2948, 56
        %v3673 = vpop.permute.xlu0 %3672
        %3674 = vrot.lane.b32.xlu0 %v2949, 56
        %v3675 = vpop.permute.xlu0 %3674
        %3676 = vrot.lane.b32.xlu0 %v2950, 56
        %v3677 = vpop.permute.xlu0 %3676
        %3678 = vrot.lane.b32.xlu0 %v2951, 56
        %v3679 = vpop.permute.xlu0 %3678
        %3732 = vrot.lane.b32.xlu0 %v2952, 64
        %v3733 = vpop.permute.xlu0 %3732
        %3734 = vrot.lane.b32.xlu0 %v2953, 64
        %v3735 = vpop.permute.xlu0 %3734
        %3736 = vrot.lane.b32.xlu0 %v2954, 64
        %v3737 = vpop.permute.xlu0 %3736
        %3738 = vrot.lane.b32.xlu0 %v2955, 64
        %v3739 = vpop.permute.xlu0 %3738
        %3740 = vrot.lane.b32.xlu0 %v2956, 64
        %v3741 = vpop.permute.xlu0 %3740
        %3742 = vrot.lane.b32.xlu0 %v2957, 64
        %v3743 = vpop.permute.xlu0 %3742
        %3744 = vrot.lane.b32.xlu0 %v2958, 64
        %v3745 = vpop.permute.xlu0 %3744
        %3746 = vrot.lane.b32.xlu0 %v2959, 64
        %v3747 = vpop.permute.xlu0 %3746
        %3748 = vrot.lane.b32.xlu0 %v2960, 64
        %v3749 = vpop.permute.xlu0 %3748
        %3750 = vrot.lane.b32.xlu0 %v2961, 64
        %v3751 = vpop.permute.xlu0 %3750
        %3752 = vrot.lane.b32.xlu0 %v2962, 64
        %v3753 = vpop.permute.xlu0 %3752
        %3754 = vrot.lane.b32.xlu0 %v2963, 64
        %v3755 = vpop.permute.xlu0 %3754
        %3756 = vrot.lane.b32.xlu0 %v2964, 64
        %v3757 = vpop.permute.xlu0 %3756
        %3758 = vrot.lane.b32.xlu0 %v2965, 64
        %v3759 = vpop.permute.xlu0 %3758
        %3760 = vrot.lane.b32.xlu0 %v2966, 64
        %v3761 = vpop.permute.xlu0 %3760
        %3762 = vrot.lane.b32.xlu0 %v2967, 64
        %v3763 = vpop.permute.xlu0 %3762
        %3764 = vrot.lane.b32.xlu0 %v2968, 64
        %v3765 = vpop.permute.xlu0 %3764
        %3766 = vrot.lane.b32.xlu0 %v2969, 64
        %v3767 = vpop.permute.xlu0 %3766
        %3768 = vrot.lane.b32.xlu0 %v2970, 64
        %v3769 = vpop.permute.xlu0 %3768
        %3770 = vrot.lane.b32.xlu0 %v2971, 64
        %v3771 = vpop.permute.xlu0 %3770
        %3772 = vrot.lane.b32.xlu0 %v2972, 64
        %v3773 = vpop.permute.xlu0 %3772
        %3774 = vrot.lane.b32.xlu0 %v2973, 64
        %v3775 = vpop.permute.xlu0 %3774
        %3776 = vrot.lane.b32.xlu0 %v2974, 64
        %v3777 = vpop.permute.xlu0 %3776
        %3778 = vrot.lane.b32.xlu0 %v2975, 64
        %v3779 = vpop.permute.xlu0 %3778
        %3780 = vrot.lane.b32.xlu0 %v2976, 64
        %v3781 = vpop.permute.xlu0 %3780
        %3782 = vrot.lane.b32.xlu0 %v2977, 64
        %v3783 = vpop.permute.xlu0 %3782
        %v3810 = vsel %vm2680, %v2742, %v3005
        %v3811 = vsel %vm2680, %v2743, %v3007
        %v3812 = vsel %vm2680, %v2744, %v3009
        %v3813 = vsel %vm2680, %v2745, %v3011
        %v3814 = vsel %vm2680, %v2746, %v3013
        %v3815 = vsel %vm2680, %v2747, %v3015
        %v3816 = vsel %vm2680, %v2748, %v3017
        %v3817 = vsel %vm2680, %v2749, %v3019
        %v3818 = vsel %vm2680, %v2750, %v3021
        %v3819 = vsel %vm2680, %v2751, %v3023
        %v3820 = vsel %vm2680, %v2752, %v3025
        %v3821 = vsel %vm2680, %v2753, %v3027
        %v3822 = vsel %vm2680, %v2754, %v3029
        %v3823 = vsel %vm2680, %v2755, %v3031
        %v3824 = vsel %vm2680, %v2756, %v3033
        %v3825 = vsel %vm2680, %v2757, %v3035
        %v3826 = vsel %vm2680, %v2758, %v3037
        %v3827 = vsel %vm2680, %v2759, %v3039
        %v3828 = vsel %vm2680, %v2760, %v3041
        %v3829 = vsel %vm2680, %v2761, %v3043
        %v3830 = vsel %vm2680, %v2762, %v3045
        %v3831 = vsel %vm2680, %v2763, %v3047
        %v3832 = vsel %vm2680, %v2764, %v3049
        %v3833 = vsel %vm2680, %v2765, %v3051
        %v3834 = vsel %vm2680, %v2766, %v3053
        %v3835 = vsel %vm2680, %v2767, %v3055
        %vm3836 = vcmask 130048
        %v3837 = vsel %vm3836, %v3810, %v3109
        %v3838 = vsel %vm3836, %v3811, %v3111
        %v3839 = vsel %vm3836, %v3812, %v3113
        %v3840 = vsel %vm3836, %v3813, %v3115
        %v3841 = vsel %vm3836, %v3814, %v3117
        %v3842 = vsel %vm3836, %v3815, %v3119
        %v3843 = vsel %vm3836, %v3816, %v3121
        %v3844 = vsel %vm3836, %v3817, %v3123
        %v3845 = vsel %vm3836, %v3818, %v3125
        %v3846 = vsel %vm3836, %v3819, %v3127
        %v3847 = vsel %vm3836, %v3820, %v3129
        %v3848 = vsel %vm3836, %v3821, %v3131
        %v3849 = vsel %vm3836, %v3822, %v3133
        %v3850 = vsel %vm3836, %v3823, %v3135
        %v3851 = vsel %vm3836, %v3824, %v3137
        %v3852 = vsel %vm3836, %v3825, %v3139
        %v3853 = vsel %vm3836, %v3826, %v3141
        %v3854 = vsel %vm3836, %v3827, %v3143
        %v3855 = vsel %vm3836, %v3828, %v3145
        %v3856 = vsel %vm3836, %v3829, %v3147
        %v3857 = vsel %vm3836, %v3830, %v3149
        %v3858 = vsel %vm3836, %v3831, %v3151
        %v3859 = vsel %vm3836, %v3832, %v3153
        %v3860 = vsel %vm3836, %v3833, %v3155
        %v3861 = vsel %vm3836, %v3834, %v3157
        %v3862 = vsel %vm3836, %v3835, %v3159
        %v3863 = vsel %vm1224, %v3837, %v3213
        %v3864 = vsel %vm1224, %v3838, %v3215
        %v3865 = vsel %vm1224, %v3839, %v3217
        %v3866 = vsel %vm1224, %v3840, %v3219
        %v3867 = vsel %vm1224, %v3841, %v3221
        %v3868 = vsel %vm1224, %v3842, %v3223
        %v3869 = vsel %vm1224, %v3843, %v3225
        %v3870 = vsel %vm1224, %v3844, %v3227
        %v3871 = vsel %vm1224, %v3845, %v3229
        %v3872 = vsel %vm1224, %v3846, %v3231
        %v3873 = vsel %vm1224, %v3847, %v3233
        %v3874 = vsel %vm1224, %v3848, %v3235
        %v3875 = vsel %vm1224, %v3849, %v3237
        %v3876 = vsel %vm1224, %v3850, %v3239
        %v3877 = vsel %vm1224, %v3851, %v3241
        %v3878 = vsel %vm1224, %v3852, %v3243
        %v3879 = vsel %vm1224, %v3853, %v3245
        %v3880 = vsel %vm1224, %v3854, %v3247
        %v3881 = vsel %vm1224, %v3855, %v3249
        %v3882 = vsel %vm1224, %v3856, %v3251
        %v3883 = vsel %vm1224, %v3857, %v3253
        %v3884 = vsel %vm1224, %v3858, %v3255
        %v3885 = vsel %vm1224, %v3859, %v3257
        %v3886 = vsel %vm1224, %v3860, %v3259
        %v3887 = vsel %vm1224, %v3861, %v3261
        %v3888 = vsel %vm1224, %v3862, %v3263
        %vm3889 = vcmask 261120
        %v3890 = vsel %vm3889, %v3863, %v3317
        %v3891 = vsel %vm3889, %v3864, %v3319
        %v3892 = vsel %vm3889, %v3865, %v3321
        %v3893 = vsel %vm3889, %v3866, %v3323
        %v3894 = vsel %vm3889, %v3867, %v3325
        %v3895 = vsel %vm3889, %v3868, %v3327
        %v3896 = vsel %vm3889, %v3869, %v3329
        %v3897 = vsel %vm3889, %v3870, %v3331
        %v3898 = vsel %vm3889, %v3871, %v3333
        %v3899 = vsel %vm3889, %v3872, %v3335
        %v3900 = vsel %vm3889, %v3873, %v3337
        %v3901 = vsel %vm3889, %v3874, %v3339
        %v3902 = vsel %vm3889, %v3875, %v3341
        %v3903 = vsel %vm3889, %v3876, %v3343
        %v3904 = vsel %vm3889, %v3877, %v3345
        %v3905 = vsel %vm3889, %v3878, %v3347
        %v3906 = vsel %vm3889, %v3879, %v3349
        %v3907 = vsel %vm3889, %v3880, %v3351
        %v3908 = vsel %vm3889, %v3881, %v3353
        %v3909 = vsel %vm3889, %v3882, %v3355
        %v3910 = vsel %vm3889, %v3883, %v3357
        %v3911 = vsel %vm3889, %v3884, %v3359
        %v3912 = vsel %vm3889, %v3885, %v3361
        %v3913 = vsel %vm3889, %v3886, %v3363
        %v3914 = vsel %vm3889, %v3887, %v3365
        %v3915 = vsel %vm3889, %v3888, %v3367
        %vm3916 = vcmask 326656
        %v3917 = vsel %vm3916, %v3890, %v3421
        %v3918 = vsel %vm3916, %v3891, %v3423
        %v3919 = vsel %vm3916, %v3892, %v3425
        %v3920 = vsel %vm3916, %v3893, %v3427
        %v3921 = vsel %vm3916, %v3894, %v3429
        %v3922 = vsel %vm3916, %v3895, %v3431
        %v3923 = vsel %vm3916, %v3896, %v3433
        %v3924 = vsel %vm3916, %v3897, %v3435
        %v3925 = vsel %vm3916, %v3898, %v3437
        %v3926 = vsel %vm3916, %v3899, %v3439
        %v3927 = vsel %vm3916, %v3900, %v3441
        %v3928 = vsel %vm3916, %v3901, %v3443
        %v3929 = vsel %vm3916, %v3902, %v3445
        %v3930 = vsel %vm3916, %v3903, %v3447
        %v3931 = vsel %vm3916, %v3904, %v3449
        %v3932 = vsel %vm3916, %v3905, %v3451
        %v3933 = vsel %vm3916, %v3906, %v3453
        %v3934 = vsel %vm3916, %v3907, %v3455
        %v3935 = vsel %vm3916, %v3908, %v3457
        %v3936 = vsel %vm3916, %v3909, %v3459
        %v3937 = vsel %vm3916, %v3910, %v3461
        %v3938 = vsel %vm3916, %v3911, %v3463
        %v3939 = vsel %vm3916, %v3912, %v3465
        %v3940 = vsel %vm3916, %v3913, %v3467
        %v3941 = vsel %vm3916, %v3914, %v3469
        %v3942 = vsel %vm3916, %v3915, %v3471
        %v3943 = vsel %vm2020, %v3917, %v3525
        %v3944 = vsel %vm2020, %v3918, %v3527
        %v3945 = vsel %vm2020, %v3919, %v3529
        %v3946 = vsel %vm2020, %v3920, %v3531
        %v3947 = vsel %vm2020, %v3921, %v3533
        %v3948 = vsel %vm2020, %v3922, %v3535
        %v3949 = vsel %vm2020, %v3923, %v3537
        %v3950 = vsel %vm2020, %v3924, %v3539
        %v3951 = vsel %vm2020, %v3925, %v3541
        %v3952 = vsel %vm2020, %v3926, %v3543
        %v3953 = vsel %vm2020, %v3927, %v3545
        %v3954 = vsel %vm2020, %v3928, %v3547
        %v3955 = vsel %vm2020, %v3929, %v3549
        %v3956 = vsel %vm2020, %v3930, %v3551
        %v3957 = vsel %vm2020, %v3931, %v3553
        %v3958 = vsel %vm2020, %v3932, %v3555
        %v3959 = vsel %vm2020, %v3933, %v3557
        %v3960 = vsel %vm2020, %v3934, %v3559
        %v3961 = vsel %vm2020, %v3935, %v3561
        %v3962 = vsel %vm2020, %v3936, %v3563
        %v3963 = vsel %vm2020, %v3937, %v3565
        %v3964 = vsel %vm2020, %v3938, %v3567
        %v3965 = vsel %vm2020, %v3939, %v3569
        %v3966 = vsel %vm2020, %v3940, %v3571
        %v3967 = vsel %vm2020, %v3941, %v3573
        %v3968 = vsel %vm2020, %v3942, %v3575
        %vm3969 = vcmask 457728
        %v3970 = vsel %vm3969, %v3943, %v3629
        %v3971 = vsel %vm3969, %v3944, %v3631
        %v3972 = vsel %vm3969, %v3945, %v3633
        %v3973 = vsel %vm3969, %v3946, %v3635
        %v3974 = vsel %vm3969, %v3947, %v3637
        %v3975 = vsel %vm3969, %v3948, %v3639
        %v3976 = vsel %vm3969, %v3949, %v3641
        %v3977 = vsel %vm3969, %v3950, %v3643
        %v3978 = vsel %vm3969, %v3951, %v3645
        %v3979 = vsel %vm3969, %v3952, %v3647
        %v3980 = vsel %vm3969, %v3953, %v3649
        %v3981 = vsel %vm3969, %v3954, %v3651
        %v3982 = vsel %vm3969, %v3955, %v3653
        %v3983 = vsel %vm3969, %v3956, %v3655
        %v3984 = vsel %vm3969, %v3957, %v3657
        %v3985 = vsel %vm3969, %v3958, %v3659
        %v3986 = vsel %vm3969, %v3959, %v3661
        %v3987 = vsel %vm3969, %v3960, %v3663
        %v3988 = vsel %vm3969, %v3961, %v3665
        %v3989 = vsel %vm3969, %v3962, %v3667
        %v3990 = vsel %vm3969, %v3963, %v3669
        %v3991 = vsel %vm3969, %v3964, %v3671
        %v3992 = vsel %vm3969, %v3965, %v3673
        %v3993 = vsel %vm3969, %v3966, %v3675
        %v3994 = vsel %vm3969, %v3967, %v3677
        %v3995 = vsel %vm3969, %v3968, %v3679
        %vm3996 = vcmask 523264
        %v3997 = vsel %vm3996, %v3970, %v3733
        %v3998 = vsel %vm3996, %v3971, %v3735
        %v3999 = vsel %vm3996, %v3972, %v3737
        %v4000 = vsel %vm3996, %v3973, %v3739
        %v4001 = vsel %vm3996, %v3974, %v3741
        %v4002 = vsel %vm3996, %v3975, %v3743
        %v4003 = vsel %vm3996, %v3976, %v3745
        %v4004 = vsel %vm3996, %v3977, %v3747
        %v4005 = vsel %vm3996, %v3978, %v3749
        %v4006 = vsel %vm3996, %v3979, %v3751
        %v4007 = vsel %vm3996, %v3980, %v3753
        %v4008 = vsel %vm3996, %v3981, %v3755
        %v4009 = vsel %vm3996, %v3982, %v3757
        %v4010 = vsel %vm3996, %v3983, %v3759
        %v4011 = vsel %vm3996, %v3984, %v3761
        %v4012 = vsel %vm3996, %v3985, %v3763
        %v4013 = vsel %vm3996, %v3986, %v3765
        %v4014 = vsel %vm3996, %v3987, %v3767
        %v4015 = vsel %vm3996, %v3988, %v3769
        %v4016 = vsel %vm3996, %v3989, %v3771
        %v4017 = vsel %vm3996, %v3990, %v3773
        %v4018 = vsel %vm3996, %v3991, %v3775
        %v4019 = vsel %vm3996, %v3992, %v3777
        %v4020 = vsel %vm3996, %v3993, %v3779
        %v4021 = vsel %vm3996, %v3994, %v3781
        %v4022 = vsel %vm3996, %v3995, %v3783
        %v4049 = vrot.slane %v3997, 1
        %v4050 = vrot.slane %v3997, 2
        %v4051 = vrot.slane %v3997, 3
        %v4052 = vrot.slane %v3997, 4
        %v4053 = vrot.slane %v3997, 5
        %v4054 = vrot.slane %v3997, 6
        %v4055 = vrot.slane %v3997, 7
        %v4056 = vrot.slane %v3998, 1
        %v4057 = vrot.slane %v3998, 2
        %v4058 = vrot.slane %v3998, 3
        %v4059 = vrot.slane %v3998, 4
        %v4060 = vrot.slane %v3999, 1
        %v4061 = vrot.slane %v3999, 2
        %v4062 = vrot.slane %v3999, 3
        %v4063 = vrot.slane %v3999, 4
        %v4064 = vrot.slane %v3999, 5
        %v4065 = vrot.slane %v3999, 6
        %v4066 = vrot.slane %v3999, 7
        %v4067 = vrot.slane %v4000, 1
        %v4068 = vrot.slane %v4000, 2
        %v4069 = vrot.slane %v4000, 3
        %v4070 = vrot.slane %v4000, 4
        %v4071 = vrot.slane %v4001, 1
        %v4072 = vrot.slane %v4001, 2
        %v4073 = vrot.slane %v4001, 3
        %v4074 = vrot.slane %v4001, 4
        %v4075 = vrot.slane %v4001, 5
        %v4076 = vrot.slane %v4001, 6
        %v4077 = vrot.slane %v4001, 7
        %v4078 = vrot.slane %v4002, 1
        %v4079 = vrot.slane %v4002, 2
        %v4080 = vrot.slane %v4002, 3
        %v4081 = vrot.slane %v4002, 4
        %v4082 = vrot.slane %v4003, 1
        %v4083 = vrot.slane %v4003, 2
        %v4084 = vrot.slane %v4003, 3
        %v4085 = vrot.slane %v4003, 4
        %v4086 = vrot.slane %v4003, 5
        %v4087 = vrot.slane %v4003, 6
        %v4088 = vrot.slane %v4003, 7
        %v4089 = vrot.slane %v4004, 1
        %v4090 = vrot.slane %v4004, 2
        %v4091 = vrot.slane %v4004, 3
        %v4092 = vrot.slane %v4004, 4
        %v4093 = vrot.slane %v4005, 1
        %v4094 = vrot.slane %v4005, 2
        %v4095 = vrot.slane %v4005, 3
        %v4096 = vrot.slane %v4005, 4
        %v4097 = vrot.slane %v4005, 5
        %v4098 = vrot.slane %v4005, 6
        %v4099 = vrot.slane %v4005, 7
        %v4100 = vrot.slane %v4006, 1
        %v4101 = vrot.slane %v4006, 2
        %v4102 = vrot.slane %v4006, 3
        %v4103 = vrot.slane %v4006, 4
        %v4104 = vrot.slane %v4007, 1
        %v4105 = vrot.slane %v4007, 2
        %v4106 = vrot.slane %v4007, 3
        %v4107 = vrot.slane %v4007, 4
        %v4108 = vrot.slane %v4007, 5
        %v4109 = vrot.slane %v4007, 6
        %v4110 = vrot.slane %v4007, 7
        %v4111 = vrot.slane %v4008, 1
        %v4112 = vrot.slane %v4008, 2
        %v4113 = vrot.slane %v4008, 3
        %v4114 = vrot.slane %v4008, 4
        %v4115 = vrot.slane %v4009, 1
        %v4116 = vrot.slane %v4009, 2
        %v4117 = vrot.slane %v4009, 3
        %v4118 = vrot.slane %v4009, 4
        %v4119 = vrot.slane %v4009, 5
        %v4120 = vrot.slane %v4009, 6
        %v4121 = vrot.slane %v4009, 7
        %v4122 = vrot.slane %v4010, 1
        %v4123 = vrot.slane %v4010, 2
        %v4124 = vrot.slane %v4010, 3
        %v4125 = vrot.slane %v4010, 4
        %v4126 = vrot.slane %v4011, 1
        %v4127 = vrot.slane %v4011, 2
        %v4128 = vrot.slane %v4011, 3
        %v4129 = vrot.slane %v4011, 4
        %v4130 = vrot.slane %v4011, 5
        %v4131 = vrot.slane %v4011, 6
        %v4132 = vrot.slane %v4011, 7
        %v4133 = vrot.slane %v4012, 1
        %v4134 = vrot.slane %v4012, 2
        %v4135 = vrot.slane %v4012, 3
        %v4136 = vrot.slane %v4012, 4
        %v4137 = vrot.slane %v4013, 1
        %v4138 = vrot.slane %v4013, 2
        %v4139 = vrot.slane %v4013, 3
        %v4140 = vrot.slane %v4013, 4
        %v4141 = vrot.slane %v4013, 5
        %v4142 = vrot.slane %v4013, 6
        %v4143 = vrot.slane %v4013, 7
        %v4144 = vrot.slane %v4014, 1
        %v4145 = vrot.slane %v4014, 2
        %v4146 = vrot.slane %v4014, 3
        %v4147 = vrot.slane %v4014, 4
        %v4148 = vrot.slane %v4015, 1
        %v4149 = vrot.slane %v4015, 2
        %v4150 = vrot.slane %v4015, 3
        %v4151 = vrot.slane %v4015, 4
        %v4152 = vrot.slane %v4015, 5
        %v4153 = vrot.slane %v4015, 6
        %v4154 = vrot.slane %v4015, 7
        %v4155 = vrot.slane %v4016, 1
        %v4156 = vrot.slane %v4016, 2
        %v4157 = vrot.slane %v4016, 3
        %v4158 = vrot.slane %v4016, 4
        %v4159 = vrot.slane %v4017, 1
        %v4160 = vrot.slane %v4017, 2
        %v4161 = vrot.slane %v4017, 3
        %v4162 = vrot.slane %v4017, 4
        %v4163 = vrot.slane %v4017, 5
        %v4164 = vrot.slane %v4017, 6
        %v4165 = vrot.slane %v4017, 7
        %v4166 = vrot.slane %v4018, 1
        %v4167 = vrot.slane %v4018, 2
        %v4168 = vrot.slane %v4018, 3
        %v4169 = vrot.slane %v4018, 4
        %v4170 = vrot.slane %v4019, 1
        %v4171 = vrot.slane %v4019, 2
        %v4172 = vrot.slane %v4019, 3
        %v4173 = vrot.slane %v4019, 4
        %v4174 = vrot.slane %v4019, 5
        %v4175 = vrot.slane %v4019, 6
        %v4176 = vrot.slane %v4019, 7
        %v4177 = vrot.slane %v4020, 1
        %v4178 = vrot.slane %v4020, 2
        %v4179 = vrot.slane %v4020, 3
        %v4180 = vrot.slane %v4020, 4
        %v4181 = vrot.slane %v4021, 1
        %v4182 = vrot.slane %v4021, 2
        %v4183 = vrot.slane %v4021, 3
        %v4184 = vrot.slane %v4021, 4
        %v4185 = vrot.slane %v4021, 5
        %v4186 = vrot.slane %v4021, 6
        %v4187 = vrot.slane %v4021, 7
        %v4188 = vrot.slane %v4022, 1
        %v4189 = vrot.slane %v4022, 2
        %v4190 = vrot.slane %v4022, 3
        %v4191 = vrot.slane %v4022, 4
        %4192 = vst [vmem:[#allocation1] ss:$9 sm:$0xff] %v3997
        %s4193 = scalar_lea.vmem [#allocation1], 1
        %4194 = vst [vmem:[%s4193] ss:$9 sm:$0xff] %v4049
        %s4195 = scalar_lea.vmem [#allocation1], 2
        %4196 = vst [vmem:[%s4195] ss:$9 sm:$0xff] %v4050
        %s4197 = scalar_lea.vmem [#allocation1], 3
        %4198 = vst [vmem:[%s4197] ss:$9 sm:$0xff] %v4051
        %s4199 = scalar_lea.vmem [#allocation1], 4
        %4200 = vst [vmem:[%s4199] ss:$9 sm:$0xff] %v4052
        %s4201 = scalar_lea.vmem [#allocation1], 5
        %4202 = vst [vmem:[%s4201] ss:$9 sm:$0xff] %v4053
        %s4203 = scalar_lea.vmem [#allocation1], 6
        %4204 = vst [vmem:[%s4203] ss:$9 sm:$0xff] %v4054
        %s4205 = scalar_lea.vmem [#allocation1], 7
        %4206 = vst [vmem:[%s4205] ss:$9 sm:$0xff] %v4055
        %v4207 = vld [vmem:[#allocation1] sm:$0xff]
        %4208 = vst [vmem:[#allocation1] ss:$9 sm:$0xff] %v3998
        %4209 = vst [vmem:[%s4193] ss:$9 sm:$0xff] %v4056
        %4210 = vst [vmem:[%s4195] ss:$9 sm:$0xff] %v4057
        %4211 = vst [vmem:[%s4197] ss:$9 sm:$0xff] %v4058
        %4212 = vst [vmem:[%s4199] ss:$9 sm:$0xff] %v4059
        %4213 = vst [vmem:[%s4201] ss:$9 sm:$0xff] %v3999
        %4214 = vst [vmem:[%s4203] ss:$9 sm:$0xff] %v4060
        %4215 = vst [vmem:[%s4205] ss:$9 sm:$0xff] %v4061
        %v4216 = vld [vmem:[#allocation1] sm:$0xff]
        %4217 = vst [vmem:[#allocation1] ss:$9 sm:$0xff] %v4062
        %4218 = vst [vmem:[%s4193] ss:$9 sm:$0xff] %v4063
        %4219 = vst [vmem:[%s4195] ss:$9 sm:$0xff] %v4064
        %4220 = vst [vmem:[%s4197] ss:$9 sm:$0xff] %v4065
        %4221 = vst [vmem:[%s4199] ss:$9 sm:$0xff] %v4066
        %4222 = vst [vmem:[%s4201] ss:$9 sm:$0xff] %v4000
        %4223 = vst [vmem:[%s4203] ss:$9 sm:$0xff] %v4067
        %4224 = vst [vmem:[%s4205] ss:$9 sm:$0xff] %v4068
        %v4225 = vld [vmem:[#allocation1] sm:$0xff]
        %4226 = vst [vmem:[#allocation1] ss:$9 sm:$0xff] %v4069
        %4227 = vst [vmem:[%s4193] ss:$9 sm:$0xff] %v4070
        %4228 = vst [vmem:[%s4195] ss:$9 sm:$0xff] %v4001
        %4229 = vst [vmem:[%s4197] ss:$9 sm:$0xff] %v4071
        %4230 = vst [vmem:[%s4199] ss:$9 sm:$0xff] %v4072
        %4231 = vst [vmem:[%s4201] ss:$9 sm:$0xff] %v4073
        %4232 = vst [vmem:[%s4203] ss:$9 sm:$0xff] %v4074
        %4233 = vst [vmem:[%s4205] ss:$9 sm:$0xff] %v4075
        %v4234 = vld [vmem:[#allocation1] sm:$0xff]
        %4235 = vst [vmem:[#allocation1] ss:$9 sm:$0xff] %v4076
        %4236 = vst [vmem:[%s4193] ss:$9 sm:$0xff] %v4077
        %4237 = vst [vmem:[%s4195] ss:$9 sm:$0xff] %v4002
        %4238 = vst [vmem:[%s4197] ss:$9 sm:$0xff] %v4078
        %4239 = vst [vmem:[%s4199] ss:$9 sm:$0xff] %v4079
        %4240 = vst [vmem:[%s4201] ss:$9 sm:$0xff] %v4080
        %4241 = vst [vmem:[%s4203] ss:$9 sm:$0xff] %v4081
        %4242 = vst [vmem:[%s4205] ss:$9 sm:$0xff] %v4003
        %v4243 = vld [vmem:[#allocation1] sm:$0xff]
        %4244 = vst [vmem:[#allocation1] ss:$9 sm:$0xff] %v4082
        %4245 = vst [vmem:[%s4193] ss:$9 sm:$0xff] %v4083
        %4246 = vst [vmem:[%s4195] ss:$9 sm:$0xff] %v4084
        %4247 = vst [vmem:[%s4197] ss:$9 sm:$0xff] %v4085
        %4248 = vst [vmem:[%s4199] ss:$9 sm:$0xff] %v4086
        %4249 = vst [vmem:[%s4201] ss:$9 sm:$0xff] %v4087
        %4250 = vst [vmem:[%s4203] ss:$9 sm:$0xff] %v4088
        %4251 = vst [vmem:[%s4205] ss:$9 sm:$0xff] %v4004
        %v4252 = vld [vmem:[#allocation1] sm:$0xff]
        %4253 = vst [vmem:[#allocation1] ss:$9 sm:$0xff] %v4089
        %4254 = vst [vmem:[%s4193] ss:$9 sm:$0xff] %v4090
        %4255 = vst [vmem:[%s4195] ss:$9 sm:$0xff] %v4091
        %4256 = vst [vmem:[%s4197] ss:$9 sm:$0xff] %v4092
        %4257 = vst [vmem:[%s4199] ss:$9 sm:$0xff] %v4005
        %4258 = vst [vmem:[%s4201] ss:$9 sm:$0xff] %v4093
        %4259 = vst [vmem:[%s4203] ss:$9 sm:$0xff] %v4094
        %4260 = vst [vmem:[%s4205] ss:$9 sm:$0xff] %v4095
        %v4261 = vld [vmem:[#allocation1] sm:$0xff]
        %4262 = vst [vmem:[#allocation1] ss:$9 sm:$0xff] %v4096
        %4263 = vst [vmem:[%s4193] ss:$9 sm:$0xff] %v4097
        %4264 = vst [vmem:[%s4195] ss:$9 sm:$0xff] %v4098
        %4265 = vst [vmem:[%s4197] ss:$9 sm:$0xff] %v4099
        %4266 = vst [vmem:[%s4199] ss:$9 sm:$0xff] %v4006
        %4267 = vst [vmem:[%s4201] ss:$9 sm:$0xff] %v4100
        %4268 = vst [vmem:[%s4203] ss:$9 sm:$0xff] %v4101
        %4269 = vst [vmem:[%s4205] ss:$9 sm:$0xff] %v4102
        %v4270 = vld [vmem:[#allocation1] sm:$0xff]
        %4271 = vst [vmem:[#allocation1] ss:$9 sm:$0xff] %v4103
        %4272 = vst [vmem:[%s4193] ss:$9 sm:$0xff] %v4007
        %4273 = vst [vmem:[%s4195] ss:$9 sm:$0xff] %v4104
        %4274 = vst [vmem:[%s4197] ss:$9 sm:$0xff] %v4105
        %4275 = vst [vmem:[%s4199] ss:$9 sm:$0xff] %v4106
        %4276 = vst [vmem:[%s4201] ss:$9 sm:$0xff] %v4107
        %4277 = vst [vmem:[%s4203] ss:$9 sm:$0xff] %v4108
        %4278 = vst [vmem:[%s4205] ss:$9 sm:$0xff] %v4109
        %v4279 = vld [vmem:[#allocation1] sm:$0xff]
        %4280 = vst [vmem:[#allocation1] ss:$9 sm:$0xff] %v4110
        %4281 = vst [vmem:[%s4193] ss:$9 sm:$0xff] %v4008
        %4282 = vst [vmem:[%s4195] ss:$9 sm:$0xff] %v4111
        %4283 = vst [vmem:[%s4197] ss:$9 sm:$0xff] %v4112
        %4284 = vst [vmem:[%s4199] ss:$9 sm:$0xff] %v4113
        %4285 = vst [vmem:[%s4201] ss:$9 sm:$0xff] %v4114
        %4286 = vst [vmem:[%s4203] ss:$9 sm:$0xff] %v4009
        %4287 = vst [vmem:[%s4205] ss:$9 sm:$0xff] %v4115
        %v4288 = vld [vmem:[#allocation1] sm:$0xff]
        %4289 = vst [vmem:[#allocation1] ss:$9 sm:$0xff] %v4116
        %4290 = vst [vmem:[%s4193] ss:$9 sm:$0xff] %v4117
        %4291 = vst [vmem:[%s4195] ss:$9 sm:$0xff] %v4118
        %4292 = vst [vmem:[%s4197] ss:$9 sm:$0xff] %v4119
        %4293 = vst [vmem:[%s4199] ss:$9 sm:$0xff] %v4120
        %4294 = vst [vmem:[%s4201] ss:$9 sm:$0xff] %v4121
        %4295 = vst [vmem:[%s4203] ss:$9 sm:$0xff] %v4010
        %4296 = vst [vmem:[%s4205] ss:$9 sm:$0xff] %v4122
        %v4297 = vld [vmem:[#allocation1] sm:$0xff]
        %4298 = vst [vmem:[#allocation1] ss:$9 sm:$0xff] %v4123
        %4299 = vst [vmem:[%s4193] ss:$9 sm:$0xff] %v4124
        %4300 = vst [vmem:[%s4195] ss:$9 sm:$0xff] %v4125
        %4301 = vst [vmem:[%s4197] ss:$9 sm:$0xff] %v4011
        %4302 = vst [vmem:[%s4199] ss:$9 sm:$0xff] %v4126
        %4303 = vst [vmem:[%s4201] ss:$9 sm:$0xff] %v4127
        %4304 = vst [vmem:[%s4203] ss:$9 sm:$0xff] %v4128
        %4305 = vst [vmem:[%s4205] ss:$9 sm:$0xff] %v4129
        %v4306 = vld [vmem:[#allocation1] sm:$0xff]
        %4307 = vst [vmem:[#allocation1] ss:$9 sm:$0xff] %v4130
        %4308 = vst [vmem:[%s4193] ss:$9 sm:$0xff] %v4131
        %4309 = vst [vmem:[%s4195] ss:$9 sm:$0xff] %v4132
        %4310 = vst [vmem:[%s4197] ss:$9 sm:$0xff] %v4012
        %4311 = vst [vmem:[%s4199] ss:$9 sm:$0xff] %v4133
        %4312 = vst [vmem:[%s4201] ss:$9 sm:$0xff] %v4134
        %4313 = vst [vmem:[%s4203] ss:$9 sm:$0xff] %v4135
        %4314 = vst [vmem:[%s4205] ss:$9 sm:$0xff] %v4136
        %v4315 = vld [vmem:[#allocation1] sm:$0xff]
        %4316 = vst [vmem:[#allocation1] ss:$9 sm:$0xff] %v4013
        %4317 = vst [vmem:[%s4193] ss:$9 sm:$0xff] %v4137
        %4318 = vst [vmem:[%s4195] ss:$9 sm:$0xff] %v4138
        %4319 = vst [vmem:[%s4197] ss:$9 sm:$0xff] %v4139
        %4320 = vst [vmem:[%s4199] ss:$9 sm:$0xff] %v4140
        %4321 = vst [vmem:[%s4201] ss:$9 sm:$0xff] %v4141
        %4322 = vst [vmem:[%s4203] ss:$9 sm:$0xff] %v4142
        %4323 = vst [vmem:[%s4205] ss:$9 sm:$0xff] %v4143
        %v4324 = vld [vmem:[#allocation1] sm:$0xff]
        %4325 = vst [vmem:[#allocation1] ss:$9 sm:$0xff] %v4014
        %4326 = vst [vmem:[%s4193] ss:$9 sm:$0xff] %v4144
        %4327 = vst [vmem:[%s4195] ss:$9 sm:$0xff] %v4145
        %4328 = vst [vmem:[%s4197] ss:$9 sm:$0xff] %v4146
        %4329 = vst [vmem:[%s4199] ss:$9 sm:$0xff] %v4147
        %4330 = vst [vmem:[%s4201] ss:$9 sm:$0xff] %v4015
        %4331 = vst [vmem:[%s4203] ss:$9 sm:$0xff] %v4148
        %4332 = vst [vmem:[%s4205] ss:$9 sm:$0xff] %v4149
        %v4333 = vld [vmem:[#allocation1] sm:$0xff]
        %4334 = vst [vmem:[#allocation1] ss:$9 sm:$0xff] %v4150
        %4335 = vst [vmem:[%s4193] ss:$9 sm:$0xff] %v4151
        %4336 = vst [vmem:[%s4195] ss:$9 sm:$0xff] %v4152
        %4337 = vst [vmem:[%s4197] ss:$9 sm:$0xff] %v4153
        %4338 = vst [vmem:[%s4199] ss:$9 sm:$0xff] %v4154
        %4339 = vst [vmem:[%s4201] ss:$9 sm:$0xff] %v4016
        %4340 = vst [vmem:[%s4203] ss:$9 sm:$0xff] %v4155
        %4341 = vst [vmem:[%s4205] ss:$9 sm:$0xff] %v4156
        %v4342 = vld [vmem:[#allocation1] sm:$0xff]
        %4343 = vst [vmem:[#allocation1] ss:$9 sm:$0xff] %v4157
        %4344 = vst [vmem:[%s4193] ss:$9 sm:$0xff] %v4158
        %4345 = vst [vmem:[%s4195] ss:$9 sm:$0xff] %v4017
        %4346 = vst [vmem:[%s4197] ss:$9 sm:$0xff] %v4159
        %4347 = vst [vmem:[%s4199] ss:$9 sm:$0xff] %v4160
        %4348 = vst [vmem:[%s4201] ss:$9 sm:$0xff] %v4161
        %4349 = vst [vmem:[%s4203] ss:$9 sm:$0xff] %v4162
        %4350 = vst [vmem:[%s4205] ss:$9 sm:$0xff] %v4163
        %v4351 = vld [vmem:[#allocation1] sm:$0xff]
        %4352 = vst [vmem:[#allocation1] ss:$9 sm:$0xff] %v4164
        %4353 = vst [vmem:[%s4193] ss:$9 sm:$0xff] %v4165
        %4354 = vst [vmem:[%s4195] ss:$9 sm:$0xff] %v4018
        %4355 = vst [vmem:[%s4197] ss:$9 sm:$0xff] %v4166
        %4356 = vst [vmem:[%s4199] ss:$9 sm:$0xff] %v4167
        %4357 = vst [vmem:[%s4201] ss:$9 sm:$0xff] %v4168
        %4358 = vst [vmem:[%s4203] ss:$9 sm:$0xff] %v4169
        %4359 = vst [vmem:[%s4205] ss:$9 sm:$0xff] %v4019
        %v4360 = vld [vmem:[#allocation1] sm:$0xff]
        %4361 = vst [vmem:[#allocation1] ss:$9 sm:$0xff] %v4170
        %4362 = vst [vmem:[%s4193] ss:$9 sm:$0xff] %v4171
        %4363 = vst [vmem:[%s4195] ss:$9 sm:$0xff] %v4172
        %4364 = vst [vmem:[%s4197] ss:$9 sm:$0xff] %v4173
        %4365 = vst [vmem:[%s4199] ss:$9 sm:$0xff] %v4174
        %4366 = vst [vmem:[%s4201] ss:$9 sm:$0xff] %v4175
        %4367 = vst [vmem:[%s4203] ss:$9 sm:$0xff] %v4176
        %4368 = vst [vmem:[%s4205] ss:$9 sm:$0xff] %v4020
        %v4369 = vld [vmem:[#allocation1] sm:$0xff]
        %4370 = vst [vmem:[#allocation1] ss:$9 sm:$0xff] %v4177
        %4371 = vst [vmem:[%s4193] ss:$9 sm:$0xff] %v4178
        %4372 = vst [vmem:[%s4195] ss:$9 sm:$0xff] %v4179
        %4373 = vst [vmem:[%s4197] ss:$9 sm:$0xff] %v4180
        %4374 = vst [vmem:[%s4199] ss:$9 sm:$0xff] %v4021
        %4375 = vst [vmem:[%s4201] ss:$9 sm:$0xff] %v4181
        %4376 = vst [vmem:[%s4203] ss:$9 sm:$0xff] %v4182
        %4377 = vst [vmem:[%s4205] ss:$9 sm:$0xff] %v4183
        %v4378 = vld [vmem:[#allocation1] sm:$0xff]
        %4379 = vst [vmem:[#allocation1] ss:$9 sm:$0xff] %v4184
        %4380 = vst [vmem:[%s4193] ss:$9 sm:$0xff] %v4185
        %4381 = vst [vmem:[%s4195] ss:$9 sm:$0xff] %v4186
        %4382 = vst [vmem:[%s4197] ss:$9 sm:$0xff] %v4187
        %4383 = vst [vmem:[%s4199] ss:$9 sm:$0xff] %v4022
        %4384 = vst [vmem:[%s4201] ss:$9 sm:$0xff] %v4188
        %4385 = vst [vmem:[%s4203] ss:$9 sm:$0xff] %v4189
        %4386 = vst [vmem:[%s4205] ss:$9 sm:$0xff] %v4190
        %v4387 = vld [vmem:[#allocation1] sm:$0xff]
        %4388 = vst [vmem:[#allocation1] ss:$9 sm:$0xff] %v4191
        %v4389 = vld [vmem:[#allocation1] sm:$0xff]
        %v4412 = vpack.c.bf16 %v4216, %v4207
        %v4413 = vpack.c.bf16 %v4234, %v4225
        %v4414 = vpack.c.bf16 %v4252, %v4243
        %v4415 = vpack.c.bf16 %v4270, %v4261
        %v4416 = vpack.c.bf16 %v4288, %v4279
        %v4417 = vpack.c.bf16 %v4306, %v4297
        %v4418 = vpack.c.bf16 %v4324, %v4315
        %v4419 = vpack.c.bf16 %v4342, %v4333
        %v4420 = vpack.c.bf16 %v4360, %v4351
        %v4421 = vpack.c.bf16 %v4378, %v4369
        %v4422 = vpack.c.bf16 %v4389, %v4387
        %v4423 = vld [vmem:[%s3] sm:$0xf]
        %v4424 = vld [vmem:[%s3 + $0x4] sm:$0xf]
        %v4425 = vld [vmem:[%s3 + $0x8] sm:$0xf]
        %v4426 = vld [vmem:[%s3 + $0xc] sm:$0xf]
        %v4427 = vld [vmem:[%s3 + $0x10] sm:$0xf]
        %v4428 = vld [vmem:[%s3 + $0x14] sm:$0xf]
        %v4429 = vld [vmem:[%s3 + $0x18] sm:$0xf]
        %v4430 = vld [vmem:[%s3 + $0x1c] sm:$0xf]
        %v4431 = vld [vmem:[%s3 + $0x20] sm:$0xf]
        %v4432 = vld [vmem:[%s4] sm:$0x1]
        %v4434 = vperm.slane %v4432, 0
        %v4445 = vunpack.c.l.b16 %v4423
        %v4446 = vunpack.c.l.b16 %v4424
        %v4447 = vunpack.c.l.b16 %v4425
        %v4448 = vunpack.c.l.b16 %v4426
        %v4449 = vunpack.c.l.b16 %v4427
        %v4450 = vunpack.c.l.b16 %v4428
        %v4451 = vunpack.c.l.b16 %v4429
        %v4452 = vunpack.c.l.b16 %v4430
        %v4453 = vunpack.c.l.b16 %v4431
        %v4454 = vpack.c.b16 %v4446, %v4445
        %v4455 = vpack.c.b16 %v4448, %v4447
        %v4456 = vpack.c.b16 %v4450, %v4449
        %v4457 = vpack.c.b16 %v4452, %v4451
        %v4458 = vpack.c.b16 %v4453, %v4453
        %vm4463 = vcmask 588800
        %v4465 = vsel %vm4463, %v4412, 0
        %v4468 = vsel %vm4463, %v4413, 0
        %v4471 = vsel %vm4463, %v4414, 0
        %v4474 = vsel %vm4463, %v4415, 0
        %v4477 = vsel %vm4463, %v4416, 0
        %v4480 = vsel %vm4463, %v4417, 0
        %v4483 = vsel %vm4463, %v4418, 0
        %v4486 = vsel %vm4463, %v4419, 0
        %v4489 = vsel %vm4463, %v4420, 0
        %v4492 = vsel %vm4463, %v4421, 0
        %v4495 = vsel %vm4463, %v4422, 0
        %vm4497 = vcmask 1043456
        %v4499 = vsel %vm4497, %v4458, 0
        %4501 = vmatpush.bf16.msra.mxu0 0
        %4502 = vmatpush.bf16.msra.mxu0 0
        %4503 = vmatpush.bf16.msra.mxu0 0
        %4504 = vmatpush.bf16.msra.mxu0 %v4499
        %4505 = vmatpush.bf16.msra.mxu0 %v4457
        %4506 = vmatpush.bf16.msra.mxu0 %v4456
        %4507 = vmatpush.bf16.msra.mxu0 %v4455
        %4508 = vmatpush.bf16.msra.mxu0 %v4454
        %4509 = vmatmul.bf16.gmra.mxu0 %v4465
        %v4510 = vpop.f32.mrf.mxu0
        %v4511 = vadd.f32 %v4434, %v4510
        %v4512 = vpop.f32.mrf.mxu0
        %v4513 = vadd.f32 %v4434, %v4512
        %4514 = vmatmul.bf16.gmra.mxu0 %v4468
        %v4515 = vpop.f32.mrf.mxu0
        %v4516 = vadd.f32 %v4434, %v4515
        %v4517 = vpop.f32.mrf.mxu0
        %v4518 = vadd.f32 %v4434, %v4517
        %4519 = vmatmul.bf16.gmra.mxu0 %v4471
        %v4520 = vpop.f32.mrf.mxu0
        %v4521 = vadd.f32 %v4434, %v4520
        %v4522 = vpop.f32.mrf.mxu0
        %v4523 = vadd.f32 %v4434, %v4522
        %4524 = vmatmul.bf16.gmra.mxu0 %v4474
        %v4525 = vpop.f32.mrf.mxu0
        %v4526 = vadd.f32 %v4434, %v4525
        %v4527 = vpop.f32.mrf.mxu0
        %v4528 = vadd.f32 %v4434, %v4527
        %4529 = vmatmul.bf16.gmra.mxu0 %v4477
        %v4530 = vpop.f32.mrf.mxu0
        %v4531 = vadd.f32 %v4434, %v4530
        %v4532 = vpop.f32.mrf.mxu0
        %v4533 = vadd.f32 %v4434, %v4532
        %4534 = vmatmul.bf16.gmra.mxu0 %v4480
        %v4535 = vpop.f32.mrf.mxu0
        %v4536 = vadd.f32 %v4434, %v4535
        %v4537 = vpop.f32.mrf.mxu0
        %v4538 = vadd.f32 %v4434, %v4537
        %4539 = vmatmul.bf16.gmra.mxu0 %v4483
        %v4540 = vpop.f32.mrf.mxu0
        %v4541 = vadd.f32 %v4434, %v4540
        %v4542 = vpop.f32.mrf.mxu0
        %v4543 = vadd.f32 %v4434, %v4542
        %4544 = vmatmul.bf16.gmra.mxu0 %v4486
        %v4545 = vpop.f32.mrf.mxu0
        %v4546 = vadd.f32 %v4434, %v4545
        %v4547 = vpop.f32.mrf.mxu0
        %v4548 = vadd.f32 %v4434, %v4547
        %4549 = vmatmul.bf16.gmra.mxu0 %v4489
        %v4550 = vpop.f32.mrf.mxu0
        %v4551 = vadd.f32 %v4434, %v4550
        %v4552 = vpop.f32.mrf.mxu0
        %v4553 = vadd.f32 %v4434, %v4552
        %4554 = vmatmul.bf16.gmra.mxu0 %v4492
        %v4555 = vpop.f32.mrf.mxu0
        %v4556 = vadd.f32 %v4434, %v4555
        %v4557 = vpop.f32.mrf.mxu0
        %v4558 = vadd.f32 %v4434, %v4557
        %4559 = vmatmul.bf16.gmra.mxu0 %v4495
        %v4560 = vpop.f32.mrf.mxu0
        %v4561 = vadd.f32 %v4434, %v4560
        %v4562 = vpop.f32.mrf.mxu0
        %v4563 = vadd.f32 %v4434, %v4562
        %4564 = vdwg.mxu0
        %v4565 = vmax.f32 %v4511, 0.0
        %v4566 = vmax.f32 %v4513, 0.0
        %v4567 = vmax.f32 %v4516, 0.0
        %v4568 = vmax.f32 %v4518, 0.0
        %v4569 = vmax.f32 %v4521, 0.0
        %v4570 = vmax.f32 %v4523, 0.0
        %v4571 = vmax.f32 %v4526, 0.0
        %v4572 = vmax.f32 %v4528, 0.0
        %v4573 = vmax.f32 %v4531, 0.0
        %v4574 = vmax.f32 %v4533, 0.0
        %v4575 = vmax.f32 %v4536, 0.0
        %v4576 = vmax.f32 %v4538, 0.0
        %v4577 = vmax.f32 %v4541, 0.0
        %v4578 = vmax.f32 %v4543, 0.0
        %v4579 = vmax.f32 %v4546, 0.0
        %v4580 = vmax.f32 %v4548, 0.0
        %v4581 = vmax.f32 %v4551, 0.0
        %v4582 = vmax.f32 %v4553, 0.0
        %v4583 = vmax.f32 %v4556, 0.0
        %v4584 = vmax.f32 %v4558, 0.0
        %v4585 = vmax.f32 %v4561, 0.0
        %v4586 = vmax.f32 %v4563, 0.0
        %v4609 = vrot.slane %v4565, 1
        %v4610 = vrot.slane %v4565, 2
        %v4611 = vrot.slane %v4565, 3
        %v4612 = vrot.slane %v4565, 4
        %v4613 = vrot.slane %v4565, 5
        %v4614 = vrot.slane %v4565, 6
        %v4615 = vrot.slane %v4565, 7
        %v4616 = vrot.slane %v4566, 1
        %v4617 = vrot.slane %v4566, 2
        %v4618 = vrot.slane %v4566, 3
        %v4619 = vrot.slane %v4566, 4
        %v4620 = vrot.slane %v4566, 5
        %v4621 = vrot.slane %v4566, 6
        %v4622 = vrot.slane %v4566, 7
        %v4623 = vrot.slane %v4567, 1
        %v4624 = vrot.slane %v4567, 2
        %v4625 = vrot.slane %v4567, 3
        %v4626 = vrot.slane %v4567, 4
        %v4627 = vrot.slane %v4567, 5
        %v4628 = vrot.slane %v4567, 6
        %v4629 = vrot.slane %v4567, 7
        %v4630 = vrot.slane %v4568, 1
        %v4631 = vrot.slane %v4568, 2
        %v4632 = vrot.slane %v4568, 3
        %v4633 = vrot.slane %v4568, 4
        %v4634 = vrot.slane %v4568, 5
        %v4635 = vrot.slane %v4568, 6
        %v4636 = vrot.slane %v4568, 7
        %v4637 = vrot.slane %v4569, 1
        %v4638 = vrot.slane %v4569, 2
        %v4639 = vrot.slane %v4569, 3
        %v4640 = vrot.slane %v4569, 4
        %v4641 = vrot.slane %v4569, 5
        %v4642 = vrot.slane %v4569, 6
        %v4643 = vrot.slane %v4569, 7
        %v4644 = vrot.slane %v4570, 1
        %v4645 = vrot.slane %v4570, 2
        %v4646 = vrot.slane %v4570, 3
        %v4647 = vrot.slane %v4570, 4
        %v4648 = vrot.slane %v4570, 5
        %v4649 = vrot.slane %v4570, 6
        %v4650 = vrot.slane %v4570, 7
        %v4651 = vrot.slane %v4571, 1
        %v4652 = vrot.slane %v4571, 2
        %v4653 = vrot.slane %v4571, 3
        %v4654 = vrot.slane %v4571, 4
        %v4655 = vrot.slane %v4571, 5
        %v4656 = vrot.slane %v4571, 6
        %v4657 = vrot.slane %v4571, 7
        %v4658 = vrot.slane %v4572, 1
        %v4659 = vrot.slane %v4572, 2
        %v4660 = vrot.slane %v4572, 3
        %v4661 = vrot.slane %v4572, 4
        %v4662 = vrot.slane %v4572, 5
        %v4663 = vrot.slane %v4572, 6
        %v4664 = vrot.slane %v4572, 7
        %v4665 = vrot.slane %v4573, 1
        %v4666 = vrot.slane %v4573, 2
        %v4667 = vrot.slane %v4573, 3
        %v4668 = vrot.slane %v4573, 4
        %v4669 = vrot.slane %v4573, 5
        %v4670 = vrot.slane %v4573, 6
        %v4671 = vrot.slane %v4573, 7
        %v4672 = vrot.slane %v4574, 1
        %v4673 = vrot.slane %v4574, 2
        %v4674 = vrot.slane %v4574, 3
        %v4675 = vrot.slane %v4574, 4
        %v4676 = vrot.slane %v4574, 5
        %v4677 = vrot.slane %v4574, 6
        %v4678 = vrot.slane %v4574, 7
        %v4679 = vrot.slane %v4575, 1
        %v4680 = vrot.slane %v4575, 2
        %v4681 = vrot.slane %v4575, 3
        %v4682 = vrot.slane %v4575, 4
        %v4683 = vrot.slane %v4575, 5
        %v4684 = vrot.slane %v4575, 6
        %v4685 = vrot.slane %v4575, 7
        %v4686 = vrot.slane %v4576, 1
        %v4687 = vrot.slane %v4576, 2
        %v4688 = vrot.slane %v4576, 3
        %v4689 = vrot.slane %v4576, 4
        %v4690 = vrot.slane %v4576, 5
        %v4691 = vrot.slane %v4576, 6
        %v4692 = vrot.slane %v4576, 7
        %v4693 = vrot.slane %v4577, 1
        %v4694 = vrot.slane %v4577, 2
        %v4695 = vrot.slane %v4577, 3
        %v4696 = vrot.slane %v4577, 4
        %v4697 = vrot.slane %v4577, 5
        %v4698 = vrot.slane %v4577, 6
        %v4699 = vrot.slane %v4577, 7
        %v4700 = vrot.slane %v4578, 1
        %v4701 = vrot.slane %v4578, 2
        %v4702 = vrot.slane %v4578, 3
        %v4703 = vrot.slane %v4578, 4
        %v4704 = vrot.slane %v4578, 5
        %v4705 = vrot.slane %v4578, 6
        %v4706 = vrot.slane %v4578, 7
        %v4707 = vrot.slane %v4579, 1
        %v4708 = vrot.slane %v4579, 2
        %v4709 = vrot.slane %v4579, 3
        %v4710 = vrot.slane %v4579, 4
        %v4711 = vrot.slane %v4579, 5
        %v4712 = vrot.slane %v4579, 6
        %v4713 = vrot.slane %v4579, 7
        %v4714 = vrot.slane %v4580, 1
        %v4715 = vrot.slane %v4580, 2
        %v4716 = vrot.slane %v4580, 3
        %v4717 = vrot.slane %v4580, 4
        %v4718 = vrot.slane %v4580, 5
        %v4719 = vrot.slane %v4580, 6
        %v4720 = vrot.slane %v4580, 7
        %v4721 = vrot.slane %v4581, 1
        %v4722 = vrot.slane %v4581, 2
        %v4723 = vrot.slane %v4581, 3
        %v4724 = vrot.slane %v4581, 4
        %v4725 = vrot.slane %v4581, 5
        %v4726 = vrot.slane %v4581, 6
        %v4727 = vrot.slane %v4581, 7
        %v4728 = vrot.slane %v4582, 1
        %v4729 = vrot.slane %v4582, 2
        %v4730 = vrot.slane %v4582, 3
        %v4731 = vrot.slane %v4582, 4
        %v4732 = vrot.slane %v4582, 5
        %v4733 = vrot.slane %v4582, 6
        %v4734 = vrot.slane %v4582, 7
        %v4735 = vrot.slane %v4583, 1
        %v4736 = vrot.slane %v4583, 2
        %v4737 = vrot.slane %v4583, 3
        %v4738 = vrot.slane %v4583, 4
        %v4739 = vrot.slane %v4583, 5
        %v4740 = vrot.slane %v4583, 6
        %v4741 = vrot.slane %v4583, 7
        %v4742 = vrot.slane %v4584, 1
        %v4743 = vrot.slane %v4584, 2
        %v4744 = vrot.slane %v4584, 3
        %v4745 = vrot.slane %v4584, 4
        %v4746 = vrot.slane %v4584, 5
        %v4747 = vrot.slane %v4584, 6
        %v4748 = vrot.slane %v4584, 7
        %v4749 = vrot.slane %v4585, 1
        %v4750 = vrot.slane %v4585, 2
        %v4751 = vrot.slane %v4585, 3
        %v4752 = vrot.slane %v4585, 4
        %v4753 = vrot.slane %v4585, 5
        %v4754 = vrot.slane %v4585, 6
        %v4755 = vrot.slane %v4585, 7
        %4756 = vst [vmem:[#allocation1] ss:$9 sm:$0xff] %v4565
        %s4757 = scalar_lea.vmem [#allocation1], 1
        %4758 = vst [vmem:[%s4757] ss:$9 sm:$0xff] %v4609
        %s4759 = scalar_lea.vmem [#allocation1], 2
        %4760 = vst [vmem:[%s4759] ss:$9 sm:$0xff] %v4610
        %s4761 = scalar_lea.vmem [#allocation1], 3
        %4762 = vst [vmem:[%s4761] ss:$9 sm:$0xff] %v4611
        %s4763 = scalar_lea.vmem [#allocation1], 4
        %4764 = vst [vmem:[%s4763] ss:$9 sm:$0xff] %v4612
        %s4765 = scalar_lea.vmem [#allocation1], 5
        %4766 = vst [vmem:[%s4765] ss:$9 sm:$0xff] %v4613
        %s4767 = scalar_lea.vmem [#allocation1], 6
        %4768 = vst [vmem:[%s4767] ss:$9 sm:$0xff] %v4614
        %s4769 = scalar_lea.vmem [#allocation1], 7
        %4770 = vst [vmem:[%s4769] ss:$9 sm:$0xff] %v4615
        %v4771 = vld [vmem:[#allocation1] sm:$0xff]
        %4772 = vst [vmem:[#allocation1] ss:$9 sm:$0xff] %v4566
        %4773 = vst [vmem:[%s4757] ss:$9 sm:$0xff] %v4616
        %4774 = vst [vmem:[%s4759] ss:$9 sm:$0xff] %v4617
        %4775 = vst [vmem:[%s4761] ss:$9 sm:$0xff] %v4618
        %4776 = vst [vmem:[%s4763] ss:$9 sm:$0xff] %v4619
        %v4777 = vld [vmem:[#allocation1] sm:$0xff]
        %4778 = vst [vmem:[#allocation1] ss:$9 sm:$0xff] %v4620
        %4779 = vst [vmem:[%s4757] ss:$9 sm:$0xff] %v4621
        %4780 = vst [vmem:[%s4759] ss:$9 sm:$0xff] %v4622
        %4781 = vst [vmem:[%s4761] ss:$9 sm:$0xff] %v4567
        %4782 = vst [vmem:[%s4763] ss:$9 sm:$0xff] %v4623
        %4783 = vst [vmem:[%s4765] ss:$9 sm:$0xff] %v4624
        %4784 = vst [vmem:[%s4767] ss:$9 sm:$0xff] %v4625
        %4785 = vst [vmem:[%s4769] ss:$9 sm:$0xff] %v4626
        %v4786 = vld [vmem:[#allocation1] sm:$0xff]
        %4787 = vst [vmem:[#allocation1] ss:$9 sm:$0xff] %v4627
        %4788 = vst [vmem:[%s4757] ss:$9 sm:$0xff] %v4628
        %4789 = vst [vmem:[%s4759] ss:$9 sm:$0xff] %v4629
        %4790 = vst [vmem:[%s4761] ss:$9 sm:$0xff] %v4568
        %4791 = vst [vmem:[%s4763] ss:$9 sm:$0xff] %v4630
        %v4792 = vld [vmem:[#allocation1] sm:$0xff]
        %4793 = vst [vmem:[#allocation1] ss:$9 sm:$0xff] %v4631
        %4794 = vst [vmem:[%s4757] ss:$9 sm:$0xff] %v4632
        %4795 = vst [vmem:[%s4759] ss:$9 sm:$0xff] %v4633
        %4796 = vst [vmem:[%s4761] ss:$9 sm:$0xff] %v4634
        %4797 = vst [vmem:[%s4763] ss:$9 sm:$0xff] %v4635
        %4798 = vst [vmem:[%s4765] ss:$9 sm:$0xff] %v4636
        %4799 = vst [vmem:[%s4767] ss:$9 sm:$0xff] %v4569
        %4800 = vst [vmem:[%s4769] ss:$9 sm:$0xff] %v4637
        %v4801 = vld [vmem:[#allocation1] sm:$0xff]
        %4802 = vst [vmem:[#allocation1] ss:$9 sm:$0xff] %v4638
        %4803 = vst [vmem:[%s4757] ss:$9 sm:$0xff] %v4639
        %4804 = vst [vmem:[%s4759] ss:$9 sm:$0xff] %v4640
        %4805 = vst [vmem:[%s4761] ss:$9 sm:$0xff] %v4641
        %4806 = vst [vmem:[%s4763] ss:$9 sm:$0xff] %v4642
        %v4807 = vld [vmem:[#allocation1] sm:$0xff]
        %4808 = vst [vmem:[#allocation1] ss:$9 sm:$0xff] %v4643
        %4809 = vst [vmem:[%s4757] ss:$9 sm:$0xff] %v4570
        %4810 = vst [vmem:[%s4759] ss:$9 sm:$0xff] %v4644
        %4811 = vst [vmem:[%s4761] ss:$9 sm:$0xff] %v4645
        %4812 = vst [vmem:[%s4763] ss:$9 sm:$0xff] %v4646
        %4813 = vst [vmem:[%s4765] ss:$9 sm:$0xff] %v4647
        %4814 = vst [vmem:[%s4767] ss:$9 sm:$0xff] %v4648
        %4815 = vst [vmem:[%s4769] ss:$9 sm:$0xff] %v4649
        %v4816 = vld [vmem:[#allocation1] sm:$0xff]
        %4817 = vst [vmem:[#allocation1] ss:$9 sm:$0xff] %v4650
        %4818 = vst [vmem:[%s4757] ss:$9 sm:$0xff] %v4571
        %4819 = vst [vmem:[%s4759] ss:$9 sm:$0xff] %v4651
        %4820 = vst [vmem:[%s4761] ss:$9 sm:$0xff] %v4652
        %4821 = vst [vmem:[%s4763] ss:$9 sm:$0xff] %v4653
        %v4822 = vld [vmem:[#allocation1] sm:$0xff]
        %4823 = vst [vmem:[#allocation1] ss:$9 sm:$0xff] %v4654
        %4824 = vst [vmem:[%s4757] ss:$9 sm:$0xff] %v4655
        %4825 = vst [vmem:[%s4759] ss:$9 sm:$0xff] %v4656
        %4826 = vst [vmem:[%s4761] ss:$9 sm:$0xff] %v4657
        %4827 = vst [vmem:[%s4763] ss:$9 sm:$0xff] %v4572
        %4828 = vst [vmem:[%s4765] ss:$9 sm:$0xff] %v4658
        %4829 = vst [vmem:[%s4767] ss:$9 sm:$0xff] %v4659
        %4830 = vst [vmem:[%s4769] ss:$9 sm:$0xff] %v4660
        %v4831 = vld [vmem:[#allocation1] sm:$0xff]
        %4832 = vst [vmem:[#allocation1] ss:$9 sm:$0xff] %v4661
        %4833 = vst [vmem:[%s4757] ss:$9 sm:$0xff] %v4662
        %4834 = vst [vmem:[%s4759] ss:$9 sm:$0xff] %v4663
        %4835 = vst [vmem:[%s4761] ss:$9 sm:$0xff] %v4664
        %4836 = vst [vmem:[%s4763] ss:$9 sm:$0xff] %v4573
        %v4837 = vld [vmem:[#allocation1] sm:$0xff]
        %4838 = vst [vmem:[#allocation1] ss:$9 sm:$0xff] %v4665
        %4839 = vst [vmem:[%s4757] ss:$9 sm:$0xff] %v4666
        %4840 = vst [vmem:[%s4759] ss:$9 sm:$0xff] %v4667
        %4841 = vst [vmem:[%s4761] ss:$9 sm:$0xff] %v4668
        %4842 = vst [vmem:[%s4763] ss:$9 sm:$0xff] %v4669
        %4843 = vst [vmem:[%s4765] ss:$9 sm:$0xff] %v4670
        %4844 = vst [vmem:[%s4767] ss:$9 sm:$0xff] %v4671
        %4845 = vst [vmem:[%s4769] ss:$9 sm:$0xff] %v4574
        %v4846 = vld [vmem:[#allocation1] sm:$0xff]
        %4847 = vst [vmem:[#allocation1] ss:$9 sm:$0xff] %v4672
        %4848 = vst [vmem:[%s4757] ss:$9 sm:$0xff] %v4673
        %4849 = vst [vmem:[%s4759] ss:$9 sm:$0xff] %v4674
        %4850 = vst [vmem:[%s4761] ss:$9 sm:$0xff] %v4675
        %4851 = vst [vmem:[%s4763] ss:$9 sm:$0xff] %v4676
        %v4852 = vld [vmem:[#allocation1] sm:$0xff]
        %4853 = vst [vmem:[#allocation1] ss:$9 sm:$0xff] %v4677
        %4854 = vst [vmem:[%s4757] ss:$9 sm:$0xff] %v4678
        %4855 = vst [vmem:[%s4759] ss:$9 sm:$0xff] %v4575
        %4856 = vst [vmem:[%s4761] ss:$9 sm:$0xff] %v4679
        %4857 = vst [vmem:[%s4763] ss:$9 sm:$0xff] %v4680
        %4858 = vst [vmem:[%s4765] ss:$9 sm:$0xff] %v4681
        %4859 = vst [vmem:[%s4767] ss:$9 sm:$0xff] %v4682
        %4860 = vst [vmem:[%s4769] ss:$9 sm:$0xff] %v4683
        %v4861 = vld [vmem:[#allocation1] sm:$0xff]
        %4862 = vst [vmem:[#allocation1] ss:$9 sm:$0xff] %v4684
        %4863 = vst [vmem:[%s4757] ss:$9 sm:$0xff] %v4685
        %4864 = vst [vmem:[%s4759] ss:$9 sm:$0xff] %v4576
        %4865 = vst [vmem:[%s4761] ss:$9 sm:$0xff] %v4686
        %4866 = vst [vmem:[%s4763] ss:$9 sm:$0xff] %v4687
        %v4867 = vld [vmem:[#allocation1] sm:$0xff]
        %4868 = vst [vmem:[#allocation1] ss:$9 sm:$0xff] %v4688
        %4869 = vst [vmem:[%s4757] ss:$9 sm:$0xff] %v4689
        %4870 = vst [vmem:[%s4759] ss:$9 sm:$0xff] %v4690
        %4871 = vst [vmem:[%s4761] ss:$9 sm:$0xff] %v4691
        %4872 = vst [vmem:[%s4763] ss:$9 sm:$0xff] %v4692
        %4873 = vst [vmem:[%s4765] ss:$9 sm:$0xff] %v4577
        %4874 = vst [vmem:[%s4767] ss:$9 sm:$0xff] %v4693
        %4875 = vst [vmem:[%s4769] ss:$9 sm:$0xff] %v4694
        %v4876 = vld [vmem:[#allocation1] sm:$0xff]
        %4877 = vst [vmem:[#allocation1] ss:$9 sm:$0xff] %v4695
        %4878 = vst [vmem:[%s4757] ss:$9 sm:$0xff] %v4696
        %4879 = vst [vmem:[%s4759] ss:$9 sm:$0xff] %v4697
        %4880 = vst [vmem:[%s4761] ss:$9 sm:$0xff] %v4698
        %4881 = vst [vmem:[%s4763] ss:$9 sm:$0xff] %v4699
        %v4882 = vld [vmem:[#allocation1] sm:$0xff]
        %4883 = vst [vmem:[#allocation1] ss:$9 sm:$0xff] %v4578
        %4884 = vst [vmem:[%s4757] ss:$9 sm:$0xff] %v4700
        %4885 = vst [vmem:[%s4759] ss:$9 sm:$0xff] %v4701
        %4886 = vst [vmem:[%s4761] ss:$9 sm:$0xff] %v4702
        %4887 = vst [vmem:[%s4763] ss:$9 sm:$0xff] %v4703
        %4888 = vst [vmem:[%s4765] ss:$9 sm:$0xff] %v4704
        %4889 = vst [vmem:[%s4767] ss:$9 sm:$0xff] %v4705
        %4890 = vst [vmem:[%s4769] ss:$9 sm:$0xff] %v4706
        %v4891 = vld [vmem:[#allocation1] sm:$0xff]
        %4892 = vst [vmem:[#allocation1] ss:$9 sm:$0xff] %v4579
        %4893 = vst [vmem:[%s4757] ss:$9 sm:$0xff] %v4707
        %4894 = vst [vmem:[%s4759] ss:$9 sm:$0xff] %v4708
        %4895 = vst [vmem:[%s4761] ss:$9 sm:$0xff] %v4709
        %4896 = vst [vmem:[%s4763] ss:$9 sm:$0xff] %v4710
        %v4897 = vld [vmem:[#allocation1] sm:$0xff]
        %4898 = vst [vmem:[#allocation1] ss:$9 sm:$0xff] %v4711
        %4899 = vst [vmem:[%s4757] ss:$9 sm:$0xff] %v4712
        %4900 = vst [vmem:[%s4759] ss:$9 sm:$0xff] %v4713
        %4901 = vst [vmem:[%s4761] ss:$9 sm:$0xff] %v4580
        %4902 = vst [vmem:[%s4763] ss:$9 sm:$0xff] %v4714
        %4903 = vst [vmem:[%s4765] ss:$9 sm:$0xff] %v4715
        %4904 = vst [vmem:[%s4767] ss:$9 sm:$0xff] %v4716
        %4905 = vst [vmem:[%s4769] ss:$9 sm:$0xff] %v4717
        %v4906 = vld [vmem:[#allocation1] sm:$0xff]
        %4907 = vst [vmem:[#allocation1] ss:$9 sm:$0xff] %v4718
        %4908 = vst [vmem:[%s4757] ss:$9 sm:$0xff] %v4719
        %4909 = vst [vmem:[%s4759] ss:$9 sm:$0xff] %v4720
        %4910 = vst [vmem:[%s4761] ss:$9 sm:$0xff] %v4581
        %4911 = vst [vmem:[%s4763] ss:$9 sm:$0xff] %v4721
        %v4912 = vld [vmem:[#allocation1] sm:$0xff]
        %4913 = vst [vmem:[#allocation1] ss:$9 sm:$0xff] %v4722
        %4914 = vst [vmem:[%s4757] ss:$9 sm:$0xff] %v4723
        %4915 = vst [vmem:[%s4759] ss:$9 sm:$0xff] %v4724
        %4916 = vst [vmem:[%s4761] ss:$9 sm:$0xff] %v4725
        %4917 = vst [vmem:[%s4763] ss:$9 sm:$0xff] %v4726
        %4918 = vst [vmem:[%s4765] ss:$9 sm:$0xff] %v4727
        %4919 = vst [vmem:[%s4767] ss:$9 sm:$0xff] %v4582
        %4920 = vst [vmem:[%s4769] ss:$9 sm:$0xff] %v4728
        %v4921 = vld [vmem:[#allocation1] sm:$0xff]
        %4922 = vst [vmem:[#allocation1] ss:$9 sm:$0xff] %v4729
        %4923 = vst [vmem:[%s4757] ss:$9 sm:$0xff] %v4730
        %4924 = vst [vmem:[%s4759] ss:$9 sm:$0xff] %v4731
        %4925 = vst [vmem:[%s4761] ss:$9 sm:$0xff] %v4732
        %4926 = vst [vmem:[%s4763] ss:$9 sm:$0xff] %v4733
        %v4927 = vld [vmem:[#allocation1] sm:$0xff]
        %4928 = vst [vmem:[#allocation1] ss:$9 sm:$0xff] %v4734
        %4929 = vst [vmem:[%s4757] ss:$9 sm:$0xff] %v4583
        %4930 = vst [vmem:[%s4759] ss:$9 sm:$0xff] %v4735
        %4931 = vst [vmem:[%s4761] ss:$9 sm:$0xff] %v4736
        %4932 = vst [vmem:[%s4763] ss:$9 sm:$0xff] %v4737
        %4933 = vst [vmem:[%s4765] ss:$9 sm:$0xff] %v4738
        %4934 = vst [vmem:[%s4767] ss:$9 sm:$0xff] %v4739
        %4935 = vst [vmem:[%s4769] ss:$9 sm:$0xff] %v4740
        %v4936 = vld [vmem:[#allocation1] sm:$0xff]
        %4937 = vst [vmem:[#allocation1] ss:$9 sm:$0xff] %v4741
        %4938 = vst [vmem:[%s4757] ss:$9 sm:$0xff] %v4584
        %4939 = vst [vmem:[%s4759] ss:$9 sm:$0xff] %v4742
        %4940 = vst [vmem:[%s4761] ss:$9 sm:$0xff] %v4743
        %4941 = vst [vmem:[%s4763] ss:$9 sm:$0xff] %v4744
        %v4942 = vld [vmem:[#allocation1] sm:$0xff]
        %4943 = vst [vmem:[#allocation1] ss:$9 sm:$0xff] %v4745
        %4944 = vst [vmem:[%s4757] ss:$9 sm:$0xff] %v4746
        %4945 = vst [vmem:[%s4759] ss:$9 sm:$0xff] %v4747
        %4946 = vst [vmem:[%s4761] ss:$9 sm:$0xff] %v4748
        %4947 = vst [vmem:[%s4763] ss:$9 sm:$0xff] %v4585
        %4948 = vst [vmem:[%s4765] ss:$9 sm:$0xff] %v4749
        %4949 = vst [vmem:[%s4767] ss:$9 sm:$0xff] %v4750
        %4950 = vst [vmem:[%s4769] ss:$9 sm:$0xff] %v4751
        %v4951 = vld [vmem:[#allocation1] sm:$0xff]
        %4952 = vst [vmem:[#allocation1] ss:$9 sm:$0xff] %v4752
        %4953 = vst [vmem:[%s4757] ss:$9 sm:$0xff] %v4753
        %4954 = vst [vmem:[%s4759] ss:$9 sm:$0xff] %v4754
        %4955 = vst [vmem:[%s4761] ss:$9 sm:$0xff] %v4755
        %4956 = vst [vmem:[%s4763] ss:$9 sm:$0xff] %v4586
        %v4957 = vld [vmem:[#allocation1] sm:$0xff]
        %s4984 = scalar_lea.vmem [#allocation3], 16
        %4985 = vst.msk [vmem:[%s4984 + $0x1] sm:$0xff] %vm2680, %v4771
        %vm4986 = vcmask 61440
        %4987 = vst.msk [vmem:[%s4984 + $0x9] sm:$0x1f] %vm4986, %v4777
        %4988 = vst.msk [vmem:[%s4984 + $0x11] sm:$0xff] %vm2680, %v4786
        %4989 = vst.msk [vmem:[%s4984 + $0x19] sm:$0x1f] %vm4986, %v4792
        %4990 = vst.msk [vmem:[%s4984 + $0x21] sm:$0xff] %vm2680, %v4801
        %4991 = vst.msk [vmem:[%s4984 + $0x29] sm:$0x1f] %vm4986, %v4807
        %4992 = vst.msk [vmem:[%s4984 + $0x31] sm:$0xff] %vm2680, %v4816
        %4993 = vst.msk [vmem:[%s4984 + $0x39] sm:$0x1f] %vm4986, %v4822
        %4994 = vst.msk [vmem:[%s4984 + $0x41] sm:$0xff] %vm2680, %v4831
        %4995 = vst.msk [vmem:[%s4984 + $0x49] sm:$0x1f] %vm4986, %v4837
        %4996 = vst.msk [vmem:[%s4984 + $0x51] sm:$0xff] %vm2680, %v4846
        %4997 = vst.msk [vmem:[%s4984 + $0x59] sm:$0x1f] %vm4986, %v4852
        %4998 = vst.msk [vmem:[%s4984 + $0x61] sm:$0xff] %vm2680, %v4861
        %4999 = vst.msk [vmem:[%s4984 + $0x69] sm:$0x1f] %vm4986, %v4867
        %5000 = vst.msk [vmem:[%s4984 + $0x71] sm:$0xff] %vm2680, %v4876
        %5001 = vst.msk [vmem:[%s4984 + $0x79] sm:$0x1f] %vm4986, %v4882
        %5002 = vst.msk [vmem:[%s4984 + $0x81] sm:$0xff] %vm2680, %v4891
        %5003 = vst.msk [vmem:[%s4984 + $0x89] sm:$0x1f] %vm4986, %v4897
        %5004 = vst.msk [vmem:[%s4984 + $0x91] sm:$0xff] %vm2680, %v4906
        %5005 = vst.msk [vmem:[%s4984 + $0x99] sm:$0x1f] %vm4986, %v4912
        %5006 = vst.msk [vmem:[%s4984 + $0xa1] sm:$0xff] %vm2680, %v4921
        %5007 = vst.msk [vmem:[%s4984 + $0xa9] sm:$0x1f] %vm4986, %v4927
        %5008 = vst.msk [vmem:[%s4984 + $0xb1] sm:$0xff] %vm2680, %v4936
        %5009 = vst.msk [vmem:[%s4984 + $0xb9] sm:$0x1f] %vm4986, %v4942
        %5010 = vst.msk [vmem:[%s4984 + $0xc1] sm:$0xff] %vm2680, %v4951
        %5011 = vst.msk [vmem:[%s4984 + $0xc9] sm:$0x1f] %vm4986, %v4957
        %v5012 = vld [vmem:[#allocation3] sm:$0xff]
        %v5013 = vld [vmem:[#allocation3 + $0x8] sm:$0x1f]
        %v5014 = vld [vmem:[#allocation3 + $0x10] sm:$0xff]
        %v5015 = vld [vmem:[#allocation3 + $0x18] sm:$0x1f]
        %v5016 = vld [vmem:[#allocation3 + $0x20] sm:$0xff]
        %v5017 = vld [vmem:[#allocation3 + $0x28] sm:$0x1f]
        %v5018 = vld [vmem:[#allocation3 + $0x30] sm:$0xff]
        %v5019 = vld [vmem:[#allocation3 + $0x38] sm:$0x1f]
        %v5020 = vld [vmem:[#allocation3 + $0x40] sm:$0xff]
        %v5021 = vld [vmem:[#allocation3 + $0x48] sm:$0x1f]
        %v5022 = vld [vmem:[#allocation3 + $0x50] sm:$0xff]
        %v5023 = vld [vmem:[#allocation3 + $0x58] sm:$0x1f]
        %v5024 = vld [vmem:[#allocation3 + $0x60] sm:$0xff]
        %v5025 = vld [vmem:[#allocation3 + $0x68] sm:$0x1f]
        %v5026 = vld [vmem:[#allocation3 + $0x70] sm:$0xff]
        %v5027 = vld [vmem:[#allocation3 + $0x78] sm:$0x1f]
        %v5028 = vld [vmem:[#allocation3 + $0x80] sm:$0xff]
        %v5029 = vld [vmem:[#allocation3 + $0x88] sm:$0x1f]
        %v5030 = vld [vmem:[#allocation3 + $0x90] sm:$0xff]
        %v5031 = vld [vmem:[#allocation3 + $0x98] sm:$0x1f]
        %v5032 = vld [vmem:[#allocation3 + $0xa0] sm:$0xff]
        %v5033 = vld [vmem:[#allocation3 + $0xa8] sm:$0x1f]
        %v5034 = vld [vmem:[#allocation3 + $0xb0] sm:$0xff]
        %v5035 = vld [vmem:[#allocation3 + $0xb8] sm:$0x1f]
        %v5036 = vld [vmem:[#allocation3 + $0xc0] sm:$0xff]
        %v5037 = vld [vmem:[#allocation3 + $0xc8] sm:$0x1f]
        %v5038 = vld [vmem:[#allocation3 + $0x1] sm:$0xff]
        %v5039 = vld [vmem:[#allocation3 + $0x9] sm:$0x1f]
        %v5040 = vld [vmem:[#allocation3 + $0x11] sm:$0xff]
        %v5041 = vld [vmem:[#allocation3 + $0x19] sm:$0x1f]
        %v5042 = vld [vmem:[#allocation3 + $0x21] sm:$0xff]
        %v5043 = vld [vmem:[#allocation3 + $0x29] sm:$0x1f]
        %v5044 = vld [vmem:[#allocation3 + $0x31] sm:$0xff]
        %v5045 = vld [vmem:[#allocation3 + $0x39] sm:$0x1f]
        %v5046 = vld [vmem:[#allocation3 + $0x41] sm:$0xff]
        %v5047 = vld [vmem:[#allocation3 + $0x49] sm:$0x1f]
        %v5048 = vld [vmem:[#allocation3 + $0x51] sm:$0xff]
        %v5049 = vld [vmem:[#allocation3 + $0x59] sm:$0x1f]
        %v5050 = vld [vmem:[#allocation3 + $0x61] sm:$0xff]
        %v5051 = vld [vmem:[#allocation3 + $0x69] sm:$0x1f]
        %v5052 = vld [vmem:[#allocation3 + $0x71] sm:$0xff]
        %v5053 = vld [vmem:[#allocation3 + $0x79] sm:$0x1f]
        %v5054 = vld [vmem:[#allocation3 + $0x81] sm:$0xff]
        %v5055 = vld [vmem:[#allocation3 + $0x89] sm:$0x1f]
        %v5056 = vld [vmem:[#allocation3 + $0x91] sm:$0xff]
        %v5057 = vld [vmem:[#allocation3 + $0x99] sm:$0x1f]
        %v5058 = vld [vmem:[#allocation3 + $0xa1] sm:$0xff]
        %v5059 = vld [vmem:[#allocation3 + $0xa9] sm:$0x1f]
        %v5060 = vld [vmem:[#allocation3 + $0xb1] sm:$0xff]
        %v5061 = vld [vmem:[#allocation3 + $0xb9] sm:$0x1f]
        %v5062 = vld [vmem:[#allocation3 + $0xc1] sm:$0xff]
        %v5063 = vld [vmem:[#allocation3 + $0xc9] sm:$0x1f]
        %v5064 = vld [vmem:[#allocation3 + $0x2] sm:$0xff]
        %v5065 = vld [vmem:[#allocation3 + $0xa] sm:$0x1f]
        %v5066 = vld [vmem:[#allocation3 + $0x12] sm:$0xff]
        %v5067 = vld [vmem:[#allocation3 + $0x1a] sm:$0x1f]
        %v5068 = vld [vmem:[#allocation3 + $0x22] sm:$0xff]
        %v5069 = vld [vmem:[#allocation3 + $0x2a] sm:$0x1f]
        %v5070 = vld [vmem:[#allocation3 + $0x32] sm:$0xff]
        %v5071 = vld [vmem:[#allocation3 + $0x3a] sm:$0x1f]
        %v5072 = vld [vmem:[#allocation3 + $0x42] sm:$0xff]
        %v5073 = vld [vmem:[#allocation3 + $0x4a] sm:$0x1f]
        %v5074 = vld [vmem:[#allocation3 + $0x52] sm:$0xff]
        %v5075 = vld [vmem:[#allocation3 + $0x5a] sm:$0x1f]
        %v5076 = vld [vmem:[#allocation3 + $0x62] sm:$0xff]
        %v5077 = vld [vmem:[#allocation3 + $0x6a] sm:$0x1f]
        %v5078 = vld [vmem:[#allocation3 + $0x72] sm:$0xff]
        %v5079 = vld [vmem:[#allocation3 + $0x7a] sm:$0x1f]
        %v5080 = vld [vmem:[#allocation3 + $0x82] sm:$0xff]
        %v5081 = vld [vmem:[#allocation3 + $0x8a] sm:$0x1f]
        %v5082 = vld [vmem:[#allocation3 + $0x92] sm:$0xff]
        %v5083 = vld [vmem:[#allocation3 + $0x9a] sm:$0x1f]
        %v5084 = vld [vmem:[#allocation3 + $0xa2] sm:$0xff]
        %v5085 = vld [vmem:[#allocation3 + $0xaa] sm:$0x1f]
        %v5086 = vld [vmem:[#allocation3 + $0xb2] sm:$0xff]
        %v5087 = vld [vmem:[#allocation3 + $0xba] sm:$0x1f]
        %v5088 = vld [vmem:[#allocation3 + $0xc2] sm:$0xff]
        %v5089 = vld [vmem:[#allocation3 + $0xca] sm:$0x1f]
        %v5090 = vld [vmem:[%s4984] sm:$0xff]
        %v5091 = vld [vmem:[%s4984 + $0x8] sm:$0x1f]
        %v5092 = vld [vmem:[%s4984 + $0x10] sm:$0xff]
        %v5093 = vld [vmem:[%s4984 + $0x18] sm:$0x1f]
        %v5094 = vld [vmem:[%s4984 + $0x20] sm:$0xff]
        %v5095 = vld [vmem:[%s4984 + $0x28] sm:$0x1f]
        %v5096 = vld [vmem:[%s4984 + $0x30] sm:$0xff]
        %v5097 = vld [vmem:[%s4984 + $0x38] sm:$0x1f]
        %v5098 = vld [vmem:[%s4984 + $0x40] sm:$0xff]
        %v5099 = vld [vmem:[%s4984 + $0x48] sm:$0x1f]
        %v5100 = vld [vmem:[%s4984 + $0x50] sm:$0xff]
        %v5101 = vld [vmem:[%s4984 + $0x58] sm:$0x1f]
        %v5102 = vld [vmem:[%s4984 + $0x60] sm:$0xff]
        %v5103 = vld [vmem:[%s4984 + $0x68] sm:$0x1f]
        %v5104 = vld [vmem:[%s4984 + $0x70] sm:$0xff]
        %v5105 = vld [vmem:[%s4984 + $0x78] sm:$0x1f]
        %v5106 = vld [vmem:[%s4984 + $0x80] sm:$0xff]
        %v5107 = vld [vmem:[%s4984 + $0x88] sm:$0x1f]
        %v5108 = vld [vmem:[%s4984 + $0x90] sm:$0xff]
        %v5109 = vld [vmem:[%s4984 + $0x98] sm:$0x1f]
        %v5110 = vld [vmem:[%s4984 + $0xa0] sm:$0xff]
        %v5111 = vld [vmem:[%s4984 + $0xa8] sm:$0x1f]
        %v5112 = vld [vmem:[%s4984 + $0xb0] sm:$0xff]
        %v5113 = vld [vmem:[%s4984 + $0xb8] sm:$0x1f]
        %v5114 = vld [vmem:[%s4984 + $0xc0] sm:$0xff]
        %v5115 = vld [vmem:[%s4984 + $0xc8] sm:$0x1f]
        %v5116 = vld [vmem:[%s4984 + $0x1] sm:$0xff]
        %v5117 = vld [vmem:[%s4984 + $0x9] sm:$0x1f]
        %v5118 = vld [vmem:[%s4984 + $0x11] sm:$0xff]
        %v5119 = vld [vmem:[%s4984 + $0x19] sm:$0x1f]
        %v5120 = vld [vmem:[%s4984 + $0x21] sm:$0xff]
        %v5121 = vld [vmem:[%s4984 + $0x29] sm:$0x1f]
        %v5122 = vld [vmem:[%s4984 + $0x31] sm:$0xff]
        %v5123 = vld [vmem:[%s4984 + $0x39] sm:$0x1f]
        %v5124 = vld [vmem:[%s4984 + $0x41] sm:$0xff]
        %v5125 = vld [vmem:[%s4984 + $0x49] sm:$0x1f]
        %v5126 = vld [vmem:[%s4984 + $0x51] sm:$0xff]
        %v5127 = vld [vmem:[%s4984 + $0x59] sm:$0x1f]
        %v5128 = vld [vmem:[%s4984 + $0x61] sm:$0xff]
        %v5129 = vld [vmem:[%s4984 + $0x69] sm:$0x1f]
        %v5130 = vld [vmem:[%s4984 + $0x71] sm:$0xff]
        %v5131 = vld [vmem:[%s4984 + $0x79] sm:$0x1f]
        %v5132 = vld [vmem:[%s4984 + $0x81] sm:$0xff]
        %v5133 = vld [vmem:[%s4984 + $0x89] sm:$0x1f]
        %v5134 = vld [vmem:[%s4984 + $0x91] sm:$0xff]
        %v5135 = vld [vmem:[%s4984 + $0x99] sm:$0x1f]
        %v5136 = vld [vmem:[%s4984 + $0xa1] sm:$0xff]
        %v5137 = vld [vmem:[%s4984 + $0xa9] sm:$0x1f]
        %v5138 = vld [vmem:[%s4984 + $0xb1] sm:$0xff]
        %v5139 = vld [vmem:[%s4984 + $0xb9] sm:$0x1f]
        %v5140 = vld [vmem:[%s4984 + $0xc1] sm:$0xff]
        %v5141 = vld [vmem:[%s4984 + $0xc9] sm:$0x1f]
        %v5142 = vld [vmem:[%s4984 + $0x2] sm:$0xff]
        %v5143 = vld [vmem:[%s4984 + $0xa] sm:$0x1f]
        %v5144 = vld [vmem:[%s4984 + $0x12] sm:$0xff]
        %v5145 = vld [vmem:[%s4984 + $0x1a] sm:$0x1f]
        %v5146 = vld [vmem:[%s4984 + $0x22] sm:$0xff]
        %v5147 = vld [vmem:[%s4984 + $0x2a] sm:$0x1f]
        %v5148 = vld [vmem:[%s4984 + $0x32] sm:$0xff]
        %v5149 = vld [vmem:[%s4984 + $0x3a] sm:$0x1f]
        %v5150 = vld [vmem:[%s4984 + $0x42] sm:$0xff]
        %v5151 = vld [vmem:[%s4984 + $0x4a] sm:$0x1f]
        %v5152 = vld [vmem:[%s4984 + $0x52] sm:$0xff]
        %v5153 = vld [vmem:[%s4984 + $0x5a] sm:$0x1f]
        %v5154 = vld [vmem:[%s4984 + $0x62] sm:$0xff]
        %v5155 = vld [vmem:[%s4984 + $0x6a] sm:$0x1f]
        %v5156 = vld [vmem:[%s4984 + $0x72] sm:$0xff]
        %v5157 = vld [vmem:[%s4984 + $0x7a] sm:$0x1f]
        %v5158 = vld [vmem:[%s4984 + $0x82] sm:$0xff]
        %v5159 = vld [vmem:[%s4984 + $0x8a] sm:$0x1f]
        %v5160 = vld [vmem:[%s4984 + $0x92] sm:$0xff]
        %v5161 = vld [vmem:[%s4984 + $0x9a] sm:$0x1f]
        %v5162 = vld [vmem:[%s4984 + $0xa2] sm:$0xff]
        %v5163 = vld [vmem:[%s4984 + $0xaa] sm:$0x1f]
        %v5164 = vld [vmem:[%s4984 + $0xb2] sm:$0xff]
        %v5165 = vld [vmem:[%s4984 + $0xba] sm:$0x1f]
        %v5166 = vld [vmem:[%s4984 + $0xc2] sm:$0xff]
        %v5167 = vld [vmem:[%s4984 + $0xca] sm:$0x1f]
        %s5168 = scalar_lea.vmem [#allocation3], 32
        %v5169 = vld [vmem:[%s5168] sm:$0xff]
        %v5170 = vld [vmem:[%s5168 + $0x8] sm:$0x1f]
        %v5171 = vld [vmem:[%s5168 + $0x10] sm:$0xff]
        %v5172 = vld [vmem:[%s5168 + $0x18] sm:$0x1f]
        %v5173 = vld [vmem:[%s5168 + $0x20] sm:$0xff]
        %v5174 = vld [vmem:[%s5168 + $0x28] sm:$0x1f]
        %v5175 = vld [vmem:[%s5168 + $0x30] sm:$0xff]
        %v5176 = vld [vmem:[%s5168 + $0x38] sm:$0x1f]
        %v5177 = vld [vmem:[%s5168 + $0x40] sm:$0xff]
        %v5178 = vld [vmem:[%s5168 + $0x48] sm:$0x1f]
        %v5179 = vld [vmem:[%s5168 + $0x50] sm:$0xff]
        %v5180 = vld [vmem:[%s5168 + $0x58] sm:$0x1f]
        %v5181 = vld [vmem:[%s5168 + $0x60] sm:$0xff]
        %v5182 = vld [vmem:[%s5168 + $0x68] sm:$0x1f]
        %v5183 = vld [vmem:[%s5168 + $0x70] sm:$0xff]
        %v5184 = vld [vmem:[%s5168 + $0x78] sm:$0x1f]
        %v5185 = vld [vmem:[%s5168 + $0x80] sm:$0xff]
        %v5186 = vld [vmem:[%s5168 + $0x88] sm:$0x1f]
        %v5187 = vld [vmem:[%s5168 + $0x90] sm:$0xff]
        %v5188 = vld [vmem:[%s5168 + $0x98] sm:$0x1f]
        %v5189 = vld [vmem:[%s5168 + $0xa0] sm:$0xff]
        %v5190 = vld [vmem:[%s5168 + $0xa8] sm:$0x1f]
        %v5191 = vld [vmem:[%s5168 + $0xb0] sm:$0xff]
        %v5192 = vld [vmem:[%s5168 + $0xb8] sm:$0x1f]
        %v5193 = vld [vmem:[%s5168 + $0xc0] sm:$0xff]
        %v5194 = vld [vmem:[%s5168 + $0xc8] sm:$0x1f]
        %v5195 = vld [vmem:[%s5168 + $0x1] sm:$0xff]
        %v5196 = vld [vmem:[%s5168 + $0x9] sm:$0x1f]
        %v5197 = vld [vmem:[%s5168 + $0x11] sm:$0xff]
        %v5198 = vld [vmem:[%s5168 + $0x19] sm:$0x1f]
        %v5199 = vld [vmem:[%s5168 + $0x21] sm:$0xff]
        %v5200 = vld [vmem:[%s5168 + $0x29] sm:$0x1f]
        %v5201 = vld [vmem:[%s5168 + $0x31] sm:$0xff]
        %v5202 = vld [vmem:[%s5168 + $0x39] sm:$0x1f]
        %v5203 = vld [vmem:[%s5168 + $0x41] sm:$0xff]
        %v5204 = vld [vmem:[%s5168 + $0x49] sm:$0x1f]
        %v5205 = vld [vmem:[%s5168 + $0x51] sm:$0xff]
        %v5206 = vld [vmem:[%s5168 + $0x59] sm:$0x1f]
        %v5207 = vld [vmem:[%s5168 + $0x61] sm:$0xff]
        %v5208 = vld [vmem:[%s5168 + $0x69] sm:$0x1f]
        %v5209 = vld [vmem:[%s5168 + $0x71] sm:$0xff]
        %v5210 = vld [vmem:[%s5168 + $0x79] sm:$0x1f]
        %v5211 = vld [vmem:[%s5168 + $0x81] sm:$0xff]
        %v5212 = vld [vmem:[%s5168 + $0x89] sm:$0x1f]
        %v5213 = vld [vmem:[%s5168 + $0x91] sm:$0xff]
        %v5214 = vld [vmem:[%s5168 + $0x99] sm:$0x1f]
        %v5215 = vld [vmem:[%s5168 + $0xa1] sm:$0xff]
        %v5216 = vld [vmem:[%s5168 + $0xa9] sm:$0x1f]
        %v5217 = vld [vmem:[%s5168 + $0xb1] sm:$0xff]
        %v5218 = vld [vmem:[%s5168 + $0xb9] sm:$0x1f]
        %v5219 = vld [vmem:[%s5168 + $0xc1] sm:$0xff]
        %v5220 = vld [vmem:[%s5168 + $0xc9] sm:$0x1f]
        %v5221 = vld [vmem:[%s5168 + $0x2] sm:$0xff]
        %v5222 = vld [vmem:[%s5168 + $0xa] sm:$0x1f]
        %v5223 = vld [vmem:[%s5168 + $0x12] sm:$0xff]
        %v5224 = vld [vmem:[%s5168 + $0x1a] sm:$0x1f]
        %v5225 = vld [vmem:[%s5168 + $0x22] sm:$0xff]
        %v5226 = vld [vmem:[%s5168 + $0x2a] sm:$0x1f]
        %v5227 = vld [vmem:[%s5168 + $0x32] sm:$0xff]
        %v5228 = vld [vmem:[%s5168 + $0x3a] sm:$0x1f]
        %v5229 = vld [vmem:[%s5168 + $0x42] sm:$0xff]
        %v5230 = vld [vmem:[%s5168 + $0x4a] sm:$0x1f]
        %v5231 = vld [vmem:[%s5168 + $0x52] sm:$0xff]
        %v5232 = vld [vmem:[%s5168 + $0x5a] sm:$0x1f]
        %v5233 = vld [vmem:[%s5168 + $0x62] sm:$0xff]
        %v5234 = vld [vmem:[%s5168 + $0x6a] sm:$0x1f]
        %v5235 = vld [vmem:[%s5168 + $0x72] sm:$0xff]
        %v5236 = vld [vmem:[%s5168 + $0x7a] sm:$0x1f]
        %v5237 = vld [vmem:[%s5168 + $0x82] sm:$0xff]
        %v5238 = vld [vmem:[%s5168 + $0x8a] sm:$0x1f]
        %v5239 = vld [vmem:[%s5168 + $0x92] sm:$0xff]
        %v5240 = vld [vmem:[%s5168 + $0x9a] sm:$0x1f]
        %v5241 = vld [vmem:[%s5168 + $0xa2] sm:$0xff]
        %v5242 = vld [vmem:[%s5168 + $0xaa] sm:$0x1f]
        %v5243 = vld [vmem:[%s5168 + $0xb2] sm:$0xff]
        %v5244 = vld [vmem:[%s5168 + $0xba] sm:$0x1f]
        %v5245 = vld [vmem:[%s5168 + $0xc2] sm:$0xff]
        %v5246 = vld [vmem:[%s5168 + $0xca] sm:$0x1f]
        %5273 = vrot.lane.b32.xlu0 %v5038, 8
        %v5274 = vpop.permute.xlu0 %5273
        %5275 = vrot.lane.b32.xlu0 %v5039, 8
        %v5276 = vpop.permute.xlu0 %5275
        %5277 = vrot.lane.b32.xlu0 %v5040, 8
        %v5278 = vpop.permute.xlu0 %5277
        %5279 = vrot.lane.b32.xlu0 %v5041, 8
        %v5280 = vpop.permute.xlu0 %5279
        %5281 = vrot.lane.b32.xlu0 %v5042, 8
        %v5282 = vpop.permute.xlu0 %5281
        %5283 = vrot.lane.b32.xlu0 %v5043, 8
        %v5284 = vpop.permute.xlu0 %5283
        %5285 = vrot.lane.b32.xlu0 %v5044, 8
        %v5286 = vpop.permute.xlu0 %5285
        %5287 = vrot.lane.b32.xlu0 %v5045, 8
        %v5288 = vpop.permute.xlu0 %5287
        %5289 = vrot.lane.b32.xlu0 %v5046, 8
        %v5290 = vpop.permute.xlu0 %5289
        %5291 = vrot.lane.b32.xlu0 %v5047, 8
        %v5292 = vpop.permute.xlu0 %5291
        %5293 = vrot.lane.b32.xlu0 %v5048, 8
        %v5294 = vpop.permute.xlu0 %5293
        %5295 = vrot.lane.b32.xlu0 %v5049, 8
        %v5296 = vpop.permute.xlu0 %5295
        %5297 = vrot.lane.b32.xlu0 %v5050, 8
        %v5298 = vpop.permute.xlu0 %5297
        %5299 = vrot.lane.b32.xlu0 %v5051, 8
        %v5300 = vpop.permute.xlu0 %5299
        %5301 = vrot.lane.b32.xlu0 %v5052, 8
        %v5302 = vpop.permute.xlu0 %5301
        %5303 = vrot.lane.b32.xlu0 %v5053, 8
        %v5304 = vpop.permute.xlu0 %5303
        %5305 = vrot.lane.b32.xlu0 %v5054, 8
        %v5306 = vpop.permute.xlu0 %5305
        %5307 = vrot.lane.b32.xlu0 %v5055, 8
        %v5308 = vpop.permute.xlu0 %5307
        %5309 = vrot.lane.b32.xlu0 %v5056, 8
        %v5310 = vpop.permute.xlu0 %5309
        %5311 = vrot.lane.b32.xlu0 %v5057, 8
        %v5312 = vpop.permute.xlu0 %5311
        %5313 = vrot.lane.b32.xlu0 %v5058, 8
        %v5314 = vpop.permute.xlu0 %5313
        %5315 = vrot.lane.b32.xlu0 %v5059, 8
        %v5316 = vpop.permute.xlu0 %5315
        %5317 = vrot.lane.b32.xlu0 %v5060, 8
        %v5318 = vpop.permute.xlu0 %5317
        %5319 = vrot.lane.b32.xlu0 %v5061, 8
        %v5320 = vpop.permute.xlu0 %5319
        %5321 = vrot.lane.b32.xlu0 %v5062, 8
        %v5322 = vpop.permute.xlu0 %5321
        %5323 = vrot.lane.b32.xlu0 %v5063, 8
        %v5324 = vpop.permute.xlu0 %5323
        %5377 = vrot.lane.b32.xlu0 %v5064, 16
        %v5378 = vpop.permute.xlu0 %5377
        %5379 = vrot.lane.b32.xlu0 %v5065, 16
        %v5380 = vpop.permute.xlu0 %5379
        %5381 = vrot.lane.b32.xlu0 %v5066, 16
        %v5382 = vpop.permute.xlu0 %5381
        %5383 = vrot.lane.b32.xlu0 %v5067, 16
        %v5384 = vpop.permute.xlu0 %5383
        %5385 = vrot.lane.b32.xlu0 %v5068, 16
        %v5386 = vpop.permute.xlu0 %5385
        %5387 = vrot.lane.b32.xlu0 %v5069, 16
        %v5388 = vpop.permute.xlu0 %5387
        %5389 = vrot.lane.b32.xlu0 %v5070, 16
        %v5390 = vpop.permute.xlu0 %5389
        %5391 = vrot.lane.b32.xlu0 %v5071, 16
        %v5392 = vpop.permute.xlu0 %5391
        %5393 = vrot.lane.b32.xlu0 %v5072, 16
        %v5394 = vpop.permute.xlu0 %5393
        %5395 = vrot.lane.b32.xlu0 %v5073, 16
        %v5396 = vpop.permute.xlu0 %5395
        %5397 = vrot.lane.b32.xlu0 %v5074, 16
        %v5398 = vpop.permute.xlu0 %5397
        %5399 = vrot.lane.b32.xlu0 %v5075, 16
        %v5400 = vpop.permute.xlu0 %5399
        %5401 = vrot.lane.b32.xlu0 %v5076, 16
        %v5402 = vpop.permute.xlu0 %5401
        %5403 = vrot.lane.b32.xlu0 %v5077, 16
        %v5404 = vpop.permute.xlu0 %5403
        %5405 = vrot.lane.b32.xlu0 %v5078, 16
        %v5406 = vpop.permute.xlu0 %5405
        %5407 = vrot.lane.b32.xlu0 %v5079, 16
        %v5408 = vpop.permute.xlu0 %5407
        %5409 = vrot.lane.b32.xlu0 %v5080, 16
        %v5410 = vpop.permute.xlu0 %5409
        %5411 = vrot.lane.b32.xlu0 %v5081, 16
        %v5412 = vpop.permute.xlu0 %5411
        %5413 = vrot.lane.b32.xlu0 %v5082, 16
        %v5414 = vpop.permute.xlu0 %5413
        %5415 = vrot.lane.b32.xlu0 %v5083, 16
        %v5416 = vpop.permute.xlu0 %5415
        %5417 = vrot.lane.b32.xlu0 %v5084, 16
        %v5418 = vpop.permute.xlu0 %5417
        %5419 = vrot.lane.b32.xlu0 %v5085, 16
        %v5420 = vpop.permute.xlu0 %5419
        %5421 = vrot.lane.b32.xlu0 %v5086, 16
        %v5422 = vpop.permute.xlu0 %5421
        %5423 = vrot.lane.b32.xlu0 %v5087, 16
        %v5424 = vpop.permute.xlu0 %5423
        %5425 = vrot.lane.b32.xlu0 %v5088, 16
        %v5426 = vpop.permute.xlu0 %5425
        %5427 = vrot.lane.b32.xlu0 %v5089, 16
        %v5428 = vpop.permute.xlu0 %5427
        %5481 = vrot.lane.b32.xlu0 %v5090, 24
        %v5482 = vpop.permute.xlu0 %5481
        %5483 = vrot.lane.b32.xlu0 %v5091, 24
        %v5484 = vpop.permute.xlu0 %5483
        %5485 = vrot.lane.b32.xlu0 %v5092, 24
        %v5486 = vpop.permute.xlu0 %5485
        %5487 = vrot.lane.b32.xlu0 %v5093, 24
        %v5488 = vpop.permute.xlu0 %5487
        %5489 = vrot.lane.b32.xlu0 %v5094, 24
        %v5490 = vpop.permute.xlu0 %5489
        %5491 = vrot.lane.b32.xlu0 %v5095, 24
        %v5492 = vpop.permute.xlu0 %5491
        %5493 = vrot.lane.b32.xlu0 %v5096, 24
        %v5494 = vpop.permute.xlu0 %5493
        %5495 = vrot.lane.b32.xlu0 %v5097, 24
        %v5496 = vpop.permute.xlu0 %5495
        %5497 = vrot.lane.b32.xlu0 %v5098, 24
        %v5498 = vpop.permute.xlu0 %5497
        %5499 = vrot.lane.b32.xlu0 %v5099, 24
        %v5500 = vpop.permute.xlu0 %5499
        %5501 = vrot.lane.b32.xlu0 %v5100, 24
        %v5502 = vpop.permute.xlu0 %5501
        %5503 = vrot.lane.b32.xlu0 %v5101, 24
        %v5504 = vpop.permute.xlu0 %5503
        %5505 = vrot.lane.b32.xlu0 %v5102, 24
        %v5506 = vpop.permute.xlu0 %5505
        %5507 = vrot.lane.b32.xlu0 %v5103, 24
        %v5508 = vpop.permute.xlu0 %5507
        %5509 = vrot.lane.b32.xlu0 %v5104, 24
        %v5510 = vpop.permute.xlu0 %5509
        %5511 = vrot.lane.b32.xlu0 %v5105, 24
        %v5512 = vpop.permute.xlu0 %5511
        %5513 = vrot.lane.b32.xlu0 %v5106, 24
        %v5514 = vpop.permute.xlu0 %5513
        %5515 = vrot.lane.b32.xlu0 %v5107, 24
        %v5516 = vpop.permute.xlu0 %5515
        %5517 = vrot.lane.b32.xlu0 %v5108, 24
        %v5518 = vpop.permute.xlu0 %5517
        %5519 = vrot.lane.b32.xlu0 %v5109, 24
        %v5520 = vpop.permute.xlu0 %5519
        %5521 = vrot.lane.b32.xlu0 %v5110, 24
        %v5522 = vpop.permute.xlu0 %5521
        %5523 = vrot.lane.b32.xlu0 %v5111, 24
        %v5524 = vpop.permute.xlu0 %5523
        %5525 = vrot.lane.b32.xlu0 %v5112, 24
        %v5526 = vpop.permute.xlu0 %5525
        %5527 = vrot.lane.b32.xlu0 %v5113, 24
        %v5528 = vpop.permute.xlu0 %5527
        %5529 = vrot.lane.b32.xlu0 %v5114, 24
        %v5530 = vpop.permute.xlu0 %5529
        %5531 = vrot.lane.b32.xlu0 %v5115, 24
        %v5532 = vpop.permute.xlu0 %5531
        %5585 = vrot.lane.b32.xlu0 %v5116, 32
        %v5586 = vpop.permute.xlu0 %5585
        %5587 = vrot.lane.b32.xlu0 %v5117, 32
        %v5588 = vpop.permute.xlu0 %5587
        %5589 = vrot.lane.b32.xlu0 %v5118, 32
        %v5590 = vpop.permute.xlu0 %5589
        %5591 = vrot.lane.b32.xlu0 %v5119, 32
        %v5592 = vpop.permute.xlu0 %5591
        %5593 = vrot.lane.b32.xlu0 %v5120, 32
        %v5594 = vpop.permute.xlu0 %5593
        %5595 = vrot.lane.b32.xlu0 %v5121, 32
        %v5596 = vpop.permute.xlu0 %5595
        %5597 = vrot.lane.b32.xlu0 %v5122, 32
        %v5598 = vpop.permute.xlu0 %5597
        %5599 = vrot.lane.b32.xlu0 %v5123, 32
        %v5600 = vpop.permute.xlu0 %5599
        %5601 = vrot.lane.b32.xlu0 %v5124, 32
        %v5602 = vpop.permute.xlu0 %5601
        %5603 = vrot.lane.b32.xlu0 %v5125, 32
        %v5604 = vpop.permute.xlu0 %5603
        %5605 = vrot.lane.b32.xlu0 %v5126, 32
        %v5606 = vpop.permute.xlu0 %5605
        %5607 = vrot.lane.b32.xlu0 %v5127, 32
        %v5608 = vpop.permute.xlu0 %5607
        %5609 = vrot.lane.b32.xlu0 %v5128, 32
        %v5610 = vpop.permute.xlu0 %5609
        %5611 = vrot.lane.b32.xlu0 %v5129, 32
        %v5612 = vpop.permute.xlu0 %5611
        %5613 = vrot.lane.b32.xlu0 %v5130, 32
        %v5614 = vpop.permute.xlu0 %5613
        %5615 = vrot.lane.b32.xlu0 %v5131, 32
        %v5616 = vpop.permute.xlu0 %5615
        %5617 = vrot.lane.b32.xlu0 %v5132, 32
        %v5618 = vpop.permute.xlu0 %5617
        %5619 = vrot.lane.b32.xlu0 %v5133, 32
        %v5620 = vpop.permute.xlu0 %5619
        %5621 = vrot.lane.b32.xlu0 %v5134, 32
        %v5622 = vpop.permute.xlu0 %5621
        %5623 = vrot.lane.b32.xlu0 %v5135, 32
        %v5624 = vpop.permute.xlu0 %5623
        %5625 = vrot.lane.b32.xlu0 %v5136, 32
        %v5626 = vpop.permute.xlu0 %5625
        %5627 = vrot.lane.b32.xlu0 %v5137, 32
        %v5628 = vpop.permute.xlu0 %5627
        %5629 = vrot.lane.b32.xlu0 %v5138, 32
        %v5630 = vpop.permute.xlu0 %5629
        %5631 = vrot.lane.b32.xlu0 %v5139, 32
        %v5632 = vpop.permute.xlu0 %5631
        %5633 = vrot.lane.b32.xlu0 %v5140, 32
        %v5634 = vpop.permute.xlu0 %5633
        %5635 = vrot.lane.b32.xlu0 %v5141, 32
        %v5636 = vpop.permute.xlu0 %5635
        %5689 = vrot.lane.b32.xlu0 %v5142, 40
        %v5690 = vpop.permute.xlu0 %5689
        %5691 = vrot.lane.b32.xlu0 %v5143, 40
        %v5692 = vpop.permute.xlu0 %5691
        %5693 = vrot.lane.b32.xlu0 %v5144, 40
        %v5694 = vpop.permute.xlu0 %5693
        %5695 = vrot.lane.b32.xlu0 %v5145, 40
        %v5696 = vpop.permute.xlu0 %5695
        %5697 = vrot.lane.b32.xlu0 %v5146, 40
        %v5698 = vpop.permute.xlu0 %5697
        %5699 = vrot.lane.b32.xlu0 %v5147, 40
        %v5700 = vpop.permute.xlu0 %5699
        %5701 = vrot.lane.b32.xlu0 %v5148, 40
        %v5702 = vpop.permute.xlu0 %5701
        %5703 = vrot.lane.b32.xlu0 %v5149, 40
        %v5704 = vpop.permute.xlu0 %5703
        %5705 = vrot.lane.b32.xlu0 %v5150, 40
        %v5706 = vpop.permute.xlu0 %5705
        %5707 = vrot.lane.b32.xlu0 %v5151, 40
        %v5708 = vpop.permute.xlu0 %5707
        %5709 = vrot.lane.b32.xlu0 %v5152, 40
        %v5710 = vpop.permute.xlu0 %5709
        %5711 = vrot.lane.b32.xlu0 %v5153, 40
        %v5712 = vpop.permute.xlu0 %5711
        %5713 = vrot.lane.b32.xlu0 %v5154, 40
        %v5714 = vpop.permute.xlu0 %5713
        %5715 = vrot.lane.b32.xlu0 %v5155, 40
        %v5716 = vpop.permute.xlu0 %5715
        %5717 = vrot.lane.b32.xlu0 %v5156, 40
        %v5718 = vpop.permute.xlu0 %5717
        %5719 = vrot.lane.b32.xlu0 %v5157, 40
        %v5720 = vpop.permute.xlu0 %5719
        %5721 = vrot.lane.b32.xlu0 %v5158, 40
        %v5722 = vpop.permute.xlu0 %5721
        %5723 = vrot.lane.b32.xlu0 %v5159, 40
        %v5724 = vpop.permute.xlu0 %5723
        %5725 = vrot.lane.b32.xlu0 %v5160, 40
        %v5726 = vpop.permute.xlu0 %5725
        %5727 = vrot.lane.b32.xlu0 %v5161, 40
        %v5728 = vpop.permute.xlu0 %5727
        %5729 = vrot.lane.b32.xlu0 %v5162, 40
        %v5730 = vpop.permute.xlu0 %5729
        %5731 = vrot.lane.b32.xlu0 %v5163, 40
        %v5732 = vpop.permute.xlu0 %5731
        %5733 = vrot.lane.b32.xlu0 %v5164, 40
        %v5734 = vpop.permute.xlu0 %5733
        %5735 = vrot.lane.b32.xlu0 %v5165, 40
        %v5736 = vpop.permute.xlu0 %5735
        %5737 = vrot.lane.b32.xlu0 %v5166, 40
        %v5738 = vpop.permute.xlu0 %5737
        %5739 = vrot.lane.b32.xlu0 %v5167, 40
        %v5740 = vpop.permute.xlu0 %5739
        %5793 = vrot.lane.b32.xlu0 %v5169, 48
        %v5794 = vpop.permute.xlu0 %5793
        %5795 = vrot.lane.b32.xlu0 %v5170, 48
        %v5796 = vpop.permute.xlu0 %5795
        %5797 = vrot.lane.b32.xlu0 %v5171, 48
        %v5798 = vpop.permute.xlu0 %5797
        %5799 = vrot.lane.b32.xlu0 %v5172, 48
        %v5800 = vpop.permute.xlu0 %5799
        %5801 = vrot.lane.b32.xlu0 %v5173, 48
        %v5802 = vpop.permute.xlu0 %5801
        %5803 = vrot.lane.b32.xlu0 %v5174, 48
        %v5804 = vpop.permute.xlu0 %5803
        %5805 = vrot.lane.b32.xlu0 %v5175, 48
        %v5806 = vpop.permute.xlu0 %5805
        %5807 = vrot.lane.b32.xlu0 %v5176, 48
        %v5808 = vpop.permute.xlu0 %5807
        %5809 = vrot.lane.b32.xlu0 %v5177, 48
        %v5810 = vpop.permute.xlu0 %5809
        %5811 = vrot.lane.b32.xlu0 %v5178, 48
        %v5812 = vpop.permute.xlu0 %5811
        %5813 = vrot.lane.b32.xlu0 %v5179, 48
        %v5814 = vpop.permute.xlu0 %5813
        %5815 = vrot.lane.b32.xlu0 %v5180, 48
        %v5816 = vpop.permute.xlu0 %5815
        %5817 = vrot.lane.b32.xlu0 %v5181, 48
        %v5818 = vpop.permute.xlu0 %5817
        %5819 = vrot.lane.b32.xlu0 %v5182, 48
        %v5820 = vpop.permute.xlu0 %5819
        %5821 = vrot.lane.b32.xlu0 %v5183, 48
        %v5822 = vpop.permute.xlu0 %5821
        %5823 = vrot.lane.b32.xlu0 %v5184, 48
        %v5824 = vpop.permute.xlu0 %5823
        %5825 = vrot.lane.b32.xlu0 %v5185, 48
        %v5826 = vpop.permute.xlu0 %5825
        %5827 = vrot.lane.b32.xlu0 %v5186, 48
        %v5828 = vpop.permute.xlu0 %5827
        %5829 = vrot.lane.b32.xlu0 %v5187, 48
        %v5830 = vpop.permute.xlu0 %5829
        %5831 = vrot.lane.b32.xlu0 %v5188, 48
        %v5832 = vpop.permute.xlu0 %5831
        %5833 = vrot.lane.b32.xlu0 %v5189, 48
        %v5834 = vpop.permute.xlu0 %5833
        %5835 = vrot.lane.b32.xlu0 %v5190, 48
        %v5836 = vpop.permute.xlu0 %5835
        %5837 = vrot.lane.b32.xlu0 %v5191, 48
        %v5838 = vpop.permute.xlu0 %5837
        %5839 = vrot.lane.b32.xlu0 %v5192, 48
        %v5840 = vpop.permute.xlu0 %5839
        %5841 = vrot.lane.b32.xlu0 %v5193, 48
        %v5842 = vpop.permute.xlu0 %5841
        %5843 = vrot.lane.b32.xlu0 %v5194, 48
        %v5844 = vpop.permute.xlu0 %5843
        %5897 = vrot.lane.b32.xlu0 %v5195, 56
        %v5898 = vpop.permute.xlu0 %5897
        %5899 = vrot.lane.b32.xlu0 %v5196, 56
        %v5900 = vpop.permute.xlu0 %5899
        %5901 = vrot.lane.b32.xlu0 %v5197, 56
        %v5902 = vpop.permute.xlu0 %5901
        %5903 = vrot.lane.b32.xlu0 %v5198, 56
        %v5904 = vpop.permute.xlu0 %5903
        %5905 = vrot.lane.b32.xlu0 %v5199, 56
        %v5906 = vpop.permute.xlu0 %5905
        %5907 = vrot.lane.b32.xlu0 %v5200, 56
        %v5908 = vpop.permute.xlu0 %5907
        %5909 = vrot.lane.b32.xlu0 %v5201, 56
        %v5910 = vpop.permute.xlu0 %5909
        %5911 = vrot.lane.b32.xlu0 %v5202, 56
        %v5912 = vpop.permute.xlu0 %5911
        %5913 = vrot.lane.b32.xlu0 %v5203, 56
        %v5914 = vpop.permute.xlu0 %5913
        %5915 = vrot.lane.b32.xlu0 %v5204, 56
        %v5916 = vpop.permute.xlu0 %5915
        %5917 = vrot.lane.b32.xlu0 %v5205, 56
        %v5918 = vpop.permute.xlu0 %5917
        %5919 = vrot.lane.b32.xlu0 %v5206, 56
        %v5920 = vpop.permute.xlu0 %5919
        %5921 = vrot.lane.b32.xlu0 %v5207, 56
        %v5922 = vpop.permute.xlu0 %5921
        %5923 = vrot.lane.b32.xlu0 %v5208, 56
        %v5924 = vpop.permute.xlu0 %5923
        %5925 = vrot.lane.b32.xlu0 %v5209, 56
        %v5926 = vpop.permute.xlu0 %5925
        %5927 = vrot.lane.b32.xlu0 %v5210, 56
        %v5928 = vpop.permute.xlu0 %5927
        %5929 = vrot.lane.b32.xlu0 %v5211, 56
        %v5930 = vpop.permute.xlu0 %5929
        %5931 = vrot.lane.b32.xlu0 %v5212, 56
        %v5932 = vpop.permute.xlu0 %5931
        %5933 = vrot.lane.b32.xlu0 %v5213, 56
        %v5934 = vpop.permute.xlu0 %5933
        %5935 = vrot.lane.b32.xlu0 %v5214, 56
        %v5936 = vpop.permute.xlu0 %5935
        %5937 = vrot.lane.b32.xlu0 %v5215, 56
        %v5938 = vpop.permute.xlu0 %5937
        %5939 = vrot.lane.b32.xlu0 %v5216, 56
        %v5940 = vpop.permute.xlu0 %5939
        %5941 = vrot.lane.b32.xlu0 %v5217, 56
        %v5942 = vpop.permute.xlu0 %5941
        %5943 = vrot.lane.b32.xlu0 %v5218, 56
        %v5944 = vpop.permute.xlu0 %5943
        %5945 = vrot.lane.b32.xlu0 %v5219, 56
        %v5946 = vpop.permute.xlu0 %5945
        %5947 = vrot.lane.b32.xlu0 %v5220, 56
        %v5948 = vpop.permute.xlu0 %5947
        %6001 = vrot.lane.b32.xlu0 %v5221, 64
        %v6002 = vpop.permute.xlu0 %6001
        %6003 = vrot.lane.b32.xlu0 %v5222, 64
        %v6004 = vpop.permute.xlu0 %6003
        %6005 = vrot.lane.b32.xlu0 %v5223, 64
        %v6006 = vpop.permute.xlu0 %6005
        %6007 = vrot.lane.b32.xlu0 %v5224, 64
        %v6008 = vpop.permute.xlu0 %6007
        %6009 = vrot.lane.b32.xlu0 %v5225, 64
        %v6010 = vpop.permute.xlu0 %6009
        %6011 = vrot.lane.b32.xlu0 %v5226, 64
        %v6012 = vpop.permute.xlu0 %6011
        %6013 = vrot.lane.b32.xlu0 %v5227, 64
        %v6014 = vpop.permute.xlu0 %6013
        %6015 = vrot.lane.b32.xlu0 %v5228, 64
        %v6016 = vpop.permute.xlu0 %6015
        %6017 = vrot.lane.b32.xlu0 %v5229, 64
        %v6018 = vpop.permute.xlu0 %6017
        %6019 = vrot.lane.b32.xlu0 %v5230, 64
        %v6020 = vpop.permute.xlu0 %6019
        %6021 = vrot.lane.b32.xlu0 %v5231, 64
        %v6022 = vpop.permute.xlu0 %6021
        %6023 = vrot.lane.b32.xlu0 %v5232, 64
        %v6024 = vpop.permute.xlu0 %6023
        %6025 = vrot.lane.b32.xlu0 %v5233, 64
        %v6026 = vpop.permute.xlu0 %6025
        %6027 = vrot.lane.b32.xlu0 %v5234, 64
        %v6028 = vpop.permute.xlu0 %6027
        %6029 = vrot.lane.b32.xlu0 %v5235, 64
        %v6030 = vpop.permute.xlu0 %6029
        %6031 = vrot.lane.b32.xlu0 %v5236, 64
        %v6032 = vpop.permute.xlu0 %6031
        %6033 = vrot.lane.b32.xlu0 %v5237, 64
        %v6034 = vpop.permute.xlu0 %6033
        %6035 = vrot.lane.b32.xlu0 %v5238, 64
        %v6036 = vpop.permute.xlu0 %6035
        %6037 = vrot.lane.b32.xlu0 %v5239, 64
        %v6038 = vpop.permute.xlu0 %6037
        %6039 = vrot.lane.b32.xlu0 %v5240, 64
        %v6040 = vpop.permute.xlu0 %6039
        %6041 = vrot.lane.b32.xlu0 %v5241, 64
        %v6042 = vpop.permute.xlu0 %6041
        %6043 = vrot.lane.b32.xlu0 %v5242, 64
        %v6044 = vpop.permute.xlu0 %6043
        %6045 = vrot.lane.b32.xlu0 %v5243, 64
        %v6046 = vpop.permute.xlu0 %6045
        %6047 = vrot.lane.b32.xlu0 %v5244, 64
        %v6048 = vpop.permute.xlu0 %6047
        %6049 = vrot.lane.b32.xlu0 %v5245, 64
        %v6050 = vpop.permute.xlu0 %6049
        %6051 = vrot.lane.b32.xlu0 %v5246, 64
        %v6052 = vpop.permute.xlu0 %6051
        %v6079 = vsel %vm2680, %v5012, %v5274
        %v6080 = vsel %vm2680, %v5013, %v5276
        %v6081 = vsel %vm2680, %v5014, %v5278
        %v6082 = vsel %vm2680, %v5015, %v5280
        %v6083 = vsel %vm2680, %v5016, %v5282
        %v6084 = vsel %vm2680, %v5017, %v5284
        %v6085 = vsel %vm2680, %v5018, %v5286
        %v6086 = vsel %vm2680, %v5019, %v5288
        %v6087 = vsel %vm2680, %v5020, %v5290
        %v6088 = vsel %vm2680, %v5021, %v5292
        %v6089 = vsel %vm2680, %v5022, %v5294
        %v6090 = vsel %vm2680, %v5023, %v5296
        %v6091 = vsel %vm2680, %v5024, %v5298
        %v6092 = vsel %vm2680, %v5025, %v5300
        %v6093 = vsel %vm2680, %v5026, %v5302
        %v6094 = vsel %vm2680, %v5027, %v5304
        %v6095 = vsel %vm2680, %v5028, %v5306
        %v6096 = vsel %vm2680, %v5029, %v5308
        %v6097 = vsel %vm2680, %v5030, %v5310
        %v6098 = vsel %vm2680, %v5031, %v5312
        %v6099 = vsel %vm2680, %v5032, %v5314
        %v6100 = vsel %vm2680, %v5033, %v5316
        %v6101 = vsel %vm2680, %v5034, %v5318
        %v6102 = vsel %vm2680, %v5035, %v5320
        %v6103 = vsel %vm2680, %v5036, %v5322
        %v6104 = vsel %vm2680, %v5037, %v5324
        %v6105 = vsel %vm3836, %v6079, %v5378
        %v6106 = vsel %vm3836, %v6080, %v5380
        %v6107 = vsel %vm3836, %v6081, %v5382
        %v6108 = vsel %vm3836, %v6082, %v5384
        %v6109 = vsel %vm3836, %v6083, %v5386
        %v6110 = vsel %vm3836, %v6084, %v5388
        %v6111 = vsel %vm3836, %v6085, %v5390
        %v6112 = vsel %vm3836, %v6086, %v5392
        %v6113 = vsel %vm3836, %v6087, %v5394
        %v6114 = vsel %vm3836, %v6088, %v5396
        %v6115 = vsel %vm3836, %v6089, %v5398
        %v6116 = vsel %vm3836, %v6090, %v5400
        %v6117 = vsel %vm3836, %v6091, %v5402
        %v6118 = vsel %vm3836, %v6092, %v5404
        %v6119 = vsel %vm3836, %v6093, %v5406
        %v6120 = vsel %vm3836, %v6094, %v5408
        %v6121 = vsel %vm3836, %v6095, %v5410
        %v6122 = vsel %vm3836, %v6096, %v5412
        %v6123 = vsel %vm3836, %v6097, %v5414
        %v6124 = vsel %vm3836, %v6098, %v5416
        %v6125 = vsel %vm3836, %v6099, %v5418
        %v6126 = vsel %vm3836, %v6100, %v5420
        %v6127 = vsel %vm3836, %v6101, %v5422
        %v6128 = vsel %vm3836, %v6102, %v5424
        %v6129 = vsel %vm3836, %v6103, %v5426
        %v6130 = vsel %vm3836, %v6104, %v5428
        %v6131 = vsel %vm1224, %v6105, %v5482
        %v6132 = vsel %vm1224, %v6106, %v5484
        %v6133 = vsel %vm1224, %v6107, %v5486
        %v6134 = vsel %vm1224, %v6108, %v5488
        %v6135 = vsel %vm1224, %v6109, %v5490
        %v6136 = vsel %vm1224, %v6110, %v5492
        %v6137 = vsel %vm1224, %v6111, %v5494
        %v6138 = vsel %vm1224, %v6112, %v5496
        %v6139 = vsel %vm1224, %v6113, %v5498
        %v6140 = vsel %vm1224, %v6114, %v5500
        %v6141 = vsel %vm1224, %v6115, %v5502
        %v6142 = vsel %vm1224, %v6116, %v5504
        %v6143 = vsel %vm1224, %v6117, %v5506
        %v6144 = vsel %vm1224, %v6118, %v5508
        %v6145 = vsel %vm1224, %v6119, %v5510
        %v6146 = vsel %vm1224, %v6120, %v5512
        %v6147 = vsel %vm1224, %v6121, %v5514
        %v6148 = vsel %vm1224, %v6122, %v5516
        %v6149 = vsel %vm1224, %v6123, %v5518
        %v6150 = vsel %vm1224, %v6124, %v5520
        %v6151 = vsel %vm1224, %v6125, %v5522
        %v6152 = vsel %vm1224, %v6126, %v5524
        %v6153 = vsel %vm1224, %v6127, %v5526
        %v6154 = vsel %vm1224, %v6128, %v5528
        %v6155 = vsel %vm1224, %v6129, %v5530
        %v6156 = vsel %vm1224, %v6130, %v5532
        %v6157 = vsel %vm3889, %v6131, %v5586
        %v6158 = vsel %vm3889, %v6132, %v5588
        %v6159 = vsel %vm3889, %v6133, %v5590
        %v6160 = vsel %vm3889, %v6134, %v5592
        %v6161 = vsel %vm3889, %v6135, %v5594
        %v6162 = vsel %vm3889, %v6136, %v5596
        %v6163 = vsel %vm3889, %v6137, %v5598
        %v6164 = vsel %vm3889, %v6138, %v5600
        %v6165 = vsel %vm3889, %v6139, %v5602
        %v6166 = vsel %vm3889, %v6140, %v5604
        %v6167 = vsel %vm3889, %v6141, %v5606
        %v6168 = vsel %vm3889, %v6142, %v5608
        %v6169 = vsel %vm3889, %v6143, %v5610
        %v6170 = vsel %vm3889, %v6144, %v5612
        %v6171 = vsel %vm3889, %v6145, %v5614
        %v6172 = vsel %vm3889, %v6146, %v5616
        %v6173 = vsel %vm3889, %v6147, %v5618
        %v6174 = vsel %vm3889, %v6148, %v5620
        %v6175 = vsel %vm3889, %v6149, %v5622
        %v6176 = vsel %vm3889, %v6150, %v5624
        %v6177 = vsel %vm3889, %v6151, %v5626
        %v6178 = vsel %vm3889, %v6152, %v5628
        %v6179 = vsel %vm3889, %v6153, %v5630
        %v6180 = vsel %vm3889, %v6154, %v5632
        %v6181 = vsel %vm3889, %v6155, %v5634
        %v6182 = vsel %vm3889, %v6156, %v5636
        %v6183 = vsel %vm3916, %v6157, %v5690
        %v6184 = vsel %vm3916, %v6158, %v5692
        %v6185 = vsel %vm3916, %v6159, %v5694
        %v6186 = vsel %vm3916, %v6160, %v5696
        %v6187 = vsel %vm3916, %v6161, %v5698
        %v6188 = vsel %vm3916, %v6162, %v5700
        %v6189 = vsel %vm3916, %v6163, %v5702
        %v6190 = vsel %vm3916, %v6164, %v5704
        %v6191 = vsel %vm3916, %v6165, %v5706
        %v6192 = vsel %vm3916, %v6166, %v5708
        %v6193 = vsel %vm3916, %v6167, %v5710
        %v6194 = vsel %vm3916, %v6168, %v5712
        %v6195 = vsel %vm3916, %v6169, %v5714
        %v6196 = vsel %vm3916, %v6170, %v5716
        %v6197 = vsel %vm3916, %v6171, %v5718
        %v6198 = vsel %vm3916, %v6172, %v5720
        %v6199 = vsel %vm3916, %v6173, %v5722
        %v6200 = vsel %vm3916, %v6174, %v5724
        %v6201 = vsel %vm3916, %v6175, %v5726
        %v6202 = vsel %vm3916, %v6176, %v5728
        %v6203 = vsel %vm3916, %v6177, %v5730
        %v6204 = vsel %vm3916, %v6178, %v5732
        %v6205 = vsel %vm3916, %v6179, %v5734
        %v6206 = vsel %vm3916, %v6180, %v5736
        %v6207 = vsel %vm3916, %v6181, %v5738
        %v6208 = vsel %vm3916, %v6182, %v5740
        %v6209 = vsel %vm2020, %v6183, %v5794
        %v6210 = vsel %vm2020, %v6184, %v5796
        %v6211 = vsel %vm2020, %v6185, %v5798
        %v6212 = vsel %vm2020, %v6186, %v5800
        %v6213 = vsel %vm2020, %v6187, %v5802
        %v6214 = vsel %vm2020, %v6188, %v5804
        %v6215 = vsel %vm2020, %v6189, %v5806
        %v6216 = vsel %vm2020, %v6190, %v5808
        %v6217 = vsel %vm2020, %v6191, %v5810
        %v6218 = vsel %vm2020, %v6192, %v5812
        %v6219 = vsel %vm2020, %v6193, %v5814
        %v6220 = vsel %vm2020, %v6194, %v5816
        %v6221 = vsel %vm2020, %v6195, %v5818
        %v6222 = vsel %vm2020, %v6196, %v5820
        %v6223 = vsel %vm2020, %v6197, %v5822
        %v6224 = vsel %vm2020, %v6198, %v5824
        %v6225 = vsel %vm2020, %v6199, %v5826
        %v6226 = vsel %vm2020, %v6200, %v5828
        %v6227 = vsel %vm2020, %v6201, %v5830
        %v6228 = vsel %vm2020, %v6202, %v5832
        %v6229 = vsel %vm2020, %v6203, %v5834
        %v6230 = vsel %vm2020, %v6204, %v5836
        %v6231 = vsel %vm2020, %v6205, %v5838
        %v6232 = vsel %vm2020, %v6206, %v5840
        %v6233 = vsel %vm2020, %v6207, %v5842
        %v6234 = vsel %vm2020, %v6208, %v5844
        %v6235 = vsel %vm3969, %v6209, %v5898
        %v6236 = vsel %vm3969, %v6210, %v5900
        %v6237 = vsel %vm3969, %v6211, %v5902
        %v6238 = vsel %vm3969, %v6212, %v5904
        %v6239 = vsel %vm3969, %v6213, %v5906
        %v6240 = vsel %vm3969, %v6214, %v5908
        %v6241 = vsel %vm3969, %v6215, %v5910
        %v6242 = vsel %vm3969, %v6216, %v5912
        %v6243 = vsel %vm3969, %v6217, %v5914
        %v6244 = vsel %vm3969, %v6218, %v5916
        %v6245 = vsel %vm3969, %v6219, %v5918
        %v6246 = vsel %vm3969, %v6220, %v5920
        %v6247 = vsel %vm3969, %v6221, %v5922
        %v6248 = vsel %vm3969, %v6222, %v5924
        %v6249 = vsel %vm3969, %v6223, %v5926
        %v6250 = vsel %vm3969, %v6224, %v5928
        %v6251 = vsel %vm3969, %v6225, %v5930
        %v6252 = vsel %vm3969, %v6226, %v5932
        %v6253 = vsel %vm3969, %v6227, %v5934
        %v6254 = vsel %vm3969, %v6228, %v5936
        %v6255 = vsel %vm3969, %v6229, %v5938
        %v6256 = vsel %vm3969, %v6230, %v5940
        %v6257 = vsel %vm3969, %v6231, %v5942
        %v6258 = vsel %vm3969, %v6232, %v5944
        %v6259 = vsel %vm3969, %v6233, %v5946
        %v6260 = vsel %vm3969, %v6234, %v5948
        %v6261 = vsel %vm3996, %v6235, %v6002
        %v6262 = vsel %vm3996, %v6236, %v6004
        %v6263 = vsel %vm3996, %v6237, %v6006
        %v6264 = vsel %vm3996, %v6238, %v6008
        %v6265 = vsel %vm3996, %v6239, %v6010
        %v6266 = vsel %vm3996, %v6240, %v6012
        %v6267 = vsel %vm3996, %v6241, %v6014
        %v6268 = vsel %vm3996, %v6242, %v6016
        %v6269 = vsel %vm3996, %v6243, %v6018
        %v6270 = vsel %vm3996, %v6244, %v6020
        %v6271 = vsel %vm3996, %v6245, %v6022
        %v6272 = vsel %vm3996, %v6246, %v6024
        %v6273 = vsel %vm3996, %v6247, %v6026
        %v6274 = vsel %vm3996, %v6248, %v6028
        %v6275 = vsel %vm3996, %v6249, %v6030
        %v6276 = vsel %vm3996, %v6250, %v6032
        %v6277 = vsel %vm3996, %v6251, %v6034
        %v6278 = vsel %vm3996, %v6252, %v6036
        %v6279 = vsel %vm3996, %v6253, %v6038
        %v6280 = vsel %vm3996, %v6254, %v6040
        %v6281 = vsel %vm3996, %v6255, %v6042
        %v6282 = vsel %vm3996, %v6256, %v6044
        %v6283 = vsel %vm3996, %v6257, %v6046
        %v6284 = vsel %vm3996, %v6258, %v6048
        %v6285 = vsel %vm3996, %v6259, %v6050
        %v6286 = vsel %vm3996, %v6260, %v6052
        %v6313 = vrot.slane %v6261, 1
        %v6314 = vrot.slane %v6261, 2
        %v6315 = vrot.slane %v6261, 3
        %v6316 = vrot.slane %v6261, 4
        %v6317 = vrot.slane %v6261, 5
        %v6318 = vrot.slane %v6261, 6
        %v6319 = vrot.slane %v6261, 7
        %v6320 = vrot.slane %v6262, 1
        %v6321 = vrot.slane %v6262, 2
        %v6322 = vrot.slane %v6262, 3
        %v6323 = vrot.slane %v6262, 4
        %v6324 = vrot.slane %v6263, 1
        %v6325 = vrot.slane %v6263, 2
        %v6326 = vrot.slane %v6263, 3
        %v6327 = vrot.slane %v6263, 4
        %v6328 = vrot.slane %v6263, 5
        %v6329 = vrot.slane %v6263, 6
        %v6330 = vrot.slane %v6263, 7
        %v6331 = vrot.slane %v6264, 1
        %v6332 = vrot.slane %v6264, 2
        %v6333 = vrot.slane %v6264, 3
        %v6334 = vrot.slane %v6264, 4
        %v6335 = vrot.slane %v6265, 1
        %v6336 = vrot.slane %v6265, 2
        %v6337 = vrot.slane %v6265, 3
        %v6338 = vrot.slane %v6265, 4
        %v6339 = vrot.slane %v6265, 5
        %v6340 = vrot.slane %v6265, 6
        %v6341 = vrot.slane %v6265, 7
        %v6342 = vrot.slane %v6266, 1
        %v6343 = vrot.slane %v6266, 2
        %v6344 = vrot.slane %v6266, 3
        %v6345 = vrot.slane %v6266, 4
        %v6346 = vrot.slane %v6267, 1
        %v6347 = vrot.slane %v6267, 2
        %v6348 = vrot.slane %v6267, 3
        %v6349 = vrot.slane %v6267, 4
        %v6350 = vrot.slane %v6267, 5
        %v6351 = vrot.slane %v6267, 6
        %v6352 = vrot.slane %v6267, 7
        %v6353 = vrot.slane %v6268, 1
        %v6354 = vrot.slane %v6268, 2
        %v6355 = vrot.slane %v6268, 3
        %v6356 = vrot.slane %v6268, 4
        %v6357 = vrot.slane %v6269, 1
        %v6358 = vrot.slane %v6269, 2
        %v6359 = vrot.slane %v6269, 3
        %v6360 = vrot.slane %v6269, 4
        %v6361 = vrot.slane %v6269, 5
        %v6362 = vrot.slane %v6269, 6
        %v6363 = vrot.slane %v6269, 7
        %v6364 = vrot.slane %v6270, 1
        %v6365 = vrot.slane %v6270, 2
        %v6366 = vrot.slane %v6270, 3
        %v6367 = vrot.slane %v6270, 4
        %v6368 = vrot.slane %v6271, 1
        %v6369 = vrot.slane %v6271, 2
        %v6370 = vrot.slane %v6271, 3
        %v6371 = vrot.slane %v6271, 4
        %v6372 = vrot.slane %v6271, 5
        %v6373 = vrot.slane %v6271, 6
        %v6374 = vrot.slane %v6271, 7
        %v6375 = vrot.slane %v6272, 1
        %v6376 = vrot.slane %v6272, 2
        %v6377 = vrot.slane %v6272, 3
        %v6378 = vrot.slane %v6272, 4
        %v6379 = vrot.slane %v6273, 1
        %v6380 = vrot.slane %v6273, 2
        %v6381 = vrot.slane %v6273, 3
        %v6382 = vrot.slane %v6273, 4
        %v6383 = vrot.slane %v6273, 5
        %v6384 = vrot.slane %v6273, 6
        %v6385 = vrot.slane %v6273, 7
        %v6386 = vrot.slane %v6274, 1
        %v6387 = vrot.slane %v6274, 2
        %v6388 = vrot.slane %v6274, 3
        %v6389 = vrot.slane %v6274, 4
        %v6390 = vrot.slane %v6275, 1
        %v6391 = vrot.slane %v6275, 2
        %v6392 = vrot.slane %v6275, 3
        %v6393 = vrot.slane %v6275, 4
        %v6394 = vrot.slane %v6275, 5
        %v6395 = vrot.slane %v6275, 6
        %v6396 = vrot.slane %v6275, 7
        %v6397 = vrot.slane %v6276, 1
        %v6398 = vrot.slane %v6276, 2
        %v6399 = vrot.slane %v6276, 3
        %v6400 = vrot.slane %v6276, 4
        %v6401 = vrot.slane %v6277, 1
        %v6402 = vrot.slane %v6277, 2
        %v6403 = vrot.slane %v6277, 3
        %v6404 = vrot.slane %v6277, 4
        %v6405 = vrot.slane %v6277, 5
        %v6406 = vrot.slane %v6277, 6
        %v6407 = vrot.slane %v6277, 7
        %v6408 = vrot.slane %v6278, 1
        %v6409 = vrot.slane %v6278, 2
        %v6410 = vrot.slane %v6278, 3
        %v6411 = vrot.slane %v6278, 4
        %v6412 = vrot.slane %v6279, 1
        %v6413 = vrot.slane %v6279, 2
        %v6414 = vrot.slane %v6279, 3
        %v6415 = vrot.slane %v6279, 4
        %v6416 = vrot.slane %v6279, 5
        %v6417 = vrot.slane %v6279, 6
        %v6418 = vrot.slane %v6279, 7
        %v6419 = vrot.slane %v6280, 1
        %v6420 = vrot.slane %v6280, 2
        %v6421 = vrot.slane %v6280, 3
        %v6422 = vrot.slane %v6280, 4
        %v6423 = vrot.slane %v6281, 1
        %v6424 = vrot.slane %v6281, 2
        %v6425 = vrot.slane %v6281, 3
        %v6426 = vrot.slane %v6281, 4
        %v6427 = vrot.slane %v6281, 5
        %v6428 = vrot.slane %v6281, 6
        %v6429 = vrot.slane %v6281, 7
        %v6430 = vrot.slane %v6282, 1
        %v6431 = vrot.slane %v6282, 2
        %v6432 = vrot.slane %v6282, 3
        %v6433 = vrot.slane %v6282, 4
        %v6434 = vrot.slane %v6283, 1
        %v6435 = vrot.slane %v6283, 2
        %v6436 = vrot.slane %v6283, 3
        %v6437 = vrot.slane %v6283, 4
        %v6438 = vrot.slane %v6283, 5
        %v6439 = vrot.slane %v6283, 6
        %v6440 = vrot.slane %v6283, 7
        %v6441 = vrot.slane %v6284, 1
        %v6442 = vrot.slane %v6284, 2
        %v6443 = vrot.slane %v6284, 3
        %v6444 = vrot.slane %v6284, 4
        %v6445 = vrot.slane %v6285, 1
        %v6446 = vrot.slane %v6285, 2
        %v6447 = vrot.slane %v6285, 3
        %v6448 = vrot.slane %v6285, 4
        %v6449 = vrot.slane %v6285, 5
        %v6450 = vrot.slane %v6285, 6
        %v6451 = vrot.slane %v6285, 7
        %v6452 = vrot.slane %v6286, 1
        %v6453 = vrot.slane %v6286, 2
        %v6454 = vrot.slane %v6286, 3
        %v6455 = vrot.slane %v6286, 4
        %6456 = vst [vmem:[#allocation1] ss:$9 sm:$0xff] %v6261
        %s6457 = scalar_lea.vmem [#allocation1], 1
        %6458 = vst [vmem:[%s6457] ss:$9 sm:$0xff] %v6313
        %s6459 = scalar_lea.vmem [#allocation1], 2
        %6460 = vst [vmem:[%s6459] ss:$9 sm:$0xff] %v6314
        %s6461 = scalar_lea.vmem [#allocation1], 3
        %6462 = vst [vmem:[%s6461] ss:$9 sm:$0xff] %v6315
        %s6463 = scalar_lea.vmem [#allocation1], 4
        %6464 = vst [vmem:[%s6463] ss:$9 sm:$0xff] %v6316
        %s6465 = scalar_lea.vmem [#allocation1], 5
        %6466 = vst [vmem:[%s6465] ss:$9 sm:$0xff] %v6317
        %s6467 = scalar_lea.vmem [#allocation1], 6
        %6468 = vst [vmem:[%s6467] ss:$9 sm:$0xff] %v6318
        %s6469 = scalar_lea.vmem [#allocation1], 7
        %6470 = vst [vmem:[%s6469] ss:$9 sm:$0xff] %v6319
        %v6471 = vld [vmem:[#allocation1] sm:$0xff]
        %6472 = vst [vmem:[#allocation1] ss:$9 sm:$0xff] %v6262
        %6473 = vst [vmem:[%s6457] ss:$9 sm:$0xff] %v6320
        %6474 = vst [vmem:[%s6459] ss:$9 sm:$0xff] %v6321
        %6475 = vst [vmem:[%s6461] ss:$9 sm:$0xff] %v6322
        %6476 = vst [vmem:[%s6463] ss:$9 sm:$0xff] %v6323
        %6477 = vst [vmem:[%s6465] ss:$9 sm:$0xff] %v6263
        %6478 = vst [vmem:[%s6467] ss:$9 sm:$0xff] %v6324
        %6479 = vst [vmem:[%s6469] ss:$9 sm:$0xff] %v6325
        %v6480 = vld [vmem:[#allocation1] sm:$0xff]
        %6481 = vst [vmem:[#allocation1] ss:$9 sm:$0xff] %v6326
        %6482 = vst [vmem:[%s6457] ss:$9 sm:$0xff] %v6327
        %6483 = vst [vmem:[%s6459] ss:$9 sm:$0xff] %v6328
        %6484 = vst [vmem:[%s6461] ss:$9 sm:$0xff] %v6329
        %6485 = vst [vmem:[%s6463] ss:$9 sm:$0xff] %v6330
        %6486 = vst [vmem:[%s6465] ss:$9 sm:$0xff] %v6264
        %6487 = vst [vmem:[%s6467] ss:$9 sm:$0xff] %v6331
        %6488 = vst [vmem:[%s6469] ss:$9 sm:$0xff] %v6332
        %v6489 = vld [vmem:[#allocation1] sm:$0xff]
        %6490 = vst [vmem:[#allocation1] ss:$9 sm:$0xff] %v6333
        %6491 = vst [vmem:[%s6457] ss:$9 sm:$0xff] %v6334
        %6492 = vst [vmem:[%s6459] ss:$9 sm:$0xff] %v6265
        %6493 = vst [vmem:[%s6461] ss:$9 sm:$0xff] %v6335
        %6494 = vst [vmem:[%s6463] ss:$9 sm:$0xff] %v6336
        %6495 = vst [vmem:[%s6465] ss:$9 sm:$0xff] %v6337
        %6496 = vst [vmem:[%s6467] ss:$9 sm:$0xff] %v6338
        %6497 = vst [vmem:[%s6469] ss:$9 sm:$0xff] %v6339
        %v6498 = vld [vmem:[#allocation1] sm:$0xff]
        %6499 = vst [vmem:[#allocation1] ss:$9 sm:$0xff] %v6340
        %6500 = vst [vmem:[%s6457] ss:$9 sm:$0xff] %v6341
        %6501 = vst [vmem:[%s6459] ss:$9 sm:$0xff] %v6266
        %6502 = vst [vmem:[%s6461] ss:$9 sm:$0xff] %v6342
        %6503 = vst [vmem:[%s6463] ss:$9 sm:$0xff] %v6343
        %6504 = vst [vmem:[%s6465] ss:$9 sm:$0xff] %v6344
        %6505 = vst [vmem:[%s6467] ss:$9 sm:$0xff] %v6345
        %6506 = vst [vmem:[%s6469] ss:$9 sm:$0xff] %v6267
        %v6507 = vld [vmem:[#allocation1] sm:$0xff]
        %6508 = vst [vmem:[#allocation1] ss:$9 sm:$0xff] %v6346
        %6509 = vst [vmem:[%s6457] ss:$9 sm:$0xff] %v6347
        %6510 = vst [vmem:[%s6459] ss:$9 sm:$0xff] %v6348
        %6511 = vst [vmem:[%s6461] ss:$9 sm:$0xff] %v6349
        %6512 = vst [vmem:[%s6463] ss:$9 sm:$0xff] %v6350
        %6513 = vst [vmem:[%s6465] ss:$9 sm:$0xff] %v6351
        %6514 = vst [vmem:[%s6467] ss:$9 sm:$0xff] %v6352
        %6515 = vst [vmem:[%s6469] ss:$9 sm:$0xff] %v6268
        %v6516 = vld [vmem:[#allocation1] sm:$0xff]
        %6517 = vst [vmem:[#allocation1] ss:$9 sm:$0xff] %v6353
        %6518 = vst [vmem:[%s6457] ss:$9 sm:$0xff] %v6354
        %6519 = vst [vmem:[%s6459] ss:$9 sm:$0xff] %v6355
        %6520 = vst [vmem:[%s6461] ss:$9 sm:$0xff] %v6356
        %6521 = vst [vmem:[%s6463] ss:$9 sm:$0xff] %v6269
        %6522 = vst [vmem:[%s6465] ss:$9 sm:$0xff] %v6357
        %6523 = vst [vmem:[%s6467] ss:$9 sm:$0xff] %v6358
        %6524 = vst [vmem:[%s6469] ss:$9 sm:$0xff] %v6359
        %v6525 = vld [vmem:[#allocation1] sm:$0xff]
        %6526 = vst [vmem:[#allocation1] ss:$9 sm:$0xff] %v6360
        %6527 = vst [vmem:[%s6457] ss:$9 sm:$0xff] %v6361
        %6528 = vst [vmem:[%s6459] ss:$9 sm:$0xff] %v6362
        %6529 = vst [vmem:[%s6461] ss:$9 sm:$0xff] %v6363
        %6530 = vst [vmem:[%s6463] ss:$9 sm:$0xff] %v6270
        %6531 = vst [vmem:[%s6465] ss:$9 sm:$0xff] %v6364
        %6532 = vst [vmem:[%s6467] ss:$9 sm:$0xff] %v6365
        %6533 = vst [vmem:[%s6469] ss:$9 sm:$0xff] %v6366
        %v6534 = vld [vmem:[#allocation1] sm:$0xff]
        %6535 = vst [vmem:[#allocation1] ss:$9 sm:$0xff] %v6367
        %6536 = vst [vmem:[%s6457] ss:$9 sm:$0xff] %v6271
        %6537 = vst [vmem:[%s6459] ss:$9 sm:$0xff] %v6368
        %6538 = vst [vmem:[%s6461] ss:$9 sm:$0xff] %v6369
        %6539 = vst [vmem:[%s6463] ss:$9 sm:$0xff] %v6370
        %6540 = vst [vmem:[%s6465] ss:$9 sm:$0xff] %v6371
        %6541 = vst [vmem:[%s6467] ss:$9 sm:$0xff] %v6372
        %6542 = vst [vmem:[%s6469] ss:$9 sm:$0xff] %v6373
        %v6543 = vld [vmem:[#allocation1] sm:$0xff]
        %6544 = vst [vmem:[#allocation1] ss:$9 sm:$0xff] %v6374
        %6545 = vst [vmem:[%s6457] ss:$9 sm:$0xff] %v6272
        %6546 = vst [vmem:[%s6459] ss:$9 sm:$0xff] %v6375
        %6547 = vst [vmem:[%s6461] ss:$9 sm:$0xff] %v6376
        %6548 = vst [vmem:[%s6463] ss:$9 sm:$0xff] %v6377
        %6549 = vst [vmem:[%s6465] ss:$9 sm:$0xff] %v6378
        %6550 = vst [vmem:[%s6467] ss:$9 sm:$0xff] %v6273
        %6551 = vst [vmem:[%s6469] ss:$9 sm:$0xff] %v6379
        %v6552 = vld [vmem:[#allocation1] sm:$0xff]
        %6553 = vst [vmem:[#allocation1] ss:$9 sm:$0xff] %v6380
        %6554 = vst [vmem:[%s6457] ss:$9 sm:$0xff] %v6381
        %6555 = vst [vmem:[%s6459] ss:$9 sm:$0xff] %v6382
        %6556 = vst [vmem:[%s6461] ss:$9 sm:$0xff] %v6383
        %6557 = vst [vmem:[%s6463] ss:$9 sm:$0xff] %v6384
        %6558 = vst [vmem:[%s6465] ss:$9 sm:$0xff] %v6385
        %6559 = vst [vmem:[%s6467] ss:$9 sm:$0xff] %v6274
        %6560 = vst [vmem:[%s6469] ss:$9 sm:$0xff] %v6386
        %v6561 = vld [vmem:[#allocation1] sm:$0xff]
        %6562 = vst [vmem:[#allocation1] ss:$9 sm:$0xff] %v6387
        %6563 = vst [vmem:[%s6457] ss:$9 sm:$0xff] %v6388
        %6564 = vst [vmem:[%s6459] ss:$9 sm:$0xff] %v6389
        %6565 = vst [vmem:[%s6461] ss:$9 sm:$0xff] %v6275
        %6566 = vst [vmem:[%s6463] ss:$9 sm:$0xff] %v6390
        %6567 = vst [vmem:[%s6465] ss:$9 sm:$0xff] %v6391
        %6568 = vst [vmem:[%s6467] ss:$9 sm:$0xff] %v6392
        %6569 = vst [vmem:[%s6469] ss:$9 sm:$0xff] %v6393
        %v6570 = vld [vmem:[#allocation1] sm:$0xff]
        %6571 = vst [vmem:[#allocation1] ss:$9 sm:$0xff] %v6394
        %6572 = vst [vmem:[%s6457] ss:$9 sm:$0xff] %v6395
        %6573 = vst [vmem:[%s6459] ss:$9 sm:$0xff] %v6396
        %6574 = vst [vmem:[%s6461] ss:$9 sm:$0xff] %v6276
        %6575 = vst [vmem:[%s6463] ss:$9 sm:$0xff] %v6397
        %6576 = vst [vmem:[%s6465] ss:$9 sm:$0xff] %v6398
        %6577 = vst [vmem:[%s6467] ss:$9 sm:$0xff] %v6399
        %6578 = vst [vmem:[%s6469] ss:$9 sm:$0xff] %v6400
        %v6579 = vld [vmem:[#allocation1] sm:$0xff]
        %6580 = vst [vmem:[#allocation1] ss:$9 sm:$0xff] %v6277
        %6581 = vst [vmem:[%s6457] ss:$9 sm:$0xff] %v6401
        %6582 = vst [vmem:[%s6459] ss:$9 sm:$0xff] %v6402
        %6583 = vst [vmem:[%s6461] ss:$9 sm:$0xff] %v6403
        %6584 = vst [vmem:[%s6463] ss:$9 sm:$0xff] %v6404
        %6585 = vst [vmem:[%s6465] ss:$9 sm:$0xff] %v6405
        %6586 = vst [vmem:[%s6467] ss:$9 sm:$0xff] %v6406
        %6587 = vst [vmem:[%s6469] ss:$9 sm:$0xff] %v6407
        %v6588 = vld [vmem:[#allocation1] sm:$0xff]
        %6589 = vst [vmem:[#allocation1] ss:$9 sm:$0xff] %v6278
        %6590 = vst [vmem:[%s6457] ss:$9 sm:$0xff] %v6408
        %6591 = vst [vmem:[%s6459] ss:$9 sm:$0xff] %v6409
        %6592 = vst [vmem:[%s6461] ss:$9 sm:$0xff] %v6410
        %6593 = vst [vmem:[%s6463] ss:$9 sm:$0xff] %v6411
        %6594 = vst [vmem:[%s6465] ss:$9 sm:$0xff] %v6279
        %6595 = vst [vmem:[%s6467] ss:$9 sm:$0xff] %v6412
        %6596 = vst [vmem:[%s6469] ss:$9 sm:$0xff] %v6413
        %v6597 = vld [vmem:[#allocation1] sm:$0xff]
        %6598 = vst [vmem:[#allocation1] ss:$9 sm:$0xff] %v6414
        %6599 = vst [vmem:[%s6457] ss:$9 sm:$0xff] %v6415
        %6600 = vst [vmem:[%s6459] ss:$9 sm:$0xff] %v6416
        %6601 = vst [vmem:[%s6461] ss:$9 sm:$0xff] %v6417
        %6602 = vst [vmem:[%s6463] ss:$9 sm:$0xff] %v6418
        %6603 = vst [vmem:[%s6465] ss:$9 sm:$0xff] %v6280
        %6604 = vst [vmem:[%s6467] ss:$9 sm:$0xff] %v6419
        %6605 = vst [vmem:[%s6469] ss:$9 sm:$0xff] %v6420
        %v6606 = vld [vmem:[#allocation1] sm:$0xff]
        %6607 = vst [vmem:[#allocation1] ss:$9 sm:$0xff] %v6421
        %6608 = vst [vmem:[%s6457] ss:$9 sm:$0xff] %v6422
        %6609 = vst [vmem:[%s6459] ss:$9 sm:$0xff] %v6281
        %6610 = vst [vmem:[%s6461] ss:$9 sm:$0xff] %v6423
        %6611 = vst [vmem:[%s6463] ss:$9 sm:$0xff] %v6424
        %6612 = vst [vmem:[%s6465] ss:$9 sm:$0xff] %v6425
        %6613 = vst [vmem:[%s6467] ss:$9 sm:$0xff] %v6426
        %6614 = vst [vmem:[%s6469] ss:$9 sm:$0xff] %v6427
        %v6615 = vld [vmem:[#allocation1] sm:$0xff]
        %6616 = vst [vmem:[#allocation1] ss:$9 sm:$0xff] %v6428
        %6617 = vst [vmem:[%s6457] ss:$9 sm:$0xff] %v6429
        %6618 = vst [vmem:[%s6459] ss:$9 sm:$0xff] %v6282
        %6619 = vst [vmem:[%s6461] ss:$9 sm:$0xff] %v6430
        %6620 = vst [vmem:[%s6463] ss:$9 sm:$0xff] %v6431
        %6621 = vst [vmem:[%s6465] ss:$9 sm:$0xff] %v6432
        %6622 = vst [vmem:[%s6467] ss:$9 sm:$0xff] %v6433
        %6623 = vst [vmem:[%s6469] ss:$9 sm:$0xff] %v6283
        %v6624 = vld [vmem:[#allocation1] sm:$0xff]
        %6625 = vst [vmem:[#allocation1] ss:$9 sm:$0xff] %v6434
        %6626 = vst [vmem:[%s6457] ss:$9 sm:$0xff] %v6435
        %6627 = vst [vmem:[%s6459] ss:$9 sm:$0xff] %v6436
        %6628 = vst [vmem:[%s6461] ss:$9 sm:$0xff] %v6437
        %6629 = vst [vmem:[%s6463] ss:$9 sm:$0xff] %v6438
        %6630 = vst [vmem:[%s6465] ss:$9 sm:$0xff] %v6439
        %6631 = vst [vmem:[%s6467] ss:$9 sm:$0xff] %v6440
        %6632 = vst [vmem:[%s6469] ss:$9 sm:$0xff] %v6284
        %v6633 = vld [vmem:[#allocation1] sm:$0xff]
        %6634 = vst [vmem:[#allocation1] ss:$9 sm:$0xff] %v6441
        %6635 = vst [vmem:[%s6457] ss:$9 sm:$0xff] %v6442
        %6636 = vst [vmem:[%s6459] ss:$9 sm:$0xff] %v6443
        %6637 = vst [vmem:[%s6461] ss:$9 sm:$0xff] %v6444
        %6638 = vst [vmem:[%s6463] ss:$9 sm:$0xff] %v6285
        %6639 = vst [vmem:[%s6465] ss:$9 sm:$0xff] %v6445
        %6640 = vst [vmem:[%s6467] ss:$9 sm:$0xff] %v6446
        %6641 = vst [vmem:[%s6469] ss:$9 sm:$0xff] %v6447
        %v6642 = vld [vmem:[#allocation1] sm:$0xff]
        %6643 = vst [vmem:[#allocation1] ss:$9 sm:$0xff] %v6448
        %6644 = vst [vmem:[%s6457] ss:$9 sm:$0xff] %v6449
        %6645 = vst [vmem:[%s6459] ss:$9 sm:$0xff] %v6450
        %6646 = vst [vmem:[%s6461] ss:$9 sm:$0xff] %v6451
        %6647 = vst [vmem:[%s6463] ss:$9 sm:$0xff] %v6286
        %6648 = vst [vmem:[%s6465] ss:$9 sm:$0xff] %v6452
        %6649 = vst [vmem:[%s6467] ss:$9 sm:$0xff] %v6453
        %6650 = vst [vmem:[%s6469] ss:$9 sm:$0xff] %v6454
        %v6651 = vld [vmem:[#allocation1] sm:$0xff]
        %6652 = vst [vmem:[#allocation1] ss:$9 sm:$0xff] %v6455
        %v6653 = vld [vmem:[#allocation1] sm:$0xff]
        %v6676 = vpack.c.bf16 %v6480, %v6471
        %v6677 = vpack.c.bf16 %v6498, %v6489
        %v6678 = vpack.c.bf16 %v6516, %v6507
        %v6679 = vpack.c.bf16 %v6534, %v6525
        %v6680 = vpack.c.bf16 %v6552, %v6543
        %v6681 = vpack.c.bf16 %v6570, %v6561
        %v6682 = vpack.c.bf16 %v6588, %v6579
        %v6683 = vpack.c.bf16 %v6606, %v6597
        %v6684 = vpack.c.bf16 %v6624, %v6615
        %v6685 = vpack.c.bf16 %v6642, %v6633
        %v6686 = vpack.c.bf16 %v6653, %v6651
        %v6687 = vld [vmem:[%s5] sm:$0xf]
        %v6688 = vld [vmem:[%s5 + $0x4] sm:$0xf]
        %v6689 = vld [vmem:[%s5 + $0x8] sm:$0xf]
        %v6690 = vld [vmem:[%s5 + $0xc] sm:$0xf]
        %v6691 = vld [vmem:[%s5 + $0x10] sm:$0xf]
        %v6692 = vld [vmem:[%s5 + $0x14] sm:$0xf]
        %v6693 = vld [vmem:[%s5 + $0x18] sm:$0xf]
        %v6694 = vld [vmem:[%s5 + $0x1c] sm:$0xf]
        %v6695 = vld [vmem:[%s5 + $0x20] sm:$0xf]
        %v6696 = vld [vmem:[%s6] sm:$0x1]
        %v6698 = vperm.slane %v6696, 0
        %v6709 = vunpack.c.l.b16 %v6687
        %v6710 = vunpack.c.l.b16 %v6688
        %v6711 = vunpack.c.l.b16 %v6689
        %v6712 = vunpack.c.l.b16 %v6690
        %v6713 = vunpack.c.l.b16 %v6691
        %v6714 = vunpack.c.l.b16 %v6692
        %v6715 = vunpack.c.l.b16 %v6693
        %v6716 = vunpack.c.l.b16 %v6694
        %v6717 = vunpack.c.l.b16 %v6695
        %v6718 = vpack.c.b16 %v6710, %v6709
        %v6719 = vpack.c.b16 %v6712, %v6711
        %v6720 = vpack.c.b16 %v6714, %v6713
        %v6721 = vpack.c.b16 %v6716, %v6715
        %v6722 = vpack.c.b16 %v6717, %v6717
        %v6728 = vsel %vm4463, %v6676, 0
        %v6731 = vsel %vm4463, %v6677, 0
        %v6734 = vsel %vm4463, %v6678, 0
        %v6737 = vsel %vm4463, %v6679, 0
        %v6740 = vsel %vm4463, %v6680, 0
        %v6743 = vsel %vm4463, %v6681, 0
        %v6746 = vsel %vm4463, %v6682, 0
        %v6749 = vsel %vm4463, %v6683, 0
        %v6752 = vsel %vm4463, %v6684, 0
        %v6755 = vsel %vm4463, %v6685, 0
        %v6758 = vsel %vm4463, %v6686, 0
        %v6761 = vsel %vm4497, %v6722, 0
        %6763 = vmatpush.bf16.msra.mxu0 0
        %6764 = vmatpush.bf16.msra.mxu0 0
        %6765 = vmatpush.bf16.msra.mxu0 0
        %6766 = vmatpush.bf16.msra.mxu0 %v6761
        %6767 = vmatpush.bf16.msra.mxu0 %v6721
        %6768 = vmatpush.bf16.msra.mxu0 %v6720
        %6769 = vmatpush.bf16.msra.mxu0 %v6719
        %6770 = vmatpush.bf16.msra.mxu0 %v6718
        %6771 = vmatmul.bf16.gmra.mxu0 %v6728
        %v6772 = vpop.f32.mrf.mxu0
        %v6773 = vadd.f32 %v6698, %v6772
        %v6774 = vpop.f32.mrf.mxu0
        %v6775 = vadd.f32 %v6698, %v6774
        %6776 = vmatmul.bf16.gmra.mxu0 %v6731
        %v6777 = vpop.f32.mrf.mxu0
        %v6778 = vadd.f32 %v6698, %v6777
        %v6779 = vpop.f32.mrf.mxu0
        %v6780 = vadd.f32 %v6698, %v6779
        %6781 = vmatmul.bf16.gmra.mxu0 %v6734
        %v6782 = vpop.f32.mrf.mxu0
        %v6783 = vadd.f32 %v6698, %v6782
        %v6784 = vpop.f32.mrf.mxu0
        %v6785 = vadd.f32 %v6698, %v6784
        %6786 = vmatmul.bf16.gmra.mxu0 %v6737
        %v6787 = vpop.f32.mrf.mxu0
        %v6788 = vadd.f32 %v6698, %v6787
        %v6789 = vpop.f32.mrf.mxu0
        %v6790 = vadd.f32 %v6698, %v6789
        %6791 = vmatmul.bf16.gmra.mxu0 %v6740
        %v6792 = vpop.f32.mrf.mxu0
        %v6793 = vadd.f32 %v6698, %v6792
        %v6794 = vpop.f32.mrf.mxu0
        %v6795 = vadd.f32 %v6698, %v6794
        %6796 = vmatmul.bf16.gmra.mxu0 %v6743
        %v6797 = vpop.f32.mrf.mxu0
        %v6798 = vadd.f32 %v6698, %v6797
        %v6799 = vpop.f32.mrf.mxu0
        %v6800 = vadd.f32 %v6698, %v6799
        %6801 = vmatmul.bf16.gmra.mxu0 %v6746
        %v6802 = vpop.f32.mrf.mxu0
        %v6803 = vadd.f32 %v6698, %v6802
        %v6804 = vpop.f32.mrf.mxu0
        %v6805 = vadd.f32 %v6698, %v6804
        %6806 = vmatmul.bf16.gmra.mxu0 %v6749
        %v6807 = vpop.f32.mrf.mxu0
        %v6808 = vadd.f32 %v6698, %v6807
        %v6809 = vpop.f32.mrf.mxu0
        %v6810 = vadd.f32 %v6698, %v6809
        %6811 = vmatmul.bf16.gmra.mxu0 %v6752
        %v6812 = vpop.f32.mrf.mxu0
        %v6813 = vadd.f32 %v6698, %v6812
        %v6814 = vpop.f32.mrf.mxu0
        %v6815 = vadd.f32 %v6698, %v6814
        %6816 = vmatmul.bf16.gmra.mxu0 %v6755
        %v6817 = vpop.f32.mrf.mxu0
        %v6818 = vadd.f32 %v6698, %v6817
        %v6819 = vpop.f32.mrf.mxu0
        %v6820 = vadd.f32 %v6698, %v6819
        %6821 = vmatmul.bf16.gmra.mxu0 %v6758
        %v6822 = vpop.f32.mrf.mxu0
        %v6823 = vadd.f32 %v6698, %v6822
        %v6824 = vpop.f32.mrf.mxu0
        %v6825 = vadd.f32 %v6698, %v6824
        %6826 = vdwg.mxu0
        %v6827 = vmax.f32 %v6773, 0.0
        %v6828 = vmax.f32 %v6775, 0.0
        %v6829 = vmax.f32 %v6778, 0.0
        %v6830 = vmax.f32 %v6780, 0.0
        %v6831 = vmax.f32 %v6783, 0.0
        %v6832 = vmax.f32 %v6785, 0.0
        %v6833 = vmax.f32 %v6788, 0.0
        %v6834 = vmax.f32 %v6790, 0.0
        %v6835 = vmax.f32 %v6793, 0.0
        %v6836 = vmax.f32 %v6795, 0.0
        %v6837 = vmax.f32 %v6798, 0.0
        %v6838 = vmax.f32 %v6800, 0.0
        %v6839 = vmax.f32 %v6803, 0.0
        %v6840 = vmax.f32 %v6805, 0.0
        %v6841 = vmax.f32 %v6808, 0.0
        %v6842 = vmax.f32 %v6810, 0.0
        %v6843 = vmax.f32 %v6813, 0.0
        %v6844 = vmax.f32 %v6815, 0.0
        %v6845 = vmax.f32 %v6818, 0.0
        %v6846 = vmax.f32 %v6820, 0.0
        %v6847 = vmax.f32 %v6823, 0.0
        %v6848 = vmax.f32 %v6825, 0.0
        %v6871 = vrot.slane %v6827, 1
        %v6872 = vrot.slane %v6827, 2
        %v6873 = vrot.slane %v6827, 3
        %v6874 = vrot.slane %v6827, 4
        %v6875 = vrot.slane %v6827, 5
        %v6876 = vrot.slane %v6827, 6
        %v6877 = vrot.slane %v6827, 7
        %v6878 = vrot.slane %v6828, 1
        %v6879 = vrot.slane %v6828, 2
        %v6880 = vrot.slane %v6828, 3
        %v6881 = vrot.slane %v6828, 4
        %v6882 = vrot.slane %v6828, 5
        %v6883 = vrot.slane %v6828, 6
        %v6884 = vrot.slane %v6828, 7
        %v6885 = vrot.slane %v6829, 1
        %v6886 = vrot.slane %v6829, 2
        %v6887 = vrot.slane %v6829, 3
        %v6888 = vrot.slane %v6829, 4
        %v6889 = vrot.slane %v6829, 5
        %v6890 = vrot.slane %v6829, 6
        %v6891 = vrot.slane %v6829, 7
        %v6892 = vrot.slane %v6830, 1
        %v6893 = vrot.slane %v6830, 2
        %v6894 = vrot.slane %v6830, 3
        %v6895 = vrot.slane %v6830, 4
        %v6896 = vrot.slane %v6830, 5
        %v6897 = vrot.slane %v6830, 6
        %v6898 = vrot.slane %v6830, 7
        %v6899 = vrot.slane %v6831, 1
        %v6900 = vrot.slane %v6831, 2
        %v6901 = vrot.slane %v6831, 3
        %v6902 = vrot.slane %v6831, 4
        %v6903 = vrot.slane %v6831, 5
        %v6904 = vrot.slane %v6831, 6
        %v6905 = vrot.slane %v6831, 7
        %v6906 = vrot.slane %v6832, 1
        %v6907 = vrot.slane %v6832, 2
        %v6908 = vrot.slane %v6832, 3
        %v6909 = vrot.slane %v6832, 4
        %v6910 = vrot.slane %v6832, 5
        %v6911 = vrot.slane %v6832, 6
        %v6912 = vrot.slane %v6832, 7
        %v6913 = vrot.slane %v6833, 1
        %v6914 = vrot.slane %v6833, 2
        %v6915 = vrot.slane %v6833, 3
        %v6916 = vrot.slane %v6833, 4
        %v6917 = vrot.slane %v6833, 5
        %v6918 = vrot.slane %v6833, 6
        %v6919 = vrot.slane %v6833, 7
        %v6920 = vrot.slane %v6834, 1
        %v6921 = vrot.slane %v6834, 2
        %v6922 = vrot.slane %v6834, 3
        %v6923 = vrot.slane %v6834, 4
        %v6924 = vrot.slane %v6834, 5
        %v6925 = vrot.slane %v6834, 6
        %v6926 = vrot.slane %v6834, 7
        %v6927 = vrot.slane %v6835, 1
        %v6928 = vrot.slane %v6835, 2
        %v6929 = vrot.slane %v6835, 3
        %v6930 = vrot.slane %v6835, 4
        %v6931 = vrot.slane %v6835, 5
        %v6932 = vrot.slane %v6835, 6
        %v6933 = vrot.slane %v6835, 7
        %v6934 = vrot.slane %v6836, 1
        %v6935 = vrot.slane %v6836, 2
        %v6936 = vrot.slane %v6836, 3
        %v6937 = vrot.slane %v6836, 4
        %v6938 = vrot.slane %v6836, 5
        %v6939 = vrot.slane %v6836, 6
        %v6940 = vrot.slane %v6836, 7
        %v6941 = vrot.slane %v6837, 1
        %v6942 = vrot.slane %v6837, 2
        %v6943 = vrot.slane %v6837, 3
        %v6944 = vrot.slane %v6837, 4
        %v6945 = vrot.slane %v6837, 5
        %v6946 = vrot.slane %v6837, 6
        %v6947 = vrot.slane %v6837, 7
        %v6948 = vrot.slane %v6838, 1
        %v6949 = vrot.slane %v6838, 2
        %v6950 = vrot.slane %v6838, 3
        %v6951 = vrot.slane %v6838, 4
        %v6952 = vrot.slane %v6838, 5
        %v6953 = vrot.slane %v6838, 6
        %v6954 = vrot.slane %v6838, 7
        %v6955 = vrot.slane %v6839, 1
        %v6956 = vrot.slane %v6839, 2
        %v6957 = vrot.slane %v6839, 3
        %v6958 = vrot.slane %v6839, 4
        %v6959 = vrot.slane %v6839, 5
        %v6960 = vrot.slane %v6839, 6
        %v6961 = vrot.slane %v6839, 7
        %v6962 = vrot.slane %v6840, 1
        %v6963 = vrot.slane %v6840, 2
        %v6964 = vrot.slane %v6840, 3
        %v6965 = vrot.slane %v6840, 4
        %v6966 = vrot.slane %v6840, 5
        %v6967 = vrot.slane %v6840, 6
        %v6968 = vrot.slane %v6840, 7
        %v6969 = vrot.slane %v6841, 1
        %v6970 = vrot.slane %v6841, 2
        %v6971 = vrot.slane %v6841, 3
        %v6972 = vrot.slane %v6841, 4
        %v6973 = vrot.slane %v6841, 5
        %v6974 = vrot.slane %v6841, 6
        %v6975 = vrot.slane %v6841, 7
        %v6976 = vrot.slane %v6842, 1
        %v6977 = vrot.slane %v6842, 2
        %v6978 = vrot.slane %v6842, 3
        %v6979 = vrot.slane %v6842, 4
        %v6980 = vrot.slane %v6842, 5
        %v6981 = vrot.slane %v6842, 6
        %v6982 = vrot.slane %v6842, 7
        %v6983 = vrot.slane %v6843, 1
        %v6984 = vrot.slane %v6843, 2
        %v6985 = vrot.slane %v6843, 3
        %v6986 = vrot.slane %v6843, 4
        %v6987 = vrot.slane %v6843, 5
        %v6988 = vrot.slane %v6843, 6
        %v6989 = vrot.slane %v6843, 7
        %v6990 = vrot.slane %v6844, 1
        %v6991 = vrot.slane %v6844, 2
        %v6992 = vrot.slane %v6844, 3
        %v6993 = vrot.slane %v6844, 4
        %v6994 = vrot.slane %v6844, 5
        %v6995 = vrot.slane %v6844, 6
        %v6996 = vrot.slane %v6844, 7
        %v6997 = vrot.slane %v6845, 1
        %v6998 = vrot.slane %v6845, 2
        %v6999 = vrot.slane %v6845, 3
        %v7000 = vrot.slane %v6845, 4
        %v7001 = vrot.slane %v6845, 5
        %v7002 = vrot.slane %v6845, 6
        %v7003 = vrot.slane %v6845, 7
        %v7004 = vrot.slane %v6846, 1
        %v7005 = vrot.slane %v6846, 2
        %v7006 = vrot.slane %v6846, 3
        %v7007 = vrot.slane %v6846, 4
        %v7008 = vrot.slane %v6846, 5
        %v7009 = vrot.slane %v6846, 6
        %v7010 = vrot.slane %v6846, 7
        %v7011 = vrot.slane %v6847, 1
        %v7012 = vrot.slane %v6847, 2
        %v7013 = vrot.slane %v6847, 3
        %v7014 = vrot.slane %v6847, 4
        %v7015 = vrot.slane %v6847, 5
        %v7016 = vrot.slane %v6847, 6
        %v7017 = vrot.slane %v6847, 7
        %7018 = vst [vmem:[#allocation1] ss:$9 sm:$0xff] %v6827
        %s7019 = scalar_lea.vmem [#allocation1], 1
        %7020 = vst [vmem:[%s7019] ss:$9 sm:$0xff] %v6871
        %s7021 = scalar_lea.vmem [#allocation1], 2
        %7022 = vst [vmem:[%s7021] ss:$9 sm:$0xff] %v6872
        %s7023 = scalar_lea.vmem [#allocation1], 3
        %7024 = vst [vmem:[%s7023] ss:$9 sm:$0xff] %v6873
        %s7025 = scalar_lea.vmem [#allocation1], 4
        %7026 = vst [vmem:[%s7025] ss:$9 sm:$0xff] %v6874
        %s7027 = scalar_lea.vmem [#allocation1], 5
        %7028 = vst [vmem:[%s7027] ss:$9 sm:$0xff] %v6875
        %s7029 = scalar_lea.vmem [#allocation1], 6
        %7030 = vst [vmem:[%s7029] ss:$9 sm:$0xff] %v6876
        %s7031 = scalar_lea.vmem [#allocation1], 7
        %7032 = vst [vmem:[%s7031] ss:$9 sm:$0xff] %v6877
        %v7033 = vld [vmem:[#allocation1] sm:$0xff]
        %7034 = vst [vmem:[#allocation1] ss:$9 sm:$0xff] %v6828
        %7035 = vst [vmem:[%s7019] ss:$9 sm:$0xff] %v6878
        %7036 = vst [vmem:[%s7021] ss:$9 sm:$0xff] %v6879
        %7037 = vst [vmem:[%s7023] ss:$9 sm:$0xff] %v6880
        %7038 = vst [vmem:[%s7025] ss:$9 sm:$0xff] %v6881
        %v7039 = vld [vmem:[#allocation1] sm:$0xff]
        %7040 = vst [vmem:[#allocation1] ss:$9 sm:$0xff] %v6882
        %7041 = vst [vmem:[%s7019] ss:$9 sm:$0xff] %v6883
        %7042 = vst [vmem:[%s7021] ss:$9 sm:$0xff] %v6884
        %7043 = vst [vmem:[%s7023] ss:$9 sm:$0xff] %v6829
        %7044 = vst [vmem:[%s7025] ss:$9 sm:$0xff] %v6885
        %7045 = vst [vmem:[%s7027] ss:$9 sm:$0xff] %v6886
        %7046 = vst [vmem:[%s7029] ss:$9 sm:$0xff] %v6887
        %7047 = vst [vmem:[%s7031] ss:$9 sm:$0xff] %v6888
        %v7048 = vld [vmem:[#allocation1] sm:$0xff]
        %7049 = vst [vmem:[#allocation1] ss:$9 sm:$0xff] %v6889
        %7050 = vst [vmem:[%s7019] ss:$9 sm:$0xff] %v6890
        %7051 = vst [vmem:[%s7021] ss:$9 sm:$0xff] %v6891
        %7052 = vst [vmem:[%s7023] ss:$9 sm:$0xff] %v6830
        %7053 = vst [vmem:[%s7025] ss:$9 sm:$0xff] %v6892
        %v7054 = vld [vmem:[#allocation1] sm:$0xff]
        %7055 = vst [vmem:[#allocation1] ss:$9 sm:$0xff] %v6893
        %7056 = vst [vmem:[%s7019] ss:$9 sm:$0xff] %v6894
        %7057 = vst [vmem:[%s7021] ss:$9 sm:$0xff] %v6895
        %7058 = vst [vmem:[%s7023] ss:$9 sm:$0xff] %v6896
        %7059 = vst [vmem:[%s7025] ss:$9 sm:$0xff] %v6897
        %7060 = vst [vmem:[%s7027] ss:$9 sm:$0xff] %v6898
        %7061 = vst [vmem:[%s7029] ss:$9 sm:$0xff] %v6831
        %7062 = vst [vmem:[%s7031] ss:$9 sm:$0xff] %v6899
        %v7063 = vld [vmem:[#allocation1] sm:$0xff]
        %7064 = vst [vmem:[#allocation1] ss:$9 sm:$0xff] %v6900
        %7065 = vst [vmem:[%s7019] ss:$9 sm:$0xff] %v6901
        %7066 = vst [vmem:[%s7021] ss:$9 sm:$0xff] %v6902
        %7067 = vst [vmem:[%s7023] ss:$9 sm:$0xff] %v6903
        %7068 = vst [vmem:[%s7025] ss:$9 sm:$0xff] %v6904
        %v7069 = vld [vmem:[#allocation1] sm:$0xff]
        %7070 = vst [vmem:[#allocation1] ss:$9 sm:$0xff] %v6905
        %7071 = vst [vmem:[%s7019] ss:$9 sm:$0xff] %v6832
        %7072 = vst [vmem:[%s7021] ss:$9 sm:$0xff] %v6906
        %7073 = vst [vmem:[%s7023] ss:$9 sm:$0xff] %v6907
        %7074 = vst [vmem:[%s7025] ss:$9 sm:$0xff] %v6908
        %7075 = vst [vmem:[%s7027] ss:$9 sm:$0xff] %v6909
        %7076 = vst [vmem:[%s7029] ss:$9 sm:$0xff] %v6910
        %7077 = vst [vmem:[%s7031] ss:$9 sm:$0xff] %v6911
        %v7078 = vld [vmem:[#allocation1] sm:$0xff]
        %7079 = vst [vmem:[#allocation1] ss:$9 sm:$0xff] %v6912
        %7080 = vst [vmem:[%s7019] ss:$9 sm:$0xff] %v6833
        %7081 = vst [vmem:[%s7021] ss:$9 sm:$0xff] %v6913
        %7082 = vst [vmem:[%s7023] ss:$9 sm:$0xff] %v6914
        %7083 = vst [vmem:[%s7025] ss:$9 sm:$0xff] %v6915
        %v7084 = vld [vmem:[#allocation1] sm:$0xff]
        %7085 = vst [vmem:[#allocation1] ss:$9 sm:$0xff] %v6916
        %7086 = vst [vmem:[%s7019] ss:$9 sm:$0xff] %v6917
        %7087 = vst [vmem:[%s7021] ss:$9 sm:$0xff] %v6918
        %7088 = vst [vmem:[%s7023] ss:$9 sm:$0xff] %v6919
        %7089 = vst [vmem:[%s7025] ss:$9 sm:$0xff] %v6834
        %7090 = vst [vmem:[%s7027] ss:$9 sm:$0xff] %v6920
        %7091 = vst [vmem:[%s7029] ss:$9 sm:$0xff] %v6921
        %7092 = vst [vmem:[%s7031] ss:$9 sm:$0xff] %v6922
        %v7093 = vld [vmem:[#allocation1] sm:$0xff]
        %7094 = vst [vmem:[#allocation1] ss:$9 sm:$0xff] %v6923
        %7095 = vst [vmem:[%s7019] ss:$9 sm:$0xff] %v6924
        %7096 = vst [vmem:[%s7021] ss:$9 sm:$0xff] %v6925
        %7097 = vst [vmem:[%s7023] ss:$9 sm:$0xff] %v6926
        %7098 = vst [vmem:[%s7025] ss:$9 sm:$0xff] %v6835
        %v7099 = vld [vmem:[#allocation1] sm:$0xff]
        %7100 = vst [vmem:[#allocation1] ss:$9 sm:$0xff] %v6927
        %7101 = vst [vmem:[%s7019] ss:$9 sm:$0xff] %v6928
        %7102 = vst [vmem:[%s7021] ss:$9 sm:$0xff] %v6929
        %7103 = vst [vmem:[%s7023] ss:$9 sm:$0xff] %v6930
        %7104 = vst [vmem:[%s7025] ss:$9 sm:$0xff] %v6931
        %7105 = vst [vmem:[%s7027] ss:$9 sm:$0xff] %v6932
        %7106 = vst [vmem:[%s7029] ss:$9 sm:$0xff] %v6933
        %7107 = vst [vmem:[%s7031] ss:$9 sm:$0xff] %v6836
        %v7108 = vld [vmem:[#allocation1] sm:$0xff]
        %7109 = vst [vmem:[#allocation1] ss:$9 sm:$0xff] %v6934
        %7110 = vst [vmem:[%s7019] ss:$9 sm:$0xff] %v6935
        %7111 = vst [vmem:[%s7021] ss:$9 sm:$0xff] %v6936
        %7112 = vst [vmem:[%s7023] ss:$9 sm:$0xff] %v6937
        %7113 = vst [vmem:[%s7025] ss:$9 sm:$0xff] %v6938
        %v7114 = vld [vmem:[#allocation1] sm:$0xff]
        %7115 = vst [vmem:[#allocation1] ss:$9 sm:$0xff] %v6939
        %7116 = vst [vmem:[%s7019] ss:$9 sm:$0xff] %v6940
        %7117 = vst [vmem:[%s7021] ss:$9 sm:$0xff] %v6837
        %7118 = vst [vmem:[%s7023] ss:$9 sm:$0xff] %v6941
        %7119 = vst [vmem:[%s7025] ss:$9 sm:$0xff] %v6942
        %7120 = vst [vmem:[%s7027] ss:$9 sm:$0xff] %v6943
        %7121 = vst [vmem:[%s7029] ss:$9 sm:$0xff] %v6944
        %7122 = vst [vmem:[%s7031] ss:$9 sm:$0xff] %v6945
        %v7123 = vld [vmem:[#allocation1] sm:$0xff]
        %7124 = vst [vmem:[#allocation1] ss:$9 sm:$0xff] %v6946
        %7125 = vst [vmem:[%s7019] ss:$9 sm:$0xff] %v6947
        %7126 = vst [vmem:[%s7021] ss:$9 sm:$0xff] %v6838
        %7127 = vst [vmem:[%s7023] ss:$9 sm:$0xff] %v6948
        %7128 = vst [vmem:[%s7025] ss:$9 sm:$0xff] %v6949
        %v7129 = vld [vmem:[#allocation1] sm:$0xff]
        %7130 = vst [vmem:[#allocation1] ss:$9 sm:$0xff] %v6950
        %7131 = vst [vmem:[%s7019] ss:$9 sm:$0xff] %v6951
        %7132 = vst [vmem:[%s7021] ss:$9 sm:$0xff] %v6952
        %7133 = vst [vmem:[%s7023] ss:$9 sm:$0xff] %v6953
        %7134 = vst [vmem:[%s7025] ss:$9 sm:$0xff] %v6954
        %7135 = vst [vmem:[%s7027] ss:$9 sm:$0xff] %v6839
        %7136 = vst [vmem:[%s7029] ss:$9 sm:$0xff] %v6955
        %7137 = vst [vmem:[%s7031] ss:$9 sm:$0xff] %v6956
        %v7138 = vld [vmem:[#allocation1] sm:$0xff]
        %7139 = vst [vmem:[#allocation1] ss:$9 sm:$0xff] %v6957
        %7140 = vst [vmem:[%s7019] ss:$9 sm:$0xff] %v6958
        %7141 = vst [vmem:[%s7021] ss:$9 sm:$0xff] %v6959
        %7142 = vst [vmem:[%s7023] ss:$9 sm:$0xff] %v6960
        %7143 = vst [vmem:[%s7025] ss:$9 sm:$0xff] %v6961
        %v7144 = vld [vmem:[#allocation1] sm:$0xff]
        %7145 = vst [vmem:[#allocation1] ss:$9 sm:$0xff] %v6840
        %7146 = vst [vmem:[%s7019] ss:$9 sm:$0xff] %v6962
        %7147 = vst [vmem:[%s7021] ss:$9 sm:$0xff] %v6963
        %7148 = vst [vmem:[%s7023] ss:$9 sm:$0xff] %v6964
        %7149 = vst [vmem:[%s7025] ss:$9 sm:$0xff] %v6965
        %7150 = vst [vmem:[%s7027] ss:$9 sm:$0xff] %v6966
        %7151 = vst [vmem:[%s7029] ss:$9 sm:$0xff] %v6967
        %7152 = vst [vmem:[%s7031] ss:$9 sm:$0xff] %v6968
        %v7153 = vld [vmem:[#allocation1] sm:$0xff]
        %7154 = vst [vmem:[#allocation1] ss:$9 sm:$0xff] %v6841
        %7155 = vst [vmem:[%s7019] ss:$9 sm:$0xff] %v6969
        %7156 = vst [vmem:[%s7021] ss:$9 sm:$0xff] %v6970
        %7157 = vst [vmem:[%s7023] ss:$9 sm:$0xff] %v6971
        %7158 = vst [vmem:[%s7025] ss:$9 sm:$0xff] %v6972
        %v7159 = vld [vmem:[#allocation1] sm:$0xff]
        %7160 = vst [vmem:[#allocation1] ss:$9 sm:$0xff] %v6973
        %7161 = vst [vmem:[%s7019] ss:$9 sm:$0xff] %v6974
        %7162 = vst [vmem:[%s7021] ss:$9 sm:$0xff] %v6975
        %7163 = vst [vmem:[%s7023] ss:$9 sm:$0xff] %v6842
        %7164 = vst [vmem:[%s7025] ss:$9 sm:$0xff] %v6976
        %7165 = vst [vmem:[%s7027] ss:$9 sm:$0xff] %v6977
        %7166 = vst [vmem:[%s7029] ss:$9 sm:$0xff] %v6978
        %7167 = vst [vmem:[%s7031] ss:$9 sm:$0xff] %v6979
        %v7168 = vld [vmem:[#allocation1] sm:$0xff]
        %7169 = vst [vmem:[#allocation1] ss:$9 sm:$0xff] %v6980
        %7170 = vst [vmem:[%s7019] ss:$9 sm:$0xff] %v6981
        %7171 = vst [vmem:[%s7021] ss:$9 sm:$0xff] %v6982
        %7172 = vst [vmem:[%s7023] ss:$9 sm:$0xff] %v6843
        %7173 = vst [vmem:[%s7025] ss:$9 sm:$0xff] %v6983
        %v7174 = vld [vmem:[#allocation1] sm:$0xff]
        %7175 = vst [vmem:[#allocation1] ss:$9 sm:$0xff] %v6984
        %7176 = vst [vmem:[%s7019] ss:$9 sm:$0xff] %v6985
        %7177 = vst [vmem:[%s7021] ss:$9 sm:$0xff] %v6986
        %7178 = vst [vmem:[%s7023] ss:$9 sm:$0xff] %v6987
        %7179 = vst [vmem:[%s7025] ss:$9 sm:$0xff] %v6988
        %7180 = vst [vmem:[%s7027] ss:$9 sm:$0xff] %v6989
        %7181 = vst [vmem:[%s7029] ss:$9 sm:$0xff] %v6844
        %7182 = vst [vmem:[%s7031] ss:$9 sm:$0xff] %v6990
        %v7183 = vld [vmem:[#allocation1] sm:$0xff]
        %7184 = vst [vmem:[#allocation1] ss:$9 sm:$0xff] %v6991
        %7185 = vst [vmem:[%s7019] ss:$9 sm:$0xff] %v6992
        %7186 = vst [vmem:[%s7021] ss:$9 sm:$0xff] %v6993
        %7187 = vst [vmem:[%s7023] ss:$9 sm:$0xff] %v6994
        %7188 = vst [vmem:[%s7025] ss:$9 sm:$0xff] %v6995
        %v7189 = vld [vmem:[#allocation1] sm:$0xff]
        %7190 = vst [vmem:[#allocation1] ss:$9 sm:$0xff] %v6996
        %7191 = vst [vmem:[%s7019] ss:$9 sm:$0xff] %v6845
        %7192 = vst [vmem:[%s7021] ss:$9 sm:$0xff] %v6997
        %7193 = vst [vmem:[%s7023] ss:$9 sm:$0xff] %v6998
        %7194 = vst [vmem:[%s7025] ss:$9 sm:$0xff] %v6999
        %7195 = vst [vmem:[%s7027] ss:$9 sm:$0xff] %v7000
        %7196 = vst [vmem:[%s7029] ss:$9 sm:$0xff] %v7001
        %7197 = vst [vmem:[%s7031] ss:$9 sm:$0xff] %v7002
        %v7198 = vld [vmem:[#allocation1] sm:$0xff]
        %7199 = vst [vmem:[#allocation1] ss:$9 sm:$0xff] %v7003
        %7200 = vst [vmem:[%s7019] ss:$9 sm:$0xff] %v6846
        %7201 = vst [vmem:[%s7021] ss:$9 sm:$0xff] %v7004
        %7202 = vst [vmem:[%s7023] ss:$9 sm:$0xff] %v7005
        %7203 = vst [vmem:[%s7025] ss:$9 sm:$0xff] %v7006
        %v7204 = vld [vmem:[#allocation1] sm:$0xff]
        %7205 = vst [vmem:[#allocation1] ss:$9 sm:$0xff] %v7007
        %7206 = vst [vmem:[%s7019] ss:$9 sm:$0xff] %v7008
        %7207 = vst [vmem:[%s7021] ss:$9 sm:$0xff] %v7009
        %7208 = vst [vmem:[%s7023] ss:$9 sm:$0xff] %v7010
        %7209 = vst [vmem:[%s7025] ss:$9 sm:$0xff] %v6847
        %7210 = vst [vmem:[%s7027] ss:$9 sm:$0xff] %v7011
        %7211 = vst [vmem:[%s7029] ss:$9 sm:$0xff] %v7012
        %7212 = vst [vmem:[%s7031] ss:$9 sm:$0xff] %v7013
        %v7213 = vld [vmem:[#allocation1] sm:$0xff]
        %7214 = vst [vmem:[#allocation1] ss:$9 sm:$0xff] %v7014
        %7215 = vst [vmem:[%s7019] ss:$9 sm:$0xff] %v7015
        %7216 = vst [vmem:[%s7021] ss:$9 sm:$0xff] %v7016
        %7217 = vst [vmem:[%s7023] ss:$9 sm:$0xff] %v7017
        %7218 = vst [vmem:[%s7025] ss:$9 sm:$0xff] %v6848
        %v7219 = vld [vmem:[#allocation1] sm:$0xff]
        %7246 = vst.msk [vmem:[#allocation4] sm:$0xff] %vm3836, %v7033
        %vm7247 = vcmask 126976
        %7248 = vst.msk [vmem:[#allocation4 + $0x8] sm:$0x1f] %vm7247, %v7039
        %7249 = vst.msk [vmem:[#allocation4 + $0x10] sm:$0xff] %vm3836, %v7048
        %7250 = vst.msk [vmem:[#allocation4 + $0x18] sm:$0x1f] %vm7247, %v7054
        %7251 = vst.msk [vmem:[#allocation4 + $0x20] sm:$0xff] %vm3836, %v7063
        %7252 = vst.msk [vmem:[#allocation4 + $0x28] sm:$0x1f] %vm7247, %v7069
        %7253 = vst.msk [vmem:[#allocation4 + $0x30] sm:$0xff] %vm3836, %v7078
        %7254 = vst.msk [vmem:[#allocation4 + $0x38] sm:$0x1f] %vm7247, %v7084
        %7255 = vst.msk [vmem:[#allocation4 + $0x40] sm:$0xff] %vm3836, %v7093
        %7256 = vst.msk [vmem:[#allocation4 + $0x48] sm:$0x1f] %vm7247, %v7099
        %7257 = vst.msk [vmem:[#allocation4 + $0x50] sm:$0xff] %vm3836, %v7108
        %7258 = vst.msk [vmem:[#allocation4 + $0x58] sm:$0x1f] %vm7247, %v7114
        %7259 = vst.msk [vmem:[#allocation4 + $0x60] sm:$0xff] %vm3836, %v7123
        %7260 = vst.msk [vmem:[#allocation4 + $0x68] sm:$0x1f] %vm7247, %v7129
        %7261 = vst.msk [vmem:[#allocation4 + $0x70] sm:$0xff] %vm3836, %v7138
        %7262 = vst.msk [vmem:[#allocation4 + $0x78] sm:$0x1f] %vm7247, %v7144
        %7263 = vst.msk [vmem:[#allocation4 + $0x80] sm:$0xff] %vm3836, %v7153
        %7264 = vst.msk [vmem:[#allocation4 + $0x88] sm:$0x1f] %vm7247, %v7159
        %7265 = vst.msk [vmem:[#allocation4 + $0x90] sm:$0xff] %vm3836, %v7168
        %7266 = vst.msk [vmem:[#allocation4 + $0x98] sm:$0x1f] %vm7247, %v7174
        %7267 = vst.msk [vmem:[#allocation4 + $0xa0] sm:$0xff] %vm3836, %v7183
        %7268 = vst.msk [vmem:[#allocation4 + $0xa8] sm:$0x1f] %vm7247, %v7189
        %7269 = vst.msk [vmem:[#allocation4 + $0xb0] sm:$0xff] %vm3836, %v7198
        %7270 = vst.msk [vmem:[#allocation4 + $0xb8] sm:$0x1f] %vm7247, %v7204
        %7271 = vst.msk [vmem:[#allocation4 + $0xc0] sm:$0xff] %vm3836, %v7213
        %7272 = vst.msk [vmem:[#allocation4 + $0xc8] sm:$0x1f] %vm7247, %v7219
        %v7273 = vld [vmem:[#allocation4] sm:$0xff]
        %v7274 = vld [vmem:[#allocation4 + $0x8] sm:$0x7]
        %v7275 = vld [vmem:[#allocation4 + $0x10] sm:$0xff]
        %v7276 = vld [vmem:[#allocation4 + $0x18] sm:$0x7]
        %v7277 = vld [vmem:[#allocation4 + $0x20] sm:$0xff]
        %v7278 = vld [vmem:[#allocation4 + $0x28] sm:$0x7]
        %v7279 = vld [vmem:[#allocation4 + $0x30] sm:$0xff]
        %v7280 = vld [vmem:[#allocation4 + $0x38] sm:$0x7]
        %v7281 = vld [vmem:[#allocation4 + $0x40] sm:$0xff]
        %v7282 = vld [vmem:[#allocation4 + $0x48] sm:$0x7]
        %v7283 = vld [vmem:[#allocation4 + $0x50] sm:$0xff]
        %v7284 = vld [vmem:[#allocation4 + $0x58] sm:$0x7]
        %v7285 = vld [vmem:[#allocation4 + $0x60] sm:$0xff]
        %v7286 = vld [vmem:[#allocation4 + $0x68] sm:$0x7]
        %v7287 = vld [vmem:[#allocation4 + $0x70] sm:$0xff]
        %v7288 = vld [vmem:[#allocation4 + $0x78] sm:$0x7]
        %v7289 = vld [vmem:[#allocation4 + $0x80] sm:$0xff]
        %v7290 = vld [vmem:[#allocation4 + $0x88] sm:$0x7]
        %v7291 = vld [vmem:[#allocation4 + $0x90] sm:$0xff]
        %v7292 = vld [vmem:[#allocation4 + $0x98] sm:$0x7]
        %v7293 = vld [vmem:[#allocation4 + $0xa0] sm:$0xff]
        %v7294 = vld [vmem:[#allocation4 + $0xa8] sm:$0x7]
        %v7295 = vld [vmem:[#allocation4 + $0x1] sm:$0xff]
        %v7296 = vld [vmem:[#allocation4 + $0x9] sm:$0x7]
        %v7297 = vld [vmem:[#allocation4 + $0x11] sm:$0xff]
        %v7298 = vld [vmem:[#allocation4 + $0x19] sm:$0x7]
        %v7299 = vld [vmem:[#allocation4 + $0x21] sm:$0xff]
        %v7300 = vld [vmem:[#allocation4 + $0x29] sm:$0x7]
        %v7301 = vld [vmem:[#allocation4 + $0x31] sm:$0xff]
        %v7302 = vld [vmem:[#allocation4 + $0x39] sm:$0x7]
        %v7303 = vld [vmem:[#allocation4 + $0x41] sm:$0xff]
        %v7304 = vld [vmem:[#allocation4 + $0x49] sm:$0x7]
        %v7305 = vld [vmem:[#allocation4 + $0x51] sm:$0xff]
        %v7306 = vld [vmem:[#allocation4 + $0x59] sm:$0x7]
        %v7307 = vld [vmem:[#allocation4 + $0x61] sm:$0xff]
        %v7308 = vld [vmem:[#allocation4 + $0x69] sm:$0x7]
        %v7309 = vld [vmem:[#allocation4 + $0x71] sm:$0xff]
        %v7310 = vld [vmem:[#allocation4 + $0x79] sm:$0x7]
        %v7311 = vld [vmem:[#allocation4 + $0x81] sm:$0xff]
        %v7312 = vld [vmem:[#allocation4 + $0x89] sm:$0x7]
        %v7313 = vld [vmem:[#allocation4 + $0x91] sm:$0xff]
        %v7314 = vld [vmem:[#allocation4 + $0x99] sm:$0x7]
        %v7315 = vld [vmem:[#allocation4 + $0xa1] sm:$0xff]
        %v7316 = vld [vmem:[#allocation4 + $0xa9] sm:$0x7]
        %v7317 = vmax.f32 %v7273, %v7295
        %v7318 = vmax.f32 %v7274, %v7296
        %v7319 = vmax.f32 %v7275, %v7297
        %v7320 = vmax.f32 %v7276, %v7298
        %v7321 = vmax.f32 %v7277, %v7299
        %v7322 = vmax.f32 %v7278, %v7300
        %v7323 = vmax.f32 %v7279, %v7301
        %v7324 = vmax.f32 %v7280, %v7302
        %v7325 = vmax.f32 %v7281, %v7303
        %v7326 = vmax.f32 %v7282, %v7304
        %v7327 = vmax.f32 %v7283, %v7305
        %v7328 = vmax.f32 %v7284, %v7306
        %v7329 = vmax.f32 %v7285, %v7307
        %v7330 = vmax.f32 %v7286, %v7308
        %v7331 = vmax.f32 %v7287, %v7309
        %v7332 = vmax.f32 %v7288, %v7310
        %v7333 = vmax.f32 %v7289, %v7311
        %v7334 = vmax.f32 %v7290, %v7312
        %v7335 = vmax.f32 %v7291, %v7313
        %v7336 = vmax.f32 %v7292, %v7314
        %v7337 = vmax.f32 %v7293, %v7315
        %v7338 = vmax.f32 %v7294, %v7316
        %v7339 = vld [vmem:[#allocation4 + $0x2] sm:$0xff]
        %v7340 = vld [vmem:[#allocation4 + $0xa] sm:$0x7]
        %v7341 = vld [vmem:[#allocation4 + $0x12] sm:$0xff]
        %v7342 = vld [vmem:[#allocation4 + $0x1a] sm:$0x7]
        %v7343 = vld [vmem:[#allocation4 + $0x22] sm:$0xff]
        %v7344 = vld [vmem:[#allocation4 + $0x2a] sm:$0x7]
        %v7345 = vld [vmem:[#allocation4 + $0x32] sm:$0xff]
        %v7346 = vld [vmem:[#allocation4 + $0x3a] sm:$0x7]
        %v7347 = vld [vmem:[#allocation4 + $0x42] sm:$0xff]
        %v7348 = vld [vmem:[#allocation4 + $0x4a] sm:$0x7]
        %v7349 = vld [vmem:[#allocation4 + $0x52] sm:$0xff]
        %v7350 = vld [vmem:[#allocation4 + $0x5a] sm:$0x7]
        %v7351 = vld [vmem:[#allocation4 + $0x62] sm:$0xff]
        %v7352 = vld [vmem:[#allocation4 + $0x6a] sm:$0x7]
        %v7353 = vld [vmem:[#allocation4 + $0x72] sm:$0xff]
        %v7354 = vld [vmem:[#allocation4 + $0x7a] sm:$0x7]
        %v7355 = vld [vmem:[#allocation4 + $0x82] sm:$0xff]
        %v7356 = vld [vmem:[#allocation4 + $0x8a] sm:$0x7]
        %v7357 = vld [vmem:[#allocation4 + $0x92] sm:$0xff]
        %v7358 = vld [vmem:[#allocation4 + $0x9a] sm:$0x7]
        %v7359 = vld [vmem:[#allocation4 + $0xa2] sm:$0xff]
        %v7360 = vld [vmem:[#allocation4 + $0xaa] sm:$0x7]
        %v7361 = vmax.f32 %v7317, %v7339
        %v7362 = vmax.f32 %v7318, %v7340
        %v7363 = vmax.f32 %v7319, %v7341
        %v7364 = vmax.f32 %v7320, %v7342
        %v7365 = vmax.f32 %v7321, %v7343
        %v7366 = vmax.f32 %v7322, %v7344
        %v7367 = vmax.f32 %v7323, %v7345
        %v7368 = vmax.f32 %v7324, %v7346
        %v7369 = vmax.f32 %v7325, %v7347
        %v7370 = vmax.f32 %v7326, %v7348
        %v7371 = vmax.f32 %v7327, %v7349
        %v7372 = vmax.f32 %v7328, %v7350
        %v7373 = vmax.f32 %v7329, %v7351
        %v7374 = vmax.f32 %v7330, %v7352
        %v7375 = vmax.f32 %v7331, %v7353
        %v7376 = vmax.f32 %v7332, %v7354
        %v7377 = vmax.f32 %v7333, %v7355
        %v7378 = vmax.f32 %v7334, %v7356
        %v7379 = vmax.f32 %v7335, %v7357
        %v7380 = vmax.f32 %v7336, %v7358
        %v7381 = vmax.f32 %v7337, %v7359
        %v7382 = vmax.f32 %v7338, %v7360
        %s7383 = scalar_lea.vmem [#allocation4], 16
        %v7384 = vld [vmem:[%s7383] sm:$0xff]
        %v7385 = vld [vmem:[%s7383 + $0x8] sm:$0x7]
        %v7386 = vld [vmem:[%s7383 + $0x10] sm:$0xff]
        %v7387 = vld [vmem:[%s7383 + $0x18] sm:$0x7]
        %v7388 = vld [vmem:[%s7383 + $0x20] sm:$0xff]
        %v7389 = vld [vmem:[%s7383 + $0x28] sm:$0x7]
        %v7390 = vld [vmem:[%s7383 + $0x30] sm:$0xff]
        %v7391 = vld [vmem:[%s7383 + $0x38] sm:$0x7]
        %v7392 = vld [vmem:[%s7383 + $0x40] sm:$0xff]
        %v7393 = vld [vmem:[%s7383 + $0x48] sm:$0x7]
        %v7394 = vld [vmem:[%s7383 + $0x50] sm:$0xff]
        %v7395 = vld [vmem:[%s7383 + $0x58] sm:$0x7]
        %v7396 = vld [vmem:[%s7383 + $0x60] sm:$0xff]
        %v7397 = vld [vmem:[%s7383 + $0x68] sm:$0x7]
        %v7398 = vld [vmem:[%s7383 + $0x70] sm:$0xff]
        %v7399 = vld [vmem:[%s7383 + $0x78] sm:$0x7]
        %v7400 = vld [vmem:[%s7383 + $0x80] sm:$0xff]
        %v7401 = vld [vmem:[%s7383 + $0x88] sm:$0x7]
        %v7402 = vld [vmem:[%s7383 + $0x90] sm:$0xff]
        %v7403 = vld [vmem:[%s7383 + $0x98] sm:$0x7]
        %v7404 = vld [vmem:[%s7383 + $0xa0] sm:$0xff]
        %v7405 = vld [vmem:[%s7383 + $0xa8] sm:$0x7]
        %v7406 = vmax.f32 %v7361, %v7384
        %v7407 = vmax.f32 %v7362, %v7385
        %v7408 = vmax.f32 %v7363, %v7386
        %v7409 = vmax.f32 %v7364, %v7387
        %v7410 = vmax.f32 %v7365, %v7388
        %v7411 = vmax.f32 %v7366, %v7389
        %v7412 = vmax.f32 %v7367, %v7390
        %v7413 = vmax.f32 %v7368, %v7391
        %v7414 = vmax.f32 %v7369, %v7392
        %v7415 = vmax.f32 %v7370, %v7393
        %v7416 = vmax.f32 %v7371, %v7394
        %v7417 = vmax.f32 %v7372, %v7395
        %v7418 = vmax.f32 %v7373, %v7396
        %v7419 = vmax.f32 %v7374, %v7397
        %v7420 = vmax.f32 %v7375, %v7398
        %v7421 = vmax.f32 %v7376, %v7399
        %v7422 = vmax.f32 %v7377, %v7400
        %v7423 = vmax.f32 %v7378, %v7401
        %v7424 = vmax.f32 %v7379, %v7402
        %v7425 = vmax.f32 %v7380, %v7403
        %v7426 = vmax.f32 %v7381, %v7404
        %v7427 = vmax.f32 %v7382, %v7405
        %v7428 = vld [vmem:[%s7383 + $0x1] sm:$0xff]
        %v7429 = vld [vmem:[%s7383 + $0x9] sm:$0x7]
        %v7430 = vld [vmem:[%s7383 + $0x11] sm:$0xff]
        %v7431 = vld [vmem:[%s7383 + $0x19] sm:$0x7]
        %v7432 = vld [vmem:[%s7383 + $0x21] sm:$0xff]
        %v7433 = vld [vmem:[%s7383 + $0x29] sm:$0x7]
        %v7434 = vld [vmem:[%s7383 + $0x31] sm:$0xff]
        %v7435 = vld [vmem:[%s7383 + $0x39] sm:$0x7]
        %v7436 = vld [vmem:[%s7383 + $0x41] sm:$0xff]
        %v7437 = vld [vmem:[%s7383 + $0x49] sm:$0x7]
        %v7438 = vld [vmem:[%s7383 + $0x51] sm:$0xff]
        %v7439 = vld [vmem:[%s7383 + $0x59] sm:$0x7]
        %v7440 = vld [vmem:[%s7383 + $0x61] sm:$0xff]
        %v7441 = vld [vmem:[%s7383 + $0x69] sm:$0x7]
        %v7442 = vld [vmem:[%s7383 + $0x71] sm:$0xff]
        %v7443 = vld [vmem:[%s7383 + $0x79] sm:$0x7]
        %v7444 = vld [vmem:[%s7383 + $0x81] sm:$0xff]
        %v7445 = vld [vmem:[%s7383 + $0x89] sm:$0x7]
        %v7446 = vld [vmem:[%s7383 + $0x91] sm:$0xff]
        %v7447 = vld [vmem:[%s7383 + $0x99] sm:$0x7]
        %v7448 = vld [vmem:[%s7383 + $0xa1] sm:$0xff]
        %v7449 = vld [vmem:[%s7383 + $0xa9] sm:$0x7]
        %v7450 = vmax.f32 %v7406, %v7428
        %v7451 = vmax.f32 %v7407, %v7429
        %v7452 = vmax.f32 %v7408, %v7430
        %v7453 = vmax.f32 %v7409, %v7431
        %v7454 = vmax.f32 %v7410, %v7432
        %v7455 = vmax.f32 %v7411, %v7433
        %v7456 = vmax.f32 %v7412, %v7434
        %v7457 = vmax.f32 %v7413, %v7435
        %v7458 = vmax.f32 %v7414, %v7436
        %v7459 = vmax.f32 %v7415, %v7437
        %v7460 = vmax.f32 %v7416, %v7438
        %v7461 = vmax.f32 %v7417, %v7439
        %v7462 = vmax.f32 %v7418, %v7440
        %v7463 = vmax.f32 %v7419, %v7441
        %v7464 = vmax.f32 %v7420, %v7442
        %v7465 = vmax.f32 %v7421, %v7443
        %v7466 = vmax.f32 %v7422, %v7444
        %v7467 = vmax.f32 %v7423, %v7445
        %v7468 = vmax.f32 %v7424, %v7446
        %v7469 = vmax.f32 %v7425, %v7447
        %v7470 = vmax.f32 %v7426, %v7448
        %v7471 = vmax.f32 %v7427, %v7449
        %v7472 = vld [vmem:[%s7383 + $0x2] sm:$0xff]
        %v7473 = vld [vmem:[%s7383 + $0xa] sm:$0x7]
        %v7474 = vld [vmem:[%s7383 + $0x12] sm:$0xff]
        %v7475 = vld [vmem:[%s7383 + $0x1a] sm:$0x7]
        %v7476 = vld [vmem:[%s7383 + $0x22] sm:$0xff]
        %v7477 = vld [vmem:[%s7383 + $0x2a] sm:$0x7]
        %v7478 = vld [vmem:[%s7383 + $0x32] sm:$0xff]
        %v7479 = vld [vmem:[%s7383 + $0x3a] sm:$0x7]
        %v7480 = vld [vmem:[%s7383 + $0x42] sm:$0xff]
        %v7481 = vld [vmem:[%s7383 + $0x4a] sm:$0x7]
        %v7482 = vld [vmem:[%s7383 + $0x52] sm:$0xff]
        %v7483 = vld [vmem:[%s7383 + $0x5a] sm:$0x7]
        %v7484 = vld [vmem:[%s7383 + $0x62] sm:$0xff]
        %v7485 = vld [vmem:[%s7383 + $0x6a] sm:$0x7]
        %v7486 = vld [vmem:[%s7383 + $0x72] sm:$0xff]
        %v7487 = vld [vmem:[%s7383 + $0x7a] sm:$0x7]
        %v7488 = vld [vmem:[%s7383 + $0x82] sm:$0xff]
        %v7489 = vld [vmem:[%s7383 + $0x8a] sm:$0x7]
        %v7490 = vld [vmem:[%s7383 + $0x92] sm:$0xff]
        %v7491 = vld [vmem:[%s7383 + $0x9a] sm:$0x7]
        %v7492 = vld [vmem:[%s7383 + $0xa2] sm:$0xff]
        %v7493 = vld [vmem:[%s7383 + $0xaa] sm:$0x7]
        %v7494 = vmax.f32 %v7450, %v7472
        %v7495 = vmax.f32 %v7451, %v7473
        %v7496 = vmax.f32 %v7452, %v7474
        %v7497 = vmax.f32 %v7453, %v7475
        %v7498 = vmax.f32 %v7454, %v7476
        %v7499 = vmax.f32 %v7455, %v7477
        %v7500 = vmax.f32 %v7456, %v7478
        %v7501 = vmax.f32 %v7457, %v7479
        %v7502 = vmax.f32 %v7458, %v7480
        %v7503 = vmax.f32 %v7459, %v7481
        %v7504 = vmax.f32 %v7460, %v7482
        %v7505 = vmax.f32 %v7461, %v7483
        %v7506 = vmax.f32 %v7462, %v7484
        %v7507 = vmax.f32 %v7463, %v7485
        %v7508 = vmax.f32 %v7464, %v7486
        %v7509 = vmax.f32 %v7465, %v7487
        %v7510 = vmax.f32 %v7466, %v7488
        %v7511 = vmax.f32 %v7467, %v7489
        %v7512 = vmax.f32 %v7468, %v7490
        %v7513 = vmax.f32 %v7469, %v7491
        %v7514 = vmax.f32 %v7470, %v7492
        %v7515 = vmax.f32 %v7471, %v7493
        %s7516 = scalar_lea.vmem [#allocation4], 32
        %v7517 = vld [vmem:[%s7516] sm:$0xff]
        %v7518 = vld [vmem:[%s7516 + $0x8] sm:$0x7]
        %v7519 = vld [vmem:[%s7516 + $0x10] sm:$0xff]
        %v7520 = vld [vmem:[%s7516 + $0x18] sm:$0x7]
        %v7521 = vld [vmem:[%s7516 + $0x20] sm:$0xff]
        %v7522 = vld [vmem:[%s7516 + $0x28] sm:$0x7]
        %v7523 = vld [vmem:[%s7516 + $0x30] sm:$0xff]
        %v7524 = vld [vmem:[%s7516 + $0x38] sm:$0x7]
        %v7525 = vld [vmem:[%s7516 + $0x40] sm:$0xff]
        %v7526 = vld [vmem:[%s7516 + $0x48] sm:$0x7]
        %v7527 = vld [vmem:[%s7516 + $0x50] sm:$0xff]
        %v7528 = vld [vmem:[%s7516 + $0x58] sm:$0x7]
        %v7529 = vld [vmem:[%s7516 + $0x60] sm:$0xff]
        %v7530 = vld [vmem:[%s7516 + $0x68] sm:$0x7]
        %v7531 = vld [vmem:[%s7516 + $0x70] sm:$0xff]
        %v7532 = vld [vmem:[%s7516 + $0x78] sm:$0x7]
        %v7533 = vld [vmem:[%s7516 + $0x80] sm:$0xff]
        %v7534 = vld [vmem:[%s7516 + $0x88] sm:$0x7]
        %v7535 = vld [vmem:[%s7516 + $0x90] sm:$0xff]
        %v7536 = vld [vmem:[%s7516 + $0x98] sm:$0x7]
        %v7537 = vld [vmem:[%s7516 + $0xa0] sm:$0xff]
        %v7538 = vld [vmem:[%s7516 + $0xa8] sm:$0x7]
        %v7539 = vmax.f32 %v7494, %v7517
        %v7540 = vmax.f32 %v7495, %v7518
        %v7541 = vmax.f32 %v7496, %v7519
        %v7542 = vmax.f32 %v7497, %v7520
        %v7543 = vmax.f32 %v7498, %v7521
        %v7544 = vmax.f32 %v7499, %v7522
        %v7545 = vmax.f32 %v7500, %v7523
        %v7546 = vmax.f32 %v7501, %v7524
        %v7547 = vmax.f32 %v7502, %v7525
        %v7548 = vmax.f32 %v7503, %v7526
        %v7549 = vmax.f32 %v7504, %v7527
        %v7550 = vmax.f32 %v7505, %v7528
        %v7551 = vmax.f32 %v7506, %v7529
        %v7552 = vmax.f32 %v7507, %v7530
        %v7553 = vmax.f32 %v7508, %v7531
        %v7554 = vmax.f32 %v7509, %v7532
        %v7555 = vmax.f32 %v7510, %v7533
        %v7556 = vmax.f32 %v7511, %v7534
        %v7557 = vmax.f32 %v7512, %v7535
        %v7558 = vmax.f32 %v7513, %v7536
        %v7559 = vmax.f32 %v7514, %v7537
        %v7560 = vmax.f32 %v7515, %v7538
        %v7561 = vld [vmem:[%s7516 + $0x1] sm:$0xff]
        %v7562 = vld [vmem:[%s7516 + $0x9] sm:$0x7]
        %v7563 = vld [vmem:[%s7516 + $0x11] sm:$0xff]
        %v7564 = vld [vmem:[%s7516 + $0x19] sm:$0x7]
        %v7565 = vld [vmem:[%s7516 + $0x21] sm:$0xff]
        %v7566 = vld [vmem:[%s7516 + $0x29] sm:$0x7]
        %v7567 = vld [vmem:[%s7516 + $0x31] sm:$0xff]
        %v7568 = vld [vmem:[%s7516 + $0x39] sm:$0x7]
        %v7569 = vld [vmem:[%s7516 + $0x41] sm:$0xff]
        %v7570 = vld [vmem:[%s7516 + $0x49] sm:$0x7]
        %v7571 = vld [vmem:[%s7516 + $0x51] sm:$0xff]
        %v7572 = vld [vmem:[%s7516 + $0x59] sm:$0x7]
        %v7573 = vld [vmem:[%s7516 + $0x61] sm:$0xff]
        %v7574 = vld [vmem:[%s7516 + $0x69] sm:$0x7]
        %v7575 = vld [vmem:[%s7516 + $0x71] sm:$0xff]
        %v7576 = vld [vmem:[%s7516 + $0x79] sm:$0x7]
        %v7577 = vld [vmem:[%s7516 + $0x81] sm:$0xff]
        %v7578 = vld [vmem:[%s7516 + $0x89] sm:$0x7]
        %v7579 = vld [vmem:[%s7516 + $0x91] sm:$0xff]
        %v7580 = vld [vmem:[%s7516 + $0x99] sm:$0x7]
        %v7581 = vld [vmem:[%s7516 + $0xa1] sm:$0xff]
        %v7582 = vld [vmem:[%s7516 + $0xa9] sm:$0x7]
        %v7583 = vmax.f32 %v7539, %v7561
        %v7584 = vmax.f32 %v7540, %v7562
        %v7585 = vmax.f32 %v7541, %v7563
        %v7586 = vmax.f32 %v7542, %v7564
        %v7587 = vmax.f32 %v7543, %v7565
        %v7588 = vmax.f32 %v7544, %v7566
        %v7589 = vmax.f32 %v7545, %v7567
        %v7590 = vmax.f32 %v7546, %v7568
        %v7591 = vmax.f32 %v7547, %v7569
        %v7592 = vmax.f32 %v7548, %v7570
        %v7593 = vmax.f32 %v7549, %v7571
        %v7594 = vmax.f32 %v7550, %v7572
        %v7595 = vmax.f32 %v7551, %v7573
        %v7596 = vmax.f32 %v7552, %v7574
        %v7597 = vmax.f32 %v7553, %v7575
        %v7598 = vmax.f32 %v7554, %v7576
        %v7599 = vmax.f32 %v7555, %v7577
        %v7600 = vmax.f32 %v7556, %v7578
        %v7601 = vmax.f32 %v7557, %v7579
        %v7602 = vmax.f32 %v7558, %v7580
        %v7603 = vmax.f32 %v7559, %v7581
        %v7604 = vmax.f32 %v7560, %v7582
        %v7605 = vld [vmem:[%s7516 + $0x2] sm:$0xff]
        %v7606 = vld [vmem:[%s7516 + $0xa] sm:$0x7]
        %v7607 = vld [vmem:[%s7516 + $0x12] sm:$0xff]
        %v7608 = vld [vmem:[%s7516 + $0x1a] sm:$0x7]
        %v7609 = vld [vmem:[%s7516 + $0x22] sm:$0xff]
        %v7610 = vld [vmem:[%s7516 + $0x2a] sm:$0x7]
        %v7611 = vld [vmem:[%s7516 + $0x32] sm:$0xff]
        %v7612 = vld [vmem:[%s7516 + $0x3a] sm:$0x7]
        %v7613 = vld [vmem:[%s7516 + $0x42] sm:$0xff]
        %v7614 = vld [vmem:[%s7516 + $0x4a] sm:$0x7]
        %v7615 = vld [vmem:[%s7516 + $0x52] sm:$0xff]
        %v7616 = vld [vmem:[%s7516 + $0x5a] sm:$0x7]
        %v7617 = vld [vmem:[%s7516 + $0x62] sm:$0xff]
        %v7618 = vld [vmem:[%s7516 + $0x6a] sm:$0x7]
        %v7619 = vld [vmem:[%s7516 + $0x72] sm:$0xff]
        %v7620 = vld [vmem:[%s7516 + $0x7a] sm:$0x7]
        %v7621 = vld [vmem:[%s7516 + $0x82] sm:$0xff]
        %v7622 = vld [vmem:[%s7516 + $0x8a] sm:$0x7]
        %v7623 = vld [vmem:[%s7516 + $0x92] sm:$0xff]
        %v7624 = vld [vmem:[%s7516 + $0x9a] sm:$0x7]
        %v7625 = vld [vmem:[%s7516 + $0xa2] sm:$0xff]
        %v7626 = vld [vmem:[%s7516 + $0xaa] sm:$0x7]
        %v7627 = vmax.f32 %v7583, %v7605
        %v7628 = vmax.f32 %v7584, %v7606
        %v7629 = vmax.f32 %v7585, %v7607
        %v7630 = vmax.f32 %v7586, %v7608
        %v7631 = vmax.f32 %v7587, %v7609
        %v7632 = vmax.f32 %v7588, %v7610
        %v7633 = vmax.f32 %v7589, %v7611
        %v7634 = vmax.f32 %v7590, %v7612
        %v7635 = vmax.f32 %v7591, %v7613
        %v7636 = vmax.f32 %v7592, %v7614
        %v7637 = vmax.f32 %v7593, %v7615
        %v7638 = vmax.f32 %v7594, %v7616
        %v7639 = vmax.f32 %v7595, %v7617
        %v7640 = vmax.f32 %v7596, %v7618
        %v7641 = vmax.f32 %v7597, %v7619
        %v7642 = vmax.f32 %v7598, %v7620
        %v7643 = vmax.f32 %v7599, %v7621
        %v7644 = vmax.f32 %v7600, %v7622
        %v7645 = vmax.f32 %v7601, %v7623
        %v7646 = vmax.f32 %v7602, %v7624
        %v7647 = vmax.f32 %v7603, %v7625
        %v7648 = vmax.f32 %v7604, %v7626
        %v7649 = vld [vmem:[%s7] sm:$0xff]
        %v7650 = vld [vmem:[%s7 + $0x8] sm:$0xff]
        %v7651 = vld [vmem:[%s7 + $0x10] sm:$0xff]
        %v7652 = vld [vmem:[%s7 + $0x18] sm:$0xff]
        %v7653 = vld [vmem:[%s7 + $0x20] sm:$0xf]
        %v7676 = vrot.slane %v7627, 1
        %v7677 = vrot.slane %v7627, 2
        %v7678 = vrot.slane %v7627, 3
        %v7679 = vrot.slane %v7627, 4
        %v7680 = vrot.slane %v7627, 5
        %v7681 = vrot.slane %v7627, 6
        %v7682 = vrot.slane %v7627, 7
        %v7683 = vrot.slane %v7628, 1
        %v7684 = vrot.slane %v7628, 2
        %v7685 = vrot.slane %v7629, 1
        %v7686 = vrot.slane %v7629, 2
        %v7687 = vrot.slane %v7629, 3
        %v7688 = vrot.slane %v7629, 4
        %v7689 = vrot.slane %v7629, 5
        %v7690 = vrot.slane %v7629, 6
        %v7691 = vrot.slane %v7629, 7
        %v7692 = vrot.slane %v7630, 1
        %v7693 = vrot.slane %v7630, 2
        %v7694 = vrot.slane %v7631, 1
        %v7695 = vrot.slane %v7631, 2
        %v7696 = vrot.slane %v7631, 3
        %v7697 = vrot.slane %v7631, 4
        %v7698 = vrot.slane %v7631, 5
        %v7699 = vrot.slane %v7631, 6
        %v7700 = vrot.slane %v7631, 7
        %v7701 = vrot.slane %v7632, 1
        %v7702 = vrot.slane %v7632, 2
        %v7703 = vrot.slane %v7633, 1
        %v7704 = vrot.slane %v7633, 2
        %v7705 = vrot.slane %v7633, 3
        %v7706 = vrot.slane %v7633, 4
        %v7707 = vrot.slane %v7633, 5
        %v7708 = vrot.slane %v7633, 6
        %v7709 = vrot.slane %v7633, 7
        %v7710 = vrot.slane %v7634, 1
        %v7711 = vrot.slane %v7634, 2
        %v7712 = vrot.slane %v7635, 1
        %v7713 = vrot.slane %v7635, 2
        %v7714 = vrot.slane %v7635, 3
        %v7715 = vrot.slane %v7635, 4
        %v7716 = vrot.slane %v7635, 5
        %v7717 = vrot.slane %v7635, 6
        %v7718 = vrot.slane %v7635, 7
        %v7719 = vrot.slane %v7636, 1
        %v7720 = vrot.slane %v7636, 2
        %v7721 = vrot.slane %v7637, 1
        %v7722 = vrot.slane %v7637, 2
        %v7723 = vrot.slane %v7637, 3
        %v7724 = vrot.slane %v7637, 4
        %v7725 = vrot.slane %v7637, 5
        %v7726 = vrot.slane %v7637, 6
        %v7727 = vrot.slane %v7637, 7
        %v7728 = vrot.slane %v7638, 1
        %v7729 = vrot.slane %v7638, 2
        %v7730 = vrot.slane %v7639, 1
        %v7731 = vrot.slane %v7639, 2
        %v7732 = vrot.slane %v7639, 3
        %v7733 = vrot.slane %v7639, 4
        %v7734 = vrot.slane %v7639, 5
        %v7735 = vrot.slane %v7639, 6
        %v7736 = vrot.slane %v7639, 7
        %v7737 = vrot.slane %v7640, 1
        %v7738 = vrot.slane %v7640, 2
        %v7739 = vrot.slane %v7641, 1
        %v7740 = vrot.slane %v7641, 2
        %v7741 = vrot.slane %v7641, 3
        %v7742 = vrot.slane %v7641, 4
        %v7743 = vrot.slane %v7641, 5
        %v7744 = vrot.slane %v7641, 6
        %v7745 = vrot.slane %v7641, 7
        %v7746 = vrot.slane %v7642, 1
        %v7747 = vrot.slane %v7642, 2
        %v7748 = vrot.slane %v7643, 1
        %v7749 = vrot.slane %v7643, 2
        %v7750 = vrot.slane %v7643, 3
        %v7751 = vrot.slane %v7643, 4
        %v7752 = vrot.slane %v7643, 5
        %v7753 = vrot.slane %v7643, 6
        %v7754 = vrot.slane %v7643, 7
        %v7755 = vrot.slane %v7644, 1
        %v7756 = vrot.slane %v7644, 2
        %v7757 = vrot.slane %v7645, 1
        %v7758 = vrot.slane %v7645, 2
        %v7759 = vrot.slane %v7645, 3
        %v7760 = vrot.slane %v7645, 4
        %v7761 = vrot.slane %v7645, 5
        %v7762 = vrot.slane %v7645, 6
        %v7763 = vrot.slane %v7645, 7
        %v7764 = vrot.slane %v7646, 1
        %v7765 = vrot.slane %v7646, 2
        %v7766 = vrot.slane %v7647, 1
        %v7767 = vrot.slane %v7647, 2
        %v7768 = vrot.slane %v7647, 3
        %v7769 = vrot.slane %v7647, 4
        %v7770 = vrot.slane %v7647, 5
        %v7771 = vrot.slane %v7647, 6
        %v7772 = vrot.slane %v7647, 7
        %v7773 = vrot.slane %v7648, 1
        %v7774 = vrot.slane %v7648, 2
        %7775 = vst [vmem:[#allocation1] ss:$9 sm:$0xff] %v7627
        %s7776 = scalar_lea.vmem [#allocation1], 1
        %7777 = vst [vmem:[%s7776] ss:$9 sm:$0xff] %v7676
        %s7778 = scalar_lea.vmem [#allocation1], 2
        %7779 = vst [vmem:[%s7778] ss:$9 sm:$0xff] %v7677
        %s7780 = scalar_lea.vmem [#allocation1], 3
        %7781 = vst [vmem:[%s7780] ss:$9 sm:$0xff] %v7678
        %s7782 = scalar_lea.vmem [#allocation1], 4
        %7783 = vst [vmem:[%s7782] ss:$9 sm:$0xff] %v7679
        %s7784 = scalar_lea.vmem [#allocation1], 5
        %7785 = vst [vmem:[%s7784] ss:$9 sm:$0xff] %v7680
        %s7786 = scalar_lea.vmem [#allocation1], 6
        %7787 = vst [vmem:[%s7786] ss:$9 sm:$0xff] %v7681
        %s7788 = scalar_lea.vmem [#allocation1], 7
        %7789 = vst [vmem:[%s7788] ss:$9 sm:$0xff] %v7682
        %v7790 = vld [vmem:[#allocation1] sm:$0xff]
        %7791 = vst [vmem:[#allocation1] ss:$9 sm:$0xff] %v7628
        %7792 = vst [vmem:[%s7776] ss:$9 sm:$0xff] %v7683
        %7793 = vst [vmem:[%s7778] ss:$9 sm:$0xff] %v7684
        %7794 = vst [vmem:[%s7780] ss:$9 sm:$0xff] %v7629
        %7795 = vst [vmem:[%s7782] ss:$9 sm:$0xff] %v7685
        %7796 = vst [vmem:[%s7784] ss:$9 sm:$0xff] %v7686
        %7797 = vst [vmem:[%s7786] ss:$9 sm:$0xff] %v7687
        %7798 = vst [vmem:[%s7788] ss:$9 sm:$0xff] %v7688
        %v7799 = vld [vmem:[#allocation1] sm:$0xff]
        %7800 = vst [vmem:[#allocation1] ss:$9 sm:$0xff] %v7689
        %7801 = vst [vmem:[%s7776] ss:$9 sm:$0xff] %v7690
        %7802 = vst [vmem:[%s7778] ss:$9 sm:$0xff] %v7691
        %7803 = vst [vmem:[%s7780] ss:$9 sm:$0xff] %v7630
        %7804 = vst [vmem:[%s7782] ss:$9 sm:$0xff] %v7692
        %7805 = vst [vmem:[%s7784] ss:$9 sm:$0xff] %v7693
        %7806 = vst [vmem:[%s7786] ss:$9 sm:$0xff] %v7631
        %7807 = vst [vmem:[%s7788] ss:$9 sm:$0xff] %v7694
        %v7808 = vld [vmem:[#allocation1] sm:$0xff]
        %7809 = vst [vmem:[#allocation1] ss:$9 sm:$0xff] %v7695
        %7810 = vst [vmem:[%s7776] ss:$9 sm:$0xff] %v7696
        %7811 = vst [vmem:[%s7778] ss:$9 sm:$0xff] %v7697
        %7812 = vst [vmem:[%s7780] ss:$9 sm:$0xff] %v7698
        %7813 = vst [vmem:[%s7782] ss:$9 sm:$0xff] %v7699
        %7814 = vst [vmem:[%s7784] ss:$9 sm:$0xff] %v7700
        %7815 = vst [vmem:[%s7786] ss:$9 sm:$0xff] %v7632
        %7816 = vst [vmem:[%s7788] ss:$9 sm:$0xff] %v7701
        %v7817 = vld [vmem:[#allocation1] sm:$0xff]
        %7818 = vst [vmem:[#allocation1] ss:$9 sm:$0xff] %v7702
        %7819 = vst [vmem:[%s7776] ss:$9 sm:$0xff] %v7633
        %7820 = vst [vmem:[%s7778] ss:$9 sm:$0xff] %v7703
        %7821 = vst [vmem:[%s7780] ss:$9 sm:$0xff] %v7704
        %7822 = vst [vmem:[%s7782] ss:$9 sm:$0xff] %v7705
        %7823 = vst [vmem:[%s7784] ss:$9 sm:$0xff] %v7706
        %7824 = vst [vmem:[%s7786] ss:$9 sm:$0xff] %v7707
        %7825 = vst [vmem:[%s7788] ss:$9 sm:$0xff] %v7708
        %v7826 = vld [vmem:[#allocation1] sm:$0xff]
        %7827 = vst [vmem:[#allocation1] ss:$9 sm:$0xff] %v7709
        %7828 = vst [vmem:[%s7776] ss:$9 sm:$0xff] %v7634
        %7829 = vst [vmem:[%s7778] ss:$9 sm:$0xff] %v7710
        %7830 = vst [vmem:[%s7780] ss:$9 sm:$0xff] %v7711
        %7831 = vst [vmem:[%s7782] ss:$9 sm:$0xff] %v7635
        %7832 = vst [vmem:[%s7784] ss:$9 sm:$0xff] %v7712
        %7833 = vst [vmem:[%s7786] ss:$9 sm:$0xff] %v7713
        %7834 = vst [vmem:[%s7788] ss:$9 sm:$0xff] %v7714
        %v7835 = vld [vmem:[#allocation1] sm:$0xff]
        %7836 = vst [vmem:[#allocation1] ss:$9 sm:$0xff] %v7715
        %7837 = vst [vmem:[%s7776] ss:$9 sm:$0xff] %v7716
        %7838 = vst [vmem:[%s7778] ss:$9 sm:$0xff] %v7717
        %7839 = vst [vmem:[%s7780] ss:$9 sm:$0xff] %v7718
        %7840 = vst [vmem:[%s7782] ss:$9 sm:$0xff] %v7636
        %7841 = vst [vmem:[%s7784] ss:$9 sm:$0xff] %v7719
        %7842 = vst [vmem:[%s7786] ss:$9 sm:$0xff] %v7720
        %7843 = vst [vmem:[%s7788] ss:$9 sm:$0xff] %v7637
        %v7844 = vld [vmem:[#allocation1] sm:$0xff]
        %7845 = vst [vmem:[#allocation1] ss:$9 sm:$0xff] %v7721
        %7846 = vst [vmem:[%s7776] ss:$9 sm:$0xff] %v7722
        %7847 = vst [vmem:[%s7778] ss:$9 sm:$0xff] %v7723
        %7848 = vst [vmem:[%s7780] ss:$9 sm:$0xff] %v7724
        %7849 = vst [vmem:[%s7782] ss:$9 sm:$0xff] %v7725
        %7850 = vst [vmem:[%s7784] ss:$9 sm:$0xff] %v7726
        %7851 = vst [vmem:[%s7786] ss:$9 sm:$0xff] %v7727
        %7852 = vst [vmem:[%s7788] ss:$9 sm:$0xff] %v7638
        %v7853 = vld [vmem:[#allocation1] sm:$0xff]
        %7854 = vst [vmem:[#allocation1] ss:$9 sm:$0xff] %v7728
        %7855 = vst [vmem:[%s7776] ss:$9 sm:$0xff] %v7729
        %7856 = vst [vmem:[%s7778] ss:$9 sm:$0xff] %v7639
        %7857 = vst [vmem:[%s7780] ss:$9 sm:$0xff] %v7730
        %7858 = vst [vmem:[%s7782] ss:$9 sm:$0xff] %v7731
        %7859 = vst [vmem:[%s7784] ss:$9 sm:$0xff] %v7732
        %7860 = vst [vmem:[%s7786] ss:$9 sm:$0xff] %v7733
        %7861 = vst [vmem:[%s7788] ss:$9 sm:$0xff] %v7734
        %v7862 = vld [vmem:[#allocation1] sm:$0xff]
        %7863 = vst [vmem:[#allocation1] ss:$9 sm:$0xff] %v7735
        %7864 = vst [vmem:[%s7776] ss:$9 sm:$0xff] %v7736
        %7865 = vst [vmem:[%s7778] ss:$9 sm:$0xff] %v7640
        %7866 = vst [vmem:[%s7780] ss:$9 sm:$0xff] %v7737
        %7867 = vst [vmem:[%s7782] ss:$9 sm:$0xff] %v7738
        %7868 = vst [vmem:[%s7784] ss:$9 sm:$0xff] %v7641
        %7869 = vst [vmem:[%s7786] ss:$9 sm:$0xff] %v7739
        %7870 = vst [vmem:[%s7788] ss:$9 sm:$0xff] %v7740
        %v7871 = vld [vmem:[#allocation1] sm:$0xff]
        %7872 = vst [vmem:[#allocation1] ss:$9 sm:$0xff] %v7741
        %7873 = vst [vmem:[%s7776] ss:$9 sm:$0xff] %v7742
        %7874 = vst [vmem:[%s7778] ss:$9 sm:$0xff] %v7743
        %7875 = vst [vmem:[%s7780] ss:$9 sm:$0xff] %v7744
        %7876 = vst [vmem:[%s7782] ss:$9 sm:$0xff] %v7745
        %7877 = vst [vmem:[%s7784] ss:$9 sm:$0xff] %v7642
        %7878 = vst [vmem:[%s7786] ss:$9 sm:$0xff] %v7746
        %7879 = vst [vmem:[%s7788] ss:$9 sm:$0xff] %v7747
        %v7880 = vld [vmem:[#allocation1] sm:$0xff]
        %7881 = vst [vmem:[#allocation1] ss:$9 sm:$0xff] %v7643
        %7882 = vst [vmem:[%s7776] ss:$9 sm:$0xff] %v7748
        %7883 = vst [vmem:[%s7778] ss:$9 sm:$0xff] %v7749
        %7884 = vst [vmem:[%s7780] ss:$9 sm:$0xff] %v7750
        %7885 = vst [vmem:[%s7782] ss:$9 sm:$0xff] %v7751
        %7886 = vst [vmem:[%s7784] ss:$9 sm:$0xff] %v7752
        %7887 = vst [vmem:[%s7786] ss:$9 sm:$0xff] %v7753
        %7888 = vst [vmem:[%s7788] ss:$9 sm:$0xff] %v7754
        %v7889 = vld [vmem:[#allocation1] sm:$0xff]
        %7890 = vst [vmem:[#allocation1] ss:$9 sm:$0xff] %v7644
        %7891 = vst [vmem:[%s7776] ss:$9 sm:$0xff] %v7755
        %7892 = vst [vmem:[%s7778] ss:$9 sm:$0xff] %v7756
        %7893 = vst [vmem:[%s7780] ss:$9 sm:$0xff] %v7645
        %7894 = vst [vmem:[%s7782] ss:$9 sm:$0xff] %v7757
        %7895 = vst [vmem:[%s7784] ss:$9 sm:$0xff] %v7758
        %7896 = vst [vmem:[%s7786] ss:$9 sm:$0xff] %v7759
        %7897 = vst [vmem:[%s7788] ss:$9 sm:$0xff] %v7760
        %v7898 = vld [vmem:[#allocation1] sm:$0xff]
        %7899 = vst [vmem:[#allocation1] ss:$9 sm:$0xff] %v7761
        %7900 = vst [vmem:[%s7776] ss:$9 sm:$0xff] %v7762
        %7901 = vst [vmem:[%s7778] ss:$9 sm:$0xff] %v7763
        %7902 = vst [vmem:[%s7780] ss:$9 sm:$0xff] %v7646
        %7903 = vst [vmem:[%s7782] ss:$9 sm:$0xff] %v7764
        %7904 = vst [vmem:[%s7784] ss:$9 sm:$0xff] %v7765
        %7905 = vst [vmem:[%s7786] ss:$9 sm:$0xff] %v7647
        %7906 = vst [vmem:[%s7788] ss:$9 sm:$0xff] %v7766
        %v7907 = vld [vmem:[#allocation1] sm:$0xff]
        %7908 = vst [vmem:[#allocation1] ss:$9 sm:$0xff] %v7767
        %7909 = vst [vmem:[%s7776] ss:$9 sm:$0xff] %v7768
        %7910 = vst [vmem:[%s7778] ss:$9 sm:$0xff] %v7769
        %7911 = vst [vmem:[%s7780] ss:$9 sm:$0xff] %v7770
        %7912 = vst [vmem:[%s7782] ss:$9 sm:$0xff] %v7771
        %7913 = vst [vmem:[%s7784] ss:$9 sm:$0xff] %v7772
        %7914 = vst [vmem:[%s7786] ss:$9 sm:$0xff] %v7648
        %7915 = vst [vmem:[%s7788] ss:$9 sm:$0xff] %v7773
        %v7916 = vld [vmem:[#allocation1] sm:$0xff]
        %7917 = vst [vmem:[#allocation1] ss:$9 sm:$0xff] %v7774
        %v7918 = vld [vmem:[#allocation1] sm:$0xff]
        %vm7934 = vcmask 990208
        %v7936 = vsel %vm7934, %v7649, 0
        %v7939 = vsel %vm7934, %v7650, 0
        %v7942 = vsel %vm7934, %v7651, 0
        %v7945 = vsel %vm7934, %v7652, 0
        %v7948 = vsel %vm7934, %v7653, 0
        %vm7950 = vcmask 1040384
        %v7951 = vsel %vm7950, %v7918, 0
        %7953 = vmatpush.msra.mxu0 %v7951
        %7954 = vmatpush.msra.mxu0 %v7916
        %7955 = vmatpush.msra.mxu0 %v7907
        %7956 = vmatpush.msra.mxu0 %v7898
        %7957 = vmatpush.msra.mxu0 %v7889
        %7958 = vmatpush.msra.mxu0 %v7880
        %7959 = vmatpush.msra.mxu0 %v7871
        %7960 = vmatpush.msra.mxu0 %v7862
        %7961 = vmatpush.msra.mxu0 %v7853
        %7962 = vmatpush.msra.mxu0 %v7844
        %7963 = vmatpush.msra.mxu0 %v7835
        %7964 = vmatpush.msra.mxu0 %v7826
        %7965 = vmatpush.msra.mxu0 %v7817
        %7966 = vmatpush.msra.mxu0 %v7808
        %7967 = vmatpush.msra.mxu0 %v7799
        %7968 = vmatpush.msra.mxu0 %v7790
        %7969 = vmatmul.f32.gmra.mxu0 %v7936
        %v7970 = vpop.f32.mrf.mxu0
        %v7971 = vadd.f32 0.0, %v7970
        %7972 = vmatmul.f32.gmra.mxu0 %v7939
        %v7973 = vpop.f32.mrf.mxu0
        %v7974 = vadd.f32 0.0, %v7973
        %7975 = vmatmul.f32.gmra.mxu0 %v7942
        %v7976 = vpop.f32.mrf.mxu0
        %v7977 = vadd.f32 0.0, %v7976
        %7978 = vmatmul.f32.gmra.mxu0 %v7945
        %v7979 = vpop.f32.mrf.mxu0
        %v7980 = vadd.f32 0.0, %v7979
        %7981 = vmatmul.f32.gmra.mxu0 %v7948
        %v7982 = vpop.f32.mrf.mxu0
        %v7983 = vadd.f32 0.0, %v7982
        %7984 = vdwg.mxu0
        %7985 = vst.msk [vmem:[#allocation5] sm:$0xff] %vm3836, 0.0
        %7986 = vst.msk [vmem:[#allocation5 + $0x8] sm:$0xff] %vm3836, 0.0
        %7987 = vst.msk [vmem:[#allocation5 + $0x10] sm:$0xff] %vm3836, 0.0
        %7988 = vst.msk [vmem:[#allocation5 + $0x18] sm:$0xff] %vm3836, 0.0
        %7989 = vst.msk [vmem:[#allocation5 + $0x20] sm:$0xff] %vm3836, 0.0
        %7990 = vst.msk [vmem:[#allocation5 + $0x28] sm:$0xff] %vm3836, 0.0
        %7991 = vst.msk [vmem:[#allocation5 + $0x30] sm:$0xff] %vm3836, 0.0
        %7992 = vst.msk [vmem:[#allocation5 + $0x38] sm:$0xff] %vm3836, 0.0
        %v7998 = vrot.slane %v7971, 2
        %v7999 = vrot.slane %v7971, 4
        %v8000 = vrot.slane %v7971, 6
        %v8001 = vrot.slane %v7974, 2
        %v8002 = vrot.slane %v7974, 4
        %v8003 = vrot.slane %v7974, 6
        %v8004 = vrot.slane %v7977, 2
        %v8005 = vrot.slane %v7977, 4
        %v8006 = vrot.slane %v7977, 6
        %v8007 = vrot.slane %v7980, 2
        %v8008 = vrot.slane %v7980, 4
        %v8009 = vrot.slane %v7980, 6
        %v8010 = vrot.slane %v7983, 2
        %8011 = vst [vmem:[#allocation1] ss:$4 sm:$0xff] %v7971
        %s8012 = scalar_lea.vmem [#allocation1], 1
        %8013 = vst [vmem:[%s8012] ss:$4 sm:$0xff] %v7998
        %s8014 = scalar_lea.vmem [#allocation1], 2
        %8015 = vst [vmem:[%s8014] ss:$4 sm:$0xff] %v7999
        %v8016 = vld.sshfl [vmem:[#allocation1] sm:$0xff pattern:$0x73625140]
        %s8017 = scalar_lea.vmem [#allocation1], 32
        %8018 = vst [vmem:[%s8017] ss:$4 sm:$0xff] %v8000
        %s8019 = scalar_lea.vmem [#allocation1], 33
        %8020 = vst [vmem:[%s8019] ss:$4 sm:$0xff] %v7974
        %s8021 = scalar_lea.vmem [#allocation1], 34
        %8022 = vst [vmem:[%s8021] ss:$4 sm:$0xff] %v8001
        %v8023 = vld.sshfl [vmem:[#allocation1 + $0x20] sm:$0xff pattern:$0x73625140]
        %8024 = vst [vmem:[#allocation1] ss:$4 sm:$0xff] %v8002
        %8025 = vst [vmem:[%s8012] ss:$4 sm:$0xff] %v8003
        %8026 = vst [vmem:[%s8014] ss:$4 sm:$0xff] %v7977
        %v8027 = vld.sshfl [vmem:[#allocation1] sm:$0xff pattern:$0x73625140]
        %8028 = vst [vmem:[%s8017] ss:$4 sm:$0xff] %v8004
        %8029 = vst [vmem:[%s8019] ss:$4 sm:$0xff] %v8005
        %8030 = vst [vmem:[%s8021] ss:$4 sm:$0xff] %v8006
        %v8031 = vld.sshfl [vmem:[#allocation1 + $0x20] sm:$0xff pattern:$0x73625140]
        %8032 = vst [vmem:[#allocation1] ss:$4 sm:$0xff] %v7980
        %8033 = vst [vmem:[%s8012] ss:$4 sm:$0xff] %v8007
        %8034 = vst [vmem:[%s8014] ss:$4 sm:$0xff] %v8008
        %v8035 = vld.sshfl [vmem:[#allocation1] sm:$0xff pattern:$0x73625140]
        %8036 = vst [vmem:[%s8017] ss:$4 sm:$0xff] %v8009
        %8037 = vst [vmem:[%s8019] ss:$4 sm:$0xff] %v7983
        %8038 = vst [vmem:[%s8021] ss:$4 sm:$0xff] %v8010
        %v8039 = vld.sshfl [vmem:[#allocation1 + $0x20] sm:$0xff pattern:$0x73625140]
        %s8046 = scalar_lea.vmem [#allocation5], 8
        %vm8047 = vcmask 128000
        %8048 = vst.msk [vmem:[%s8046 + $0x1] sm:$0x3f] %vm8047, %v8016
        %8049 = vst.msk [vmem:[%s8046 + $0x9] sm:$0x3f] %vm8047, %v8023
        %8050 = vst.msk [vmem:[%s8046 + $0x11] sm:$0x3f] %vm8047, %v8027
        %8051 = vst.msk [vmem:[%s8046 + $0x19] sm:$0x3f] %vm8047, %v8031
        %8052 = vst.msk [vmem:[%s8046 + $0x21] sm:$0x3f] %vm8047, %v8035
        %8053 = vst.msk [vmem:[%s8046 + $0x29] sm:$0x3f] %vm8047, %v8039
        %v8054 = vpack.c.bf16 %v7974, %v7971
        %v8055 = vpack.c.bf16 %v7980, %v7977
        %v8056 = vpack.c.bf16 %v7983, %v7983
        %v8057 = vld [vmem:[%s8] sm:$0xf]
        %v8058 = vld [vmem:[%s8 + $0x4] sm:$0xf]
        %v8059 = vld [vmem:[%s9] sm:$0x1]
        %v8061 = vperm.slane %v8059, 0
        %v8065 = vunpack.c.l.b16 %v8057
        %v8066 = vunpack.c.l.b16 %v8058
        %v8067 = vpack.c.b16 %v8066, %v8065
        %v8070 = vsel %vm3836, %v8054, 0
        %v8073 = vsel %vm3836, %v8055, 0
        %v8076 = vsel %vm3836, %v8056, 0
        %8078 = vmatpush.bf16.msra.mxu0 0
        %8079 = vmatpush.bf16.msra.mxu0 0
        %8080 = vmatpush.bf16.msra.mxu0 0
        %8081 = vmatpush.bf16.msra.mxu0 0
        %8082 = vmatpush.bf16.msra.mxu0 0
        %8083 = vmatpush.bf16.msra.mxu0 0
        %8084 = vmatpush.bf16.msra.mxu0 0
        %8085 = vmatpush.bf16.msra.mxu0 %v8067
        %8086 = vmatmul.bf16.gmra.mxu0 %v8070
        %v8087 = vpop.f32.mrf.mxu0
        %v8088 = vadd.f32 %v8061, %v8087
        %v8089 = vpop.f32.mrf.mxu0
        %v8090 = vadd.f32 %v8061, %v8089
        %8091 = vmatmul.bf16.gmra.mxu0 %v8073
        %v8092 = vpop.f32.mrf.mxu0
        %v8093 = vadd.f32 %v8061, %v8092
        %v8094 = vpop.f32.mrf.mxu0
        %v8095 = vadd.f32 %v8061, %v8094
        %8096 = vmatmul.bf16.gmra.mxu0 %v8076
        %v8097 = vpop.f32.mrf.mxu0
        %v8098 = vadd.f32 %v8061, %v8097
        %v8099 = vpop.f32.mrf.mxu0
        %8100 = vdwg.mxu0
        %v8101 = vmax.f32 %v8088, 0.0
        %v8102 = vmax.f32 %v8090, 0.0
        %v8103 = vmax.f32 %v8093, 0.0
        %v8104 = vmax.f32 %v8095, 0.0
        %v8105 = vmax.f32 %v8098, 0.0
        %8106 = vst.msk [vmem:[#allocation6] sm:$0xff] %vm3836, 0.0
        %8107 = vst.msk [vmem:[#allocation6 + $0x8] sm:$0xff] %vm3836, 0.0
        %8108 = vst.msk [vmem:[#allocation6 + $0x10] sm:$0xff] %vm3836, 0.0
        %8109 = vst.msk [vmem:[#allocation6 + $0x18] sm:$0xff] %vm3836, 0.0
        %8110 = vst.msk [vmem:[#allocation6 + $0x20] sm:$0xff] %vm3836, 0.0
        %8111 = vst.msk [vmem:[#allocation6 + $0x28] sm:$0xff] %vm3836, 0.0
        %8112 = vst.msk [vmem:[#allocation6 + $0x30] sm:$0xff] %vm3836, 0.0
        %8113 = vst.msk [vmem:[#allocation6 + $0x38] sm:$0xff] %vm3836, 0.0
        %v8119 = vrot.slane %v8101, 2
        %v8120 = vrot.slane %v8101, 4
        %v8121 = vrot.slane %v8101, 6
        %v8122 = vrot.slane %v8102, 2
        %v8123 = vrot.slane %v8102, 4
        %v8124 = vrot.slane %v8102, 6
        %v8125 = vrot.slane %v8103, 2
        %v8126 = vrot.slane %v8103, 4
        %v8127 = vrot.slane %v8103, 6
        %v8128 = vrot.slane %v8104, 2
        %v8129 = vrot.slane %v8104, 4
        %v8130 = vrot.slane %v8104, 6
        %v8131 = vrot.slane %v8105, 2
        %8132 = vst [vmem:[#allocation1] ss:$4 sm:$0xff] %v8101
        %s8133 = scalar_lea.vmem [#allocation1], 1
        %8134 = vst [vmem:[%s8133] ss:$4 sm:$0xff] %v8119
        %s8135 = scalar_lea.vmem [#allocation1], 2
        %8136 = vst [vmem:[%s8135] ss:$4 sm:$0xff] %v8120
        %v8137 = vld.sshfl [vmem:[#allocation1] sm:$0xff pattern:$0x73625140]
        %s8138 = scalar_lea.vmem [#allocation1], 32
        %8139 = vst [vmem:[%s8138] ss:$4 sm:$0xff] %v8121
        %s8140 = scalar_lea.vmem [#allocation1], 33
        %8141 = vst [vmem:[%s8140] ss:$4 sm:$0xff] %v8102
        %s8142 = scalar_lea.vmem [#allocation1], 34
        %8143 = vst [vmem:[%s8142] ss:$4 sm:$0xff] %v8122
        %v8144 = vld.sshfl [vmem:[#allocation1 + $0x20] sm:$0xff pattern:$0x73625140]
        %8145 = vst [vmem:[#allocation1] ss:$4 sm:$0xff] %v8123
        %8146 = vst [vmem:[%s8133] ss:$4 sm:$0xff] %v8124
        %8147 = vst [vmem:[%s8135] ss:$4 sm:$0xff] %v8103
        %v8148 = vld.sshfl [vmem:[#allocation1] sm:$0xff pattern:$0x73625140]
        %8149 = vst [vmem:[%s8138] ss:$4 sm:$0xff] %v8125
        %8150 = vst [vmem:[%s8140] ss:$4 sm:$0xff] %v8126
        %8151 = vst [vmem:[%s8142] ss:$4 sm:$0xff] %v8127
        %v8152 = vld.sshfl [vmem:[#allocation1 + $0x20] sm:$0xff pattern:$0x73625140]
        %8153 = vst [vmem:[#allocation1] ss:$4 sm:$0xff] %v8104
        %8154 = vst [vmem:[%s8133] ss:$4 sm:$0xff] %v8128
        %8155 = vst [vmem:[%s8135] ss:$4 sm:$0xff] %v8129
        %v8156 = vld.sshfl [vmem:[#allocation1] sm:$0xff pattern:$0x73625140]
        %8157 = vst [vmem:[%s8138] ss:$4 sm:$0xff] %v8130
        %8158 = vst [vmem:[%s8140] ss:$4 sm:$0xff] %v8105
        %8159 = vst [vmem:[%s8142] ss:$4 sm:$0xff] %v8131
        %v8160 = vld.sshfl [vmem:[#allocation1 + $0x20] sm:$0xff pattern:$0x73625140]
        %8161 = vrot.lane.b32.xlu0 %v8137, 120
        %v8162 = vpop.permute.xlu0 %8161
        %8163 = vrot.lane.b32.xlu0 %v8144, 120
        %v8164 = vpop.permute.xlu0 %8163
        %8165 = vrot.lane.b32.xlu0 %v8148, 120
        %v8166 = vpop.permute.xlu0 %8165
        %8167 = vrot.lane.b32.xlu0 %v8152, 120
        %v8168 = vpop.permute.xlu0 %8167
        %8169 = vrot.lane.b32.xlu0 %v8156, 120
        %v8170 = vpop.permute.xlu0 %8169
        %8171 = vrot.lane.b32.xlu0 %v8160, 120
        %v8172 = vpop.permute.xlu0 %8171
        %s8179 = scalar_lea.vmem [#allocation6], 8
        %8180 = vst.msk [vmem:[%s8179 + $0x1] sm:$0x3f] %vm8047, %v8162
        %8181 = vst.msk [vmem:[%s8179 + $0x9] sm:$0x3f] %vm8047, %v8164
        %8182 = vst.msk [vmem:[%s8179 + $0x11] sm:$0x3f] %vm8047, %v8166
        %8183 = vst.msk [vmem:[%s8179 + $0x19] sm:$0x3f] %vm8047, %v8168
        %8184 = vst.msk [vmem:[%s8179 + $0x21] sm:$0x3f] %vm8047, %v8170
        %8185 = vst.msk [vmem:[%s8179 + $0x29] sm:$0x3f] %vm8047, %v8172
        %v8186 = vld [vmem:[#allocation6] sm:$0x3f]
        %v8187 = vld [vmem:[#allocation6 + $0x8] sm:$0x3f]
        %v8188 = vld [vmem:[#allocation6 + $0x10] sm:$0x3f]
        %v8189 = vld [vmem:[#allocation6 + $0x18] sm:$0x3f]
        %v8190 = vld [vmem:[#allocation6 + $0x20] sm:$0x3f]
        %v8191 = vld [vmem:[#allocation6 + $0x28] sm:$0x3f]
        %v8192 = vld [vmem:[#allocation6 + $0x1] sm:$0x3f]
        %v8193 = vld [vmem:[#allocation6 + $0x9] sm:$0x3f]
        %v8194 = vld [vmem:[#allocation6 + $0x11] sm:$0x3f]
        %v8195 = vld [vmem:[#allocation6 + $0x19] sm:$0x3f]
        %v8196 = vld [vmem:[#allocation6 + $0x21] sm:$0x3f]
        %v8197 = vld [vmem:[#allocation6 + $0x29] sm:$0x3f]
        %v8198 = vld [vmem:[#allocation6 + $0x2] sm:$0x3f]
        %v8199 = vld [vmem:[#allocation6 + $0xa] sm:$0x3f]
        %v8200 = vld [vmem:[#allocation6 + $0x12] sm:$0x3f]
        %v8201 = vld [vmem:[#allocation6 + $0x1a] sm:$0x3f]
        %v8202 = vld [vmem:[#allocation6 + $0x22] sm:$0x3f]
        %v8203 = vld [vmem:[#allocation6 + $0x2a] sm:$0x3f]
        %v8204 = vld [vmem:[%s8179] sm:$0x3f]
        %v8205 = vld [vmem:[%s8179 + $0x8] sm:$0x3f]
        %v8206 = vld [vmem:[%s8179 + $0x10] sm:$0x3f]
        %v8207 = vld [vmem:[%s8179 + $0x18] sm:$0x3f]
        %v8208 = vld [vmem:[%s8179 + $0x20] sm:$0x3f]
        %v8209 = vld [vmem:[%s8179 + $0x28] sm:$0x3f]
        %v8210 = vld [vmem:[%s8179 + $0x1] sm:$0x3f]
        %v8211 = vld [vmem:[%s8179 + $0x9] sm:$0x3f]
        %v8212 = vld [vmem:[%s8179 + $0x11] sm:$0x3f]
        %v8213 = vld [vmem:[%s8179 + $0x19] sm:$0x3f]
        %v8214 = vld [vmem:[%s8179 + $0x21] sm:$0x3f]
        %v8215 = vld [vmem:[%s8179 + $0x29] sm:$0x3f]
        %v8216 = vld [vmem:[%s8179 + $0x2] sm:$0x3f]
        %v8217 = vld [vmem:[%s8179 + $0xa] sm:$0x3f]
        %v8218 = vld [vmem:[%s8179 + $0x12] sm:$0x3f]
        %v8219 = vld [vmem:[%s8179 + $0x1a] sm:$0x3f]
        %v8220 = vld [vmem:[%s8179 + $0x22] sm:$0x3f]
        %v8221 = vld [vmem:[%s8179 + $0x2a] sm:$0x3f]
        %s8222 = scalar_lea.vmem [#allocation6], 16
        %v8223 = vld [vmem:[%s8222] sm:$0x3f]
        %v8224 = vld [vmem:[%s8222 + $0x8] sm:$0x3f]
        %v8225 = vld [vmem:[%s8222 + $0x10] sm:$0x3f]
        %v8226 = vld [vmem:[%s8222 + $0x18] sm:$0x3f]
        %v8227 = vld [vmem:[%s8222 + $0x20] sm:$0x3f]
        %v8228 = vld [vmem:[%s8222 + $0x28] sm:$0x3f]
        %v8229 = vld [vmem:[%s8222 + $0x1] sm:$0x3f]
        %v8230 = vld [vmem:[%s8222 + $0x9] sm:$0x3f]
        %v8231 = vld [vmem:[%s8222 + $0x11] sm:$0x3f]
        %v8232 = vld [vmem:[%s8222 + $0x19] sm:$0x3f]
        %v8233 = vld [vmem:[%s8222 + $0x21] sm:$0x3f]
        %v8234 = vld [vmem:[%s8222 + $0x29] sm:$0x3f]
        %v8235 = vld [vmem:[%s8222 + $0x2] sm:$0x3f]
        %v8236 = vld [vmem:[%s8222 + $0xa] sm:$0x3f]
        %v8237 = vld [vmem:[%s8222 + $0x12] sm:$0x3f]
        %v8238 = vld [vmem:[%s8222 + $0x1a] sm:$0x3f]
        %v8239 = vld [vmem:[%s8222 + $0x22] sm:$0x3f]
        %v8240 = vld [vmem:[%s8222 + $0x2a] sm:$0x3f]
        %8247 = vrot.lane.b32.xlu0 %v8192, 16
        %v8248 = vpop.permute.xlu0 %8247
        %8249 = vrot.lane.b32.xlu0 %v8193, 16
        %v8250 = vpop.permute.xlu0 %8249
        %8251 = vrot.lane.b32.xlu0 %v8194, 16
        %v8252 = vpop.permute.xlu0 %8251
        %8253 = vrot.lane.b32.xlu0 %v8195, 16
        %v8254 = vpop.permute.xlu0 %8253
        %8255 = vrot.lane.b32.xlu0 %v8196, 16
        %v8256 = vpop.permute.xlu0 %8255
        %8257 = vrot.lane.b32.xlu0 %v8197, 16
        %v8258 = vpop.permute.xlu0 %8257
        %8271 = vrot.lane.b32.xlu0 %v8198, 32
        %v8272 = vpop.permute.xlu0 %8271
        %8273 = vrot.lane.b32.xlu0 %v8199, 32
        %v8274 = vpop.permute.xlu0 %8273
        %8275 = vrot.lane.b32.xlu0 %v8200, 32
        %v8276 = vpop.permute.xlu0 %8275
        %8277 = vrot.lane.b32.xlu0 %v8201, 32
        %v8278 = vpop.permute.xlu0 %8277
        %8279 = vrot.lane.b32.xlu0 %v8202, 32
        %v8280 = vpop.permute.xlu0 %8279
        %8281 = vrot.lane.b32.xlu0 %v8203, 32
        %v8282 = vpop.permute.xlu0 %8281
        %8295 = vrot.lane.b32.xlu0 %v8204, 48
        %v8296 = vpop.permute.xlu0 %8295
        %8297 = vrot.lane.b32.xlu0 %v8205, 48
        %v8298 = vpop.permute.xlu0 %8297
        %8299 = vrot.lane.b32.xlu0 %v8206, 48
        %v8300 = vpop.permute.xlu0 %8299
        %8301 = vrot.lane.b32.xlu0 %v8207, 48
        %v8302 = vpop.permute.xlu0 %8301
        %8303 = vrot.lane.b32.xlu0 %v8208, 48
        %v8304 = vpop.permute.xlu0 %8303
        %8305 = vrot.lane.b32.xlu0 %v8209, 48
        %v8306 = vpop.permute.xlu0 %8305
        %8319 = vrot.lane.b32.xlu0 %v8210, 64
        %v8320 = vpop.permute.xlu0 %8319
        %8321 = vrot.lane.b32.xlu0 %v8211, 64
        %v8322 = vpop.permute.xlu0 %8321
        %8323 = vrot.lane.b32.xlu0 %v8212, 64
        %v8324 = vpop.permute.xlu0 %8323
        %8325 = vrot.lane.b32.xlu0 %v8213, 64
        %v8326 = vpop.permute.xlu0 %8325
        %8327 = vrot.lane.b32.xlu0 %v8214, 64
        %v8328 = vpop.permute.xlu0 %8327
        %8329 = vrot.lane.b32.xlu0 %v8215, 64
        %v8330 = vpop.permute.xlu0 %8329
        %8343 = vrot.lane.b32.xlu0 %v8216, 80
        %v8344 = vpop.permute.xlu0 %8343
        %8345 = vrot.lane.b32.xlu0 %v8217, 80
        %v8346 = vpop.permute.xlu0 %8345
        %8347 = vrot.lane.b32.xlu0 %v8218, 80
        %v8348 = vpop.permute.xlu0 %8347
        %8349 = vrot.lane.b32.xlu0 %v8219, 80
        %v8350 = vpop.permute.xlu0 %8349
        %8351 = vrot.lane.b32.xlu0 %v8220, 80
        %v8352 = vpop.permute.xlu0 %8351
        %8353 = vrot.lane.b32.xlu0 %v8221, 80
        %v8354 = vpop.permute.xlu0 %8353
        %8367 = vrot.lane.b32.xlu0 %v8223, 96
        %v8368 = vpop.permute.xlu0 %8367
        %8369 = vrot.lane.b32.xlu0 %v8224, 96
        %v8370 = vpop.permute.xlu0 %8369
        %8371 = vrot.lane.b32.xlu0 %v8225, 96
        %v8372 = vpop.permute.xlu0 %8371
        %8373 = vrot.lane.b32.xlu0 %v8226, 96
        %v8374 = vpop.permute.xlu0 %8373
        %8375 = vrot.lane.b32.xlu0 %v8227, 96
        %v8376 = vpop.permute.xlu0 %8375
        %8377 = vrot.lane.b32.xlu0 %v8228, 96
        %v8378 = vpop.permute.xlu0 %8377
        %8391 = vrot.lane.b32.xlu0 %v8229, 112
        %v8392 = vpop.permute.xlu0 %8391
        %8393 = vrot.lane.b32.xlu0 %v8230, 112
        %v8394 = vpop.permute.xlu0 %8393
        %8395 = vrot.lane.b32.xlu0 %v8231, 112
        %v8396 = vpop.permute.xlu0 %8395
        %8397 = vrot.lane.b32.xlu0 %v8232, 112
        %v8398 = vpop.permute.xlu0 %8397
        %8399 = vrot.lane.b32.xlu0 %v8233, 112
        %v8400 = vpop.permute.xlu0 %8399
        %8401 = vrot.lane.b32.xlu0 %v8234, 112
        %v8402 = vpop.permute.xlu0 %8401
        %v8409 = vsel %vm3836, %v8186, %v8248
        %v8410 = vsel %vm3836, %v8187, %v8250
        %v8411 = vsel %vm3836, %v8188, %v8252
        %v8412 = vsel %vm3836, %v8189, %v8254
        %v8413 = vsel %vm3836, %v8190, %v8256
        %v8414 = vsel %vm3836, %v8191, %v8258
        %v8415 = vsel %vm3889, %v8409, %v8272
        %v8416 = vsel %vm3889, %v8410, %v8274
        %v8417 = vsel %vm3889, %v8411, %v8276
        %v8418 = vsel %vm3889, %v8412, %v8278
        %v8419 = vsel %vm3889, %v8413, %v8280
        %v8420 = vsel %vm3889, %v8414, %v8282
        %v8421 = vsel %vm2020, %v8415, %v8296
        %v8422 = vsel %vm2020, %v8416, %v8298
        %v8423 = vsel %vm2020, %v8417, %v8300
        %v8424 = vsel %vm2020, %v8418, %v8302
        %v8425 = vsel %vm2020, %v8419, %v8304
        %v8426 = vsel %vm2020, %v8420, %v8306
        %v8427 = vsel %vm3996, %v8421, %v8320
        %v8428 = vsel %vm3996, %v8422, %v8322
        %v8429 = vsel %vm3996, %v8423, %v8324
        %v8430 = vsel %vm3996, %v8424, %v8326
        %v8431 = vsel %vm3996, %v8425, %v8328
        %v8432 = vsel %vm3996, %v8426, %v8330
        %vm8433 = vcmask 654336
        %v8434 = vsel %vm8433, %v8427, %v8344
        %v8435 = vsel %vm8433, %v8428, %v8346
        %v8436 = vsel %vm8433, %v8429, %v8348
        %v8437 = vsel %vm8433, %v8430, %v8350
        %v8438 = vsel %vm8433, %v8431, %v8352
        %v8439 = vsel %vm8433, %v8432, %v8354
        %vm8440 = vcmask 785408
        %v8441 = vsel %vm8440, %v8434, %v8368
        %v8442 = vsel %vm8440, %v8435, %v8370
        %v8443 = vsel %vm8440, %v8436, %v8372
        %v8444 = vsel %vm8440, %v8437, %v8374
        %v8445 = vsel %vm8440, %v8438, %v8376
        %v8446 = vsel %vm8440, %v8439, %v8378
        %vm8447 = vcmask 916480
        %v8448 = vsel %vm8447, %v8441, %v8392
        %v8449 = vsel %vm8447, %v8442, %v8394
        %v8450 = vsel %vm8447, %v8443, %v8396
        %v8451 = vsel %vm8447, %v8444, %v8398
        %v8452 = vsel %vm8447, %v8445, %v8400
        %v8453 = vsel %vm8447, %v8446, %v8402
        %v8466 = vrot.slane %v8235, 6
        %v8467 = vrot.slane %v8236, 6
        %v8468 = vrot.slane %v8237, 6
        %v8469 = vrot.slane %v8238, 6
        %v8470 = vrot.slane %v8239, 6
        %v8471 = vrot.slane %v8240, 6
        %vm8472 = vcmask 1041408
        %v8473 = vsel %vm8472, %v8448, %v8466
        %vm8474 = vcmask 1043458
        %v8475 = vsel %vm8474, %v8448, %v8466
        %v8476 = vrot.slane %v8475, 2
        %vm8477 = vcmask 1045508
        %v8478 = vsel %vm8477, %v8448, %v8466
        %v8479 = vrot.slane %v8478, 4
        %v8480 = vsel %vm8472, %v8449, %v8467
        %v8481 = vsel %vm8474, %v8449, %v8467
        %v8482 = vrot.slane %v8481, 2
        %v8483 = vsel %vm8477, %v8449, %v8467
        %v8484 = vrot.slane %v8483, 4
        %v8485 = vsel %vm8472, %v8450, %v8468
        %v8486 = vsel %vm8474, %v8450, %v8468
        %v8487 = vrot.slane %v8486, 2
        %v8488 = vsel %vm8477, %v8450, %v8468
        %v8489 = vrot.slane %v8488, 4
        %v8490 = vsel %vm8472, %v8451, %v8469
        %v8491 = vsel %vm8474, %v8451, %v8469
        %v8492 = vrot.slane %v8491, 2
        %v8493 = vsel %vm8477, %v8451, %v8469
        %v8494 = vrot.slane %v8493, 4
        %v8495 = vsel %vm8472, %v8452, %v8470
        %v8496 = vsel %vm8474, %v8452, %v8470
        %v8497 = vrot.slane %v8496, 2
        %v8498 = vsel %vm8477, %v8452, %v8470
        %v8499 = vrot.slane %v8498, 4
        %v8500 = vsel %vm8472, %v8453, %v8471
        %v8501 = vsel %vm8474, %v8453, %v8471
        %v8502 = vrot.slane %v8501, 2
        %v8503 = vsel %vm8477, %v8453, %v8471
        %v8504 = vrot.slane %v8503, 4
        %8505 = vst [vmem:[#allocation1] ss:$4 sm:$0xff] %v8473
        %s8506 = scalar_lea.vmem [#allocation1], 1
        %8507 = vst [vmem:[%s8506] ss:$4 sm:$0xff] %v8476
        %s8508 = scalar_lea.vmem [#allocation1], 2
        %8509 = vst [vmem:[%s8508] ss:$4 sm:$0xff] %v8479
        %s8510 = scalar_lea.vmem [#allocation1], 3
        %8511 = vst [vmem:[%s8510] ss:$4 sm:$0xff] %v8480
        %s8512 = scalar_lea.vmem [#allocation1], 32
        %8513 = vst [vmem:[%s8512] ss:$4 sm:$0xff] %v8482
        %s8514 = scalar_lea.vmem [#allocation1], 33
        %8515 = vst [vmem:[%s8514] ss:$4 sm:$0xff] %v8484
        %s8516 = scalar_lea.vmem [#allocation1], 34
        %8517 = vst [vmem:[%s8516] ss:$4 sm:$0xff] %v8485
        %s8518 = scalar_lea.vmem [#allocation1], 35
        %8519 = vst [vmem:[%s8518] ss:$4 sm:$0xff] %v8487
        %v8520 = vld.sshfl [vmem:[#allocation1] sm:$0xff pattern:$0x73625140]
        %v8521 = vld.sshfl [vmem:[#allocation1 + $0x8] sm:$0xff pattern:$0x73625140]
        %v8522 = vld.sshfl [vmem:[#allocation1 + $0x20] sm:$0xff pattern:$0x73625140]
        %v8523 = vld.sshfl [vmem:[#allocation1 + $0x28] sm:$0xff pattern:$0x73625140]
        %8524 = vst [vmem:[#allocation1] ss:$4 sm:$0xff] %v8489
        %8525 = vst [vmem:[%s8506] ss:$4 sm:$0xff] %v8490
        %8526 = vst [vmem:[%s8508] ss:$4 sm:$0xff] %v8492
        %8527 = vst [vmem:[%s8510] ss:$4 sm:$0xff] %v8494
        %8528 = vst [vmem:[%s8512] ss:$4 sm:$0xff] %v8495
        %8529 = vst [vmem:[%s8514] ss:$4 sm:$0xff] %v8497
        %8530 = vst [vmem:[%s8516] ss:$4 sm:$0xff] %v8499
        %8531 = vst [vmem:[%s8518] ss:$4 sm:$0xff] %v8500
        %v8532 = vld.sshfl [vmem:[#allocation1] sm:$0xff pattern:$0x73625140]
        %v8533 = vld.sshfl [vmem:[#allocation1 + $0x8] sm:$0xff pattern:$0x73625140]
        %v8534 = vld.sshfl [vmem:[#allocation1 + $0x20] sm:$0xff pattern:$0x73625140]
        %v8535 = vld.sshfl [vmem:[#allocation1 + $0x28] sm:$0xff pattern:$0x73625140]
        %8536 = vst [vmem:[#allocation1] ss:$4 sm:$0xff] %v8502
        %8537 = vst [vmem:[%s8506] ss:$4 sm:$0xff] %v8504
        %v8538 = vld.sshfl [vmem:[#allocation1] sm:$0xff pattern:$0x73625140]
        %v8539 = vld.sshfl [vmem:[#allocation1 + $0x8] sm:$0xff pattern:$0x73625140]
        %v8550 = vpack.c.bf16 %v8522, %v8520
        %v8551 = vpack.c.bf16 %v8523, %v8521
        %v8552 = vpack.c.bf16 %v8534, %v8532
        %v8553 = vpack.c.bf16 %v8535, %v8533
        %v8554 = vpack.c.bf16 %v8538, %v8538
        %v8555 = vpack.c.bf16 %v8539, %v8539
        %v8556 = vld [vmem:[%s10] sm:$0xf]
        %v8557 = vld [vmem:[%s10 + $0x4] sm:$0xf]
        %v8558 = vld [vmem:[%s10 + $0x8] sm:$0xf]
        %v8559 = vld [vmem:[%s10 + $0xc] sm:$0xf]
        %v8560 = vld [vmem:[%s10 + $0x10] sm:$0xf]
        %v8561 = vld [vmem:[%s10 + $0x14] sm:$0xf]
        %v8562 = vld [vmem:[%s10 + $0x18] sm:$0xf]
        %v8563 = vld [vmem:[%s10 + $0x1c] sm:$0xf]
        %v8564 = vld [vmem:[%s10 + $0x20] sm:$0xf]
        %v8565 = vld [vmem:[%s10 + $0x24] sm:$0xf]
        %v8566 = vld [vmem:[%s10 + $0x28] sm:$0xf]
        %v8567 = vld [vmem:[%s10 + $0x2c] sm:$0xf]
        %v8568 = vld [vmem:[%s10 + $0x30] sm:$0xf]
        %v8569 = vld [vmem:[%s10 + $0x34] sm:$0xf]
        %v8570 = vld [vmem:[%s10 + $0x38] sm:$0xf]
        %v8571 = vld [vmem:[%s10 + $0x3c] sm:$0xf]
        %v8572 = vld [vmem:[%s10 + $0x40] sm:$0xf]
        %v8573 = vld [vmem:[%s10 + $0x44] sm:$0xf]
        %v8574 = vld [vmem:[%s11] sm:$0x1]
        %v8576 = vperm.slane %v8574, 0
        %v8596 = vunpack.c.l.b16 %v8556
        %v8597 = vunpack.c.l.b16 %v8557
        %v8598 = vunpack.c.l.b16 %v8558
        %v8599 = vunpack.c.l.b16 %v8559
        %v8600 = vunpack.c.l.b16 %v8560
        %v8601 = vunpack.c.l.b16 %v8561
        %v8602 = vunpack.c.l.b16 %v8562
        %v8603 = vunpack.c.l.b16 %v8563
        %v8604 = vunpack.c.l.b16 %v8564
        %v8605 = vunpack.c.l.b16 %v8565
        %v8606 = vunpack.c.l.b16 %v8566
        %v8607 = vunpack.c.l.b16 %v8567
        %v8608 = vunpack.c.l.b16 %v8568
        %v8609 = vunpack.c.l.b16 %v8569
        %v8610 = vunpack.c.l.b16 %v8570
        %v8611 = vunpack.c.l.b16 %v8571
        %v8612 = vunpack.c.l.b16 %v8572
        %v8613 = vunpack.c.l.b16 %v8573
        %v8614 = vpack.c.b16 %v8597, %v8596
        %v8615 = vpack.c.b16 %v8599, %v8598
        %v8616 = vpack.c.b16 %v8601, %v8600
        %v8617 = vpack.c.b16 %v8603, %v8602
        %v8618 = vpack.c.b16 %v8605, %v8604
        %v8619 = vpack.c.b16 %v8607, %v8606
        %v8620 = vpack.c.b16 %v8609, %v8608
        %v8621 = vpack.c.b16 %v8611, %v8610
        %v8622 = vpack.c.b16 %v8613, %v8612
        %v8633 = vsel %vm3836, %v8551, 0
        %v8636 = vsel %vm3836, %v8553, 0
        %v8639 = vsel %vm3836, %v8555, 0
        %8641 = vmatpush.bf16.msra.mxu0 %v8621
        %8642 = vmatpush.bf16.msra.mxu0 %v8620
        %8643 = vmatpush.bf16.msra.mxu0 %v8619
        %8644 = vmatpush.bf16.msra.mxu0 %v8618
        %8645 = vmatpush.bf16.msra.mxu0 %v8617
        %8646 = vmatpush.bf16.msra.mxu0 %v8616
        %8647 = vmatpush.bf16.msra.mxu0 %v8615
        %8648 = vmatpush.bf16.msra.mxu0 %v8614
        %8649 = vmatmul.bf16.gmra.mxu0 %v8550
        %v8650 = vpop.f32.mrf.mxu0
        %v8651 = vadd.f32 %v8576, %v8650
        %v8652 = vpop.f32.mrf.mxu0
        %v8653 = vadd.f32 %v8576, %v8652
        %8654 = vmatmul.bf16.gmra.mxu0 %v8552
        %v8655 = vpop.f32.mrf.mxu0
        %v8656 = vadd.f32 %v8576, %v8655
        %v8657 = vpop.f32.mrf.mxu0
        %v8658 = vadd.f32 %v8576, %v8657
        %8659 = vmatmul.bf16.gmra.mxu0 %v8554
        %v8660 = vpop.f32.mrf.mxu0
        %v8661 = vadd.f32 %v8576, %v8660
        %v8662 = vpop.f32.mrf.mxu0
        %8663 = vdwg.mxu0
        %8664 = vmatpush.bf16.msra.mxu0 0
        %8665 = vmatpush.bf16.msra.mxu0 0
        %8666 = vmatpush.bf16.msra.mxu0 0
        %8667 = vmatpush.bf16.msra.mxu0 0
        %8668 = vmatpush.bf16.msra.mxu0 0
        %8669 = vmatpush.bf16.msra.mxu0 0
        %8670 = vmatpush.bf16.msra.mxu0 0
        %8671 = vmatpush.bf16.msra.mxu0 %v8622
        %8672 = vmatmul.bf16.gmra.mxu0 %v8633
        %v8673 = vpop.f32.mrf.mxu0
        %v8674 = vadd.f32 %v8651, %v8673
        %v8675 = vpop.f32.mrf.mxu0
        %v8676 = vadd.f32 %v8653, %v8675
        %8677 = vmatmul.bf16.gmra.mxu0 %v8636
        %v8678 = vpop.f32.mrf.mxu0
        %v8679 = vadd.f32 %v8656, %v8678
        %v8680 = vpop.f32.mrf.mxu0
        %v8681 = vadd.f32 %v8658, %v8680
        %8682 = vmatmul.bf16.gmra.mxu0 %v8639
        %v8683 = vpop.f32.mrf.mxu0
        %v8684 = vadd.f32 %v8661, %v8683
        %v8685 = vpop.f32.mrf.mxu0
        %8686 = vdwg.mxu0
        %v8687 = vmax.f32 %v8674, 0.0
        %v8688 = vmax.f32 %v8676, 0.0
        %v8689 = vmax.f32 %v8679, 0.0
        %v8690 = vmax.f32 %v8681, 0.0
        %v8691 = vmax.f32 %v8684, 0.0
        %8692 = vst.msk [vmem:[#allocation7] sm:$0xff] %vm1193, 0.0
        %8693 = vst.msk [vmem:[#allocation7 + $0x8] sm:$0xff] %vm1193, 0.0
        %8694 = vst.msk [vmem:[#allocation7 + $0x10] sm:$0xff] %vm1193, 0.0
        %8695 = vst.msk [vmem:[#allocation7 + $0x18] sm:$0xff] %vm1193, 0.0
        %8696 = vst.msk [vmem:[#allocation7 + $0x20] sm:$0xff] %vm1193, 0.0
        %8697 = vst.msk [vmem:[#allocation7 + $0x28] sm:$0xff] %vm1193, 0.0
        %8698 = vst.msk [vmem:[#allocation7 + $0x30] sm:$0xff] %vm1193, 0.0
        %8699 = vst.msk [vmem:[#allocation7 + $0x38] sm:$0xff] %vm1193, 0.0
        %v8705 = vrot.slane %v8687, 2
        %v8706 = vrot.slane %v8687, 4
        %v8707 = vrot.slane %v8687, 6
        %v8708 = vrot.slane %v8688, 2
        %v8709 = vrot.slane %v8688, 4
        %v8710 = vrot.slane %v8688, 6
        %v8711 = vrot.slane %v8689, 2
        %v8712 = vrot.slane %v8689, 4
        %v8713 = vrot.slane %v8689, 6
        %v8714 = vrot.slane %v8690, 2
        %v8715 = vrot.slane %v8690, 4
        %v8716 = vrot.slane %v8690, 6
        %v8717 = vrot.slane %v8691, 2
        %8718 = vst [vmem:[#allocation1] ss:$4 sm:$0xff] %v8687
        %s8719 = scalar_lea.vmem [#allocation1], 1
        %8720 = vst [vmem:[%s8719] ss:$4 sm:$0xff] %v8705
        %s8721 = scalar_lea.vmem [#allocation1], 2
        %8722 = vst [vmem:[%s8721] ss:$4 sm:$0xff] %v8706
        %v8723 = vld.sshfl [vmem:[#allocation1] sm:$0xff pattern:$0x73625140]
        %s8724 = scalar_lea.vmem [#allocation1], 32
        %8725 = vst [vmem:[%s8724] ss:$4 sm:$0xff] %v8707
        %s8726 = scalar_lea.vmem [#allocation1], 33
        %8727 = vst [vmem:[%s8726] ss:$4 sm:$0xff] %v8688
        %s8728 = scalar_lea.vmem [#allocation1], 34
        %8729 = vst [vmem:[%s8728] ss:$4 sm:$0xff] %v8708
        %v8730 = vld.sshfl [vmem:[#allocation1 + $0x20] sm:$0xff pattern:$0x73625140]
        %8731 = vst [vmem:[#allocation1] ss:$4 sm:$0xff] %v8709
        %8732 = vst [vmem:[%s8719] ss:$4 sm:$0xff] %v8710
        %8733 = vst [vmem:[%s8721] ss:$4 sm:$0xff] %v8689
        %v8734 = vld.sshfl [vmem:[#allocation1] sm:$0xff pattern:$0x73625140]
        %8735 = vst [vmem:[%s8724] ss:$4 sm:$0xff] %v8711
        %8736 = vst [vmem:[%s8726] ss:$4 sm:$0xff] %v8712
        %8737 = vst [vmem:[%s8728] ss:$4 sm:$0xff] %v8713
        %v8738 = vld.sshfl [vmem:[#allocation1 + $0x20] sm:$0xff pattern:$0x73625140]
        %8739 = vst [vmem:[#allocation1] ss:$4 sm:$0xff] %v8690
        %8740 = vst [vmem:[%s8719] ss:$4 sm:$0xff] %v8714
        %8741 = vst [vmem:[%s8721] ss:$4 sm:$0xff] %v8715
        %v8742 = vld.sshfl [vmem:[#allocation1] sm:$0xff pattern:$0x73625140]
        %8743 = vst [vmem:[%s8724] ss:$4 sm:$0xff] %v8716
        %8744 = vst [vmem:[%s8726] ss:$4 sm:$0xff] %v8691
        %8745 = vst [vmem:[%s8728] ss:$4 sm:$0xff] %v8717
        %v8746 = vld.sshfl [vmem:[#allocation1 + $0x20] sm:$0xff pattern:$0x73625140]
        %8747 = vrot.lane.b32.xlu0 %v8723, 120
        %v8748 = vpop.permute.xlu0 %8747
        %8749 = vrot.lane.b32.xlu0 %v8730, 120
        %v8750 = vpop.permute.xlu0 %8749
        %8751 = vrot.lane.b32.xlu0 %v8734, 120
        %v8752 = vpop.permute.xlu0 %8751
        %8753 = vrot.lane.b32.xlu0 %v8738, 120
        %v8754 = vpop.permute.xlu0 %8753
        %8755 = vrot.lane.b32.xlu0 %v8742, 120
        %v8756 = vpop.permute.xlu0 %8755
        %8757 = vrot.lane.b32.xlu0 %v8746, 120
        %v8758 = vpop.permute.xlu0 %8757
        %s8765 = scalar_lea.vmem [#allocation7], 8
        %vm8766 = vcmask 95232
        %8767 = vst.msk [vmem:[%s8765 + $0x1] sm:$0x3f] %vm8766, %v8748
        %8768 = vst.msk [vmem:[%s8765 + $0x9] sm:$0x3f] %vm8766, %v8750
        %8769 = vst.msk [vmem:[%s8765 + $0x11] sm:$0x3f] %vm8766, %v8752
        %8770 = vst.msk [vmem:[%s8765 + $0x19] sm:$0x3f] %vm8766, %v8754
        %8771 = vst.msk [vmem:[%s8765 + $0x21] sm:$0x3f] %vm8766, %v8756
        %8772 = vst.msk [vmem:[%s8765 + $0x29] sm:$0x3f] %vm8766, %v8758
        %v8773 = vld [vmem:[#allocation7] sm:$0x3f]
        %v8774 = vld [vmem:[#allocation7 + $0x8] sm:$0x3f]
        %v8775 = vld [vmem:[#allocation7 + $0x10] sm:$0x3f]
        %v8776 = vld [vmem:[#allocation7 + $0x18] sm:$0x3f]
        %v8777 = vld [vmem:[#allocation7 + $0x20] sm:$0x3f]
        %v8778 = vld [vmem:[#allocation7 + $0x28] sm:$0x3f]
        %v8779 = vld [vmem:[#allocation7 + $0x1] sm:$0x3f]
        %v8780 = vld [vmem:[#allocation7 + $0x9] sm:$0x3f]
        %v8781 = vld [vmem:[#allocation7 + $0x11] sm:$0x3f]
        %v8782 = vld [vmem:[#allocation7 + $0x19] sm:$0x3f]
        %v8783 = vld [vmem:[#allocation7 + $0x21] sm:$0x3f]
        %v8784 = vld [vmem:[#allocation7 + $0x29] sm:$0x3f]
        %v8785 = vld [vmem:[#allocation7 + $0x2] sm:$0x3f]
        %v8786 = vld [vmem:[#allocation7 + $0xa] sm:$0x3f]
        %v8787 = vld [vmem:[#allocation7 + $0x12] sm:$0x3f]
        %v8788 = vld [vmem:[#allocation7 + $0x1a] sm:$0x3f]
        %v8789 = vld [vmem:[#allocation7 + $0x22] sm:$0x3f]
        %v8790 = vld [vmem:[#allocation7 + $0x2a] sm:$0x3f]
        %v8791 = vld [vmem:[%s8765] sm:$0x3f]
        %v8792 = vld [vmem:[%s8765 + $0x8] sm:$0x3f]
        %v8793 = vld [vmem:[%s8765 + $0x10] sm:$0x3f]
        %v8794 = vld [vmem:[%s8765 + $0x18] sm:$0x3f]
        %v8795 = vld [vmem:[%s8765 + $0x20] sm:$0x3f]
        %v8796 = vld [vmem:[%s8765 + $0x28] sm:$0x3f]
        %v8797 = vld [vmem:[%s8765 + $0x1] sm:$0x3f]
        %v8798 = vld [vmem:[%s8765 + $0x9] sm:$0x3f]
        %v8799 = vld [vmem:[%s8765 + $0x11] sm:$0x3f]
        %v8800 = vld [vmem:[%s8765 + $0x19] sm:$0x3f]
        %v8801 = vld [vmem:[%s8765 + $0x21] sm:$0x3f]
        %v8802 = vld [vmem:[%s8765 + $0x29] sm:$0x3f]
        %v8803 = vld [vmem:[%s8765 + $0x2] sm:$0x3f]
        %v8804 = vld [vmem:[%s8765 + $0xa] sm:$0x3f]
        %v8805 = vld [vmem:[%s8765 + $0x12] sm:$0x3f]
        %v8806 = vld [vmem:[%s8765 + $0x1a] sm:$0x3f]
        %v8807 = vld [vmem:[%s8765 + $0x22] sm:$0x3f]
        %v8808 = vld [vmem:[%s8765 + $0x2a] sm:$0x3f]
        %s8809 = scalar_lea.vmem [#allocation7], 16
        %v8810 = vld [vmem:[%s8809] sm:$0x3f]
        %v8811 = vld [vmem:[%s8809 + $0x8] sm:$0x3f]
        %v8812 = vld [vmem:[%s8809 + $0x10] sm:$0x3f]
        %v8813 = vld [vmem:[%s8809 + $0x18] sm:$0x3f]
        %v8814 = vld [vmem:[%s8809 + $0x20] sm:$0x3f]
        %v8815 = vld [vmem:[%s8809 + $0x28] sm:$0x3f]
        %v8816 = vld [vmem:[%s8809 + $0x1] sm:$0x3f]
        %v8817 = vld [vmem:[%s8809 + $0x9] sm:$0x3f]
        %v8818 = vld [vmem:[%s8809 + $0x11] sm:$0x3f]
        %v8819 = vld [vmem:[%s8809 + $0x19] sm:$0x3f]
        %v8820 = vld [vmem:[%s8809 + $0x21] sm:$0x3f]
        %v8821 = vld [vmem:[%s8809 + $0x29] sm:$0x3f]
        %v8822 = vld [vmem:[%s8809 + $0x2] sm:$0x3f]
        %v8823 = vld [vmem:[%s8809 + $0xa] sm:$0x3f]
        %v8824 = vld [vmem:[%s8809 + $0x12] sm:$0x3f]
        %v8825 = vld [vmem:[%s8809 + $0x1a] sm:$0x3f]
        %v8826 = vld [vmem:[%s8809 + $0x22] sm:$0x3f]
        %v8827 = vld [vmem:[%s8809 + $0x2a] sm:$0x3f]
        %8834 = vrot.lane.b32.xlu0 %v8779, 12
        %v8835 = vpop.permute.xlu0 %8834
        %8836 = vrot.lane.b32.xlu0 %v8780, 12
        %v8837 = vpop.permute.xlu0 %8836
        %8838 = vrot.lane.b32.xlu0 %v8781, 12
        %v8839 = vpop.permute.xlu0 %8838
        %8840 = vrot.lane.b32.xlu0 %v8782, 12
        %v8841 = vpop.permute.xlu0 %8840
        %8842 = vrot.lane.b32.xlu0 %v8783, 12
        %v8843 = vpop.permute.xlu0 %8842
        %8844 = vrot.lane.b32.xlu0 %v8784, 12
        %v8845 = vpop.permute.xlu0 %8844
        %8858 = vrot.lane.b32.xlu0 %v8785, 24
        %v8859 = vpop.permute.xlu0 %8858
        %8860 = vrot.lane.b32.xlu0 %v8786, 24
        %v8861 = vpop.permute.xlu0 %8860
        %8862 = vrot.lane.b32.xlu0 %v8787, 24
        %v8863 = vpop.permute.xlu0 %8862
        %8864 = vrot.lane.b32.xlu0 %v8788, 24
        %v8865 = vpop.permute.xlu0 %8864
        %8866 = vrot.lane.b32.xlu0 %v8789, 24
        %v8867 = vpop.permute.xlu0 %8866
        %8868 = vrot.lane.b32.xlu0 %v8790, 24
        %v8869 = vpop.permute.xlu0 %8868
        %8882 = vrot.lane.b32.xlu0 %v8791, 36
        %v8883 = vpop.permute.xlu0 %8882
        %8884 = vrot.lane.b32.xlu0 %v8792, 36
        %v8885 = vpop.permute.xlu0 %8884
        %8886 = vrot.lane.b32.xlu0 %v8793, 36
        %v8887 = vpop.permute.xlu0 %8886
        %8888 = vrot.lane.b32.xlu0 %v8794, 36
        %v8889 = vpop.permute.xlu0 %8888
        %8890 = vrot.lane.b32.xlu0 %v8795, 36
        %v8891 = vpop.permute.xlu0 %8890
        %8892 = vrot.lane.b32.xlu0 %v8796, 36
        %v8893 = vpop.permute.xlu0 %8892
        %8906 = vrot.lane.b32.xlu0 %v8797, 48
        %v8907 = vpop.permute.xlu0 %8906
        %8908 = vrot.lane.b32.xlu0 %v8798, 48
        %v8909 = vpop.permute.xlu0 %8908
        %8910 = vrot.lane.b32.xlu0 %v8799, 48
        %v8911 = vpop.permute.xlu0 %8910
        %8912 = vrot.lane.b32.xlu0 %v8800, 48
        %v8913 = vpop.permute.xlu0 %8912
        %8914 = vrot.lane.b32.xlu0 %v8801, 48
        %v8915 = vpop.permute.xlu0 %8914
        %8916 = vrot.lane.b32.xlu0 %v8802, 48
        %v8917 = vpop.permute.xlu0 %8916
        %8930 = vrot.lane.b32.xlu0 %v8803, 60
        %v8931 = vpop.permute.xlu0 %8930
        %8932 = vrot.lane.b32.xlu0 %v8804, 60
        %v8933 = vpop.permute.xlu0 %8932
        %8934 = vrot.lane.b32.xlu0 %v8805, 60
        %v8935 = vpop.permute.xlu0 %8934
        %8936 = vrot.lane.b32.xlu0 %v8806, 60
        %v8937 = vpop.permute.xlu0 %8936
        %8938 = vrot.lane.b32.xlu0 %v8807, 60
        %v8939 = vpop.permute.xlu0 %8938
        %8940 = vrot.lane.b32.xlu0 %v8808, 60
        %v8941 = vpop.permute.xlu0 %8940
        %8954 = vrot.lane.b32.xlu0 %v8810, 72
        %v8955 = vpop.permute.xlu0 %8954
        %8956 = vrot.lane.b32.xlu0 %v8811, 72
        %v8957 = vpop.permute.xlu0 %8956
        %8958 = vrot.lane.b32.xlu0 %v8812, 72
        %v8959 = vpop.permute.xlu0 %8958
        %8960 = vrot.lane.b32.xlu0 %v8813, 72
        %v8961 = vpop.permute.xlu0 %8960
        %8962 = vrot.lane.b32.xlu0 %v8814, 72
        %v8963 = vpop.permute.xlu0 %8962
        %8964 = vrot.lane.b32.xlu0 %v8815, 72
        %v8965 = vpop.permute.xlu0 %8964
        %8978 = vrot.lane.b32.xlu0 %v8816, 84
        %v8979 = vpop.permute.xlu0 %8978
        %8980 = vrot.lane.b32.xlu0 %v8817, 84
        %v8981 = vpop.permute.xlu0 %8980
        %8982 = vrot.lane.b32.xlu0 %v8818, 84
        %v8983 = vpop.permute.xlu0 %8982
        %8984 = vrot.lane.b32.xlu0 %v8819, 84
        %v8985 = vpop.permute.xlu0 %8984
        %8986 = vrot.lane.b32.xlu0 %v8820, 84
        %v8987 = vpop.permute.xlu0 %8986
        %8988 = vrot.lane.b32.xlu0 %v8821, 84
        %v8989 = vpop.permute.xlu0 %8988
        %9002 = vrot.lane.b32.xlu0 %v8822, 96
        %v9003 = vpop.permute.xlu0 %9002
        %9004 = vrot.lane.b32.xlu0 %v8823, 96
        %v9005 = vpop.permute.xlu0 %9004
        %9006 = vrot.lane.b32.xlu0 %v8824, 96
        %v9007 = vpop.permute.xlu0 %9006
        %9008 = vrot.lane.b32.xlu0 %v8825, 96
        %v9009 = vpop.permute.xlu0 %9008
        %9010 = vrot.lane.b32.xlu0 %v8826, 96
        %v9011 = vpop.permute.xlu0 %9010
        %9012 = vrot.lane.b32.xlu0 %v8827, 96
        %v9013 = vpop.permute.xlu0 %9012
        %v9020 = vsel %vm1193, %v8773, %v8835
        %v9021 = vsel %vm1193, %v8774, %v8837
        %v9022 = vsel %vm1193, %v8775, %v8839
        %v9023 = vsel %vm1193, %v8776, %v8841
        %v9024 = vsel %vm1193, %v8777, %v8843
        %v9025 = vsel %vm1193, %v8778, %v8845
        %v9026 = vsel %vm1224, %v9020, %v8859
        %v9027 = vsel %vm1224, %v9021, %v8861
        %v9028 = vsel %vm1224, %v9022, %v8863
        %v9029 = vsel %vm1224, %v9023, %v8865
        %v9030 = vsel %vm1224, %v9024, %v8867
        %v9031 = vsel %vm1224, %v9025, %v8869
        %v9032 = vsel %vm1255, %v9026, %v8883
        %v9033 = vsel %vm1255, %v9027, %v8885
        %v9034 = vsel %vm1255, %v9028, %v8887
        %v9035 = vsel %vm1255, %v9029, %v8889
        %v9036 = vsel %vm1255, %v9030, %v8891
        %v9037 = vsel %vm1255, %v9031, %v8893
        %v9038 = vsel %vm2020, %v9032, %v8907
        %v9039 = vsel %vm2020, %v9033, %v8909
        %v9040 = vsel %vm2020, %v9034, %v8911
        %v9041 = vsel %vm2020, %v9035, %v8913
        %v9042 = vsel %vm2020, %v9036, %v8915
        %v9043 = vsel %vm2020, %v9037, %v8917
        %vm9044 = vcmask 490496
        %v9045 = vsel %vm9044, %v9038, %v8931
        %v9046 = vsel %vm9044, %v9039, %v8933
        %v9047 = vsel %vm9044, %v9040, %v8935
        %v9048 = vsel %vm9044, %v9041, %v8937
        %v9049 = vsel %vm9044, %v9042, %v8939
        %v9050 = vsel %vm9044, %v9043, %v8941
        %v9051 = vsel %vm4463, %v9045, %v8955
        %v9052 = vsel %vm4463, %v9046, %v8957
        %v9053 = vsel %vm4463, %v9047, %v8959
        %v9054 = vsel %vm4463, %v9048, %v8961
        %v9055 = vsel %vm4463, %v9049, %v8963
        %v9056 = vsel %vm4463, %v9050, %v8965
        %vm9057 = vcmask 687104
        %v9058 = vsel %vm9057, %v9051, %v8979
        %v9059 = vsel %vm9057, %v9052, %v8981
        %v9060 = vsel %vm9057, %v9053, %v8983
        %v9061 = vsel %vm9057, %v9054, %v8985
        %v9062 = vsel %vm9057, %v9055, %v8987
        %v9063 = vsel %vm9057, %v9056, %v8989
        %v9064 = vsel %vm8440, %v9058, %v9003
        %v9065 = vsel %vm8440, %v9059, %v9005
        %v9066 = vsel %vm8440, %v9060, %v9007
        %v9067 = vsel %vm8440, %v9061, %v9009
        %v9068 = vsel %vm8440, %v9062, %v9011
        %v9069 = vsel %vm8440, %v9063, %v9013
        %v9076 = vrot.slane %v9064, 2
        %v9077 = vrot.slane %v9064, 4
        %v9078 = vrot.slane %v9065, 2
        %v9079 = vrot.slane %v9065, 4
        %v9080 = vrot.slane %v9066, 2
        %v9081 = vrot.slane %v9066, 4
        %v9082 = vrot.slane %v9067, 2
        %v9083 = vrot.slane %v9067, 4
        %v9084 = vrot.slane %v9068, 2
        %v9085 = vrot.slane %v9068, 4
        %v9086 = vrot.slane %v9069, 2
        %v9087 = vrot.slane %v9069, 4
        %9088 = vst [vmem:[#allocation1] ss:$4 sm:$0xff] %v9064
        %s9089 = scalar_lea.vmem [#allocation1], 1
        %9090 = vst [vmem:[%s9089] ss:$4 sm:$0xff] %v9076
        %s9091 = scalar_lea.vmem [#allocation1], 2
        %9092 = vst [vmem:[%s9091] ss:$4 sm:$0xff] %v9077
        %s9093 = scalar_lea.vmem [#allocation1], 3
        %9094 = vst [vmem:[%s9093] ss:$4 sm:$0xff] %v9065
        %s9095 = scalar_lea.vmem [#allocation1], 32
        %9096 = vst [vmem:[%s9095] ss:$4 sm:$0xff] %v9078
        %s9097 = scalar_lea.vmem [#allocation1], 33
        %9098 = vst [vmem:[%s9097] ss:$4 sm:$0xff] %v9079
        %s9099 = scalar_lea.vmem [#allocation1], 34
        %9100 = vst [vmem:[%s9099] ss:$4 sm:$0xff] %v9066
        %s9101 = scalar_lea.vmem [#allocation1], 35
        %9102 = vst [vmem:[%s9101] ss:$4 sm:$0xff] %v9080
        %v9103 = vld.sshfl [vmem:[#allocation1] sm:$0xff pattern:$0x73625140]
        %v9104 = vld.sshfl [vmem:[#allocation1 + $0x20] sm:$0xff pattern:$0x73625140]
        %9105 = vst [vmem:[#allocation1] ss:$4 sm:$0xff] %v9081
        %9106 = vst [vmem:[%s9089] ss:$4 sm:$0xff] %v9067
        %9107 = vst [vmem:[%s9091] ss:$4 sm:$0xff] %v9082
        %9108 = vst [vmem:[%s9093] ss:$4 sm:$0xff] %v9083
        %9109 = vst [vmem:[%s9095] ss:$4 sm:$0xff] %v9068
        %9110 = vst [vmem:[%s9097] ss:$4 sm:$0xff] %v9084
        %9111 = vst [vmem:[%s9099] ss:$4 sm:$0xff] %v9085
        %9112 = vst [vmem:[%s9101] ss:$4 sm:$0xff] %v9069
        %v9113 = vld.sshfl [vmem:[#allocation1] sm:$0xff pattern:$0x73625140]
        %v9114 = vld.sshfl [vmem:[#allocation1 + $0x20] sm:$0xff pattern:$0x73625140]
        %9115 = vst [vmem:[#allocation1] ss:$4 sm:$0xff] %v9086
        %9116 = vst [vmem:[%s9089] ss:$4 sm:$0xff] %v9087
        %v9117 = vld.sshfl [vmem:[#allocation1] sm:$0xff pattern:$0x73625140]
        %v9123 = vpack.c.bf16 %v9104, %v9103
        %v9124 = vpack.c.bf16 %v9114, %v9113
        %v9125 = vpack.c.bf16 %v9117, %v9117
        %v9126 = vld [vmem:[%s12] sm:$0xf]
        %v9127 = vld [vmem:[%s12 + $0x4] sm:$0xf]
        %v9128 = vld [vmem:[%s12 + $0x8] sm:$0xf]
        %v9129 = vld [vmem:[%s12 + $0xc] sm:$0xf]
        %v9130 = vld [vmem:[%s12 + $0x10] sm:$0xf]
        %v9131 = vld [vmem:[%s12 + $0x14] sm:$0xf]
        %v9132 = vld [vmem:[%s12 + $0x18] sm:$0xf]
        %v9133 = vld [vmem:[%s12 + $0x1c] sm:$0xf]
        %v9134 = vld [vmem:[%s12 + $0x20] sm:$0xf]
        %v9135 = vld [vmem:[%s12 + $0x24] sm:$0xf]
        %v9136 = vld [vmem:[%s12 + $0x28] sm:$0xf]
        %v9137 = vld [vmem:[%s12 + $0x2c] sm:$0xf]
        %v9138 = vld [vmem:[%s12 + $0x30] sm:$0xf]
        %v9139 = vld [vmem:[%s12 + $0x34] sm:$0x3]
        %v9140 = vld [vmem:[%s13] sm:$0x1]
        %v9142 = vperm.slane %v9140, 0
        %v9158 = vunpack.c.l.b16 %v9126
        %v9159 = vunpack.c.l.b16 %v9127
        %v9160 = vunpack.c.l.b16 %v9128
        %v9161 = vunpack.c.l.b16 %v9129
        %v9162 = vunpack.c.l.b16 %v9130
        %v9163 = vunpack.c.l.b16 %v9131
        %v9164 = vunpack.c.l.b16 %v9132
        %v9165 = vunpack.c.l.b16 %v9133
        %v9166 = vunpack.c.l.b16 %v9134
        %v9167 = vunpack.c.l.b16 %v9135
        %v9168 = vunpack.c.l.b16 %v9136
        %v9169 = vunpack.c.l.b16 %v9137
        %v9170 = vunpack.c.l.b16 %v9138
        %v9171 = vunpack.c.l.b16 %v9139
        %v9172 = vpack.c.b16 %v9159, %v9158
        %v9173 = vpack.c.b16 %v9161, %v9160
        %v9174 = vpack.c.b16 %v9163, %v9162
        %v9175 = vpack.c.b16 %v9165, %v9164
        %v9176 = vpack.c.b16 %v9167, %v9166
        %v9177 = vpack.c.b16 %v9169, %v9168
        %v9178 = vpack.c.b16 %v9171, %v9170
        %vm9185 = vcmask 883712
        %v9187 = vsel %vm9185, %v9123, 0
        %v9190 = vsel %vm9185, %v9124, 0
        %v9193 = vsel %vm9185, %v9125, 0
        %vm9195 = vcmask 1045504
        %v9197 = vsel %vm9195, %v9178, 0
        %9199 = vmatpush.bf16.msra.mxu0 0
        %9200 = vmatpush.bf16.msra.mxu0 %v9197
        %9201 = vmatpush.bf16.msra.mxu0 %v9177
        %9202 = vmatpush.bf16.msra.mxu0 %v9176
        %9203 = vmatpush.bf16.msra.mxu0 %v9175
        %9204 = vmatpush.bf16.msra.mxu0 %v9174
        %9205 = vmatpush.bf16.msra.mxu0 %v9173
        %9206 = vmatpush.bf16.msra.mxu0 %v9172
        %9207 = vmatmul.bf16.gmra.mxu0 %v9187
        %v9208 = vpop.f32.mrf.mxu0
        %v9209 = vadd.f32 %v9142, %v9208
        %v9210 = vpop.f32.mrf.mxu0
        %v9211 = vadd.f32 %v9142, %v9210
        %9212 = vmatmul.bf16.gmra.mxu0 %v9190
        %v9213 = vpop.f32.mrf.mxu0
        %v9214 = vadd.f32 %v9142, %v9213
        %v9215 = vpop.f32.mrf.mxu0
        %v9216 = vadd.f32 %v9142, %v9215
        %9217 = vmatmul.bf16.gmra.mxu0 %v9193
        %v9218 = vpop.f32.mrf.mxu0
        %v9219 = vadd.f32 %v9142, %v9218
        %v9220 = vpop.f32.mrf.mxu0
        %9221 = vdwg.mxu0
        %v9222 = vmax.f32 %v9209, 0.0
        %v9223 = vmax.f32 %v9211, 0.0
        %v9224 = vmax.f32 %v9214, 0.0
        %v9225 = vmax.f32 %v9216, 0.0
        %v9226 = vmax.f32 %v9219, 0.0
        %v9227 = vld [vmem:[#allocation5] sm:$0x3f]
        %v9228 = vld [vmem:[#allocation5 + $0x8] sm:$0x3f]
        %v9229 = vld [vmem:[#allocation5 + $0x10] sm:$0x3f]
        %v9230 = vld [vmem:[#allocation5 + $0x18] sm:$0x3f]
        %v9231 = vld [vmem:[#allocation5 + $0x20] sm:$0x3f]
        %v9232 = vld [vmem:[#allocation5 + $0x28] sm:$0x3f]
        %v9233 = vld [vmem:[#allocation5 + $0x1] sm:$0x3f]
        %v9234 = vld [vmem:[#allocation5 + $0x9] sm:$0x3f]
        %v9235 = vld [vmem:[#allocation5 + $0x11] sm:$0x3f]
        %v9236 = vld [vmem:[#allocation5 + $0x19] sm:$0x3f]
        %v9237 = vld [vmem:[#allocation5 + $0x21] sm:$0x3f]
        %v9238 = vld [vmem:[#allocation5 + $0x29] sm:$0x3f]
        %v9239 = vadd.f32 %v9227, %v9233
        %v9240 = vadd.f32 %v9228, %v9234
        %v9241 = vadd.f32 %v9229, %v9235
        %v9242 = vadd.f32 %v9230, %v9236
        %v9243 = vadd.f32 %v9231, %v9237
        %v9244 = vadd.f32 %v9232, %v9238
        %v9245 = vld [vmem:[#allocation5 + $0x2] sm:$0x3f]
        %v9246 = vld [vmem:[#allocation5 + $0xa] sm:$0x3f]
        %v9247 = vld [vmem:[#allocation5 + $0x12] sm:$0x3f]
        %v9248 = vld [vmem:[#allocation5 + $0x1a] sm:$0x3f]
        %v9249 = vld [vmem:[#allocation5 + $0x22] sm:$0x3f]
        %v9250 = vld [vmem:[#allocation5 + $0x2a] sm:$0x3f]
        %v9251 = vadd.f32 %v9239, %v9245
        %v9252 = vadd.f32 %v9240, %v9246
        %v9253 = vadd.f32 %v9241, %v9247
        %v9254 = vadd.f32 %v9242, %v9248
        %v9255 = vadd.f32 %v9243, %v9249
        %v9256 = vadd.f32 %v9244, %v9250
        %v9257 = vld [vmem:[%s8046] sm:$0x3f]
        %v9258 = vld [vmem:[%s8046 + $0x8] sm:$0x3f]
        %v9259 = vld [vmem:[%s8046 + $0x10] sm:$0x3f]
        %v9260 = vld [vmem:[%s8046 + $0x18] sm:$0x3f]
        %v9261 = vld [vmem:[%s8046 + $0x20] sm:$0x3f]
        %v9262 = vld [vmem:[%s8046 + $0x28] sm:$0x3f]
        %v9263 = vadd.f32 %v9251, %v9257
        %v9264 = vadd.f32 %v9252, %v9258
        %v9265 = vadd.f32 %v9253, %v9259
        %v9266 = vadd.f32 %v9254, %v9260
        %v9267 = vadd.f32 %v9255, %v9261
        %v9268 = vadd.f32 %v9256, %v9262
        %v9269 = vld [vmem:[%s8046 + $0x1] sm:$0x3f]
        %v9270 = vld [vmem:[%s8046 + $0x9] sm:$0x3f]
        %v9271 = vld [vmem:[%s8046 + $0x11] sm:$0x3f]
        %v9272 = vld [vmem:[%s8046 + $0x19] sm:$0x3f]
        %v9273 = vld [vmem:[%s8046 + $0x21] sm:$0x3f]
        %v9274 = vld [vmem:[%s8046 + $0x29] sm:$0x3f]
        %v9275 = vadd.f32 %v9263, %v9269
        %v9276 = vadd.f32 %v9264, %v9270
        %v9277 = vadd.f32 %v9265, %v9271
        %v9278 = vadd.f32 %v9266, %v9272
        %v9279 = vadd.f32 %v9267, %v9273
        %v9280 = vadd.f32 %v9268, %v9274
        %v9281 = vld [vmem:[%s8046 + $0x2] sm:$0x3f]
        %v9282 = vld [vmem:[%s8046 + $0xa] sm:$0x3f]
        %v9283 = vld [vmem:[%s8046 + $0x12] sm:$0x3f]
        %v9284 = vld [vmem:[%s8046 + $0x1a] sm:$0x3f]
        %v9285 = vld [vmem:[%s8046 + $0x22] sm:$0x3f]
        %v9286 = vld [vmem:[%s8046 + $0x2a] sm:$0x3f]
        %v9287 = vadd.f32 %v9275, %v9281
        %v9288 = vadd.f32 %v9276, %v9282
        %v9289 = vadd.f32 %v9277, %v9283
        %v9290 = vadd.f32 %v9278, %v9284
        %v9291 = vadd.f32 %v9279, %v9285
        %v9292 = vadd.f32 %v9280, %v9286
        %s9293 = scalar_lea.vmem [#allocation5], 16
        %v9294 = vld [vmem:[%s9293] sm:$0x3f]
        %v9295 = vld [vmem:[%s9293 + $0x8] sm:$0x3f]
        %v9296 = vld [vmem:[%s9293 + $0x10] sm:$0x3f]
        %v9297 = vld [vmem:[%s9293 + $0x18] sm:$0x3f]
        %v9298 = vld [vmem:[%s9293 + $0x20] sm:$0x3f]
        %v9299 = vld [vmem:[%s9293 + $0x28] sm:$0x3f]
        %v9300 = vadd.f32 %v9287, %v9294
        %v9301 = vadd.f32 %v9288, %v9295
        %v9302 = vadd.f32 %v9289, %v9296
        %v9303 = vadd.f32 %v9290, %v9297
        %v9304 = vadd.f32 %v9291, %v9298
        %v9305 = vadd.f32 %v9292, %v9299
        %v9306 = vld [vmem:[%s9293 + $0x1] sm:$0x3f]
        %v9307 = vld [vmem:[%s9293 + $0x9] sm:$0x3f]
        %v9308 = vld [vmem:[%s9293 + $0x11] sm:$0x3f]
        %v9309 = vld [vmem:[%s9293 + $0x19] sm:$0x3f]
        %v9310 = vld [vmem:[%s9293 + $0x21] sm:$0x3f]
        %v9311 = vld [vmem:[%s9293 + $0x29] sm:$0x3f]
        %v9312 = vadd.f32 %v9300, %v9306
        %v9313 = vadd.f32 %v9301, %v9307
        %v9314 = vadd.f32 %v9302, %v9308
        %v9315 = vadd.f32 %v9303, %v9309
        %v9316 = vadd.f32 %v9304, %v9310
        %v9317 = vadd.f32 %v9305, %v9311
        %v9318 = vld [vmem:[%s9293 + $0x2] sm:$0x3f]
        %v9319 = vld [vmem:[%s9293 + $0xa] sm:$0x3f]
        %v9320 = vld [vmem:[%s9293 + $0x12] sm:$0x3f]
        %v9321 = vld [vmem:[%s9293 + $0x1a] sm:$0x3f]
        %v9322 = vld [vmem:[%s9293 + $0x22] sm:$0x3f]
        %v9323 = vld [vmem:[%s9293 + $0x2a] sm:$0x3f]
        %v9324 = vadd.f32 %v9312, %v9318
        %v9325 = vadd.f32 %v9313, %v9319
        %v9326 = vadd.f32 %v9314, %v9320
        %v9327 = vadd.f32 %v9315, %v9321
        %v9328 = vadd.f32 %v9316, %v9322
        %v9329 = vadd.f32 %v9317, %v9323
        %v9336 = vrot.slane %v9324, 2
        %v9337 = vrot.slane %v9324, 4
        %v9338 = vrot.slane %v9325, 2
        %v9339 = vrot.slane %v9325, 4
        %v9340 = vrot.slane %v9326, 2
        %v9341 = vrot.slane %v9326, 4
        %v9342 = vrot.slane %v9327, 2
        %v9343 = vrot.slane %v9327, 4
        %v9344 = vrot.slane %v9328, 2
        %v9345 = vrot.slane %v9328, 4
        %v9346 = vrot.slane %v9329, 2
        %v9347 = vrot.slane %v9329, 4
        %v9360 = vld [vmem:[%s14] sm:$0xff]
        %v9361 = vld [vmem:[%s14 + $0x8] sm:$0xff]
        %v9362 = vld [vmem:[%s14 + $0x10] sm:$0xff]
        %v9363 = vld [vmem:[%s14 + $0x18] sm:$0xff]
        %v9364 = vld [vmem:[%s14 + $0x20] sm:$0xf]
        %9366 = vset.pattern.permute.xlu0 0
        %9367 = vperm.xlu0 %9366, %v9360
        %v9368 = vpop.permute.xlu0 %9367
        %9370 = vset.pattern.permute.xlu0 0
        %9371 = vperm.xlu0 %9370, %v9361
        %v9372 = vpop.permute.xlu0 %9371
        %9374 = vset.pattern.permute.xlu0 0
        %9375 = vperm.xlu0 %9374, %v9362
        %v9376 = vpop.permute.xlu0 %9375
        %9378 = vset.pattern.permute.xlu0 0
        %9379 = vperm.xlu0 %9378, %v9363
        %v9380 = vpop.permute.xlu0 %9379
        %9382 = vset.pattern.permute.xlu0 0
        %9383 = vperm.xlu0 %9382, %v9364
        %v9384 = vpop.permute.xlu0 %9383
        %v9386 = vunpack.c.l.s4 269488144
        %v9387 = vunpack.c.0.s8 %v9386
        %v9388 = vperm.slane %v9368, %v9387
        %v9390 = vunpack.c.l.s4 842150450
        %v9391 = vunpack.c.0.s8 %v9390
        %v9392 = vperm.slane %v9368, %v9391
        %v9394 = vunpack.c.l.s4 1414812756
        %v9395 = vunpack.c.0.s8 %v9394
        %v9396 = vperm.slane %v9368, %v9395
        %v9398 = vunpack.c.l.s4 1987475062
        %v9399 = vunpack.c.0.s8 %v9398
        %v9400 = vperm.slane %v9368, %v9399
        %v9402 = vunpack.c.l.s4 269488144
        %v9403 = vunpack.c.0.s8 %v9402
        %v9404 = vperm.slane %v9372, %v9403
        %v9406 = vunpack.c.l.s4 842150450
        %v9407 = vunpack.c.0.s8 %v9406
        %v9408 = vperm.slane %v9372, %v9407
        %v9410 = vunpack.c.l.s4 1414812756
        %v9411 = vunpack.c.0.s8 %v9410
        %v9412 = vperm.slane %v9372, %v9411
        %v9414 = vunpack.c.l.s4 1987475062
        %v9415 = vunpack.c.0.s8 %v9414
        %v9416 = vperm.slane %v9372, %v9415
        %v9418 = vunpack.c.l.s4 269488144
        %v9419 = vunpack.c.0.s8 %v9418
        %v9420 = vperm.slane %v9376, %v9419
        %v9422 = vunpack.c.l.s4 842150450
        %v9423 = vunpack.c.0.s8 %v9422
        %v9424 = vperm.slane %v9376, %v9423
        %v9426 = vunpack.c.l.s4 1414812756
        %v9427 = vunpack.c.0.s8 %v9426
        %v9428 = vperm.slane %v9376, %v9427
        %v9430 = vunpack.c.l.s4 1987475062
        %v9431 = vunpack.c.0.s8 %v9430
        %v9432 = vperm.slane %v9376, %v9431
        %v9434 = vunpack.c.l.s4 269488144
        %v9435 = vunpack.c.0.s8 %v9434
        %v9436 = vperm.slane %v9380, %v9435
        %v9438 = vunpack.c.l.s4 842150450
        %v9439 = vunpack.c.0.s8 %v9438
        %v9440 = vperm.slane %v9380, %v9439
        %v9442 = vunpack.c.l.s4 1414812756
        %v9443 = vunpack.c.0.s8 %v9442
        %v9444 = vperm.slane %v9380, %v9443
        %v9446 = vunpack.c.l.s4 1987475062
        %v9447 = vunpack.c.0.s8 %v9446
        %v9448 = vperm.slane %v9380, %v9447
        %v9450 = vunpack.c.l.s4 269488144
        %v9451 = vunpack.c.0.s8 %v9450
        %v9452 = vperm.slane %v9384, %v9451
        %v9454 = vunpack.c.l.s4 842150450
        %v9455 = vunpack.c.0.s8 %v9454
        %v9456 = vperm.slane %v9384, %v9455
        %v9475 = vmul.f32 %v9324, %v9388
        %v9476 = vmul.f32 %v9336, %v9392
        %v9477 = vmul.f32 %v9337, %v9396
        %v9478 = vmul.f32 %v9325, %v9400
        %v9479 = vmul.f32 %v9338, %v9404
        %v9480 = vmul.f32 %v9339, %v9408
        %v9481 = vmul.f32 %v9326, %v9412
        %v9482 = vmul.f32 %v9340, %v9416
        %v9483 = vmul.f32 %v9341, %v9420
        %v9484 = vmul.f32 %v9327, %v9424
        %v9485 = vmul.f32 %v9342, %v9428
        %v9486 = vmul.f32 %v9343, %v9432
        %v9487 = vmul.f32 %v9328, %v9436
        %v9488 = vmul.f32 %v9344, %v9440
        %v9489 = vmul.f32 %v9345, %v9444
        %v9490 = vmul.f32 %v9329, %v9448
        %v9491 = vmul.f32 %v9346, %v9452
        %v9492 = vmul.f32 %v9347, %v9456
        %9511 = vst [vmem:[#allocation1] ss:$4 sm:$0xff] %v9475
        %s9512 = scalar_lea.vmem [#allocation1], 1
        %9513 = vst [vmem:[%s9512] ss:$4 sm:$0xff] %v9476
        %s9514 = scalar_lea.vmem [#allocation1], 2
        %9515 = vst [vmem:[%s9514] ss:$4 sm:$0xff] %v9477
        %s9516 = scalar_lea.vmem [#allocation1], 3
        %9517 = vst [vmem:[%s9516] ss:$4 sm:$0xff] %v9478
        %s9518 = scalar_lea.vmem [#allocation1], 32
        %9519 = vst [vmem:[%s9518] ss:$4 sm:$0xff] %v9479
        %s9520 = scalar_lea.vmem [#allocation1], 33
        %9521 = vst [vmem:[%s9520] ss:$4 sm:$0xff] %v9480
        %s9522 = scalar_lea.vmem [#allocation1], 34
        %9523 = vst [vmem:[%s9522] ss:$4 sm:$0xff] %v9481
        %s9524 = scalar_lea.vmem [#allocation1], 35
        %9525 = vst [vmem:[%s9524] ss:$4 sm:$0xff] %v9482
        %v9526 = vld.sshfl [vmem:[#allocation1] sm:$0xff pattern:$0x73625140]
        %v9527 = vld.sshfl [vmem:[#allocation1 + $0x20] sm:$0xff pattern:$0x73625140]
        %9528 = vst [vmem:[#allocation1] ss:$4 sm:$0xff] %v9483
        %9529 = vst [vmem:[%s9512] ss:$4 sm:$0xff] %v9484
        %9530 = vst [vmem:[%s9514] ss:$4 sm:$0xff] %v9485
        %9531 = vst [vmem:[%s9516] ss:$4 sm:$0xff] %v9486
        %9532 = vst [vmem:[%s9518] ss:$4 sm:$0xff] %v9487
        %9533 = vst [vmem:[%s9520] ss:$4 sm:$0xff] %v9488
        %9534 = vst [vmem:[%s9522] ss:$4 sm:$0xff] %v9489
        %9535 = vst [vmem:[%s9524] ss:$4 sm:$0xff] %v9490
        %v9536 = vld.sshfl [vmem:[#allocation1] sm:$0xff pattern:$0x73625140]
        %v9537 = vld.sshfl [vmem:[#allocation1 + $0x20] sm:$0xff pattern:$0x73625140]
        %9538 = vst [vmem:[#allocation1] ss:$4 sm:$0xff] %v9491
        %9539 = vst [vmem:[%s9512] ss:$4 sm:$0xff] %v9492
        %v9540 = vld.sshfl [vmem:[#allocation1] sm:$0xff pattern:$0x73625140]
        %v9546 = vpack.c.bf16 %v9527, %v9526
        %v9547 = vpack.c.bf16 %v9537, %v9536
        %v9548 = vpack.c.bf16 %v9540, %v9540
        %v9549 = vld [vmem:[%s15] sm:$0xf]
        %v9550 = vld [vmem:[%s15 + $0x4] sm:$0xf]
        %v9551 = vld [vmem:[%s16] sm:$0x1]
        %v9553 = vperm.slane %v9551, 0
        %v9557 = vunpack.c.l.b16 %v9549
        %v9558 = vunpack.c.l.b16 %v9550
        %v9559 = vpack.c.b16 %v9558, %v9557
        %v9562 = vsel %vm3836, %v9546, 0
        %v9565 = vsel %vm3836, %v9547, 0
        %v9568 = vsel %vm3836, %v9548, 0
        %9570 = vmatpush.bf16.msra.mxu0 0
        %9571 = vmatpush.bf16.msra.mxu0 0
        %9572 = vmatpush.bf16.msra.mxu0 0
        %9573 = vmatpush.bf16.msra.mxu0 0
        %9574 = vmatpush.bf16.msra.mxu0 0
        %9575 = vmatpush.bf16.msra.mxu0 0
        %9576 = vmatpush.bf16.msra.mxu0 0
        %9577 = vmatpush.bf16.msra.mxu0 %v9559
        %9578 = vmatmul.bf16.gmra.mxu0 %v9562
        %v9579 = vpop.f32.mrf.mxu0
        %v9580 = vadd.f32 %v9553, %v9579
        %v9581 = vpop.f32.mrf.mxu0
        %v9582 = vadd.f32 %v9553, %v9581
        %9583 = vmatmul.bf16.gmra.mxu0 %v9565
        %v9584 = vpop.f32.mrf.mxu0
        %v9585 = vadd.f32 %v9553, %v9584
        %v9586 = vpop.f32.mrf.mxu0
        %v9587 = vadd.f32 %v9553, %v9586
        %9588 = vmatmul.bf16.gmra.mxu0 %v9568
        %v9589 = vpop.f32.mrf.mxu0
        %v9590 = vadd.f32 %v9553, %v9589
        %v9591 = vpop.f32.mrf.mxu0
        %9592 = vdwg.mxu0
        %v9593 = vmax.f32 %v9580, 0.0
        %v9594 = vmax.f32 %v9582, 0.0
        %v9595 = vmax.f32 %v9585, 0.0
        %v9596 = vmax.f32 %v9587, 0.0
        %v9597 = vmax.f32 %v9590, 0.0
        %v9598 = vld [vmem:[%s21] sm:$0x1]
        %v9599 = vsel %vm2680, %v8101, 0.0
        %v9600 = vsel %vm2680, %v8102, 0.0
        %v9601 = vadd.f32 %v9599, %v9600
        %v9602 = vsel %vm2680, %v8103, 0.0
        %v9603 = vadd.f32 %v9601, %v9602
        %v9604 = vsel %vm2680, %v8104, 0.0
        %v9605 = vadd.f32 %v9603, %v9604
        %vm9606 = vcmask 60416
        %v9607 = vsel %vm9606, %v8105, 0.0
        %v9608 = vadd.f32 %v9605, %v9607
        %v9609 = vrot.slane %v9608, 4
        %v9610 = vadd.f32 %v9608, %v9609
        %v9611 = vrot.slane %v9610, 2
        %v9612 = vadd.f32 %v9610, %v9611
        %v9613 = vrot.slane %v9612, 1
        %v9614 = vadd.f32 %v9612, %v9613
        %v9615 = vmul.f32 %v9614, 0.027777778
        %v9616 = vpack.c.bf16 %v9615, %v9615
        %v9617 = vld [vmem:[%s17] sm:$0xf]
        %v9619 = vsel %vm2680, %v9616, 0
        %v9622 = vsel %vm4497, %v9617, 0
        %9624 = vmatpush.bf16.msra.mxu0 0
        %9625 = vmatpush.bf16.msra.mxu0 0
        %9626 = vmatpush.bf16.msra.mxu0 0
        %9627 = vmatpush.bf16.msra.mxu0 0
        %9628 = vmatpush.bf16.msra.mxu0 0
        %9629 = vmatpush.bf16.msra.mxu0 0
        %9630 = vmatpush.bf16.msra.mxu0 0
        %9631 = vmatpush.bf16.msra.mxu0 %v9622
        %9632 = vmatmul.bf16.gmra.mxu0 %v9619
        %v9633 = vpop.f32.mrf.mxu0
        %v9634 = vadd.f32 0.0, %v9633
        %v9635 = vpop.f32.mrf.mxu0
        %9636 = vdwg.mxu0
        %v9637 = vadd.f32 %v9598, %v9634
        %v9638 = vsel %vm2680, %v8687, 0.0
        %v9639 = vsel %vm2680, %v8688, 0.0
        %v9640 = vadd.f32 %v9638, %v9639
        %v9641 = vsel %vm2680, %v8689, 0.0
        %v9642 = vadd.f32 %v9640, %v9641
        %v9643 = vsel %vm2680, %v8690, 0.0
        %v9644 = vadd.f32 %v9642, %v9643
        %v9645 = vsel %vm9606, %v8691, 0.0
        %v9646 = vadd.f32 %v9644, %v9645
        %v9647 = vrot.slane %v9646, 4
        %v9648 = vadd.f32 %v9646, %v9647
        %v9649 = vrot.slane %v9648, 2
        %v9650 = vadd.f32 %v9648, %v9649
        %v9651 = vrot.slane %v9650, 1
        %v9652 = vadd.f32 %v9650, %v9651
        %v9653 = vmul.f32 %v9652, 0.027777778
        %v9654 = vpack.c.bf16 %v9653, %v9653
        %v9655 = vld [vmem:[%s18] sm:$0xf]
        %v9657 = vsel %vm2680, %v9654, 0
        %v9660 = vsel %vm4497, %v9655, 0
        %9662 = vmatpush.bf16.msra.mxu0 0
        %9663 = vmatpush.bf16.msra.mxu0 0
        %9664 = vmatpush.bf16.msra.mxu0 0
        %9665 = vmatpush.bf16.msra.mxu0 0
        %9666 = vmatpush.bf16.msra.mxu0 0
        %9667 = vmatpush.bf16.msra.mxu0 0
        %9668 = vmatpush.bf16.msra.mxu0 0
        %9669 = vmatpush.bf16.msra.mxu0 %v9660
        %9670 = vmatmul.bf16.gmra.mxu0 %v9657
        %v9671 = vpop.f32.mrf.mxu0
        %v9672 = vadd.f32 0.0, %v9671
        %v9673 = vpop.f32.mrf.mxu0
        %9674 = vdwg.mxu0
        %v9675 = vadd.f32 %v9637, %v9672
        %v9676 = vsel %vm1193, %v9222, 0.0
        %v9677 = vsel %vm1193, %v9223, 0.0
        %v9678 = vadd.f32 %v9676, %v9677
        %v9679 = vsel %vm1193, %v9224, 0.0
        %v9680 = vadd.f32 %v9678, %v9679
        %v9681 = vsel %vm1193, %v9225, 0.0
        %v9682 = vadd.f32 %v9680, %v9681
        %vm9683 = vcmask 93184
        %v9684 = vsel %vm9683, %v9226, 0.0
        %v9685 = vadd.f32 %v9682, %v9684
        %v9686 = vrot.slane %v9685, 4
        %v9687 = vadd.f32 %v9685, %v9686
        %v9688 = vrot.slane %v9687, 2
        %v9689 = vadd.f32 %v9687, %v9688
        %v9690 = vrot.slane %v9689, 1
        %v9691 = vadd.f32 %v9689, %v9690
        %v9692 = vmul.f32 %v9691, 0.027777778
        %v9693 = vpack.c.bf16 %v9692, %v9692
        %v9694 = vld [vmem:[%s19] sm:$0xf]
        %v9695 = vld [vmem:[%s19 + $0x4] sm:$0x3]
        %v9698 = vunpack.c.l.b16 %v9694
        %v9699 = vunpack.c.l.b16 %v9695
        %v9700 = vpack.c.b16 %v9699, %v9698
        %v9702 = vsel %vm1193, %v9693, 0
        %v9705 = vsel %vm9195, %v9700, 0
        %9707 = vmatpush.bf16.msra.mxu0 0
        %9708 = vmatpush.bf16.msra.mxu0 0
        %9709 = vmatpush.bf16.msra.mxu0 0
        %9710 = vmatpush.bf16.msra.mxu0 0
        %9711 = vmatpush.bf16.msra.mxu0 0
        %9712 = vmatpush.bf16.msra.mxu0 0
        %9713 = vmatpush.bf16.msra.mxu0 0
        %9714 = vmatpush.bf16.msra.mxu0 %v9705
        %9715 = vmatmul.bf16.gmra.mxu0 %v9702
        %v9716 = vpop.f32.mrf.mxu0
        %v9717 = vadd.f32 0.0, %v9716
        %v9718 = vpop.f32.mrf.mxu0
        %9719 = vdwg.mxu0
        %v9720 = vadd.f32 %v9675, %v9717
        %v9721 = vsel %vm2680, %v9593, 0.0
        %v9722 = vsel %vm2680, %v9594, 0.0
        %v9723 = vadd.f32 %v9721, %v9722
        %v9724 = vsel %vm2680, %v9595, 0.0
        %v9725 = vadd.f32 %v9723, %v9724
        %v9726 = vsel %vm2680, %v9596, 0.0
        %v9727 = vadd.f32 %v9725, %v9726
        %v9728 = vsel %vm9606, %v9597, 0.0
        %v9729 = vadd.f32 %v9727, %v9728
        %v9730 = vrot.slane %v9729, 4
        %v9731 = vadd.f32 %v9729, %v9730
        %v9732 = vrot.slane %v9731, 2
        %v9733 = vadd.f32 %v9731, %v9732
        %v9734 = vrot.slane %v9733, 1
        %v9735 = vadd.f32 %v9733, %v9734
        %v9736 = vmul.f32 %v9735, 0.027777778
        %v9737 = vpack.c.bf16 %v9736, %v9736
        %v9738 = vld [vmem:[%s20] sm:$0xf]
        %v9740 = vsel %vm2680, %v9737, 0
        %v9743 = vsel %vm4497, %v9738, 0
        %9745 = vmatpush.bf16.msra.mxu0 0
        %9746 = vmatpush.bf16.msra.mxu0 0
        %9747 = vmatpush.bf16.msra.mxu0 0
        %9748 = vmatpush.bf16.msra.mxu0 0
        %9749 = vmatpush.bf16.msra.mxu0 0
        %9750 = vmatpush.bf16.msra.mxu0 0
        %9751 = vmatpush.bf16.msra.mxu0 0
        %9752 = vmatpush.bf16.msra.mxu0 %v9743
        %9753 = vmatmul.bf16.gmra.mxu0 %v9740
        %v9754 = vpop.f32.mrf.mxu0
        %v9755 = vadd.f32 0.0, %v9754
        %v9756 = vpop.f32.mrf.mxu0
        %9757 = vdwg.mxu0
        %v9758 = vadd.f32 %v9720, %v9755
        %vm9759 = vcmask 57344
        %9760 = vst.msk [vmem:[%s675] sm:$0x1] %vm9759, %v9758
        %s9761 = sand.u32 %s511, 1
        %s9762 = scalar_lea.sflag [#allocation9], %s9761
        %s9763 = sand.u32 %s511, 1
        %s9764 = scalar_lea.vmem [#allocation8], %s9763
        // Predicated region
        $region109: #{modified_inception_forward.1} parent=107 // pred_check
          %p9765 = pneg %p521
        $region110: #{modified_inception_forward.1} parent=107 // pred_check_branch
          %9767 = sbr.rel (%p9765) target = $region112
        $region111: #{modified_inception_forward.1} parent=107 // pred_region
          %9769 = vsyncadd %s9762, 0
          %s9770 = scalar_lea.hbm %s22, %s36
          %s9772 = sshll.u32 %s9764, 4
          %s9773 = int_to_ptr.vmem [resolvable:$true] %s9772
          %s9774 = sshll.u32 %s9770, 4
          %s9775 = int_to_ptr.hbm [resolvable:$true] %s9774
          %9777 = dma.vmem_to_hbm [thread:$0]  %s9773, 16, %s9775, %s9762
        $region112: #{modified_inception_forward.1} parent=107 // pred_fallthru
          _
      $region108: #{modified_inception_forward.1} parent=5 // pred_fallthru
        _
      %p9778 = scmp.le.s32.totalorder 2, %s31
      // Predicated region
      $region113: #{modified_inception_forward.1} parent=5 // pred_check
        %p9779 = pneg %p9778
      $region114: #{modified_inception_forward.1} parent=5 // pred_check_branch
        %9781 = sbr.rel (%p9779) target = $region116
      $region115: #{modified_inception_forward.1} parent=5 // pred_region
        %s9782 = ssub.s32 %s31, 2
        // Predicated region
        $region117: #{modified_inception_forward.1} parent=115 // pred_check
          %p9783 = pneg %p527
        $region118: #{modified_inception_forward.1} parent=115 // pred_check_branch
          %9785 = sbr.rel (%p9783) target = $region120
        $region119: #{modified_inception_forward.1} parent=115 // pred_region
          %s9786 = sand.u32 %s512, 1
          %s9787 = scalar_lea.sflag [#allocation9], %s9786
          %s9788 = sand.u32 %s512, 1
          %s9789 = scalar_lea.vmem [#allocation8], %s9788
          %9791 = dma.done %s9787, 16
        $region120: #{modified_inception_forward.1} parent=115 // pred_fallthru
          _
      $region116: #{modified_inception_forward.1} parent=5 // pred_fallthru
        _
    $region6: #{modified_inception_forward.1} parent=1 // loop_footer
      %s35 = sadd.s32 1, %s31
    $region7: #{modified_inception_forward.1} parent=1 // loop_footer_branch
      %30 = sbr.rel target = $region3
    $region8: #{modified_inception_forward.1} parent=1 // loop_exit
      _
    %9792 = vsyncpa [#allocation9], 1
    %s9793 = scalar_lea.sflag [#allocation9], 1
    %9794 = vsyncpa %s9793, 1

</llo_original>
